<compile_context>
chip_gen: v7x
topology: tpu7x:2x2x1
jax: 0.10.0
libtpu: 0.0.40
codegen_flags: <defaults>
</compile_context>

<pallas_src>
import functools

import jax
import jax.numpy as jnp
from jax.experimental import pallas as pl
from jax.experimental.pallas import tpu as pltpu

LANE = 128  # TPU lane width; channel dims are padded to a multiple of this.


def _round_up(v, m):
    return (v + m - 1) // m * m


def _next_pow2(v):
    return 1 << max(0, (int(v) - 1).bit_length())


# --------------------------------------------------------------------------
# Fused 5-block encoder kernel
# --------------------------------------------------------------------------
def encoder_fused_kernel(x_ref, wc_ref, p_ref, o_ref, w_vmem, *, neg_slope):
    """Fused [Conv3x3(valid) + bias + LeakyReLU + BatchNorm(eval)] x L.

    x_ref : (Bblk, H, Wpad, Cpad)          bf16  (channel/width padded input)
    wc_ref: (L, 3, 3*cin_p, Cpad)          bf16  compact im2col weights,
                                                 layout [kw, kh*cin_p + cin]
    p_ref : (L, 3, 1, Cpad)                f32   rows = (bias, bn_scale, bn_shift)
    o_ref : (Bblk, H-2L, Wpad, Cpad)       f32   (valid window is [:H-2L,:W-2L])
    w_vmem: (L, 3, 3*Cpad, Cpad)           bf16  persistent expanded weights
    """
    num_layers = wc_ref.shape[0]
    cin_p = wc_ref.shape[2] // 3
    cp = x_ref.shape[-1]
    wpx = x_ref.shape[2]
    bb = x_ref.shape[0]
    reps = cp // cin_p

    # One-time (per TensorCore) expansion of the compact weights into the
    # tap-padded MXU operand, kept resident in VMEM scratch.  Replicating the
    # cin rows (instead of zero-filling) writes every scratch row exactly once
    # and is correct because those rows only ever multiply activation lanes
    # that are exactly zero.
    @pl.when(pl.program_id(1) == 0)
    def _expand_weights():
        for l in range(num_layers):
            for kw in range(3):
                for kh in range(3):
                    blk = wc_ref[l, kw, kh * cin_p:(kh + 1) * cin_p, :]
                    w_vmem[l, kw, kh * cp:(kh + 1) * cp, :] = jnp.tile(
                        blk, (reps, 1))

    x = x_ref[...]                                    # (bb, H, Wpad, Cpad) bf16

    for l in range(num_layers):                       # fully unrolled (L = 5)
        ho = x.shape[1] - 2
        m = bb * ho * wpx

        # kh taps: major-axis slices + one lane-aligned concat + one
        # layout-preserving reshape (wpx is a multiple of the bf16 sublane
        # tile) -> no sublane relayout, all in bf16.
        patch = jnp.concatenate(
            [x[:, kh:kh + ho, :, :] for kh in range(3)], axis=-1
        ).reshape(m, 3 * cp)                          # (m, 3*Cpad) bf16

        # One MXU matmul per kw (bf16 operands, f32 accumulation).
        ys = []
        for kw in range(3):
            ykw = jnp.dot(patch, w_vmem[l, kw],
                          preferred_element_type=jnp.float32)
            ys.append(ykw.reshape(bb, ho, wpx, cp))   # f32

        # Realign the kw taps with cheap XLU sublane rolls on the f32 results;
        # wrapped-in values only land in the dead right-edge columns that a
        # valid conv never reads.
        y = (ys[0]
             + pltpu.roll(ys[1], shift=wpx - 1, axis=2)
             + pltpu.roll(ys[2], shift=wpx - 2, axis=2))

        # f32 epilogue: conv bias + LeakyReLU(0.2) + folded eval BatchNorm.
        y = y + p_ref[l, 0]                           # bias        (1, Cpad)
        y = jnp.maximum(y, neg_slope * y)             # LeakyReLU (0<slope<1)
        y = y * p_ref[l, 1] + p_ref[l, 2]             # BN scale/shift
        # Dropout(0.3) is identity in eval mode.
        # TODO(synk): train-mode Dropout/BatchNorm would need pltpu.prng_*
        # bits and batch-statistics reductions; PyTorch's RNG stream cannot be
        # reproduced.

        if l + 1 < num_layers:
            x = y.astype(jnp.bfloat16)                # bf16 hand-off
        else:
            o_ref[...] = y                            # lane-dense f32 output


def encoder_pallas(x_pad, wc, prm, *, core_split=2, batch_block=1,
                   neg_slope=0.2):
    """x_pad: (N, H, Wpad, Cpad) bf16. Returns (N, H-2L, Wpad, Cpad) f32."""
    n, h, wpx, cpad = x_pad.shape
    num_layers = wc.shape[0]
    ho = h - 2 * num_layers

    assert n % batch_block == 0, (n, batch_block)
    n_blocks = n // batch_block
    core_split = max(1, min(core_split, n_blocks))
    while n_blocks % core_split:
        core_split -= 1
    steps = n_blocks // core_split

    kern = functools.partial(encoder_fused_kernel, neg_slope=neg_slope)

    return pl.pallas_call(
        kern,
        out_shape=jax.ShapeDtypeStruct((n, ho, wpx, cpad), jnp.float32),
        grid_spec=pltpu.PrefetchScalarGridSpec(
            num_scalar_prefetch=0,
            grid=(core_split, steps),
            in_specs=[
                pl.BlockSpec((batch_block, h, wpx, cpad),
                             lambda c, s: (c * steps + s, 0, 0, 0)),
                # Compact params: constant block index -> fetched once.
                pl.BlockSpec(wc.shape, lambda c, s: (0, 0, 0, 0)),
                pl.BlockSpec(prm.shape, lambda c, s: (0, 0, 0, 0)),
            ],
            out_specs=pl.BlockSpec((batch_block, ho, wpx, cpad),
                                   lambda c, s: (c * steps + s, 0, 0, 0)),
            scratch_shapes=[
                pltpu.VMEM((num_layers, 3, 3 * cpad, cpad), jnp.bfloat16)],
        ),
        compiler_params=pltpu.CompilerParams(
            # Batch split stays on the parallel axis (2 TCs on v7x); the
            # per-core step axis is arbitrary.  VMEM use (<4 MiB) is far
            # below every generation's scoped default, so no vmem_limit.
            dimension_semantics=("parallel", "arbitrary")),
    )(x_pad, wc, prm)


# --------------------------------------------------------------------------
# Parameter construction / packing
# --------------------------------------------------------------------------
def init_encoder_params(key, input_channels, feature_maps):
    """Deterministic synthetic parameters for the 5 conv+BN blocks (HWIO)."""
    chans = [input_channels] + [feature_maps * (2 ** i) for i in range(5)]
    eps = 1e-5
    params = []
    for li in range(5):
        cin, cout = chans[li], chans[li + 1]
        key, k_w, k_b, k_g, k_be, k_m, k_v = jax.random.split(key, 7)
        w = jax.random.normal(k_w, (3, 3, cin, cout), jnp.float32) * 0.1
        b = jax.random.normal(k_b, (cout,), jnp.float32) * 0.05
        gamma = 1.0 + 0.1 * jax.random.normal(k_g, (cout,), jnp.float32)
        beta = 0.05 * jax.random.normal(k_be, (cout,), jnp.float32)
        running_mean = 0.05 * jax.random.normal(k_m, (cout,), jnp.float32)
        running_var = 1.0 + 0.1 * jax.random.uniform(k_v, (cout,), jnp.float32)
        scale = gamma / jnp.sqrt(running_var + eps)
        shift = beta - running_mean * scale
        params.append(dict(w=w, b=b, scale=scale, shift=shift))
    return params


def pack_params(params):
    """Compact, stacked parameter packing.

    Weights: (L, 3, 3*cin_p, Cpad) bf16, element [l, kw, kh*cin_p + ci, co] =
    W_l[kh, kw, ci, co]; cin padded only to cin_p (power of two >= 16 dividing
    128), cout zero-padded to the lane width.  BN/bias: (L, 3, 1, Cpad) f32.
    """
    cins = [p["w"].shape[2] for p in params]
    couts = [p["w"].shape[3] for p in params]
    cpad = _round_up(max(cins + couts), LANE)
    cin_p = max(16, _next_pow2(max(cins)))
    if cin_p > cpad or cpad % cin_p:
        cin_p = cpad                                   # no-compaction fallback

    ws, ps = [], []
    for p in params:
        w = p["w"]
        cin, cout = w.shape[2], w.shape[3]
        wp = jnp.zeros((3, 3, cin_p, cpad), jnp.float32)
        wp = wp.at[:, :, :cin, :cout].set(w)           # (kh, kw, cin_p, cpad)
        wp = jnp.transpose(wp, (1, 0, 2, 3)).reshape(3, 3 * cin_p, cpad)
        ws.append(wp.astype(jnp.bfloat16))

        prm = jnp.zeros((3, 1, cpad), jnp.float32)
        prm = prm.at[0, 0, :cout].set(p["b"])
        prm = prm.at[1, 0, :cout].set(p["scale"])
        prm = prm.at[2, 0, :cout].set(p["shift"])
        ps.append(prm)
    return jnp.stack(ws), jnp.stack(ps), cpad, cin_p


# --------------------------------------------------------------------------
# End-to-end forward (NCHW in / NCHW out, like the PyTorch module)
# --------------------------------------------------------------------------
@functools.partial(jax.jit,
                   static_argnames=("out_channels", "core_split", "batch_block"))
def encoder_forward(x_nchw, wc, prm, *, out_channels, core_split=2,
                    batch_block=1):
    n, cin, h, w = x_nchw.shape
    num_layers = wc.shape[0]
    cpad = wc.shape[-1]
    wpx = _round_up(w, 16)                 # fixed, bf16-sublane-aligned width
    # NCHW (PyTorch) -> NHWC, zero-pad width/channels, bf16 activations in HBM.
    x = jnp.transpose(x_nchw, (0, 2, 3, 1)).astype(jnp.float32)
    x = jnp.pad(x, ((0, 0), (0, 0), (0, wpx - w), (0, cpad - cin)))
    x = x.astype(jnp.bfloat16)

    out_pad = encoder_pallas(x, wc, prm, core_split=core_split,
                             batch_block=batch_block)
    ho, wo = h - 2 * num_layers, w - 2 * num_layers
    out = out_pad[:, :ho, :wo, :out_channels]   # drop garbage cols + pad chans
    return jnp.transpose(out, (0, 3, 1, 2))     # NHWC -> NCHW


def _reference_forward(x_nchw, params, *, neg_slope=0.2):
    """Plain-JAX reference with the same mixed precision as the kernel:
    bf16 conv operands, f32 accumulation, f32 epilogue."""
    x = jnp.transpose(x_nchw, (0, 2, 3, 1)).astype(jnp.float32)
    dn = ("NHWC", "HWIO", "NHWC")
    for p in params:
        y = jax.lax.conv_general_dilated(
            x.astype(jnp.bfloat16), p["w"].astype(jnp.bfloat16), (1, 1),
            "VALID", dimension_numbers=dn,
            preferred_element_type=jnp.float32)
        y = y + p["b"]
        y = jnp.where(y > 0, y, neg_slope * y)
        y = y * p["scale"] + p["shift"]
        x = y
    return jnp.transpose(x, (0, 3, 1, 2))


if __name__ == "__main__":
    batch, input_channels, feature_maps, spatial = 2, 4, 4, 16

    key = jax.random.PRNGKey(0)
    kx, kp = jax.random.split(key)
    x = jax.random.normal(kx, (batch, input_channels, spatial, spatial),
                          jnp.float32)
    params = init_encoder_params(kp, input_channels, feature_maps)
    wc, prm, _cpad, _cin_p = pack_params(params)

    out_channels = feature_maps * 16
    out = encoder_forward(x, wc, prm, out_channels=out_channels,
                          core_split=2, batch_block=1)
    out = jax.block_until_ready(out)

    expected_shape = (batch, out_channels, spatial - 10, spatial - 10)
    assert out.shape == expected_shape, (out.shape, expected_shape)

    ref = _reference_forward(x, params)
    max_err = float(jnp.max(jnp.abs(out - ref)))
    # Both paths use bf16 conv operands with f32 accumulation and the same
    # per-layer bf16 activation rounding; residual diff is order-of-summation
    # noise only.
    assert jnp.allclose(out, ref, atol=5e-3, rtol=5e-3), max_err

    print("KERNEL_OK")
</pallas_src>

<mosaic_0001>
module attributes {stable_mosaic.version = 11 : i64} {
  func.func @encoder_fused_kernel(%arg0: i32, %arg1: i32, %arg2: memref<1x16x16x128xbf16, #tpu.memory_space<vmem>>, %arg3: memref<5x3x96x128xbf16, #tpu.memory_space<vmem>>, %arg4: memref<5x3x1x128xf32, #tpu.memory_space<vmem>>, %arg5: memref<1x6x16x128xf32, #tpu.memory_space<vmem>>, %arg6: memref<5x3x384x128xbf16, #tpu.memory_space<vmem>>) attributes {dimension_semantics = [#tpu.dimension_semantics<parallel>, #tpu.dimension_semantics<arbitrary>], iteration_bounds = array<i64: 2, 1>, scalar_prefetch = 0 : i64, scratch_operands = 1 : i64, tpu.core_type = #tpu.core_type<tc>, window_params = [{transform_indices = @transform_0, window_bounds = array<i64: 1, 16, 16, 128>}, {pipeline_mode = #tpu.pipeline_mode<synchronous>, transform_indices = @transform_1, window_bounds = array<i64: 5, 3, 96, 128>}, {pipeline_mode = #tpu.pipeline_mode<synchronous>, transform_indices = @transform_2, window_bounds = array<i64: 5, 3, 1, 128>}, {transform_indices = @transform_3, window_bounds = array<i64: 1, 6, 16, 128>}]} {
    %c0_i32 = arith.constant 0 : i32
    %0 = arith.cmpi eq, %arg1, %c0_i32 : i32
    %1 = arith.extui %0 : i1 to i32
    %c0_i32_0 = arith.constant 0 : i32
    %2 = arith.cmpi ne, %1, %c0_i32_0 : i32
    scf.if %2 {
      %c0_151 = arith.constant 0 : index
      %c0_152 = arith.constant 0 : index
      %c0_153 = arith.constant 0 : index
      %c0_154 = arith.constant 0 : index
      %204 = vector.load %arg3[%c0_151, %c0_152, %c0_153, %c0_154] : memref<5x3x96x128xbf16, #tpu.memory_space<vmem>>, vector<1x1x32x128xbf16>
      %205 = vector.shape_cast %204 : vector<1x1x32x128xbf16> to vector<32x128xbf16>
      %206 = tpu.concatenate %205, %205, %205, %205 in 0 : vector<32x128xbf16>, vector<32x128xbf16>, vector<32x128xbf16>, vector<32x128xbf16> -> vector<128x128xbf16>
      %c0_155 = arith.constant 0 : index
      %c0_156 = arith.constant 0 : index
      %c0_157 = arith.constant 0 : index
      %c0_158 = arith.constant 0 : index
      %207 = vector.load %arg6[%c0_155, %c0_156, %c0_157, %c0_158] : memref<5x3x384x128xbf16, #tpu.memory_space<vmem>>, vector<1x1x128x128xbf16>
      %208 = vector.shape_cast %207 : vector<1x1x128x128xbf16> to vector<128x128xbf16>
      %209 = vector.shape_cast %206 : vector<128x128xbf16> to vector<1x1x128x128xbf16>
      tpu.vector_store %arg6[%c0_155, %c0_156, %c0_157, %c0_158], %209 {strides = array<i32>} : memref<5x3x384x128xbf16, #tpu.memory_space<vmem>>, vector<1x1x128x128xbf16>,
      %c0_159 = arith.constant 0 : index
      %c0_160 = arith.constant 0 : index
      %c32 = arith.constant 32 : index
      %c0_161 = arith.constant 0 : index
      %210 = vector.load %arg3[%c0_159, %c0_160, %c32, %c0_161] : memref<5x3x96x128xbf16, #tpu.memory_space<vmem>>, vector<1x1x32x128xbf16>
      %211 = vector.shape_cast %210 : vector<1x1x32x128xbf16> to vector<32x128xbf16>
      %212 = tpu.concatenate %211, %211, %211, %211 in 0 : vector<32x128xbf16>, vector<32x128xbf16>, vector<32x128xbf16>, vector<32x128xbf16> -> vector<128x128xbf16>
      %c0_162 = arith.constant 0 : index
      %c0_163 = arith.constant 0 : index
      %c128 = arith.constant 128 : index
      %c0_164 = arith.constant 0 : index
      %213 = vector.load %arg6[%c0_162, %c0_163, %c128, %c0_164] : memref<5x3x384x128xbf16, #tpu.memory_space<vmem>>, vector<1x1x128x128xbf16>
      %214 = vector.shape_cast %213 : vector<1x1x128x128xbf16> to vector<128x128xbf16>
      %215 = vector.shape_cast %212 : vector<128x128xbf16> to vector<1x1x128x128xbf16>
      tpu.vector_store %arg6[%c0_162, %c0_163, %c128, %c0_164], %215 {strides = array<i32>} : memref<5x3x384x128xbf16, #tpu.memory_space<vmem>>, vector<1x1x128x128xbf16>,
      %c0_165 = arith.constant 0 : index
      %c0_166 = arith.constant 0 : index
      %c64 = arith.constant 64 : index
      %c0_167 = arith.constant 0 : index
      %216 = vector.load %arg3[%c0_165, %c0_166, %c64, %c0_167] : memref<5x3x96x128xbf16, #tpu.memory_space<vmem>>, vector<1x1x32x128xbf16>
      %217 = vector.shape_cast %216 : vector<1x1x32x128xbf16> to vector<32x128xbf16>
      %218 = tpu.concatenate %217, %217, %217, %217 in 0 : vector<32x128xbf16>, vector<32x128xbf16>, vector<32x128xbf16>, vector<32x128xbf16> -> vector<128x128xbf16>
      %c0_168 = arith.constant 0 : index
      %c0_169 = arith.constant 0 : index
      %c256 = arith.constant 256 : index
      %c0_170 = arith.constant 0 : index
      %219 = vector.load %arg6[%c0_168, %c0_169, %c256, %c0_170] : memref<5x3x384x128xbf16, #tpu.memory_space<vmem>>, vector<1x1x128x128xbf16>
      %220 = vector.shape_cast %219 : vector<1x1x128x128xbf16> to vector<128x128xbf16>
      %221 = vector.shape_cast %218 : vector<128x128xbf16> to vector<1x1x128x128xbf16>
      tpu.vector_store %arg6[%c0_168, %c0_169, %c256, %c0_170], %221 {strides = array<i32>} : memref<5x3x384x128xbf16, #tpu.memory_space<vmem>>, vector<1x1x128x128xbf16>,
      %c0_171 = arith.constant 0 : index
      %c1_172 = arith.constant 1 : index
      %c0_173 = arith.constant 0 : index
      %c0_174 = arith.constant 0 : index
      %222 = vector.load %arg3[%c0_171, %c1_172, %c0_173, %c0_174] : memref<5x3x96x128xbf16, #tpu.memory_space<vmem>>, vector<1x1x32x128xbf16>
      %223 = vector.shape_cast %222 : vector<1x1x32x128xbf16> to vector<32x128xbf16>
      %224 = tpu.concatenate %223, %223, %223, %223 in 0 : vector<32x128xbf16>, vector<32x128xbf16>, vector<32x128xbf16>, vector<32x128xbf16> -> vector<128x128xbf16>
      %c0_175 = arith.constant 0 : index
      %c1_176 = arith.constant 1 : index
      %c0_177 = arith.constant 0 : index
      %c0_178 = arith.constant 0 : index
      %225 = vector.load %arg6[%c0_175, %c1_176, %c0_177, %c0_178] : memref<5x3x384x128xbf16, #tpu.memory_space<vmem>>, vector<1x1x128x128xbf16>
      %226 = vector.shape_cast %225 : vector<1x1x128x128xbf16> to vector<128x128xbf16>
      %227 = vector.shape_cast %224 : vector<128x128xbf16> to vector<1x1x128x128xbf16>
      tpu.vector_store %arg6[%c0_175, %c1_176, %c0_177, %c0_178], %227 {strides = array<i32>} : memref<5x3x384x128xbf16, #tpu.memory_space<vmem>>, vector<1x1x128x128xbf16>,
      %c0_179 = arith.constant 0 : index
      %c1_180 = arith.constant 1 : index
      %c32_181 = arith.constant 32 : index
      %c0_182 = arith.constant 0 : index
      %228 = vector.load %arg3[%c0_179, %c1_180, %c32_181, %c0_182] : memref<5x3x96x128xbf16, #tpu.memory_space<vmem>>, vector<1x1x32x128xbf16>
      %229 = vector.shape_cast %228 : vector<1x1x32x128xbf16> to vector<32x128xbf16>
      %230 = tpu.concatenate %229, %229, %229, %229 in 0 : vector<32x128xbf16>, vector<32x128xbf16>, vector<32x128xbf16>, vector<32x128xbf16> -> vector<128x128xbf16>
      %c0_183 = arith.constant 0 : index
      %c1_184 = arith.constant 1 : index
      %c128_185 = arith.constant 128 : index
      %c0_186 = arith.constant 0 : index
      %231 = vector.load %arg6[%c0_183, %c1_184, %c128_185, %c0_186] : memref<5x3x384x128xbf16, #tpu.memory_space<vmem>>, vector<1x1x128x128xbf16>
      %232 = vector.shape_cast %231 : vector<1x1x128x128xbf16> to vector<128x128xbf16>
      %233 = vector.shape_cast %230 : vector<128x128xbf16> to vector<1x1x128x128xbf16>
      tpu.vector_store %arg6[%c0_183, %c1_184, %c128_185, %c0_186], %233 {strides = array<i32>} : memref<5x3x384x128xbf16, #tpu.memory_space<vmem>>, vector<1x1x128x128xbf16>,
      %c0_187 = arith.constant 0 : index
      %c1_188 = arith.constant 1 : index
      %c64_189 = arith.constant 64 : index
      %c0_190 = arith.constant 0 : index
      %234 = vector.load %arg3[%c0_187, %c1_188, %c64_189, %c0_190] : memref<5x3x96x128xbf16, #tpu.memory_space<vmem>>, vector<1x1x32x128xbf16>
      %235 = vector.shape_cast %234 : vector<1x1x32x128xbf16> to vector<32x128xbf16>
      %236 = tpu.concatenate %235, %235, %235, %235 in 0 : vector<32x128xbf16>, vector<32x128xbf16>, vector<32x128xbf16>, vector<32x128xbf16> -> vector<128x128xbf16>
      %c0_191 = arith.constant 0 : index
      %c1_192 = arith.constant 1 : index
      %c256_193 = arith.constant 256 : index
      %c0_194 = arith.constant 0 : index
      %237 = vector.load %arg6[%c0_191, %c1_192, %c256_193, %c0_194] : memref<5x3x384x128xbf16, #tpu.memory_space<vmem>>, vector<1x1x128x128xbf16>
      %238 = vector.shape_cast %237 : vector<1x1x128x128xbf16> to vector<128x128xbf16>
      %239 = vector.shape_cast %236 : vector<128x128xbf16> to vector<1x1x128x128xbf16>
      tpu.vector_store %arg6[%c0_191, %c1_192, %c256_193, %c0_194], %239 {strides = array<i32>} : memref<5x3x384x128xbf16, #tpu.memory_space<vmem>>, vector<1x1x128x128xbf16>,
      %c0_195 = arith.constant 0 : index
      %c2_196 = arith.constant 2 : index
      %c0_197 = arith.constant 0 : index
      %c0_198 = arith.constant 0 : index
      %240 = vector.load %arg3[%c0_195, %c2_196, %c0_197, %c0_198] : memref<5x3x96x128xbf16, #tpu.memory_space<vmem>>, vector<1x1x32x128xbf16>
      %241 = vector.shape_cast %240 : vector<1x1x32x128xbf16> to vector<32x128xbf16>
      %242 = tpu.concatenate %241, %241, %241, %241 in 0 : vector<32x128xbf16>, vector<32x128xbf16>, vector<32x128xbf16>, vector<32x128xbf16> -> vector<128x128xbf16>
      %c0_199 = arith.constant 0 : index
      %c2_200 = arith.constant 2 : index
      %c0_201 = arith.constant 0 : index
      %c0_202 = arith.constant 0 : index
      %243 = vector.load %arg6[%c0_199, %c2_200, %c0_201, %c0_202] : memref<5x3x384x128xbf16, #tpu.memory_space<vmem>>, vector<1x1x128x128xbf16>
      %244 = vector.shape_cast %243 : vector<1x1x128x128xbf16> to vector<128x128xbf16>
      %245 = vector.shape_cast %242 : vector<128x128xbf16> to vector<1x1x128x128xbf16>
      tpu.vector_store %arg6[%c0_199, %c2_200, %c0_201, %c0_202], %245 {strides = array<i32>} : memref<5x3x384x128xbf16, #tpu.memory_space<vmem>>, vector<1x1x128x128xbf16>,
      %c0_203 = arith.constant 0 : index
      %c2_204 = arith.constant 2 : index
      %c32_205 = arith.constant 32 : index
      %c0_206 = arith.constant 0 : index
      %246 = vector.load %arg3[%c0_203, %c2_204, %c32_205, %c0_206] : memref<5x3x96x128xbf16, #tpu.memory_space<vmem>>, vector<1x1x32x128xbf16>
      %247 = vector.shape_cast %246 : vector<1x1x32x128xbf16> to vector<32x128xbf16>
      %248 = tpu.concatenate %247, %247, %247, %247 in 0 : vector<32x128xbf16>, vector<32x128xbf16>, vector<32x128xbf16>, vector<32x128xbf16> -> vector<128x128xbf16>
      %c0_207 = arith.constant 0 : index
      %c2_208 = arith.constant 2 : index
      %c128_209 = arith.constant 128 : index
      %c0_210 = arith.constant 0 : index
      %249 = vector.load %arg6[%c0_207, %c2_208, %c128_209, %c0_210] : memref<5x3x384x128xbf16, #tpu.memory_space<vmem>>, vector<1x1x128x128xbf16>
      %250 = vector.shape_cast %249 : vector<1x1x128x128xbf16> to vector<128x128xbf16>
      %251 = vector.shape_cast %248 : vector<128x128xbf16> to vector<1x1x128x128xbf16>
      tpu.vector_store %arg6[%c0_207, %c2_208, %c128_209, %c0_210], %251 {strides = array<i32>} : memref<5x3x384x128xbf16, #tpu.memory_space<vmem>>, vector<1x1x128x128xbf16>,
      %c0_211 = arith.constant 0 : index
      %c2_212 = arith.constant 2 : index
      %c64_213 = arith.constant 64 : index
      %c0_214 = arith.constant 0 : index
      %252 = vector.load %arg3[%c0_211, %c2_212, %c64_213, %c0_214] : memref<5x3x96x128xbf16, #tpu.memory_space<vmem>>, vector<1x1x32x128xbf16>
      %253 = vector.shape_cast %252 : vector<1x1x32x128xbf16> to vector<32x128xbf16>
      %254 = tpu.concatenate %253, %253, %253, %253 in 0 : vector<32x128xbf16>, vector<32x128xbf16>, vector<32x128xbf16>, vector<32x128xbf16> -> vector<128x128xbf16>
      %c0_215 = arith.constant 0 : index
      %c2_216 = arith.constant 2 : index
      %c256_217 = arith.constant 256 : index
      %c0_218 = arith.constant 0 : index
      %255 = vector.load %arg6[%c0_215, %c2_216, %c256_217, %c0_218] : memref<5x3x384x128xbf16, #tpu.memory_space<vmem>>, vector<1x1x128x128xbf16>
      %256 = vector.shape_cast %255 : vector<1x1x128x128xbf16> to vector<128x128xbf16>
      %257 = vector.shape_cast %254 : vector<128x128xbf16> to vector<1x1x128x128xbf16>
      tpu.vector_store %arg6[%c0_215, %c2_216, %c256_217, %c0_218], %257 {strides = array<i32>} : memref<5x3x384x128xbf16, #tpu.memory_space<vmem>>, vector<1x1x128x128xbf16>,
      %c1_219 = arith.constant 1 : index
      %c0_220 = arith.constant 0 : index
      %c0_221 = arith.constant 0 : index
      %c0_222 = arith.constant 0 : index
      %258 = vector.load %arg3[%c1_219, %c0_220, %c0_221, %c0_222] : memref<5x3x96x128xbf16, #tpu.memory_space<vmem>>, vector<1x1x32x128xbf16>
      %259 = vector.shape_cast %258 : vector<1x1x32x128xbf16> to vector<32x128xbf16>
      %260 = tpu.concatenate %259, %259, %259, %259 in 0 : vector<32x128xbf16>, vector<32x128xbf16>, vector<32x128xbf16>, vector<32x128xbf16> -> vector<128x128xbf16>
      %c1_223 = arith.constant 1 : index
      %c0_224 = arith.constant 0 : index
      %c0_225 = arith.constant 0 : index
      %c0_226 = arith.constant 0 : index
      %261 = vector.load %arg6[%c1_223, %c0_224, %c0_225, %c0_226] : memref<5x3x384x128xbf16, #tpu.memory_space<vmem>>, vector<1x1x128x128xbf16>
      %262 = vector.shape_cast %261 : vector<1x1x128x128xbf16> to vector<128x128xbf16>
      %263 = vector.shape_cast %260 : vector<128x128xbf16> to vector<1x1x128x128xbf16>
      tpu.vector_store %arg6[%c1_223, %c0_224, %c0_225, %c0_226], %263 {strides = array<i32>} : memref<5x3x384x128xbf16, #tpu.memory_space<vmem>>, vector<1x1x128x128xbf16>,
      %c1_227 = arith.constant 1 : index
      %c0_228 = arith.constant 0 : index
      %c32_229 = arith.constant 32 : index
      %c0_230 = arith.constant 0 : index
      %264 = vector.load %arg3[%c1_227, %c0_228, %c32_229, %c0_230] : memref<5x3x96x128xbf16, #tpu.memory_space<vmem>>, vector<1x1x32x128xbf16>
      %265 = vector.shape_cast %264 : vector<1x1x32x128xbf16> to vector<32x128xbf16>
      %266 = tpu.concatenate %265, %265, %265, %265 in 0 : vector<32x128xbf16>, vector<32x128xbf16>, vector<32x128xbf16>, vector<32x128xbf16> -> vector<128x128xbf16>
      %c1_231 = arith.constant 1 : index
      %c0_232 = arith.constant 0 : index
      %c128_233 = arith.constant 128 : index
      %c0_234 = arith.constant 0 : index
      %267 = vector.load %arg6[%c1_231, %c0_232, %c128_233, %c0_234] : memref<5x3x384x128xbf16, #tpu.memory_space<vmem>>, vector<1x1x128x128xbf16>
      %268 = vector.shape_cast %267 : vector<1x1x128x128xbf16> to vector<128x128xbf16>
      %269 = vector.shape_cast %266 : vector<128x128xbf16> to vector<1x1x128x128xbf16>
      tpu.vector_store %arg6[%c1_231, %c0_232, %c128_233, %c0_234], %269 {strides = array<i32>} : memref<5x3x384x128xbf16, #tpu.memory_space<vmem>>, vector<1x1x128x128xbf16>,
      %c1_235 = arith.constant 1 : index
      %c0_236 = arith.constant 0 : index
      %c64_237 = arith.constant 64 : index
      %c0_238 = arith.constant 0 : index
      %270 = vector.load %arg3[%c1_235, %c0_236, %c64_237, %c0_238] : memref<5x3x96x128xbf16, #tpu.memory_space<vmem>>, vector<1x1x32x128xbf16>
      %271 = vector.shape_cast %270 : vector<1x1x32x128xbf16> to vector<32x128xbf16>
      %272 = tpu.concatenate %271, %271, %271, %271 in 0 : vector<32x128xbf16>, vector<32x128xbf16>, vector<32x128xbf16>, vector<32x128xbf16> -> vector<128x128xbf16>
      %c1_239 = arith.constant 1 : index
      %c0_240 = arith.constant 0 : index
      %c256_241 = arith.constant 256 : index
      %c0_242 = arith.constant 0 : index
      %273 = vector.load %arg6[%c1_239, %c0_240, %c256_241, %c0_242] : memref<5x3x384x128xbf16, #tpu.memory_space<vmem>>, vector<1x1x128x128xbf16>
      %274 = vector.shape_cast %273 : vector<1x1x128x128xbf16> to vector<128x128xbf16>
      %275 = vector.shape_cast %272 : vector<128x128xbf16> to vector<1x1x128x128xbf16>
      tpu.vector_store %arg6[%c1_239, %c0_240, %c256_241, %c0_242], %275 {strides = array<i32>} : memref<5x3x384x128xbf16, #tpu.memory_space<vmem>>, vector<1x1x128x128xbf16>,
      %c1_243 = arith.constant 1 : index
      %c1_244 = arith.constant 1 : index
      %c0_245 = arith.constant 0 : index
      %c0_246 = arith.constant 0 : index
      %276 = vector.load %arg3[%c1_243, %c1_244, %c0_245, %c0_246] : memref<5x3x96x128xbf16, #tpu.memory_space<vmem>>, vector<1x1x32x128xbf16>
      %277 = vector.shape_cast %276 : vector<1x1x32x128xbf16> to vector<32x128xbf16>
      %278 = tpu.concatenate %277, %277, %277, %277 in 0 : vector<32x128xbf16>, vector<32x128xbf16>, vector<32x128xbf16>, vector<32x128xbf16> -> vector<128x128xbf16>
      %c1_247 = arith.constant 1 : index
      %c1_248 = arith.constant 1 : index
      %c0_249 = arith.constant 0 : index
      %c0_250 = arith.constant 0 : index
      %279 = vector.load %arg6[%c1_247, %c1_248, %c0_249, %c0_250] : memref<5x3x384x128xbf16, #tpu.memory_space<vmem>>, vector<1x1x128x128xbf16>
      %280 = vector.shape_cast %279 : vector<1x1x128x128xbf16> to vector<128x128xbf16>
      %281 = vector.shape_cast %278 : vector<128x128xbf16> to vector<1x1x128x128xbf16>
      tpu.vector_store %arg6[%c1_247, %c1_248, %c0_249, %c0_250], %281 {strides = array<i32>} : memref<5x3x384x128xbf16, #tpu.memory_space<vmem>>, vector<1x1x128x128xbf16>,
      %c1_251 = arith.constant 1 : index
      %c1_252 = arith.constant 1 : index
      %c32_253 = arith.constant 32 : index
      %c0_254 = arith.constant 0 : index
      %282 = vector.load %arg3[%c1_251, %c1_252, %c32_253, %c0_254] : memref<5x3x96x128xbf16, #tpu.memory_space<vmem>>, vector<1x1x32x128xbf16>
      %283 = vector.shape_cast %282 : vector<1x1x32x128xbf16> to vector<32x128xbf16>
      %284 = tpu.concatenate %283, %283, %283, %283 in 0 : vector<32x128xbf16>, vector<32x128xbf16>, vector<32x128xbf16>, vector<32x128xbf16> -> vector<128x128xbf16>
      %c1_255 = arith.constant 1 : index
      %c1_256 = arith.constant 1 : index
      %c128_257 = arith.constant 128 : index
      %c0_258 = arith.constant 0 : index
      %285 = vector.load %arg6[%c1_255, %c1_256, %c128_257, %c0_258] : memref<5x3x384x128xbf16, #tpu.memory_space<vmem>>, vector<1x1x128x128xbf16>
      %286 = vector.shape_cast %285 : vector<1x1x128x128xbf16> to vector<128x128xbf16>
      %287 = vector.shape_cast %284 : vector<128x128xbf16> to vector<1x1x128x128xbf16>
      tpu.vector_store %arg6[%c1_255, %c1_256, %c128_257, %c0_258], %287 {strides = array<i32>} : memref<5x3x384x128xbf16, #tpu.memory_space<vmem>>, vector<1x1x128x128xbf16>,
      %c1_259 = arith.constant 1 : index
      %c1_260 = arith.constant 1 : index
      %c64_261 = arith.constant 64 : index
      %c0_262 = arith.constant 0 : index
      %288 = vector.load %arg3[%c1_259, %c1_260, %c64_261, %c0_262] : memref<5x3x96x128xbf16, #tpu.memory_space<vmem>>, vector<1x1x32x128xbf16>
      %289 = vector.shape_cast %288 : vector<1x1x32x128xbf16> to vector<32x128xbf16>
      %290 = tpu.concatenate %289, %289, %289, %289 in 0 : vector<32x128xbf16>, vector<32x128xbf16>, vector<32x128xbf16>, vector<32x128xbf16> -> vector<128x128xbf16>
      %c1_263 = arith.constant 1 : index
      %c1_264 = arith.constant 1 : index
      %c256_265 = arith.constant 256 : index
      %c0_266 = arith.constant 0 : index
      %291 = vector.load %arg6[%c1_263, %c1_264, %c256_265, %c0_266] : memref<5x3x384x128xbf16, #tpu.memory_space<vmem>>, vector<1x1x128x128xbf16>
      %292 = vector.shape_cast %291 : vector<1x1x128x128xbf16> to vector<128x128xbf16>
      %293 = vector.shape_cast %290 : vector<128x128xbf16> to vector<1x1x128x128xbf16>
      tpu.vector_store %arg6[%c1_263, %c1_264, %c256_265, %c0_266], %293 {strides = array<i32>} : memref<5x3x384x128xbf16, #tpu.memory_space<vmem>>, vector<1x1x128x128xbf16>,
      %c1_267 = arith.constant 1 : index
      %c2_268 = arith.constant 2 : index
      %c0_269 = arith.constant 0 : index
      %c0_270 = arith.constant 0 : index
      %294 = vector.load %arg3[%c1_267, %c2_268, %c0_269, %c0_270] : memref<5x3x96x128xbf16, #tpu.memory_space<vmem>>, vector<1x1x32x128xbf16>
      %295 = vector.shape_cast %294 : vector<1x1x32x128xbf16> to vector<32x128xbf16>
      %296 = tpu.concatenate %295, %295, %295, %295 in 0 : vector<32x128xbf16>, vector<32x128xbf16>, vector<32x128xbf16>, vector<32x128xbf16> -> vector<128x128xbf16>
      %c1_271 = arith.constant 1 : index
      %c2_272 = arith.constant 2 : index
      %c0_273 = arith.constant 0 : index
      %c0_274 = arith.constant 0 : index
      %297 = vector.load %arg6[%c1_271, %c2_272, %c0_273, %c0_274] : memref<5x3x384x128xbf16, #tpu.memory_space<vmem>>, vector<1x1x128x128xbf16>
      %298 = vector.shape_cast %297 : vector<1x1x128x128xbf16> to vector<128x128xbf16>
      %299 = vector.shape_cast %296 : vector<128x128xbf16> to vector<1x1x128x128xbf16>
      tpu.vector_store %arg6[%c1_271, %c2_272, %c0_273, %c0_274], %299 {strides = array<i32>} : memref<5x3x384x128xbf16, #tpu.memory_space<vmem>>, vector<1x1x128x128xbf16>,
      %c1_275 = arith.constant 1 : index
      %c2_276 = arith.constant 2 : index
      %c32_277 = arith.constant 32 : index
      %c0_278 = arith.constant 0 : index
      %300 = vector.load %arg3[%c1_275, %c2_276, %c32_277, %c0_278] : memref<5x3x96x128xbf16, #tpu.memory_space<vmem>>, vector<1x1x32x128xbf16>
      %301 = vector.shape_cast %300 : vector<1x1x32x128xbf16> to vector<32x128xbf16>
      %302 = tpu.concatenate %301, %301, %301, %301 in 0 : vector<32x128xbf16>, vector<32x128xbf16>, vector<32x128xbf16>, vector<32x128xbf16> -> vector<128x128xbf16>
      %c1_279 = arith.constant 1 : index
      %c2_280 = arith.constant 2 : index
      %c128_281 = arith.constant 128 : index
      %c0_282 = arith.constant 0 : index
      %303 = vector.load %arg6[%c1_279, %c2_280, %c128_281, %c0_282] : memref<5x3x384x128xbf16, #tpu.memory_space<vmem>>, vector<1x1x128x128xbf16>
      %304 = vector.shape_cast %303 : vector<1x1x128x128xbf16> to vector<128x128xbf16>
      %305 = vector.shape_cast %302 : vector<128x128xbf16> to vector<1x1x128x128xbf16>
      tpu.vector_store %arg6[%c1_279, %c2_280, %c128_281, %c0_282], %305 {strides = array<i32>} : memref<5x3x384x128xbf16, #tpu.memory_space<vmem>>, vector<1x1x128x128xbf16>,
      %c1_283 = arith.constant 1 : index
      %c2_284 = arith.constant 2 : index
      %c64_285 = arith.constant 64 : index
      %c0_286 = arith.constant 0 : index
      %306 = vector.load %arg3[%c1_283, %c2_284, %c64_285, %c0_286] : memref<5x3x96x128xbf16, #tpu.memory_space<vmem>>, vector<1x1x32x128xbf16>
      %307 = vector.shape_cast %306 : vector<1x1x32x128xbf16> to vector<32x128xbf16>
      %308 = tpu.concatenate %307, %307, %307, %307 in 0 : vector<32x128xbf16>, vector<32x128xbf16>, vector<32x128xbf16>, vector<32x128xbf16> -> vector<128x128xbf16>
      %c1_287 = arith.constant 1 : index
      %c2_288 = arith.constant 2 : index
      %c256_289 = arith.constant 256 : index
      %c0_290 = arith.constant 0 : index
      %309 = vector.load %arg6[%c1_287, %c2_288, %c256_289, %c0_290] : memref<5x3x384x128xbf16, #tpu.memory_space<vmem>>, vector<1x1x128x128xbf16>
      %310 = vector.shape_cast %309 : vector<1x1x128x128xbf16> to vector<128x128xbf16>
      %311 = vector.shape_cast %308 : vector<128x128xbf16> to vector<1x1x128x128xbf16>
      tpu.vector_store %arg6[%c1_287, %c2_288, %c256_289, %c0_290], %311 {strides = array<i32>} : memref<5x3x384x128xbf16, #tpu.memory_space<vmem>>, vector<1x1x128x128xbf16>,
      %c2_291 = arith.constant 2 : index
      %c0_292 = arith.constant 0 : index
      %c0_293 = arith.constant 0 : index
      %c0_294 = arith.constant 0 : index
      %312 = vector.load %arg3[%c2_291, %c0_292, %c0_293, %c0_294] : memref<5x3x96x128xbf16, #tpu.memory_space<vmem>>, vector<1x1x32x128xbf16>
      %313 = vector.shape_cast %312 : vector<1x1x32x128xbf16> to vector<32x128xbf16>
      %314 = tpu.concatenate %313, %313, %313, %313 in 0 : vector<32x128xbf16>, vector<32x128xbf16>, vector<32x128xbf16>, vector<32x128xbf16> -> vector<128x128xbf16>
      %c2_295 = arith.constant 2 : index
      %c0_296 = arith.constant 0 : index
      %c0_297 = arith.constant 0 : index
      %c0_298 = arith.constant 0 : index
      %315 = vector.load %arg6[%c2_295, %c0_296, %c0_297, %c0_298] : memref<5x3x384x128xbf16, #tpu.memory_space<vmem>>, vector<1x1x128x128xbf16>
      %316 = vector.shape_cast %315 : vector<1x1x128x128xbf16> to vector<128x128xbf16>
      %317 = vector.shape_cast %314 : vector<128x128xbf16> to vector<1x1x128x128xbf16>
      tpu.vector_store %arg6[%c2_295, %c0_296, %c0_297, %c0_298], %317 {strides = array<i32>} : memref<5x3x384x128xbf16, #tpu.memory_space<vmem>>, vector<1x1x128x128xbf16>,
      %c2_299 = arith.constant 2 : index
      %c0_300 = arith.constant 0 : index
      %c32_301 = arith.constant 32 : index
      %c0_302 = arith.constant 0 : index
      %318 = vector.load %arg3[%c2_299, %c0_300, %c32_301, %c0_302] : memref<5x3x96x128xbf16, #tpu.memory_space<vmem>>, vector<1x1x32x128xbf16>
      %319 = vector.shape_cast %318 : vector<1x1x32x128xbf16> to vector<32x128xbf16>
      %320 = tpu.concatenate %319, %319, %319, %319 in 0 : vector<32x128xbf16>, vector<32x128xbf16>, vector<32x128xbf16>, vector<32x128xbf16> -> vector<128x128xbf16>
      %c2_303 = arith.constant 2 : index
      %c0_304 = arith.constant 0 : index
      %c128_305 = arith.constant 128 : index
      %c0_306 = arith.constant 0 : index
      %321 = vector.load %arg6[%c2_303, %c0_304, %c128_305, %c0_306] : memref<5x3x384x128xbf16, #tpu.memory_space<vmem>>, vector<1x1x128x128xbf16>
      %322 = vector.shape_cast %321 : vector<1x1x128x128xbf16> to vector<128x128xbf16>
      %323 = vector.shape_cast %320 : vector<128x128xbf16> to vector<1x1x128x128xbf16>
      tpu.vector_store %arg6[%c2_303, %c0_304, %c128_305, %c0_306], %323 {strides = array<i32>} : memref<5x3x384x128xbf16, #tpu.memory_space<vmem>>, vector<1x1x128x128xbf16>,
      %c2_307 = arith.constant 2 : index
      %c0_308 = arith.constant 0 : index
      %c64_309 = arith.constant 64 : index
      %c0_310 = arith.constant 0 : index
      %324 = vector.load %arg3[%c2_307, %c0_308, %c64_309, %c0_310] : memref<5x3x96x128xbf16, #tpu.memory_space<vmem>>, vector<1x1x32x128xbf16>
      %325 = vector.shape_cast %324 : vector<1x1x32x128xbf16> to vector<32x128xbf16>
      %326 = tpu.concatenate %325, %325, %325, %325 in 0 : vector<32x128xbf16>, vector<32x128xbf16>, vector<32x128xbf16>, vector<32x128xbf16> -> vector<128x128xbf16>
      %c2_311 = arith.constant 2 : index
      %c0_312 = arith.constant 0 : index
      %c256_313 = arith.constant 256 : index
      %c0_314 = arith.constant 0 : index
      %327 = vector.load %arg6[%c2_311, %c0_312, %c256_313, %c0_314] : memref<5x3x384x128xbf16, #tpu.memory_space<vmem>>, vector<1x1x128x128xbf16>
      %328 = vector.shape_cast %327 : vector<1x1x128x128xbf16> to vector<128x128xbf16>
      %329 = vector.shape_cast %326 : vector<128x128xbf16> to vector<1x1x128x128xbf16>
      tpu.vector_store %arg6[%c2_311, %c0_312, %c256_313, %c0_314], %329 {strides = array<i32>} : memref<5x3x384x128xbf16, #tpu.memory_space<vmem>>, vector<1x1x128x128xbf16>,
      %c2_315 = arith.constant 2 : index
      %c1_316 = arith.constant 1 : index
      %c0_317 = arith.constant 0 : index
      %c0_318 = arith.constant 0 : index
      %330 = vector.load %arg3[%c2_315, %c1_316, %c0_317, %c0_318] : memref<5x3x96x128xbf16, #tpu.memory_space<vmem>>, vector<1x1x32x128xbf16>
      %331 = vector.shape_cast %330 : vector<1x1x32x128xbf16> to vector<32x128xbf16>
      %332 = tpu.concatenate %331, %331, %331, %331 in 0 : vector<32x128xbf16>, vector<32x128xbf16>, vector<32x128xbf16>, vector<32x128xbf16> -> vector<128x128xbf16>
      %c2_319 = arith.constant 2 : index
      %c1_320 = arith.constant 1 : index
      %c0_321 = arith.constant 0 : index
      %c0_322 = arith.constant 0 : index
      %333 = vector.load %arg6[%c2_319, %c1_320, %c0_321, %c0_322] : memref<5x3x384x128xbf16, #tpu.memory_space<vmem>>, vector<1x1x128x128xbf16>
      %334 = vector.shape_cast %333 : vector<1x1x128x128xbf16> to vector<128x128xbf16>
      %335 = vector.shape_cast %332 : vector<128x128xbf16> to vector<1x1x128x128xbf16>
      tpu.vector_store %arg6[%c2_319, %c1_320, %c0_321, %c0_322], %335 {strides = array<i32>} : memref<5x3x384x128xbf16, #tpu.memory_space<vmem>>, vector<1x1x128x128xbf16>,
      %c2_323 = arith.constant 2 : index
      %c1_324 = arith.constant 1 : index
      %c32_325 = arith.constant 32 : index
      %c0_326 = arith.constant 0 : index
      %336 = vector.load %arg3[%c2_323, %c1_324, %c32_325, %c0_326] : memref<5x3x96x128xbf16, #tpu.memory_space<vmem>>, vector<1x1x32x128xbf16>
      %337 = vector.shape_cast %336 : vector<1x1x32x128xbf16> to vector<32x128xbf16>
      %338 = tpu.concatenate %337, %337, %337, %337 in 0 : vector<32x128xbf16>, vector<32x128xbf16>, vector<32x128xbf16>, vector<32x128xbf16> -> vector<128x128xbf16>
      %c2_327 = arith.constant 2 : index
      %c1_328 = arith.constant 1 : index
      %c128_329 = arith.constant 128 : index
      %c0_330 = arith.constant 0 : index
      %339 = vector.load %arg6[%c2_327, %c1_328, %c128_329, %c0_330] : memref<5x3x384x128xbf16, #tpu.memory_space<vmem>>, vector<1x1x128x128xbf16>
      %340 = vector.shape_cast %339 : vector<1x1x128x128xbf16> to vector<128x128xbf16>
      %341 = vector.shape_cast %338 : vector<128x128xbf16> to vector<1x1x128x128xbf16>
      tpu.vector_store %arg6[%c2_327, %c1_328, %c128_329, %c0_330], %341 {strides = array<i32>} : memref<5x3x384x128xbf16, #tpu.memory_space<vmem>>, vector<1x1x128x128xbf16>,
      %c2_331 = arith.constant 2 : index
      %c1_332 = arith.constant 1 : index
      %c64_333 = arith.constant 64 : index
      %c0_334 = arith.constant 0 : index
      %342 = vector.load %arg3[%c2_331, %c1_332, %c64_333, %c0_334] : memref<5x3x96x128xbf16, #tpu.memory_space<vmem>>, vector<1x1x32x128xbf16>
      %343 = vector.shape_cast %342 : vector<1x1x32x128xbf16> to vector<32x128xbf16>
      %344 = tpu.concatenate %343, %343, %343, %343 in 0 : vector<32x128xbf16>, vector<32x128xbf16>, vector<32x128xbf16>, vector<32x128xbf16> -> vector<128x128xbf16>
      %c2_335 = arith.constant 2 : index
      %c1_336 = arith.constant 1 : index
      %c256_337 = arith.constant 256 : index
      %c0_338 = arith.constant 0 : index
      %345 = vector.load %arg6[%c2_335, %c1_336, %c256_337, %c0_338] : memref<5x3x384x128xbf16, #tpu.memory_space<vmem>>, vector<1x1x128x128xbf16>
      %346 = vector.shape_cast %345 : vector<1x1x128x128xbf16> to vector<128x128xbf16>
      %347 = vector.shape_cast %344 : vector<128x128xbf16> to vector<1x1x128x128xbf16>
      tpu.vector_store %arg6[%c2_335, %c1_336, %c256_337, %c0_338], %347 {strides = array<i32>} : memref<5x3x384x128xbf16, #tpu.memory_space<vmem>>, vector<1x1x128x128xbf16>,
      %c2_339 = arith.constant 2 : index
      %c2_340 = arith.constant 2 : index
      %c0_341 = arith.constant 0 : index
      %c0_342 = arith.constant 0 : index
      %348 = vector.load %arg3[%c2_339, %c2_340, %c0_341, %c0_342] : memref<5x3x96x128xbf16, #tpu.memory_space<vmem>>, vector<1x1x32x128xbf16>
      %349 = vector.shape_cast %348 : vector<1x1x32x128xbf16> to vector<32x128xbf16>
      %350 = tpu.concatenate %349, %349, %349, %349 in 0 : vector<32x128xbf16>, vector<32x128xbf16>, vector<32x128xbf16>, vector<32x128xbf16> -> vector<128x128xbf16>
      %c2_343 = arith.constant 2 : index
      %c2_344 = arith.constant 2 : index
      %c0_345 = arith.constant 0 : index
      %c0_346 = arith.constant 0 : index
      %351 = vector.load %arg6[%c2_343, %c2_344, %c0_345, %c0_346] : memref<5x3x384x128xbf16, #tpu.memory_space<vmem>>, vector<1x1x128x128xbf16>
      %352 = vector.shape_cast %351 : vector<1x1x128x128xbf16> to vector<128x128xbf16>
      %353 = vector.shape_cast %350 : vector<128x128xbf16> to vector<1x1x128x128xbf16>
      tpu.vector_store %arg6[%c2_343, %c2_344, %c0_345, %c0_346], %353 {strides = array<i32>} : memref<5x3x384x128xbf16, #tpu.memory_space<vmem>>, vector<1x1x128x128xbf16>,
      %c2_347 = arith.constant 2 : index
      %c2_348 = arith.constant 2 : index
      %c32_349 = arith.constant 32 : index
      %c0_350 = arith.constant 0 : index
      %354 = vector.load %arg3[%c2_347, %c2_348, %c32_349, %c0_350] : memref<5x3x96x128xbf16, #tpu.memory_space<vmem>>, vector<1x1x32x128xbf16>
      %355 = vector.shape_cast %354 : vector<1x1x32x128xbf16> to vector<32x128xbf16>
      %356 = tpu.concatenate %355, %355, %355, %355 in 0 : vector<32x128xbf16>, vector<32x128xbf16>, vector<32x128xbf16>, vector<32x128xbf16> -> vector<128x128xbf16>
      %c2_351 = arith.constant 2 : index
      %c2_352 = arith.constant 2 : index
      %c128_353 = arith.constant 128 : index
      %c0_354 = arith.constant 0 : index
      %357 = vector.load %arg6[%c2_351, %c2_352, %c128_353, %c0_354] : memref<5x3x384x128xbf16, #tpu.memory_space<vmem>>, vector<1x1x128x128xbf16>
      %358 = vector.shape_cast %357 : vector<1x1x128x128xbf16> to vector<128x128xbf16>
      %359 = vector.shape_cast %356 : vector<128x128xbf16> to vector<1x1x128x128xbf16>
      tpu.vector_store %arg6[%c2_351, %c2_352, %c128_353, %c0_354], %359 {strides = array<i32>} : memref<5x3x384x128xbf16, #tpu.memory_space<vmem>>, vector<1x1x128x128xbf16>,
      %c2_355 = arith.constant 2 : index
      %c2_356 = arith.constant 2 : index
      %c64_357 = arith.constant 64 : index
      %c0_358 = arith.constant 0 : index
      %360 = vector.load %arg3[%c2_355, %c2_356, %c64_357, %c0_358] : memref<5x3x96x128xbf16, #tpu.memory_space<vmem>>, vector<1x1x32x128xbf16>
      %361 = vector.shape_cast %360 : vector<1x1x32x128xbf16> to vector<32x128xbf16>
      %362 = tpu.concatenate %361, %361, %361, %361 in 0 : vector<32x128xbf16>, vector<32x128xbf16>, vector<32x128xbf16>, vector<32x128xbf16> -> vector<128x128xbf16>
      %c2_359 = arith.constant 2 : index
      %c2_360 = arith.constant 2 : index
      %c256_361 = arith.constant 256 : index
      %c0_362 = arith.constant 0 : index
      %363 = vector.load %arg6[%c2_359, %c2_360, %c256_361, %c0_362] : memref<5x3x384x128xbf16, #tpu.memory_space<vmem>>, vector<1x1x128x128xbf16>
      %364 = vector.shape_cast %363 : vector<1x1x128x128xbf16> to vector<128x128xbf16>
      %365 = vector.shape_cast %362 : vector<128x128xbf16> to vector<1x1x128x128xbf16>
      tpu.vector_store %arg6[%c2_359, %c2_360, %c256_361, %c0_362], %365 {strides = array<i32>} : memref<5x3x384x128xbf16, #tpu.memory_space<vmem>>, vector<1x1x128x128xbf16>,
      %c3_363 = arith.constant 3 : index
      %c0_364 = arith.constant 0 : index
      %c0_365 = arith.constant 0 : index
      %c0_366 = arith.constant 0 : index
      %366 = vector.load %arg3[%c3_363, %c0_364, %c0_365, %c0_366] : memref<5x3x96x128xbf16, #tpu.memory_space<vmem>>, vector<1x1x32x128xbf16>
      %367 = vector.shape_cast %366 : vector<1x1x32x128xbf16> to vector<32x128xbf16>
      %368 = tpu.concatenate %367, %367, %367, %367 in 0 : vector<32x128xbf16>, vector<32x128xbf16>, vector<32x128xbf16>, vector<32x128xbf16> -> vector<128x128xbf16>
      %c3_367 = arith.constant 3 : index
      %c0_368 = arith.constant 0 : index
      %c0_369 = arith.constant 0 : index
      %c0_370 = arith.constant 0 : index
      %369 = vector.load %arg6[%c3_367, %c0_368, %c0_369, %c0_370] : memref<5x3x384x128xbf16, #tpu.memory_space<vmem>>, vector<1x1x128x128xbf16>
      %370 = vector.shape_cast %369 : vector<1x1x128x128xbf16> to vector<128x128xbf16>
      %371 = vector.shape_cast %368 : vector<128x128xbf16> to vector<1x1x128x128xbf16>
      tpu.vector_store %arg6[%c3_367, %c0_368, %c0_369, %c0_370], %371 {strides = array<i32>} : memref<5x3x384x128xbf16, #tpu.memory_space<vmem>>, vector<1x1x128x128xbf16>,
      %c3_371 = arith.constant 3 : index
      %c0_372 = arith.constant 0 : index
      %c32_373 = arith.constant 32 : index
      %c0_374 = arith.constant 0 : index
      %372 = vector.load %arg3[%c3_371, %c0_372, %c32_373, %c0_374] : memref<5x3x96x128xbf16, #tpu.memory_space<vmem>>, vector<1x1x32x128xbf16>
      %373 = vector.shape_cast %372 : vector<1x1x32x128xbf16> to vector<32x128xbf16>
      %374 = tpu.concatenate %373, %373, %373, %373 in 0 : vector<32x128xbf16>, vector<32x128xbf16>, vector<32x128xbf16>, vector<32x128xbf16> -> vector<128x128xbf16>
      %c3_375 = arith.constant 3 : index
      %c0_376 = arith.constant 0 : index
      %c128_377 = arith.constant 128 : index
      %c0_378 = arith.constant 0 : index
      %375 = vector.load %arg6[%c3_375, %c0_376, %c128_377, %c0_378] : memref<5x3x384x128xbf16, #tpu.memory_space<vmem>>, vector<1x1x128x128xbf16>
      %376 = vector.shape_cast %375 : vector<1x1x128x128xbf16> to vector<128x128xbf16>
      %377 = vector.shape_cast %374 : vector<128x128xbf16> to vector<1x1x128x128xbf16>
      tpu.vector_store %arg6[%c3_375, %c0_376, %c128_377, %c0_378], %377 {strides = array<i32>} : memref<5x3x384x128xbf16, #tpu.memory_space<vmem>>, vector<1x1x128x128xbf16>,
      %c3_379 = arith.constant 3 : index
      %c0_380 = arith.constant 0 : index
      %c64_381 = arith.constant 64 : index
      %c0_382 = arith.constant 0 : index
      %378 = vector.load %arg3[%c3_379, %c0_380, %c64_381, %c0_382] : memref<5x3x96x128xbf16, #tpu.memory_space<vmem>>, vector<1x1x32x128xbf16>
      %379 = vector.shape_cast %378 : vector<1x1x32x128xbf16> to vector<32x128xbf16>
      %380 = tpu.concatenate %379, %379, %379, %379 in 0 : vector<32x128xbf16>, vector<32x128xbf16>, vector<32x128xbf16>, vector<32x128xbf16> -> vector<128x128xbf16>
      %c3_383 = arith.constant 3 : index
      %c0_384 = arith.constant 0 : index
      %c256_385 = arith.constant 256 : index
      %c0_386 = arith.constant 0 : index
      %381 = vector.load %arg6[%c3_383, %c0_384, %c256_385, %c0_386] : memref<5x3x384x128xbf16, #tpu.memory_space<vmem>>, vector<1x1x128x128xbf16>
      %382 = vector.shape_cast %381 : vector<1x1x128x128xbf16> to vector<128x128xbf16>
      %383 = vector.shape_cast %380 : vector<128x128xbf16> to vector<1x1x128x128xbf16>
      tpu.vector_store %arg6[%c3_383, %c0_384, %c256_385, %c0_386], %383 {strides = array<i32>} : memref<5x3x384x128xbf16, #tpu.memory_space<vmem>>, vector<1x1x128x128xbf16>,
      %c3_387 = arith.constant 3 : index
      %c1_388 = arith.constant 1 : index
      %c0_389 = arith.constant 0 : index
      %c0_390 = arith.constant 0 : index
      %384 = vector.load %arg3[%c3_387, %c1_388, %c0_389, %c0_390] : memref<5x3x96x128xbf16, #tpu.memory_space<vmem>>, vector<1x1x32x128xbf16>
      %385 = vector.shape_cast %384 : vector<1x1x32x128xbf16> to vector<32x128xbf16>
      %386 = tpu.concatenate %385, %385, %385, %385 in 0 : vector<32x128xbf16>, vector<32x128xbf16>, vector<32x128xbf16>, vector<32x128xbf16> -> vector<128x128xbf16>
      %c3_391 = arith.constant 3 : index
      %c1_392 = arith.constant 1 : index
      %c0_393 = arith.constant 0 : index
      %c0_394 = arith.constant 0 : index
      %387 = vector.load %arg6[%c3_391, %c1_392, %c0_393, %c0_394] : memref<5x3x384x128xbf16, #tpu.memory_space<vmem>>, vector<1x1x128x128xbf16>
      %388 = vector.shape_cast %387 : vector<1x1x128x128xbf16> to vector<128x128xbf16>
      %389 = vector.shape_cast %386 : vector<128x128xbf16> to vector<1x1x128x128xbf16>
      tpu.vector_store %arg6[%c3_391, %c1_392, %c0_393, %c0_394], %389 {strides = array<i32>} : memref<5x3x384x128xbf16, #tpu.memory_space<vmem>>, vector<1x1x128x128xbf16>,
      %c3_395 = arith.constant 3 : index
      %c1_396 = arith.constant 1 : index
      %c32_397 = arith.constant 32 : index
      %c0_398 = arith.constant 0 : index
      %390 = vector.load %arg3[%c3_395, %c1_396, %c32_397, %c0_398] : memref<5x3x96x128xbf16, #tpu.memory_space<vmem>>, vector<1x1x32x128xbf16>
      %391 = vector.shape_cast %390 : vector<1x1x32x128xbf16> to vector<32x128xbf16>
      %392 = tpu.concatenate %391, %391, %391, %391 in 0 : vector<32x128xbf16>, vector<32x128xbf16>, vector<32x128xbf16>, vector<32x128xbf16> -> vector<128x128xbf16>
      %c3_399 = arith.constant 3 : index
      %c1_400 = arith.constant 1 : index
      %c128_401 = arith.constant 128 : index
      %c0_402 = arith.constant 0 : index
      %393 = vector.load %arg6[%c3_399, %c1_400, %c128_401, %c0_402] : memref<5x3x384x128xbf16, #tpu.memory_space<vmem>>, vector<1x1x128x128xbf16>
      %394 = vector.shape_cast %393 : vector<1x1x128x128xbf16> to vector<128x128xbf16>
      %395 = vector.shape_cast %392 : vector<128x128xbf16> to vector<1x1x128x128xbf16>
      tpu.vector_store %arg6[%c3_399, %c1_400, %c128_401, %c0_402], %395 {strides = array<i32>} : memref<5x3x384x128xbf16, #tpu.memory_space<vmem>>, vector<1x1x128x128xbf16>,
      %c3_403 = arith.constant 3 : index
      %c1_404 = arith.constant 1 : index
      %c64_405 = arith.constant 64 : index
      %c0_406 = arith.constant 0 : index
      %396 = vector.load %arg3[%c3_403, %c1_404, %c64_405, %c0_406] : memref<5x3x96x128xbf16, #tpu.memory_space<vmem>>, vector<1x1x32x128xbf16>
      %397 = vector.shape_cast %396 : vector<1x1x32x128xbf16> to vector<32x128xbf16>
      %398 = tpu.concatenate %397, %397, %397, %397 in 0 : vector<32x128xbf16>, vector<32x128xbf16>, vector<32x128xbf16>, vector<32x128xbf16> -> vector<128x128xbf16>
      %c3_407 = arith.constant 3 : index
      %c1_408 = arith.constant 1 : index
      %c256_409 = arith.constant 256 : index
      %c0_410 = arith.constant 0 : index
      %399 = vector.load %arg6[%c3_407, %c1_408, %c256_409, %c0_410] : memref<5x3x384x128xbf16, #tpu.memory_space<vmem>>, vector<1x1x128x128xbf16>
      %400 = vector.shape_cast %399 : vector<1x1x128x128xbf16> to vector<128x128xbf16>
      %401 = vector.shape_cast %398 : vector<128x128xbf16> to vector<1x1x128x128xbf16>
      tpu.vector_store %arg6[%c3_407, %c1_408, %c256_409, %c0_410], %401 {strides = array<i32>} : memref<5x3x384x128xbf16, #tpu.memory_space<vmem>>, vector<1x1x128x128xbf16>,
      %c3_411 = arith.constant 3 : index
      %c2_412 = arith.constant 2 : index
      %c0_413 = arith.constant 0 : index
      %c0_414 = arith.constant 0 : index
      %402 = vector.load %arg3[%c3_411, %c2_412, %c0_413, %c0_414] : memref<5x3x96x128xbf16, #tpu.memory_space<vmem>>, vector<1x1x32x128xbf16>
      %403 = vector.shape_cast %402 : vector<1x1x32x128xbf16> to vector<32x128xbf16>
      %404 = tpu.concatenate %403, %403, %403, %403 in 0 : vector<32x128xbf16>, vector<32x128xbf16>, vector<32x128xbf16>, vector<32x128xbf16> -> vector<128x128xbf16>
      %c3_415 = arith.constant 3 : index
      %c2_416 = arith.constant 2 : index
      %c0_417 = arith.constant 0 : index
      %c0_418 = arith.constant 0 : index
      %405 = vector.load %arg6[%c3_415, %c2_416, %c0_417, %c0_418] : memref<5x3x384x128xbf16, #tpu.memory_space<vmem>>, vector<1x1x128x128xbf16>
      %406 = vector.shape_cast %405 : vector<1x1x128x128xbf16> to vector<128x128xbf16>
      %407 = vector.shape_cast %404 : vector<128x128xbf16> to vector<1x1x128x128xbf16>
      tpu.vector_store %arg6[%c3_415, %c2_416, %c0_417, %c0_418], %407 {strides = array<i32>} : memref<5x3x384x128xbf16, #tpu.memory_space<vmem>>, vector<1x1x128x128xbf16>,
      %c3_419 = arith.constant 3 : index
      %c2_420 = arith.constant 2 : index
      %c32_421 = arith.constant 32 : index
      %c0_422 = arith.constant 0 : index
      %408 = vector.load %arg3[%c3_419, %c2_420, %c32_421, %c0_422] : memref<5x3x96x128xbf16, #tpu.memory_space<vmem>>, vector<1x1x32x128xbf16>
      %409 = vector.shape_cast %408 : vector<1x1x32x128xbf16> to vector<32x128xbf16>
      %410 = tpu.concatenate %409, %409, %409, %409 in 0 : vector<32x128xbf16>, vector<32x128xbf16>, vector<32x128xbf16>, vector<32x128xbf16> -> vector<128x128xbf16>
      %c3_423 = arith.constant 3 : index
      %c2_424 = arith.constant 2 : index
      %c128_425 = arith.constant 128 : index
      %c0_426 = arith.constant 0 : index
      %411 = vector.load %arg6[%c3_423, %c2_424, %c128_425, %c0_426] : memref<5x3x384x128xbf16, #tpu.memory_space<vmem>>, vector<1x1x128x128xbf16>
      %412 = vector.shape_cast %411 : vector<1x1x128x128xbf16> to vector<128x128xbf16>
      %413 = vector.shape_cast %410 : vector<128x128xbf16> to vector<1x1x128x128xbf16>
      tpu.vector_store %arg6[%c3_423, %c2_424, %c128_425, %c0_426], %413 {strides = array<i32>} : memref<5x3x384x128xbf16, #tpu.memory_space<vmem>>, vector<1x1x128x128xbf16>,
      %c3_427 = arith.constant 3 : index
      %c2_428 = arith.constant 2 : index
      %c64_429 = arith.constant 64 : index
      %c0_430 = arith.constant 0 : index
      %414 = vector.load %arg3[%c3_427, %c2_428, %c64_429, %c0_430] : memref<5x3x96x128xbf16, #tpu.memory_space<vmem>>, vector<1x1x32x128xbf16>
      %415 = vector.shape_cast %414 : vector<1x1x32x128xbf16> to vector<32x128xbf16>
      %416 = tpu.concatenate %415, %415, %415, %415 in 0 : vector<32x128xbf16>, vector<32x128xbf16>, vector<32x128xbf16>, vector<32x128xbf16> -> vector<128x128xbf16>
      %c3_431 = arith.constant 3 : index
      %c2_432 = arith.constant 2 : index
      %c256_433 = arith.constant 256 : index
      %c0_434 = arith.constant 0 : index
      %417 = vector.load %arg6[%c3_431, %c2_432, %c256_433, %c0_434] : memref<5x3x384x128xbf16, #tpu.memory_space<vmem>>, vector<1x1x128x128xbf16>
      %418 = vector.shape_cast %417 : vector<1x1x128x128xbf16> to vector<128x128xbf16>
      %419 = vector.shape_cast %416 : vector<128x128xbf16> to vector<1x1x128x128xbf16>
      tpu.vector_store %arg6[%c3_431, %c2_432, %c256_433, %c0_434], %419 {strides = array<i32>} : memref<5x3x384x128xbf16, #tpu.memory_space<vmem>>, vector<1x1x128x128xbf16>,
      %c4_435 = arith.constant 4 : index
      %c0_436 = arith.constant 0 : index
      %c0_437 = arith.constant 0 : index
      %c0_438 = arith.constant 0 : index
      %420 = vector.load %arg3[%c4_435, %c0_436, %c0_437, %c0_438] : memref<5x3x96x128xbf16, #tpu.memory_space<vmem>>, vector<1x1x32x128xbf16>
      %421 = vector.shape_cast %420 : vector<1x1x32x128xbf16> to vector<32x128xbf16>
      %422 = tpu.concatenate %421, %421, %421, %421 in 0 : vector<32x128xbf16>, vector<32x128xbf16>, vector<32x128xbf16>, vector<32x128xbf16> -> vector<128x128xbf16>
      %c4_439 = arith.constant 4 : index
      %c0_440 = arith.constant 0 : index
      %c0_441 = arith.constant 0 : index
      %c0_442 = arith.constant 0 : index
      %423 = vector.load %arg6[%c4_439, %c0_440, %c0_441, %c0_442] : memref<5x3x384x128xbf16, #tpu.memory_space<vmem>>, vector<1x1x128x128xbf16>
      %424 = vector.shape_cast %423 : vector<1x1x128x128xbf16> to vector<128x128xbf16>
      %425 = vector.shape_cast %422 : vector<128x128xbf16> to vector<1x1x128x128xbf16>
      tpu.vector_store %arg6[%c4_439, %c0_440, %c0_441, %c0_442], %425 {strides = array<i32>} : memref<5x3x384x128xbf16, #tpu.memory_space<vmem>>, vector<1x1x128x128xbf16>,
      %c4_443 = arith.constant 4 : index
      %c0_444 = arith.constant 0 : index
      %c32_445 = arith.constant 32 : index
      %c0_446 = arith.constant 0 : index
      %426 = vector.load %arg3[%c4_443, %c0_444, %c32_445, %c0_446] : memref<5x3x96x128xbf16, #tpu.memory_space<vmem>>, vector<1x1x32x128xbf16>
      %427 = vector.shape_cast %426 : vector<1x1x32x128xbf16> to vector<32x128xbf16>
      %428 = tpu.concatenate %427, %427, %427, %427 in 0 : vector<32x128xbf16>, vector<32x128xbf16>, vector<32x128xbf16>, vector<32x128xbf16> -> vector<128x128xbf16>
      %c4_447 = arith.constant 4 : index
      %c0_448 = arith.constant 0 : index
      %c128_449 = arith.constant 128 : index
      %c0_450 = arith.constant 0 : index
      %429 = vector.load %arg6[%c4_447, %c0_448, %c128_449, %c0_450] : memref<5x3x384x128xbf16, #tpu.memory_space<vmem>>, vector<1x1x128x128xbf16>
      %430 = vector.shape_cast %429 : vector<1x1x128x128xbf16> to vector<128x128xbf16>
      %431 = vector.shape_cast %428 : vector<128x128xbf16> to vector<1x1x128x128xbf16>
      tpu.vector_store %arg6[%c4_447, %c0_448, %c128_449, %c0_450], %431 {strides = array<i32>} : memref<5x3x384x128xbf16, #tpu.memory_space<vmem>>, vector<1x1x128x128xbf16>,
      %c4_451 = arith.constant 4 : index
      %c0_452 = arith.constant 0 : index
      %c64_453 = arith.constant 64 : index
      %c0_454 = arith.constant 0 : index
      %432 = vector.load %arg3[%c4_451, %c0_452, %c64_453, %c0_454] : memref<5x3x96x128xbf16, #tpu.memory_space<vmem>>, vector<1x1x32x128xbf16>
      %433 = vector.shape_cast %432 : vector<1x1x32x128xbf16> to vector<32x128xbf16>
      %434 = tpu.concatenate %433, %433, %433, %433 in 0 : vector<32x128xbf16>, vector<32x128xbf16>, vector<32x128xbf16>, vector<32x128xbf16> -> vector<128x128xbf16>
      %c4_455 = arith.constant 4 : index
      %c0_456 = arith.constant 0 : index
      %c256_457 = arith.constant 256 : index
      %c0_458 = arith.constant 0 : index
      %435 = vector.load %arg6[%c4_455, %c0_456, %c256_457, %c0_458] : memref<5x3x384x128xbf16, #tpu.memory_space<vmem>>, vector<1x1x128x128xbf16>
      %436 = vector.shape_cast %435 : vector<1x1x128x128xbf16> to vector<128x128xbf16>
      %437 = vector.shape_cast %434 : vector<128x128xbf16> to vector<1x1x128x128xbf16>
      tpu.vector_store %arg6[%c4_455, %c0_456, %c256_457, %c0_458], %437 {strides = array<i32>} : memref<5x3x384x128xbf16, #tpu.memory_space<vmem>>, vector<1x1x128x128xbf16>,
      %c4_459 = arith.constant 4 : index
      %c1_460 = arith.constant 1 : index
      %c0_461 = arith.constant 0 : index
      %c0_462 = arith.constant 0 : index
      %438 = vector.load %arg3[%c4_459, %c1_460, %c0_461, %c0_462] : memref<5x3x96x128xbf16, #tpu.memory_space<vmem>>, vector<1x1x32x128xbf16>
      %439 = vector.shape_cast %438 : vector<1x1x32x128xbf16> to vector<32x128xbf16>
      %440 = tpu.concatenate %439, %439, %439, %439 in 0 : vector<32x128xbf16>, vector<32x128xbf16>, vector<32x128xbf16>, vector<32x128xbf16> -> vector<128x128xbf16>
      %c4_463 = arith.constant 4 : index
      %c1_464 = arith.constant 1 : index
      %c0_465 = arith.constant 0 : index
      %c0_466 = arith.constant 0 : index
      %441 = vector.load %arg6[%c4_463, %c1_464, %c0_465, %c0_466] : memref<5x3x384x128xbf16, #tpu.memory_space<vmem>>, vector<1x1x128x128xbf16>
      %442 = vector.shape_cast %441 : vector<1x1x128x128xbf16> to vector<128x128xbf16>
      %443 = vector.shape_cast %440 : vector<128x128xbf16> to vector<1x1x128x128xbf16>
      tpu.vector_store %arg6[%c4_463, %c1_464, %c0_465, %c0_466], %443 {strides = array<i32>} : memref<5x3x384x128xbf16, #tpu.memory_space<vmem>>, vector<1x1x128x128xbf16>,
      %c4_467 = arith.constant 4 : index
      %c1_468 = arith.constant 1 : index
      %c32_469 = arith.constant 32 : index
      %c0_470 = arith.constant 0 : index
      %444 = vector.load %arg3[%c4_467, %c1_468, %c32_469, %c0_470] : memref<5x3x96x128xbf16, #tpu.memory_space<vmem>>, vector<1x1x32x128xbf16>
      %445 = vector.shape_cast %444 : vector<1x1x32x128xbf16> to vector<32x128xbf16>
      %446 = tpu.concatenate %445, %445, %445, %445 in 0 : vector<32x128xbf16>, vector<32x128xbf16>, vector<32x128xbf16>, vector<32x128xbf16> -> vector<128x128xbf16>
      %c4_471 = arith.constant 4 : index
      %c1_472 = arith.constant 1 : index
      %c128_473 = arith.constant 128 : index
      %c0_474 = arith.constant 0 : index
      %447 = vector.load %arg6[%c4_471, %c1_472, %c128_473, %c0_474] : memref<5x3x384x128xbf16, #tpu.memory_space<vmem>>, vector<1x1x128x128xbf16>
      %448 = vector.shape_cast %447 : vector<1x1x128x128xbf16> to vector<128x128xbf16>
      %449 = vector.shape_cast %446 : vector<128x128xbf16> to vector<1x1x128x128xbf16>
      tpu.vector_store %arg6[%c4_471, %c1_472, %c128_473, %c0_474], %449 {strides = array<i32>} : memref<5x3x384x128xbf16, #tpu.memory_space<vmem>>, vector<1x1x128x128xbf16>,
      %c4_475 = arith.constant 4 : index
      %c1_476 = arith.constant 1 : index
      %c64_477 = arith.constant 64 : index
      %c0_478 = arith.constant 0 : index
      %450 = vector.load %arg3[%c4_475, %c1_476, %c64_477, %c0_478] : memref<5x3x96x128xbf16, #tpu.memory_space<vmem>>, vector<1x1x32x128xbf16>
      %451 = vector.shape_cast %450 : vector<1x1x32x128xbf16> to vector<32x128xbf16>
      %452 = tpu.concatenate %451, %451, %451, %451 in 0 : vector<32x128xbf16>, vector<32x128xbf16>, vector<32x128xbf16>, vector<32x128xbf16> -> vector<128x128xbf16>
      %c4_479 = arith.constant 4 : index
      %c1_480 = arith.constant 1 : index
      %c256_481 = arith.constant 256 : index
      %c0_482 = arith.constant 0 : index
      %453 = vector.load %arg6[%c4_479, %c1_480, %c256_481, %c0_482] : memref<5x3x384x128xbf16, #tpu.memory_space<vmem>>, vector<1x1x128x128xbf16>
      %454 = vector.shape_cast %453 : vector<1x1x128x128xbf16> to vector<128x128xbf16>
      %455 = vector.shape_cast %452 : vector<128x128xbf16> to vector<1x1x128x128xbf16>
      tpu.vector_store %arg6[%c4_479, %c1_480, %c256_481, %c0_482], %455 {strides = array<i32>} : memref<5x3x384x128xbf16, #tpu.memory_space<vmem>>, vector<1x1x128x128xbf16>,
      %c4_483 = arith.constant 4 : index
      %c2_484 = arith.constant 2 : index
      %c0_485 = arith.constant 0 : index
      %c0_486 = arith.constant 0 : index
      %456 = vector.load %arg3[%c4_483, %c2_484, %c0_485, %c0_486] : memref<5x3x96x128xbf16, #tpu.memory_space<vmem>>, vector<1x1x32x128xbf16>
      %457 = vector.shape_cast %456 : vector<1x1x32x128xbf16> to vector<32x128xbf16>
      %458 = tpu.concatenate %457, %457, %457, %457 in 0 : vector<32x128xbf16>, vector<32x128xbf16>, vector<32x128xbf16>, vector<32x128xbf16> -> vector<128x128xbf16>
      %c4_487 = arith.constant 4 : index
      %c2_488 = arith.constant 2 : index
      %c0_489 = arith.constant 0 : index
      %c0_490 = arith.constant 0 : index
      %459 = vector.load %arg6[%c4_487, %c2_488, %c0_489, %c0_490] : memref<5x3x384x128xbf16, #tpu.memory_space<vmem>>, vector<1x1x128x128xbf16>
      %460 = vector.shape_cast %459 : vector<1x1x128x128xbf16> to vector<128x128xbf16>
      %461 = vector.shape_cast %458 : vector<128x128xbf16> to vector<1x1x128x128xbf16>
      tpu.vector_store %arg6[%c4_487, %c2_488, %c0_489, %c0_490], %461 {strides = array<i32>} : memref<5x3x384x128xbf16, #tpu.memory_space<vmem>>, vector<1x1x128x128xbf16>,
      %c4_491 = arith.constant 4 : index
      %c2_492 = arith.constant 2 : index
      %c32_493 = arith.constant 32 : index
      %c0_494 = arith.constant 0 : index
      %462 = vector.load %arg3[%c4_491, %c2_492, %c32_493, %c0_494] : memref<5x3x96x128xbf16, #tpu.memory_space<vmem>>, vector<1x1x32x128xbf16>
      %463 = vector.shape_cast %462 : vector<1x1x32x128xbf16> to vector<32x128xbf16>
      %464 = tpu.concatenate %463, %463, %463, %463 in 0 : vector<32x128xbf16>, vector<32x128xbf16>, vector<32x128xbf16>, vector<32x128xbf16> -> vector<128x128xbf16>
      %c4_495 = arith.constant 4 : index
      %c2_496 = arith.constant 2 : index
      %c128_497 = arith.constant 128 : index
      %c0_498 = arith.constant 0 : index
      %465 = vector.load %arg6[%c4_495, %c2_496, %c128_497, %c0_498] : memref<5x3x384x128xbf16, #tpu.memory_space<vmem>>, vector<1x1x128x128xbf16>
      %466 = vector.shape_cast %465 : vector<1x1x128x128xbf16> to vector<128x128xbf16>
      %467 = vector.shape_cast %464 : vector<128x128xbf16> to vector<1x1x128x128xbf16>
      tpu.vector_store %arg6[%c4_495, %c2_496, %c128_497, %c0_498], %467 {strides = array<i32>} : memref<5x3x384x128xbf16, #tpu.memory_space<vmem>>, vector<1x1x128x128xbf16>,
      %c4_499 = arith.constant 4 : index
      %c2_500 = arith.constant 2 : index
      %c64_501 = arith.constant 64 : index
      %c0_502 = arith.constant 0 : index
      %468 = vector.load %arg3[%c4_499, %c2_500, %c64_501, %c0_502] : memref<5x3x96x128xbf16, #tpu.memory_space<vmem>>, vector<1x1x32x128xbf16>
      %469 = vector.shape_cast %468 : vector<1x1x32x128xbf16> to vector<32x128xbf16>
      %470 = tpu.concatenate %469, %469, %469, %469 in 0 : vector<32x128xbf16>, vector<32x128xbf16>, vector<32x128xbf16>, vector<32x128xbf16> -> vector<128x128xbf16>
      %c4_503 = arith.constant 4 : index
      %c2_504 = arith.constant 2 : index
      %c256_505 = arith.constant 256 : index
      %c0_506 = arith.constant 0 : index
      %471 = vector.load %arg6[%c4_503, %c2_504, %c256_505, %c0_506] : memref<5x3x384x128xbf16, #tpu.memory_space<vmem>>, vector<1x1x128x128xbf16>
      %472 = vector.shape_cast %471 : vector<1x1x128x128xbf16> to vector<128x128xbf16>
      %473 = vector.shape_cast %470 : vector<128x128xbf16> to vector<1x1x128x128xbf16>
      tpu.vector_store %arg6[%c4_503, %c2_504, %c256_505, %c0_506], %473 {strides = array<i32>} : memref<5x3x384x128xbf16, #tpu.memory_space<vmem>>, vector<1x1x128x128xbf16>,
    } else {
    }
    %c0 = arith.constant 0 : index
    %c0_1 = arith.constant 0 : index
    %c0_2 = arith.constant 0 : index
    %c0_3 = arith.constant 0 : index
    %3 = vector.load %arg2[%c0, %c0_1, %c0_2, %c0_3] : memref<1x16x16x128xbf16, #tpu.memory_space<vmem>>, vector<1x16x16x128xbf16>
    %4 = vector.extract_strided_slice %3 {offsets = [0, 0, 0, 0], sizes = [1, 14, 16, 128], strides = [1, 1, 1, 1]} : vector<1x16x16x128xbf16> to vector<1x14x16x128xbf16>
    %5 = vector.extract_strided_slice %3 {offsets = [0, 1, 0, 0], sizes = [1, 14, 16, 128], strides = [1, 1, 1, 1]} : vector<1x16x16x128xbf16> to vector<1x14x16x128xbf16>
    %6 = vector.extract_strided_slice %3 {offsets = [0, 2, 0, 0], sizes = [1, 14, 16, 128], strides = [1, 1, 1, 1]} : vector<1x16x16x128xbf16> to vector<1x14x16x128xbf16>
    %7 = tpu.concatenate %4, %5, %6 in 3 : vector<1x14x16x128xbf16>, vector<1x14x16x128xbf16>, vector<1x14x16x128xbf16> -> vector<1x14x16x384xbf16>
    %8 = vector.shape_cast %7 : vector<1x14x16x384xbf16> to vector<224x384xbf16>
    %c0_4 = arith.constant 0 : index
    %c0_5 = arith.constant 0 : index
    %c0_6 = arith.constant 0 : index
    %c0_7 = arith.constant 0 : index
    %9 = vector.load %arg6[%c0_4, %c0_5, %c0_6, %c0_7] : memref<5x3x384x128xbf16, #tpu.memory_space<vmem>>, vector<1x1x384x128xbf16>
    %10 = vector.shape_cast %9 : vector<1x1x384x128xbf16> to vector<384x128xbf16>
    %cst = arith.constant dense<0.000000e+00> : vector<224x128xf32>
    %11 = tpu.matmul %8, %10, %cst {dimension_numbers = #tpu.dot_dimension_numbers<[1], [0], [0], [1], [0, 0, 1, 1], [], []>} : vector<224x384xbf16>, vector<384x128xbf16>, vector<224x128xf32> -> vector<224x128xf32>
    %12 = vector.shape_cast %11 : vector<224x128xf32> to vector<1x14x16x128xf32>
    %c0_8 = arith.constant 0 : index
    %c1 = arith.constant 1 : index
    %c0_9 = arith.constant 0 : index
    %c0_10 = arith.constant 0 : index
    %13 = vector.load %arg6[%c0_8, %c1, %c0_9, %c0_10] : memref<5x3x384x128xbf16, #tpu.memory_space<vmem>>, vector<1x1x384x128xbf16>
    %14 = vector.shape_cast %13 : vector<1x1x384x128xbf16> to vector<384x128xbf16>
    %cst_11 = arith.constant dense<0.000000e+00> : vector<224x128xf32>
    %15 = tpu.matmul %8, %14, %cst_11 {dimension_numbers = #tpu.dot_dimension_numbers<[1], [0], [0], [1], [0, 0, 1, 1], [], []>} : vector<224x384xbf16>, vector<384x128xbf16>, vector<224x128xf32> -> vector<224x128xf32>
    %16 = vector.shape_cast %15 : vector<224x128xf32> to vector<1x14x16x128xf32>
    %c0_12 = arith.constant 0 : index
    %c2 = arith.constant 2 : index
    %c0_13 = arith.constant 0 : index
    %c0_14 = arith.constant 0 : index
    %17 = vector.load %arg6[%c0_12, %c2, %c0_13, %c0_14] : memref<5x3x384x128xbf16, #tpu.memory_space<vmem>>, vector<1x1x384x128xbf16>
    %18 = vector.shape_cast %17 : vector<1x1x384x128xbf16> to vector<384x128xbf16>
    %cst_15 = arith.constant dense<0.000000e+00> : vector<224x128xf32>
    %19 = tpu.matmul %8, %18, %cst_15 {dimension_numbers = #tpu.dot_dimension_numbers<[1], [0], [0], [1], [0, 0, 1, 1], [], []>} : vector<224x384xbf16>, vector<384x128xbf16>, vector<224x128xf32> -> vector<224x128xf32>
    %20 = vector.shape_cast %19 : vector<224x128xf32> to vector<1x14x16x128xf32>
    %c15_i32 = arith.constant 15 : i32
    %21 = tpu.dynamic_rotate %16 by %c15_i32 dim 2 : vector<1x14x16x128xf32>, i32 -> vector<1x14x16x128xf32>
    %22 = arith.addf %12, %21 : vector<1x14x16x128xf32>
    %c14_i32 = arith.constant 14 : i32
    %23 = tpu.dynamic_rotate %20 by %c14_i32 dim 2 : vector<1x14x16x128xf32>, i32 -> vector<1x14x16x128xf32>
    %24 = arith.addf %22, %23 : vector<1x14x16x128xf32>
    %c0_16 = arith.constant 0 : index
    %c0_17 = arith.constant 0 : index
    %c0_18 = arith.constant 0 : index
    %c0_19 = arith.constant 0 : index
    %25 = vector.load %arg4[%c0_16, %c0_17, %c0_18, %c0_19] : memref<5x3x1x128xf32, #tpu.memory_space<vmem>>, vector<1x1x1x128xf32>
    %26 = vector.shape_cast %25 : vector<1x1x1x128xf32> to vector<1x128xf32>
    %27 = vector.shape_cast %26 : vector<1x128xf32> to vector<1x1x1x128xf32>
    %28 = vector.broadcast %27 : vector<1x1x1x128xf32> to vector<1x14x16x128xf32>
    %29 = arith.addf %24, %28 : vector<1x14x16x128xf32>
    %cst_20 = arith.constant 2.000000e-01 : f32
    %30 = vector.broadcast %cst_20 : f32 to vector<1x14x16x128xf32>
    %31 = arith.mulf %30, %29 : vector<1x14x16x128xf32>
    %32 = arith.maximumf %29, %31 : vector<1x14x16x128xf32>
    %c0_21 = arith.constant 0 : index
    %c1_22 = arith.constant 1 : index
    %c0_23 = arith.constant 0 : index
    %c0_24 = arith.constant 0 : index
    %33 = vector.load %arg4[%c0_21, %c1_22, %c0_23, %c0_24] : memref<5x3x1x128xf32, #tpu.memory_space<vmem>>, vector<1x1x1x128xf32>
    %34 = vector.shape_cast %33 : vector<1x1x1x128xf32> to vector<1x128xf32>
    %35 = vector.shape_cast %34 : vector<1x128xf32> to vector<1x1x1x128xf32>
    %36 = vector.broadcast %35 : vector<1x1x1x128xf32> to vector<1x14x16x128xf32>
    %37 = arith.mulf %32, %36 : vector<1x14x16x128xf32>
    %c0_25 = arith.constant 0 : index
    %c2_26 = arith.constant 2 : index
    %c0_27 = arith.constant 0 : index
    %c0_28 = arith.constant 0 : index
    %38 = vector.load %arg4[%c0_25, %c2_26, %c0_27, %c0_28] : memref<5x3x1x128xf32, #tpu.memory_space<vmem>>, vector<1x1x1x128xf32>
    %39 = vector.shape_cast %38 : vector<1x1x1x128xf32> to vector<1x128xf32>
    %40 = vector.shape_cast %39 : vector<1x128xf32> to vector<1x1x1x128xf32>
    %41 = vector.broadcast %40 : vector<1x1x1x128xf32> to vector<1x14x16x128xf32>
    %42 = arith.addf %37, %41 : vector<1x14x16x128xf32>
    %43 = arith.truncf %42 : vector<1x14x16x128xf32> to vector<1x14x16x128xbf16>
    %44 = vector.extract_strided_slice %43 {offsets = [0, 0, 0, 0], sizes = [1, 12, 16, 128], strides = [1, 1, 1, 1]} : vector<1x14x16x128xbf16> to vector<1x12x16x128xbf16>
    %45 = vector.extract_strided_slice %43 {offsets = [0, 1, 0, 0], sizes = [1, 12, 16, 128], strides = [1, 1, 1, 1]} : vector<1x14x16x128xbf16> to vector<1x12x16x128xbf16>
    %46 = vector.extract_strided_slice %43 {offsets = [0, 2, 0, 0], sizes = [1, 12, 16, 128], strides = [1, 1, 1, 1]} : vector<1x14x16x128xbf16> to vector<1x12x16x128xbf16>
    %47 = tpu.concatenate %44, %45, %46 in 3 : vector<1x12x16x128xbf16>, vector<1x12x16x128xbf16>, vector<1x12x16x128xbf16> -> vector<1x12x16x384xbf16>
    %48 = vector.shape_cast %47 : vector<1x12x16x384xbf16> to vector<192x384xbf16>
    %c1_29 = arith.constant 1 : index
    %c0_30 = arith.constant 0 : index
    %c0_31 = arith.constant 0 : index
    %c0_32 = arith.constant 0 : index
    %49 = vector.load %arg6[%c1_29, %c0_30, %c0_31, %c0_32] : memref<5x3x384x128xbf16, #tpu.memory_space<vmem>>, vector<1x1x384x128xbf16>
    %50 = vector.shape_cast %49 : vector<1x1x384x128xbf16> to vector<384x128xbf16>
    %cst_33 = arith.constant dense<0.000000e+00> : vector<192x128xf32>
    %51 = tpu.matmul %48, %50, %cst_33 {dimension_numbers = #tpu.dot_dimension_numbers<[1], [0], [0], [1], [0, 0, 1, 1], [], []>} : vector<192x384xbf16>, vector<384x128xbf16>, vector<192x128xf32> -> vector<192x128xf32>
    %52 = vector.shape_cast %51 : vector<192x128xf32> to vector<1x12x16x128xf32>
    %c1_34 = arith.constant 1 : index
    %c1_35 = arith.constant 1 : index
    %c0_36 = arith.constant 0 : index
    %c0_37 = arith.constant 0 : index
    %53 = vector.load %arg6[%c1_34, %c1_35, %c0_36, %c0_37] : memref<5x3x384x128xbf16, #tpu.memory_space<vmem>>, vector<1x1x384x128xbf16>
    %54 = vector.shape_cast %53 : vector<1x1x384x128xbf16> to vector<384x128xbf16>
    %cst_38 = arith.constant dense<0.000000e+00> : vector<192x128xf32>
    %55 = tpu.matmul %48, %54, %cst_38 {dimension_numbers = #tpu.dot_dimension_numbers<[1], [0], [0], [1], [0, 0, 1, 1], [], []>} : vector<192x384xbf16>, vector<384x128xbf16>, vector<192x128xf32> -> vector<192x128xf32>
    %56 = vector.shape_cast %55 : vector<192x128xf32> to vector<1x12x16x128xf32>
    %c1_39 = arith.constant 1 : index
    %c2_40 = arith.constant 2 : index
    %c0_41 = arith.constant 0 : index
    %c0_42 = arith.constant 0 : index
    %57 = vector.load %arg6[%c1_39, %c2_40, %c0_41, %c0_42] : memref<5x3x384x128xbf16, #tpu.memory_space<vmem>>, vector<1x1x384x128xbf16>
    %58 = vector.shape_cast %57 : vector<1x1x384x128xbf16> to vector<384x128xbf16>
    %cst_43 = arith.constant dense<0.000000e+00> : vector<192x128xf32>
    %59 = tpu.matmul %48, %58, %cst_43 {dimension_numbers = #tpu.dot_dimension_numbers<[1], [0], [0], [1], [0, 0, 1, 1], [], []>} : vector<192x384xbf16>, vector<384x128xbf16>, vector<192x128xf32> -> vector<192x128xf32>
    %60 = vector.shape_cast %59 : vector<192x128xf32> to vector<1x12x16x128xf32>
    %c15_i32_44 = arith.constant 15 : i32
    %61 = tpu.dynamic_rotate %56 by %c15_i32_44 dim 2 : vector<1x12x16x128xf32>, i32 -> vector<1x12x16x128xf32>
    %62 = arith.addf %52, %61 : vector<1x12x16x128xf32>
    %c14_i32_45 = arith.constant 14 : i32
    %63 = tpu.dynamic_rotate %60 by %c14_i32_45 dim 2 : vector<1x12x16x128xf32>, i32 -> vector<1x12x16x128xf32>
    %64 = arith.addf %62, %63 : vector<1x12x16x128xf32>
    %c1_46 = arith.constant 1 : index
    %c0_47 = arith.constant 0 : index
    %c0_48 = arith.constant 0 : index
    %c0_49 = arith.constant 0 : index
    %65 = vector.load %arg4[%c1_46, %c0_47, %c0_48, %c0_49] : memref<5x3x1x128xf32, #tpu.memory_space<vmem>>, vector<1x1x1x128xf32>
    %66 = vector.shape_cast %65 : vector<1x1x1x128xf32> to vector<1x128xf32>
    %67 = vector.shape_cast %66 : vector<1x128xf32> to vector<1x1x1x128xf32>
    %68 = vector.broadcast %67 : vector<1x1x1x128xf32> to vector<1x12x16x128xf32>
    %69 = arith.addf %64, %68 : vector<1x12x16x128xf32>
    %cst_50 = arith.constant 2.000000e-01 : f32
    %70 = vector.broadcast %cst_50 : f32 to vector<1x12x16x128xf32>
    %71 = arith.mulf %70, %69 : vector<1x12x16x128xf32>
    %72 = arith.maximumf %69, %71 : vector<1x12x16x128xf32>
    %c1_51 = arith.constant 1 : index
    %c1_52 = arith.constant 1 : index
    %c0_53 = arith.constant 0 : index
    %c0_54 = arith.constant 0 : index
    %73 = vector.load %arg4[%c1_51, %c1_52, %c0_53, %c0_54] : memref<5x3x1x128xf32, #tpu.memory_space<vmem>>, vector<1x1x1x128xf32>
    %74 = vector.shape_cast %73 : vector<1x1x1x128xf32> to vector<1x128xf32>
    %75 = vector.shape_cast %74 : vector<1x128xf32> to vector<1x1x1x128xf32>
    %76 = vector.broadcast %75 : vector<1x1x1x128xf32> to vector<1x12x16x128xf32>
    %77 = arith.mulf %72, %76 : vector<1x12x16x128xf32>
    %c1_55 = arith.constant 1 : index
    %c2_56 = arith.constant 2 : index
    %c0_57 = arith.constant 0 : index
    %c0_58 = arith.constant 0 : index
    %78 = vector.load %arg4[%c1_55, %c2_56, %c0_57, %c0_58] : memref<5x3x1x128xf32, #tpu.memory_space<vmem>>, vector<1x1x1x128xf32>
    %79 = vector.shape_cast %78 : vector<1x1x1x128xf32> to vector<1x128xf32>
    %80 = vector.shape_cast %79 : vector<1x128xf32> to vector<1x1x1x128xf32>
    %81 = vector.broadcast %80 : vector<1x1x1x128xf32> to vector<1x12x16x128xf32>
    %82 = arith.addf %77, %81 : vector<1x12x16x128xf32>
    %83 = arith.truncf %82 : vector<1x12x16x128xf32> to vector<1x12x16x128xbf16>
    %84 = vector.extract_strided_slice %83 {offsets = [0, 0, 0, 0], sizes = [1, 10, 16, 128], strides = [1, 1, 1, 1]} : vector<1x12x16x128xbf16> to vector<1x10x16x128xbf16>
    %85 = vector.extract_strided_slice %83 {offsets = [0, 1, 0, 0], sizes = [1, 10, 16, 128], strides = [1, 1, 1, 1]} : vector<1x12x16x128xbf16> to vector<1x10x16x128xbf16>
    %86 = vector.extract_strided_slice %83 {offsets = [0, 2, 0, 0], sizes = [1, 10, 16, 128], strides = [1, 1, 1, 1]} : vector<1x12x16x128xbf16> to vector<1x10x16x128xbf16>
    %87 = tpu.concatenate %84, %85, %86 in 3 : vector<1x10x16x128xbf16>, vector<1x10x16x128xbf16>, vector<1x10x16x128xbf16> -> vector<1x10x16x384xbf16>
    %88 = vector.shape_cast %87 : vector<1x10x16x384xbf16> to vector<160x384xbf16>
    %c2_59 = arith.constant 2 : index
    %c0_60 = arith.constant 0 : index
    %c0_61 = arith.constant 0 : index
    %c0_62 = arith.constant 0 : index
    %89 = vector.load %arg6[%c2_59, %c0_60, %c0_61, %c0_62] : memref<5x3x384x128xbf16, #tpu.memory_space<vmem>>, vector<1x1x384x128xbf16>
    %90 = vector.shape_cast %89 : vector<1x1x384x128xbf16> to vector<384x128xbf16>
    %cst_63 = arith.constant dense<0.000000e+00> : vector<160x128xf32>
    %91 = tpu.matmul %88, %90, %cst_63 {dimension_numbers = #tpu.dot_dimension_numbers<[1], [0], [0], [1], [0, 0, 1, 1], [], []>} : vector<160x384xbf16>, vector<384x128xbf16>, vector<160x128xf32> -> vector<160x128xf32>
    %92 = vector.shape_cast %91 : vector<160x128xf32> to vector<1x10x16x128xf32>
    %c2_64 = arith.constant 2 : index
    %c1_65 = arith.constant 1 : index
    %c0_66 = arith.constant 0 : index
    %c0_67 = arith.constant 0 : index
    %93 = vector.load %arg6[%c2_64, %c1_65, %c0_66, %c0_67] : memref<5x3x384x128xbf16, #tpu.memory_space<vmem>>, vector<1x1x384x128xbf16>
    %94 = vector.shape_cast %93 : vector<1x1x384x128xbf16> to vector<384x128xbf16>
    %cst_68 = arith.constant dense<0.000000e+00> : vector<160x128xf32>
    %95 = tpu.matmul %88, %94, %cst_68 {dimension_numbers = #tpu.dot_dimension_numbers<[1], [0], [0], [1], [0, 0, 1, 1], [], []>} : vector<160x384xbf16>, vector<384x128xbf16>, vector<160x128xf32> -> vector<160x128xf32>
    %96 = vector.shape_cast %95 : vector<160x128xf32> to vector<1x10x16x128xf32>
    %c2_69 = arith.constant 2 : index
    %c2_70 = arith.constant 2 : index
    %c0_71 = arith.constant 0 : index
    %c0_72 = arith.constant 0 : index
    %97 = vector.load %arg6[%c2_69, %c2_70, %c0_71, %c0_72] : memref<5x3x384x128xbf16, #tpu.memory_space<vmem>>, vector<1x1x384x128xbf16>
    %98 = vector.shape_cast %97 : vector<1x1x384x128xbf16> to vector<384x128xbf16>
    %cst_73 = arith.constant dense<0.000000e+00> : vector<160x128xf32>
    %99 = tpu.matmul %88, %98, %cst_73 {dimension_numbers = #tpu.dot_dimension_numbers<[1], [0], [0], [1], [0, 0, 1, 1], [], []>} : vector<160x384xbf16>, vector<384x128xbf16>, vector<160x128xf32> -> vector<160x128xf32>
    %100 = vector.shape_cast %99 : vector<160x128xf32> to vector<1x10x16x128xf32>
    %c15_i32_74 = arith.constant 15 : i32
    %101 = tpu.dynamic_rotate %96 by %c15_i32_74 dim 2 : vector<1x10x16x128xf32>, i32 -> vector<1x10x16x128xf32>
    %102 = arith.addf %92, %101 : vector<1x10x16x128xf32>
    %c14_i32_75 = arith.constant 14 : i32
    %103 = tpu.dynamic_rotate %100 by %c14_i32_75 dim 2 : vector<1x10x16x128xf32>, i32 -> vector<1x10x16x128xf32>
    %104 = arith.addf %102, %103 : vector<1x10x16x128xf32>
    %c2_76 = arith.constant 2 : index
    %c0_77 = arith.constant 0 : index
    %c0_78 = arith.constant 0 : index
    %c0_79 = arith.constant 0 : index
    %105 = vector.load %arg4[%c2_76, %c0_77, %c0_78, %c0_79] : memref<5x3x1x128xf32, #tpu.memory_space<vmem>>, vector<1x1x1x128xf32>
    %106 = vector.shape_cast %105 : vector<1x1x1x128xf32> to vector<1x128xf32>
    %107 = vector.shape_cast %106 : vector<1x128xf32> to vector<1x1x1x128xf32>
    %108 = vector.broadcast %107 : vector<1x1x1x128xf32> to vector<1x10x16x128xf32>
    %109 = arith.addf %104, %108 : vector<1x10x16x128xf32>
    %cst_80 = arith.constant 2.000000e-01 : f32
    %110 = vector.broadcast %cst_80 : f32 to vector<1x10x16x128xf32>
    %111 = arith.mulf %110, %109 : vector<1x10x16x128xf32>
    %112 = arith.maximumf %109, %111 : vector<1x10x16x128xf32>
    %c2_81 = arith.constant 2 : index
    %c1_82 = arith.constant 1 : index
    %c0_83 = arith.constant 0 : index
    %c0_84 = arith.constant 0 : index
    %113 = vector.load %arg4[%c2_81, %c1_82, %c0_83, %c0_84] : memref<5x3x1x128xf32, #tpu.memory_space<vmem>>, vector<1x1x1x128xf32>
    %114 = vector.shape_cast %113 : vector<1x1x1x128xf32> to vector<1x128xf32>
    %115 = vector.shape_cast %114 : vector<1x128xf32> to vector<1x1x1x128xf32>
    %116 = vector.broadcast %115 : vector<1x1x1x128xf32> to vector<1x10x16x128xf32>
    %117 = arith.mulf %112, %116 : vector<1x10x16x128xf32>
    %c2_85 = arith.constant 2 : index
    %c2_86 = arith.constant 2 : index
    %c0_87 = arith.constant 0 : index
    %c0_88 = arith.constant 0 : index
    %118 = vector.load %arg4[%c2_85, %c2_86, %c0_87, %c0_88] : memref<5x3x1x128xf32, #tpu.memory_space<vmem>>, vector<1x1x1x128xf32>
    %119 = vector.shape_cast %118 : vector<1x1x1x128xf32> to vector<1x128xf32>
    %120 = vector.shape_cast %119 : vector<1x128xf32> to vector<1x1x1x128xf32>
    %121 = vector.broadcast %120 : vector<1x1x1x128xf32> to vector<1x10x16x128xf32>
    %122 = arith.addf %117, %121 : vector<1x10x16x128xf32>
    %123 = arith.truncf %122 : vector<1x10x16x128xf32> to vector<1x10x16x128xbf16>
    %124 = vector.extract_strided_slice %123 {offsets = [0, 0, 0, 0], sizes = [1, 8, 16, 128], strides = [1, 1, 1, 1]} : vector<1x10x16x128xbf16> to vector<1x8x16x128xbf16>
    %125 = vector.extract_strided_slice %123 {offsets = [0, 1, 0, 0], sizes = [1, 8, 16, 128], strides = [1, 1, 1, 1]} : vector<1x10x16x128xbf16> to vector<1x8x16x128xbf16>
    %126 = vector.extract_strided_slice %123 {offsets = [0, 2, 0, 0], sizes = [1, 8, 16, 128], strides = [1, 1, 1, 1]} : vector<1x10x16x128xbf16> to vector<1x8x16x128xbf16>
    %127 = tpu.concatenate %124, %125, %126 in 3 : vector<1x8x16x128xbf16>, vector<1x8x16x128xbf16>, vector<1x8x16x128xbf16> -> vector<1x8x16x384xbf16>
    %128 = vector.shape_cast %127 : vector<1x8x16x384xbf16> to vector<128x384xbf16>
    %c3 = arith.constant 3 : index
    %c0_89 = arith.constant 0 : index
    %c0_90 = arith.constant 0 : index
    %c0_91 = arith.constant 0 : index
    %129 = vector.load %arg6[%c3, %c0_89, %c0_90, %c0_91] : memref<5x3x384x128xbf16, #tpu.memory_space<vmem>>, vector<1x1x384x128xbf16>
    %130 = vector.shape_cast %129 : vector<1x1x384x128xbf16> to vector<384x128xbf16>
    %cst_92 = arith.constant dense<0.000000e+00> : vector<128x128xf32>
    %131 = tpu.matmul %128, %130, %cst_92 {dimension_numbers = #tpu.dot_dimension_numbers<[1], [0], [0], [1], [0, 0, 1, 1], [], []>} : vector<128x384xbf16>, vector<384x128xbf16>, vector<128x128xf32> -> vector<128x128xf32>
    %132 = vector.shape_cast %131 : vector<128x128xf32> to vector<1x8x16x128xf32>
    %c3_93 = arith.constant 3 : index
    %c1_94 = arith.constant 1 : index
    %c0_95 = arith.constant 0 : index
    %c0_96 = arith.constant 0 : index
    %133 = vector.load %arg6[%c3_93, %c1_94, %c0_95, %c0_96] : memref<5x3x384x128xbf16, #tpu.memory_space<vmem>>, vector<1x1x384x128xbf16>
    %134 = vector.shape_cast %133 : vector<1x1x384x128xbf16> to vector<384x128xbf16>
    %cst_97 = arith.constant dense<0.000000e+00> : vector<128x128xf32>
    %135 = tpu.matmul %128, %134, %cst_97 {dimension_numbers = #tpu.dot_dimension_numbers<[1], [0], [0], [1], [0, 0, 1, 1], [], []>} : vector<128x384xbf16>, vector<384x128xbf16>, vector<128x128xf32> -> vector<128x128xf32>
    %136 = vector.shape_cast %135 : vector<128x128xf32> to vector<1x8x16x128xf32>
    %c3_98 = arith.constant 3 : index
    %c2_99 = arith.constant 2 : index
    %c0_100 = arith.constant 0 : index
    %c0_101 = arith.constant 0 : index
    %137 = vector.load %arg6[%c3_98, %c2_99, %c0_100, %c0_101] : memref<5x3x384x128xbf16, #tpu.memory_space<vmem>>, vector<1x1x384x128xbf16>
    %138 = vector.shape_cast %137 : vector<1x1x384x128xbf16> to vector<384x128xbf16>
    %cst_102 = arith.constant dense<0.000000e+00> : vector<128x128xf32>
    %139 = tpu.matmul %128, %138, %cst_102 {dimension_numbers = #tpu.dot_dimension_numbers<[1], [0], [0], [1], [0, 0, 1, 1], [], []>} : vector<128x384xbf16>, vector<384x128xbf16>, vector<128x128xf32> -> vector<128x128xf32>
    %140 = vector.shape_cast %139 : vector<128x128xf32> to vector<1x8x16x128xf32>
    %c15_i32_103 = arith.constant 15 : i32
    %141 = tpu.dynamic_rotate %136 by %c15_i32_103 dim 2 : vector<1x8x16x128xf32>, i32 -> vector<1x8x16x128xf32>
    %142 = arith.addf %132, %141 : vector<1x8x16x128xf32>
    %c14_i32_104 = arith.constant 14 : i32
    %143 = tpu.dynamic_rotate %140 by %c14_i32_104 dim 2 : vector<1x8x16x128xf32>, i32 -> vector<1x8x16x128xf32>
    %144 = arith.addf %142, %143 : vector<1x8x16x128xf32>
    %c3_105 = arith.constant 3 : index
    %c0_106 = arith.constant 0 : index
    %c0_107 = arith.constant 0 : index
    %c0_108 = arith.constant 0 : index
    %145 = vector.load %arg4[%c3_105, %c0_106, %c0_107, %c0_108] : memref<5x3x1x128xf32, #tpu.memory_space<vmem>>, vector<1x1x1x128xf32>
    %146 = vector.shape_cast %145 : vector<1x1x1x128xf32> to vector<1x128xf32>
    %147 = vector.shape_cast %146 : vector<1x128xf32> to vector<1x1x1x128xf32>
    %148 = vector.broadcast %147 : vector<1x1x1x128xf32> to vector<1x8x16x128xf32>
    %149 = arith.addf %144, %148 : vector<1x8x16x128xf32>
    %cst_109 = arith.constant 2.000000e-01 : f32
    %150 = vector.broadcast %cst_109 : f32 to vector<1x8x16x128xf32>
    %151 = arith.mulf %150, %149 : vector<1x8x16x128xf32>
    %152 = arith.maximumf %149, %151 : vector<1x8x16x128xf32>
    %c3_110 = arith.constant 3 : index
    %c1_111 = arith.constant 1 : index
    %c0_112 = arith.constant 0 : index
    %c0_113 = arith.constant 0 : index
    %153 = vector.load %arg4[%c3_110, %c1_111, %c0_112, %c0_113] : memref<5x3x1x128xf32, #tpu.memory_space<vmem>>, vector<1x1x1x128xf32>
    %154 = vector.shape_cast %153 : vector<1x1x1x128xf32> to vector<1x128xf32>
    %155 = vector.shape_cast %154 : vector<1x128xf32> to vector<1x1x1x128xf32>
    %156 = vector.broadcast %155 : vector<1x1x1x128xf32> to vector<1x8x16x128xf32>
    %157 = arith.mulf %152, %156 : vector<1x8x16x128xf32>
    %c3_114 = arith.constant 3 : index
    %c2_115 = arith.constant 2 : index
    %c0_116 = arith.constant 0 : index
    %c0_117 = arith.constant 0 : index
    %158 = vector.load %arg4[%c3_114, %c2_115, %c0_116, %c0_117] : memref<5x3x1x128xf32, #tpu.memory_space<vmem>>, vector<1x1x1x128xf32>
    %159 = vector.shape_cast %158 : vector<1x1x1x128xf32> to vector<1x128xf32>
    %160 = vector.shape_cast %159 : vector<1x128xf32> to vector<1x1x1x128xf32>
    %161 = vector.broadcast %160 : vector<1x1x1x128xf32> to vector<1x8x16x128xf32>
    %162 = arith.addf %157, %161 : vector<1x8x16x128xf32>
    %163 = arith.truncf %162 : vector<1x8x16x128xf32> to vector<1x8x16x128xbf16>
    %164 = vector.extract_strided_slice %163 {offsets = [0, 0, 0, 0], sizes = [1, 6, 16, 128], strides = [1, 1, 1, 1]} : vector<1x8x16x128xbf16> to vector<1x6x16x128xbf16>
    %165 = vector.extract_strided_slice %163 {offsets = [0, 1, 0, 0], sizes = [1, 6, 16, 128], strides = [1, 1, 1, 1]} : vector<1x8x16x128xbf16> to vector<1x6x16x128xbf16>
    %166 = vector.extract_strided_slice %163 {offsets = [0, 2, 0, 0], sizes = [1, 6, 16, 128], strides = [1, 1, 1, 1]} : vector<1x8x16x128xbf16> to vector<1x6x16x128xbf16>
    %167 = tpu.concatenate %164, %165, %166 in 3 : vector<1x6x16x128xbf16>, vector<1x6x16x128xbf16>, vector<1x6x16x128xbf16> -> vector<1x6x16x384xbf16>
    %168 = vector.shape_cast %167 : vector<1x6x16x384xbf16> to vector<96x384xbf16>
    %c4 = arith.constant 4 : index
    %c0_118 = arith.constant 0 : index
    %c0_119 = arith.constant 0 : index
    %c0_120 = arith.constant 0 : index
    %169 = vector.load %arg6[%c4, %c0_118, %c0_119, %c0_120] : memref<5x3x384x128xbf16, #tpu.memory_space<vmem>>, vector<1x1x384x128xbf16>
    %170 = vector.shape_cast %169 : vector<1x1x384x128xbf16> to vector<384x128xbf16>
    %cst_121 = arith.constant dense<0.000000e+00> : vector<96x128xf32>
    %171 = tpu.matmul %168, %170, %cst_121 {dimension_numbers = #tpu.dot_dimension_numbers<[1], [0], [0], [1], [0, 0, 1, 1], [], []>} : vector<96x384xbf16>, vector<384x128xbf16>, vector<96x128xf32> -> vector<96x128xf32>
    %172 = vector.shape_cast %171 : vector<96x128xf32> to vector<1x6x16x128xf32>
    %c4_122 = arith.constant 4 : index
    %c1_123 = arith.constant 1 : index
    %c0_124 = arith.constant 0 : index
    %c0_125 = arith.constant 0 : index
    %173 = vector.load %arg6[%c4_122, %c1_123, %c0_124, %c0_125] : memref<5x3x384x128xbf16, #tpu.memory_space<vmem>>, vector<1x1x384x128xbf16>
    %174 = vector.shape_cast %173 : vector<1x1x384x128xbf16> to vector<384x128xbf16>
    %cst_126 = arith.constant dense<0.000000e+00> : vector<96x128xf32>
    %175 = tpu.matmul %168, %174, %cst_126 {dimension_numbers = #tpu.dot_dimension_numbers<[1], [0], [0], [1], [0, 0, 1, 1], [], []>} : vector<96x384xbf16>, vector<384x128xbf16>, vector<96x128xf32> -> vector<96x128xf32>
    %176 = vector.shape_cast %175 : vector<96x128xf32> to vector<1x6x16x128xf32>
    %c4_127 = arith.constant 4 : index
    %c2_128 = arith.constant 2 : index
    %c0_129 = arith.constant 0 : index
    %c0_130 = arith.constant 0 : index
    %177 = vector.load %arg6[%c4_127, %c2_128, %c0_129, %c0_130] : memref<5x3x384x128xbf16, #tpu.memory_space<vmem>>, vector<1x1x384x128xbf16>
    %178 = vector.shape_cast %177 : vector<1x1x384x128xbf16> to vector<384x128xbf16>
    %cst_131 = arith.constant dense<0.000000e+00> : vector<96x128xf32>
    %179 = tpu.matmul %168, %178, %cst_131 {dimension_numbers = #tpu.dot_dimension_numbers<[1], [0], [0], [1], [0, 0, 1, 1], [], []>} : vector<96x384xbf16>, vector<384x128xbf16>, vector<96x128xf32> -> vector<96x128xf32>
    %180 = vector.shape_cast %179 : vector<96x128xf32> to vector<1x6x16x128xf32>
    %c15_i32_132 = arith.constant 15 : i32
    %181 = tpu.dynamic_rotate %176 by %c15_i32_132 dim 2 : vector<1x6x16x128xf32>, i32 -> vector<1x6x16x128xf32>
    %182 = arith.addf %172, %181 : vector<1x6x16x128xf32>
    %c14_i32_133 = arith.constant 14 : i32
    %183 = tpu.dynamic_rotate %180 by %c14_i32_133 dim 2 : vector<1x6x16x128xf32>, i32 -> vector<1x6x16x128xf32>
    %184 = arith.addf %182, %183 : vector<1x6x16x128xf32>
    %c4_134 = arith.constant 4 : index
    %c0_135 = arith.constant 0 : index
    %c0_136 = arith.constant 0 : index
    %c0_137 = arith.constant 0 : index
    %185 = vector.load %arg4[%c4_134, %c0_135, %c0_136, %c0_137] : memref<5x3x1x128xf32, #tpu.memory_space<vmem>>, vector<1x1x1x128xf32>
    %186 = vector.shape_cast %185 : vector<1x1x1x128xf32> to vector<1x128xf32>
    %187 = vector.shape_cast %186 : vector<1x128xf32> to vector<1x1x1x128xf32>
    %188 = vector.broadcast %187 : vector<1x1x1x128xf32> to vector<1x6x16x128xf32>
    %189 = arith.addf %184, %188 : vector<1x6x16x128xf32>
    %cst_138 = arith.constant 2.000000e-01 : f32
    %190 = vector.broadcast %cst_138 : f32 to vector<1x6x16x128xf32>
    %191 = arith.mulf %190, %189 : vector<1x6x16x128xf32>
    %192 = arith.maximumf %189, %191 : vector<1x6x16x128xf32>
    %c4_139 = arith.constant 4 : index
    %c1_140 = arith.constant 1 : index
    %c0_141 = arith.constant 0 : index
    %c0_142 = arith.constant 0 : index
    %193 = vector.load %arg4[%c4_139, %c1_140, %c0_141, %c0_142] : memref<5x3x1x128xf32, #tpu.memory_space<vmem>>, vector<1x1x1x128xf32>
    %194 = vector.shape_cast %193 : vector<1x1x1x128xf32> to vector<1x128xf32>
    %195 = vector.shape_cast %194 : vector<1x128xf32> to vector<1x1x1x128xf32>
    %196 = vector.broadcast %195 : vector<1x1x1x128xf32> to vector<1x6x16x128xf32>
    %197 = arith.mulf %192, %196 : vector<1x6x16x128xf32>
    %c4_143 = arith.constant 4 : index
    %c2_144 = arith.constant 2 : index
    %c0_145 = arith.constant 0 : index
    %c0_146 = arith.constant 0 : index
    %198 = vector.load %arg4[%c4_143, %c2_144, %c0_145, %c0_146] : memref<5x3x1x128xf32, #tpu.memory_space<vmem>>, vector<1x1x1x128xf32>
    %199 = vector.shape_cast %198 : vector<1x1x1x128xf32> to vector<1x128xf32>
    %200 = vector.shape_cast %199 : vector<1x128xf32> to vector<1x1x1x128xf32>
    %201 = vector.broadcast %200 : vector<1x1x1x128xf32> to vector<1x6x16x128xf32>
    %202 = arith.addf %197, %201 : vector<1x6x16x128xf32>
    %c0_147 = arith.constant 0 : index
    %c0_148 = arith.constant 0 : index
    %c0_149 = arith.constant 0 : index
    %c0_150 = arith.constant 0 : index
    %203 = vector.load %arg5[%c0_147, %c0_148, %c0_149, %c0_150] : memref<1x6x16x128xf32, #tpu.memory_space<vmem>>, vector<1x6x16x128xf32>
    tpu.vector_store %arg5[%c0_147, %c0_148, %c0_149, %c0_150], %202 {strides = array<i32>} : memref<1x6x16x128xf32, #tpu.memory_space<vmem>>, vector<1x6x16x128xf32>,
    return
  }
  func.func @transform_0(%arg0: i32, %arg1: i32) -> (i32, i32, i32, i32) {
    %c1_i32 = arith.constant 1 : i32
    %0 = arith.muli %arg0, %c1_i32 : i32
    %1 = arith.addi %0, %arg1 : i32
    %c0_i32 = arith.constant 0 : i32
    %c0_i32_0 = arith.constant 0 : i32
    %c0_i32_1 = arith.constant 0 : i32
    %c0_i32_2 = arith.constant 0 : i32
    return %1, %c0_i32, %c0_i32_0, %c0_i32_1 : i32, i32, i32, i32
  }
  func.func @transform_1(%arg0: i32, %arg1: i32) -> (i32, i32, i32, i32) {
    %c0_i32 = arith.constant 0 : i32
    %c0_i32_0 = arith.constant 0 : i32
    %c0_i32_1 = arith.constant 0 : i32
    %c0_i32_2 = arith.constant 0 : i32
    %c0_i32_3 = arith.constant 0 : i32
    return %c0_i32, %c0_i32_0, %c0_i32_1, %c0_i32_2 : i32, i32, i32, i32
  }
  func.func @transform_2(%arg0: i32, %arg1: i32) -> (i32, i32, i32, i32) {
    %c0_i32 = arith.constant 0 : i32
    %c0_i32_0 = arith.constant 0 : i32
    %c0_i32_1 = arith.constant 0 : i32
    %c0_i32_2 = arith.constant 0 : i32
    %c0_i32_3 = arith.constant 0 : i32
    return %c0_i32, %c0_i32_0, %c0_i32_1, %c0_i32_2 : i32, i32, i32, i32
  }
  func.func @transform_3(%arg0: i32, %arg1: i32) -> (i32, i32, i32, i32) {
    %c1_i32 = arith.constant 1 : i32
    %0 = arith.muli %arg0, %c1_i32 : i32
    %1 = arith.addi %0, %arg1 : i32
    %c0_i32 = arith.constant 0 : i32
    %c0_i32_0 = arith.constant 0 : i32
    %c0_i32_1 = arith.constant 0 : i32
    %c0_i32_2 = arith.constant 0 : i32
    return %1, %c0_i32, %c0_i32_0, %c0_i32_1 : i32, i32, i32, i32
  }
}

</mosaic_0001>

<llo_original>
// kernel: encoder_forward.1
$region0: #{encoder_forward.1}
  #allocation0 [shape = 'u32[]', space=smem, size = 0x4, offset = 0x4, fixed_abs, tag = 'smem constant byte address 0x4 - core index']
  #allocation1 [shape = 'u32[144,128]{1,0:T(1,128)}', space=vmem, size = 0x12000, scoped, tag = 'internal scratch']
  #allocation2 [shape = 'bf16[5,3,384,128]{3,2,1,0:T(16,128)(2,1)}', space=vmem, size = 0x168000, scoped, tag = 'scratch operand']
  %s0 = inlined_call_operand.vmem [shape: bf16[2,16,16,128], index: 0, kind: input, shape index: {}]
  %s1 = inlined_call_operand.vmem [shape: bf16[5,3,96,128], index: 1, kind: input, shape index: {}]
  %s2 = inlined_call_operand.vmem [shape: f32[5,3,1,128], index: 2, kind: input, shape index: {}]
  %s3 = inlined_call_operand.vmem [shape: f32[2,6,16,128], index: 3, kind: output, shape index: {}]
  %s4 = sld [smem:[#allocation0]]
  $region49: #{encoder_forward.1} parent=0
    _
  %s6 = ssub.s32 1, %s4
  %s7 = scalar_select 0, %s6, %s4
  loop: start=0, step=1, limit=4
  $region2: #{encoder_forward.1} parent=0 // loop_pre_header
    _
  $region3: #{encoder_forward.1} parent=0 // loop_header
    %s9 = sphi 0, %s13
    %p10 = scmp.ge.s32.totalorder %s9, 4
    %s16 = sphi 0, %s28
    %s17 = sphi 0, %s24
    %s18 = sphi 0, %s16
    %s19 = sphi 0, %s17
    %s20 = sphi 0, %s18
    %s21 = sphi 0, %s19
    %s33 = sphi 0, %s35
    %s36 = sphi 0, %s33
    %s37 = sphi 0, %s36
    %s53 = sphi 0, %s37
    %s57 = sphi 0, %s57
    %s59 = sphi 0, %s57
    %s60 = sphi 0, %s59
    %s74 = sphi 0, %s60
    %s78 = sphi 0, %s78
    %s80 = sphi 0, %s78
    %s81 = sphi 0, %s80
    %s95 = sphi 0, %s81
    %s103 = sphi 0, %s105
    %s106 = sphi 0, %s103
    %s107 = sphi 0, %s106
    %s123 = sphi 0, %s107
  $region4: #{encoder_forward.1} parent=0 // loop_header_branch
    %12 = sbr.rel (%p10) target = $region8
  $region5: #{encoder_forward.1} parent=0 // loop_body
    %s14 = ssub.s32 %s9, 1
    %s15 = ssub.s32 %s9, 2
    %s22 = sadd.s32 1, %s17
    %p23 = scmp.ge.s32.totalorder %s22, 1
    %s24 = scalar_select %p23, 0, %s22
    %s25 = sadd.s32 1, %s16
    %s26 = scalar_select %p23, %s25, %s16
    %p27 = scmp.ge.s32.totalorder %s26, 2
    %s28 = scalar_select %p27, 0, %s26
    %s29 = sadd.s32 %s16, %s17
    %s30 = sadd.s32 %s28, %s24
    %s31 = ssub.s32 %s29, %s30
    %p32 = scmp.eq.s32.totalorder %s31, 0
    %s34 = sadd.s32 %s33, 1
    %s35 = scalar_select %p32, %s33, %s34
    %p38 = pneg %p32
    %p39 = scmp.eq.s32.totalorder %s9, 1
    %p40 = por %p38, %p39
    %p41 = scmp.ne.s32.totalorder %s33, %s36
    %p42 = scmp.eq.s32.totalorder %s9, 0
    %p43 = por %p41, %p42
    %p44 = scmp.ne.s32.totalorder %s33, %s36
    %p45 = scmp.eq.s32.totalorder %s14, 1
    %p46 = por %p44, %p45
    %p47 = scmp.ne.s32.totalorder %s36, %s37
    %p48 = scmp.eq.s32.totalorder %s14, 0
    %p49 = por %p47, %p48
    %p50 = scmp.ne.s32.totalorder %s36, %s37
    %p51 = scmp.eq.s32.totalorder %s15, 1
    %p52 = por %p50, %p51
    %p54 = scmp.ne.s32.totalorder %s37, %s53
    %p55 = scmp.eq.s32.totalorder %s15, 0
    %p56 = por %p54, %p55
    %s58 = sadd.s32 %s57, 1
    %p61 = scmp.eq.s32.totalorder %s9, 1
    %p62 = scmp.ne.s32.totalorder %s57, %s59
    %p63 = scmp.eq.s32.totalorder %s9, 0
    %p64 = por %p62, %p63
    %p65 = scmp.ne.s32.totalorder %s57, %s59
    %p66 = scmp.eq.s32.totalorder %s14, 1
    %p67 = por %p65, %p66
    %p68 = scmp.ne.s32.totalorder %s59, %s60
    %p69 = scmp.eq.s32.totalorder %s14, 0
    %p70 = por %p68, %p69
    %p71 = scmp.ne.s32.totalorder %s59, %s60
    %p72 = scmp.eq.s32.totalorder %s15, 1
    %p73 = por %p71, %p72
    %p75 = scmp.ne.s32.totalorder %s60, %s74
    %p76 = scmp.eq.s32.totalorder %s15, 0
    %p77 = por %p75, %p76
    %s79 = sadd.s32 %s78, 1
    %p82 = scmp.eq.s32.totalorder %s9, 1
    %p83 = scmp.ne.s32.totalorder %s78, %s80
    %p84 = scmp.eq.s32.totalorder %s9, 0
    %p85 = por %p83, %p84
    %p86 = scmp.ne.s32.totalorder %s78, %s80
    %p87 = scmp.eq.s32.totalorder %s14, 1
    %p88 = por %p86, %p87
    %p89 = scmp.ne.s32.totalorder %s80, %s81
    %p90 = scmp.eq.s32.totalorder %s14, 0
    %p91 = por %p89, %p90
    %p92 = scmp.ne.s32.totalorder %s80, %s81
    %p93 = scmp.eq.s32.totalorder %s15, 1
    %p94 = por %p92, %p93
    %p96 = scmp.ne.s32.totalorder %s81, %s95
    %p97 = scmp.eq.s32.totalorder %s15, 0
    %p98 = por %p96, %p97
    %s99 = sadd.s32 %s16, %s17
    %s100 = sadd.s32 %s28, %s24
    %s101 = ssub.s32 %s99, %s100
    %p102 = scmp.eq.s32.totalorder %s101, 0
    %s104 = sadd.s32 %s103, 1
    %s105 = scalar_select %p102, %s103, %s104
    %p108 = pneg %p102
    %p109 = scmp.eq.s32.totalorder %s9, 1
    %p110 = por %p108, %p109
    %p111 = scmp.ne.s32.totalorder %s103, %s106
    %p112 = scmp.eq.s32.totalorder %s9, 0
    %p113 = por %p111, %p112
    %p114 = scmp.ne.s32.totalorder %s103, %s106
    %p115 = scmp.eq.s32.totalorder %s14, 1
    %p116 = por %p114, %p115
    %p117 = scmp.ne.s32.totalorder %s106, %s107
    %p118 = scmp.eq.s32.totalorder %s14, 0
    %p119 = por %p117, %p118
    %p120 = scmp.ne.s32.totalorder %s106, %s107
    %p121 = scmp.eq.s32.totalorder %s15, 1
    %p122 = por %p120, %p121
    %p124 = scmp.ne.s32.totalorder %s107, %s123
    %p125 = scmp.eq.s32.totalorder %s15, 0
    %p126 = por %p124, %p125
    %p127 = scmp.le.s32.totalorder 1, %s9
    %p128 = scmp.lt.s32.totalorder %s9, 3
    %p129 = pnand %p127, %p128
    %p130 = pneg %p129
    // Predicated region
    $region9: #{encoder_forward.1} parent=5 // pred_check
      _
    $region10: #{encoder_forward.1} parent=5 // pred_check_branch
      %132 = sbr.rel (%p129) target = $region12
    $region11: #{encoder_forward.1} parent=5 // pred_region
      %s133 = ssub.s32 %s9, 1
      // Predicated region
      $region13: #{encoder_forward.1} parent=11 // pred_check
        %p134 = pneg %p70
      $region14: #{encoder_forward.1} parent=11 // pred_check_branch
        %136 = sbr.rel (%p134) target = $region16
      $region15: #{encoder_forward.1} parent=11 // pred_region
        _
      $region16: #{encoder_forward.1} parent=11 // pred_fallthru
        _
      // Predicated region
      $region17: #{encoder_forward.1} parent=11 // pred_check
        %p137 = pneg %p91
      $region18: #{encoder_forward.1} parent=11 // pred_check_branch
        %139 = sbr.rel (%p137) target = $region20
      $region19: #{encoder_forward.1} parent=11 // pred_region
        _
      $region20: #{encoder_forward.1} parent=11 // pred_fallthru
        _
    $region12: #{encoder_forward.1} parent=5 // pred_fallthru
      _
    %p140 = scmp.lt.s32.totalorder %s9, 2
    // Predicated region
    $region21: #{encoder_forward.1} parent=5 // pred_check
      %p141 = pneg %p140
    $region22: #{encoder_forward.1} parent=5 // pred_check_branch
      %143 = sbr.rel (%p141) target = $region24
    $region23: #{encoder_forward.1} parent=5 // pred_region
      // Predicated region
      $region25: #{encoder_forward.1} parent=23 // pred_check
        %p144 = pneg %p43
      $region26: #{encoder_forward.1} parent=23 // pred_check_branch
        %146 = sbr.rel (%p144) target = $region28
      $region27: #{encoder_forward.1} parent=23 // pred_region
        %s147 = sadd.s32 %s16, %s17
        %p148 = scmp.lt.s32.totalorder %s147, 1
        %s149 = scalar_select %p148, %s147, 1
        %s150 = smul.addr %s149, 32
        %s151 = smul.addr %s150, 4
        %s152 = scalar_lea.vmem %s0, %s151
        %s153 = sadd.s32 %s16, %s17
      $region28: #{encoder_forward.1} parent=23 // pred_fallthru
        _
    $region24: #{encoder_forward.1} parent=5 // pred_fallthru
      _
    %p154 = scmp.le.s32.totalorder 1, %s9
    %p155 = scmp.lt.s32.totalorder %s9, 3
    %p156 = pnand %p154, %p155
    %p157 = pneg %p156
    // Predicated region
    $region29: #{encoder_forward.1} parent=5 // pred_check
      _
    $region30: #{encoder_forward.1} parent=5 // pred_check_branch
      %159 = sbr.rel (%p156) target = $region32
    $region31: #{encoder_forward.1} parent=5 // pred_region
      %s160 = ssub.s32 %s9, 1
      %s161 = sadd.s32 %s18, %s19
      %p162 = scmp.lt.s32.totalorder %s161, 1
      %s163 = scalar_select %p162, %s161, 1
      %s164 = smul.addr %s163, 32
      %s165 = smul.addr %s164, 4
      %s166 = scalar_lea.vmem %s0, %s165
      %p167 = pneg %p49
      %p168 = pneg %p46
      %p169 = pneg %p70
      %p170 = pneg %p67
      %p171 = pneg %p91
      %p172 = pneg %p88
      %p173 = pneg %p119
      %p174 = pneg %p116
      %s175 = sadd.s32 %s18, %s19
      %p176 = scmp.lt.s32.totalorder %s175, 1
      %s177 = scalar_select %p176, %s175, 1
      %s178 = smul.addr %s177, 12
      %s179 = smul.addr %s178, 8
      %s180 = scalar_lea.vmem %s3, %s179
      %s181 = sadd.s32 %s18, %s19
      %p182 = scmp.lt.s32.totalorder %s181, 1
      %s183 = scalar_select %p182, %s181, 1
      %s184 = smul.addr %s183, 32
      %s185 = smul.addr %s184, 4
      %s186 = scalar_lea.vmem %s0, %s185
      %s187 = sadd.s32 %s18, %s19
      %s188 = sadd.s32 %s18, %s19
      %p189 = scmp.lt.s32.totalorder %s188, 1
      %s190 = scalar_select %p189, %s188, 1
      %s191 = smul.addr %s190, 12
      %s192 = smul.addr %s191, 8
      %s193 = scalar_lea.vmem %s3, %s192
      %s194 = sadd.s32 %s18, %s19
      %p196 = scmp.eq.s32.totalorder %s19, 0
      // Predicated region
      $region33: #{encoder_forward.1} parent=31 // pred_check
        %p197 = pneg %p196
      $region34: #{encoder_forward.1} parent=31 // pred_check_branch
        %199 = sbr.rel (%p197) target = $region36
      $region35: #{encoder_forward.1} parent=31 // pred_region
        %v200 = vld [vmem:[%s1] sm:$0xf]
        %v201 = vld [vmem:[%s1 + $0x4] sm:$0xf]
        %v202 = vld [vmem:[%s1 + $0x8] sm:$0xf]
        %v203 = vld [vmem:[%s1 + $0xc] sm:$0xf]
        %v208 = vunpack.c.l.b16 %v200
        %v209 = vunpack.c.l.b16 %v201
        %v210 = vunpack.c.l.b16 %v202
        %v211 = vunpack.c.l.b16 %v203
        %v212 = vpack.c.b16 %v209, %v208
        %v213 = vpack.c.b16 %v211, %v210
        %216 = vst [vmem:[#allocation2] sm:$0xff] %v212
        %217 = vst [vmem:[#allocation2 + $0x8] sm:$0xff] %v213
        %218 = vst [vmem:[#allocation2 + $0x10] sm:$0xff] %v212
        %219 = vst [vmem:[#allocation2 + $0x18] sm:$0xff] %v213
        %220 = vst [vmem:[#allocation2 + $0x20] sm:$0xff] %v212
        %221 = vst [vmem:[#allocation2 + $0x28] sm:$0xff] %v213
        %222 = vst [vmem:[#allocation2 + $0x30] sm:$0xff] %v212
        %223 = vst [vmem:[#allocation2 + $0x38] sm:$0xff] %v213
        %v224 = vld [vmem:[%s1 + $0x10] sm:$0xf]
        %v225 = vld [vmem:[%s1 + $0x14] sm:$0xf]
        %v226 = vld [vmem:[%s1 + $0x18] sm:$0xf]
        %v227 = vld [vmem:[%s1 + $0x1c] sm:$0xf]
        %v232 = vunpack.c.l.b16 %v224
        %v233 = vunpack.c.l.b16 %v225
        %v234 = vunpack.c.l.b16 %v226
        %v235 = vunpack.c.l.b16 %v227
        %v236 = vpack.c.b16 %v233, %v232
        %v237 = vpack.c.b16 %v235, %v234
        %240 = vst [vmem:[#allocation2 + $0x40] sm:$0xff] %v236
        %241 = vst [vmem:[#allocation2 + $0x48] sm:$0xff] %v237
        %242 = vst [vmem:[#allocation2 + $0x50] sm:$0xff] %v236
        %243 = vst [vmem:[#allocation2 + $0x58] sm:$0xff] %v237
        %244 = vst [vmem:[#allocation2 + $0x60] sm:$0xff] %v236
        %245 = vst [vmem:[#allocation2 + $0x68] sm:$0xff] %v237
        %246 = vst [vmem:[#allocation2 + $0x70] sm:$0xff] %v236
        %247 = vst [vmem:[#allocation2 + $0x78] sm:$0xff] %v237
        %v248 = vld [vmem:[%s1 + $0x20] sm:$0xf]
        %v249 = vld [vmem:[%s1 + $0x24] sm:$0xf]
        %v250 = vld [vmem:[%s1 + $0x28] sm:$0xf]
        %v251 = vld [vmem:[%s1 + $0x2c] sm:$0xf]
        %v256 = vunpack.c.l.b16 %v248
        %v257 = vunpack.c.l.b16 %v249
        %v258 = vunpack.c.l.b16 %v250
        %v259 = vunpack.c.l.b16 %v251
        %v260 = vpack.c.b16 %v257, %v256
        %v261 = vpack.c.b16 %v259, %v258
        %264 = vst [vmem:[#allocation2 + $0x80] sm:$0xff] %v260
        %265 = vst [vmem:[#allocation2 + $0x88] sm:$0xff] %v261
        %266 = vst [vmem:[#allocation2 + $0x90] sm:$0xff] %v260
        %267 = vst [vmem:[#allocation2 + $0x98] sm:$0xff] %v261
        %268 = vst [vmem:[#allocation2 + $0xa0] sm:$0xff] %v260
        %269 = vst [vmem:[#allocation2 + $0xa8] sm:$0xff] %v261
        %270 = vst [vmem:[#allocation2 + $0xb0] sm:$0xff] %v260
        %271 = vst [vmem:[#allocation2 + $0xb8] sm:$0xff] %v261
        %s272 = scalar_lea.vmem %s1, 48
        %v273 = vld [vmem:[%s272] sm:$0xf]
        %v274 = vld [vmem:[%s272 + $0x4] sm:$0xf]
        %v275 = vld [vmem:[%s272 + $0x8] sm:$0xf]
        %v276 = vld [vmem:[%s272 + $0xc] sm:$0xf]
        %v281 = vunpack.c.l.b16 %v273
        %v282 = vunpack.c.l.b16 %v274
        %v283 = vunpack.c.l.b16 %v275
        %v284 = vunpack.c.l.b16 %v276
        %v285 = vpack.c.b16 %v282, %v281
        %v286 = vpack.c.b16 %v284, %v283
        %s289 = scalar_lea.vmem [#allocation2], 192
        %290 = vst [vmem:[%s289] sm:$0xff] %v285
        %291 = vst [vmem:[%s289 + $0x8] sm:$0xff] %v286
        %292 = vst [vmem:[%s289 + $0x10] sm:$0xff] %v285
        %293 = vst [vmem:[%s289 + $0x18] sm:$0xff] %v286
        %294 = vst [vmem:[%s289 + $0x20] sm:$0xff] %v285
        %295 = vst [vmem:[%s289 + $0x28] sm:$0xff] %v286
        %296 = vst [vmem:[%s289 + $0x30] sm:$0xff] %v285
        %297 = vst [vmem:[%s289 + $0x38] sm:$0xff] %v286
        %v298 = vld [vmem:[%s272 + $0x10] sm:$0xf]
        %v299 = vld [vmem:[%s272 + $0x14] sm:$0xf]
        %v300 = vld [vmem:[%s272 + $0x18] sm:$0xf]
        %v301 = vld [vmem:[%s272 + $0x1c] sm:$0xf]
        %v306 = vunpack.c.l.b16 %v298
        %v307 = vunpack.c.l.b16 %v299
        %v308 = vunpack.c.l.b16 %v300
        %v309 = vunpack.c.l.b16 %v301
        %v310 = vpack.c.b16 %v307, %v306
        %v311 = vpack.c.b16 %v309, %v308
        %314 = vst [vmem:[%s289 + $0x40] sm:$0xff] %v310
        %315 = vst [vmem:[%s289 + $0x48] sm:$0xff] %v311
        %316 = vst [vmem:[%s289 + $0x50] sm:$0xff] %v310
        %317 = vst [vmem:[%s289 + $0x58] sm:$0xff] %v311
        %318 = vst [vmem:[%s289 + $0x60] sm:$0xff] %v310
        %319 = vst [vmem:[%s289 + $0x68] sm:$0xff] %v311
        %320 = vst [vmem:[%s289 + $0x70] sm:$0xff] %v310
        %321 = vst [vmem:[%s289 + $0x78] sm:$0xff] %v311
        %v322 = vld [vmem:[%s272 + $0x20] sm:$0xf]
        %v323 = vld [vmem:[%s272 + $0x24] sm:$0xf]
        %v324 = vld [vmem:[%s272 + $0x28] sm:$0xf]
        %v325 = vld [vmem:[%s272 + $0x2c] sm:$0xf]
        %v330 = vunpack.c.l.b16 %v322
        %v331 = vunpack.c.l.b16 %v323
        %v332 = vunpack.c.l.b16 %v324
        %v333 = vunpack.c.l.b16 %v325
        %v334 = vpack.c.b16 %v331, %v330
        %v335 = vpack.c.b16 %v333, %v332
        %338 = vst [vmem:[%s289 + $0x80] sm:$0xff] %v334
        %339 = vst [vmem:[%s289 + $0x88] sm:$0xff] %v335
        %340 = vst [vmem:[%s289 + $0x90] sm:$0xff] %v334
        %341 = vst [vmem:[%s289 + $0x98] sm:$0xff] %v335
        %342 = vst [vmem:[%s289 + $0xa0] sm:$0xff] %v334
        %343 = vst [vmem:[%s289 + $0xa8] sm:$0xff] %v335
        %344 = vst [vmem:[%s289 + $0xb0] sm:$0xff] %v334
        %345 = vst [vmem:[%s289 + $0xb8] sm:$0xff] %v335
        %s346 = scalar_lea.vmem %s1, 96
        %v347 = vld [vmem:[%s346] sm:$0xf]
        %v348 = vld [vmem:[%s346 + $0x4] sm:$0xf]
        %v349 = vld [vmem:[%s346 + $0x8] sm:$0xf]
        %v350 = vld [vmem:[%s346 + $0xc] sm:$0xf]
        %v355 = vunpack.c.l.b16 %v347
        %v356 = vunpack.c.l.b16 %v348
        %v357 = vunpack.c.l.b16 %v349
        %v358 = vunpack.c.l.b16 %v350
        %v359 = vpack.c.b16 %v356, %v355
        %v360 = vpack.c.b16 %v358, %v357
        %s363 = scalar_lea.vmem [#allocation2], 384
        %364 = vst [vmem:[%s363] sm:$0xff] %v359
        %365 = vst [vmem:[%s363 + $0x8] sm:$0xff] %v360
        %366 = vst [vmem:[%s363 + $0x10] sm:$0xff] %v359
        %367 = vst [vmem:[%s363 + $0x18] sm:$0xff] %v360
        %368 = vst [vmem:[%s363 + $0x20] sm:$0xff] %v359
        %369 = vst [vmem:[%s363 + $0x28] sm:$0xff] %v360
        %370 = vst [vmem:[%s363 + $0x30] sm:$0xff] %v359
        %371 = vst [vmem:[%s363 + $0x38] sm:$0xff] %v360
        %v372 = vld [vmem:[%s346 + $0x10] sm:$0xf]
        %v373 = vld [vmem:[%s346 + $0x14] sm:$0xf]
        %v374 = vld [vmem:[%s346 + $0x18] sm:$0xf]
        %v375 = vld [vmem:[%s346 + $0x1c] sm:$0xf]
        %v380 = vunpack.c.l.b16 %v372
        %v381 = vunpack.c.l.b16 %v373
        %v382 = vunpack.c.l.b16 %v374
        %v383 = vunpack.c.l.b16 %v375
        %v384 = vpack.c.b16 %v381, %v380
        %v385 = vpack.c.b16 %v383, %v382
        %388 = vst [vmem:[%s363 + $0x40] sm:$0xff] %v384
        %389 = vst [vmem:[%s363 + $0x48] sm:$0xff] %v385
        %390 = vst [vmem:[%s363 + $0x50] sm:$0xff] %v384
        %391 = vst [vmem:[%s363 + $0x58] sm:$0xff] %v385
        %392 = vst [vmem:[%s363 + $0x60] sm:$0xff] %v384
        %393 = vst [vmem:[%s363 + $0x68] sm:$0xff] %v385
        %394 = vst [vmem:[%s363 + $0x70] sm:$0xff] %v384
        %395 = vst [vmem:[%s363 + $0x78] sm:$0xff] %v385
        %v396 = vld [vmem:[%s346 + $0x20] sm:$0xf]
        %v397 = vld [vmem:[%s346 + $0x24] sm:$0xf]
        %v398 = vld [vmem:[%s346 + $0x28] sm:$0xf]
        %v399 = vld [vmem:[%s346 + $0x2c] sm:$0xf]
        %v404 = vunpack.c.l.b16 %v396
        %v405 = vunpack.c.l.b16 %v397
        %v406 = vunpack.c.l.b16 %v398
        %v407 = vunpack.c.l.b16 %v399
        %v408 = vpack.c.b16 %v405, %v404
        %v409 = vpack.c.b16 %v407, %v406
        %412 = vst [vmem:[%s363 + $0x80] sm:$0xff] %v408
        %413 = vst [vmem:[%s363 + $0x88] sm:$0xff] %v409
        %414 = vst [vmem:[%s363 + $0x90] sm:$0xff] %v408
        %415 = vst [vmem:[%s363 + $0x98] sm:$0xff] %v409
        %416 = vst [vmem:[%s363 + $0xa0] sm:$0xff] %v408
        %417 = vst [vmem:[%s363 + $0xa8] sm:$0xff] %v409
        %418 = vst [vmem:[%s363 + $0xb0] sm:$0xff] %v408
        %419 = vst [vmem:[%s363 + $0xb8] sm:$0xff] %v409
        %s420 = scalar_lea.vmem %s1, 144
        %v421 = vld [vmem:[%s420] sm:$0xf]
        %v422 = vld [vmem:[%s420 + $0x4] sm:$0xf]
        %v423 = vld [vmem:[%s420 + $0x8] sm:$0xf]
        %v424 = vld [vmem:[%s420 + $0xc] sm:$0xf]
        %v429 = vunpack.c.l.b16 %v421
        %v430 = vunpack.c.l.b16 %v422
        %v431 = vunpack.c.l.b16 %v423
        %v432 = vunpack.c.l.b16 %v424
        %v433 = vpack.c.b16 %v430, %v429
        %v434 = vpack.c.b16 %v432, %v431
        %s437 = scalar_lea.vmem [#allocation2], 576
        %438 = vst [vmem:[%s437] sm:$0xff] %v433
        %439 = vst [vmem:[%s437 + $0x8] sm:$0xff] %v434
        %440 = vst [vmem:[%s437 + $0x10] sm:$0xff] %v433
        %441 = vst [vmem:[%s437 + $0x18] sm:$0xff] %v434
        %442 = vst [vmem:[%s437 + $0x20] sm:$0xff] %v433
        %443 = vst [vmem:[%s437 + $0x28] sm:$0xff] %v434
        %444 = vst [vmem:[%s437 + $0x30] sm:$0xff] %v433
        %445 = vst [vmem:[%s437 + $0x38] sm:$0xff] %v434
        %v446 = vld [vmem:[%s420 + $0x10] sm:$0xf]
        %v447 = vld [vmem:[%s420 + $0x14] sm:$0xf]
        %v448 = vld [vmem:[%s420 + $0x18] sm:$0xf]
        %v449 = vld [vmem:[%s420 + $0x1c] sm:$0xf]
        %v454 = vunpack.c.l.b16 %v446
        %v455 = vunpack.c.l.b16 %v447
        %v456 = vunpack.c.l.b16 %v448
        %v457 = vunpack.c.l.b16 %v449
        %v458 = vpack.c.b16 %v455, %v454
        %v459 = vpack.c.b16 %v457, %v456
        %462 = vst [vmem:[%s437 + $0x40] sm:$0xff] %v458
        %463 = vst [vmem:[%s437 + $0x48] sm:$0xff] %v459
        %464 = vst [vmem:[%s437 + $0x50] sm:$0xff] %v458
        %465 = vst [vmem:[%s437 + $0x58] sm:$0xff] %v459
        %466 = vst [vmem:[%s437 + $0x60] sm:$0xff] %v458
        %467 = vst [vmem:[%s437 + $0x68] sm:$0xff] %v459
        %468 = vst [vmem:[%s437 + $0x70] sm:$0xff] %v458
        %469 = vst [vmem:[%s437 + $0x78] sm:$0xff] %v459
        %v470 = vld [vmem:[%s420 + $0x20] sm:$0xf]
        %v471 = vld [vmem:[%s420 + $0x24] sm:$0xf]
        %v472 = vld [vmem:[%s420 + $0x28] sm:$0xf]
        %v473 = vld [vmem:[%s420 + $0x2c] sm:$0xf]
        %v478 = vunpack.c.l.b16 %v470
        %v479 = vunpack.c.l.b16 %v471
        %v480 = vunpack.c.l.b16 %v472
        %v481 = vunpack.c.l.b16 %v473
        %v482 = vpack.c.b16 %v479, %v478
        %v483 = vpack.c.b16 %v481, %v480
        %486 = vst [vmem:[%s437 + $0x80] sm:$0xff] %v482
        %487 = vst [vmem:[%s437 + $0x88] sm:$0xff] %v483
        %488 = vst [vmem:[%s437 + $0x90] sm:$0xff] %v482
        %489 = vst [vmem:[%s437 + $0x98] sm:$0xff] %v483
        %490 = vst [vmem:[%s437 + $0xa0] sm:$0xff] %v482
        %491 = vst [vmem:[%s437 + $0xa8] sm:$0xff] %v483
        %492 = vst [vmem:[%s437 + $0xb0] sm:$0xff] %v482
        %493 = vst [vmem:[%s437 + $0xb8] sm:$0xff] %v483
        %s494 = scalar_lea.vmem %s1, 192
        %v495 = vld [vmem:[%s494] sm:$0xf]
        %v496 = vld [vmem:[%s494 + $0x4] sm:$0xf]
        %v497 = vld [vmem:[%s494 + $0x8] sm:$0xf]
        %v498 = vld [vmem:[%s494 + $0xc] sm:$0xf]
        %v503 = vunpack.c.l.b16 %v495
        %v504 = vunpack.c.l.b16 %v496
        %v505 = vunpack.c.l.b16 %v497
        %v506 = vunpack.c.l.b16 %v498
        %v507 = vpack.c.b16 %v504, %v503
        %v508 = vpack.c.b16 %v506, %v505
        %s511 = scalar_lea.vmem [#allocation2], 768
        %512 = vst [vmem:[%s511] sm:$0xff] %v507
        %513 = vst [vmem:[%s511 + $0x8] sm:$0xff] %v508
        %514 = vst [vmem:[%s511 + $0x10] sm:$0xff] %v507
        %515 = vst [vmem:[%s511 + $0x18] sm:$0xff] %v508
        %516 = vst [vmem:[%s511 + $0x20] sm:$0xff] %v507
        %517 = vst [vmem:[%s511 + $0x28] sm:$0xff] %v508
        %518 = vst [vmem:[%s511 + $0x30] sm:$0xff] %v507
        %519 = vst [vmem:[%s511 + $0x38] sm:$0xff] %v508
        %v520 = vld [vmem:[%s494 + $0x10] sm:$0xf]
        %v521 = vld [vmem:[%s494 + $0x14] sm:$0xf]
        %v522 = vld [vmem:[%s494 + $0x18] sm:$0xf]
        %v523 = vld [vmem:[%s494 + $0x1c] sm:$0xf]
        %v528 = vunpack.c.l.b16 %v520
        %v529 = vunpack.c.l.b16 %v521
        %v530 = vunpack.c.l.b16 %v522
        %v531 = vunpack.c.l.b16 %v523
        %v532 = vpack.c.b16 %v529, %v528
        %v533 = vpack.c.b16 %v531, %v530
        %536 = vst [vmem:[%s511 + $0x40] sm:$0xff] %v532
        %537 = vst [vmem:[%s511 + $0x48] sm:$0xff] %v533
        %538 = vst [vmem:[%s511 + $0x50] sm:$0xff] %v532
        %539 = vst [vmem:[%s511 + $0x58] sm:$0xff] %v533
        %540 = vst [vmem:[%s511 + $0x60] sm:$0xff] %v532
        %541 = vst [vmem:[%s511 + $0x68] sm:$0xff] %v533
        %542 = vst [vmem:[%s511 + $0x70] sm:$0xff] %v532
        %543 = vst [vmem:[%s511 + $0x78] sm:$0xff] %v533
        %v544 = vld [vmem:[%s494 + $0x20] sm:$0xf]
        %v545 = vld [vmem:[%s494 + $0x24] sm:$0xf]
        %v546 = vld [vmem:[%s494 + $0x28] sm:$0xf]
        %v547 = vld [vmem:[%s494 + $0x2c] sm:$0xf]
        %v552 = vunpack.c.l.b16 %v544
        %v553 = vunpack.c.l.b16 %v545
        %v554 = vunpack.c.l.b16 %v546
        %v555 = vunpack.c.l.b16 %v547
        %v556 = vpack.c.b16 %v553, %v552
        %v557 = vpack.c.b16 %v555, %v554
        %560 = vst [vmem:[%s511 + $0x80] sm:$0xff] %v556
        %561 = vst [vmem:[%s511 + $0x88] sm:$0xff] %v557
        %562 = vst [vmem:[%s511 + $0x90] sm:$0xff] %v556
        %563 = vst [vmem:[%s511 + $0x98] sm:$0xff] %v557
        %564 = vst [vmem:[%s511 + $0xa0] sm:$0xff] %v556
        %565 = vst [vmem:[%s511 + $0xa8] sm:$0xff] %v557
        %566 = vst [vmem:[%s511 + $0xb0] sm:$0xff] %v556
        %567 = vst [vmem:[%s511 + $0xb8] sm:$0xff] %v557
        %s568 = scalar_lea.vmem %s1, 240
        %v569 = vld [vmem:[%s568] sm:$0xf]
        %v570 = vld [vmem:[%s568 + $0x4] sm:$0xf]
        %v571 = vld [vmem:[%s568 + $0x8] sm:$0xf]
        %v572 = vld [vmem:[%s568 + $0xc] sm:$0xf]
        %v577 = vunpack.c.l.b16 %v569
        %v578 = vunpack.c.l.b16 %v570
        %v579 = vunpack.c.l.b16 %v571
        %v580 = vunpack.c.l.b16 %v572
        %v581 = vpack.c.b16 %v578, %v577
        %v582 = vpack.c.b16 %v580, %v579
        %s585 = scalar_lea.vmem [#allocation2], 960
        %586 = vst [vmem:[%s585] sm:$0xff] %v581
        %587 = vst [vmem:[%s585 + $0x8] sm:$0xff] %v582
        %588 = vst [vmem:[%s585 + $0x10] sm:$0xff] %v581
        %589 = vst [vmem:[%s585 + $0x18] sm:$0xff] %v582
        %590 = vst [vmem:[%s585 + $0x20] sm:$0xff] %v581
        %591 = vst [vmem:[%s585 + $0x28] sm:$0xff] %v582
        %592 = vst [vmem:[%s585 + $0x30] sm:$0xff] %v581
        %593 = vst [vmem:[%s585 + $0x38] sm:$0xff] %v582
        %v594 = vld [vmem:[%s568 + $0x10] sm:$0xf]
        %v595 = vld [vmem:[%s568 + $0x14] sm:$0xf]
        %v596 = vld [vmem:[%s568 + $0x18] sm:$0xf]
        %v597 = vld [vmem:[%s568 + $0x1c] sm:$0xf]
        %v602 = vunpack.c.l.b16 %v594
        %v603 = vunpack.c.l.b16 %v595
        %v604 = vunpack.c.l.b16 %v596
        %v605 = vunpack.c.l.b16 %v597
        %v606 = vpack.c.b16 %v603, %v602
        %v607 = vpack.c.b16 %v605, %v604
        %610 = vst [vmem:[%s585 + $0x40] sm:$0xff] %v606
        %611 = vst [vmem:[%s585 + $0x48] sm:$0xff] %v607
        %612 = vst [vmem:[%s585 + $0x50] sm:$0xff] %v606
        %613 = vst [vmem:[%s585 + $0x58] sm:$0xff] %v607
        %614 = vst [vmem:[%s585 + $0x60] sm:$0xff] %v606
        %615 = vst [vmem:[%s585 + $0x68] sm:$0xff] %v607
        %616 = vst [vmem:[%s585 + $0x70] sm:$0xff] %v606
        %617 = vst [vmem:[%s585 + $0x78] sm:$0xff] %v607
        %v618 = vld [vmem:[%s568 + $0x20] sm:$0xf]
        %v619 = vld [vmem:[%s568 + $0x24] sm:$0xf]
        %v620 = vld [vmem:[%s568 + $0x28] sm:$0xf]
        %v621 = vld [vmem:[%s568 + $0x2c] sm:$0xf]
        %v626 = vunpack.c.l.b16 %v618
        %v627 = vunpack.c.l.b16 %v619
        %v628 = vunpack.c.l.b16 %v620
        %v629 = vunpack.c.l.b16 %v621
        %v630 = vpack.c.b16 %v627, %v626
        %v631 = vpack.c.b16 %v629, %v628
        %634 = vst [vmem:[%s585 + $0x80] sm:$0xff] %v630
        %635 = vst [vmem:[%s585 + $0x88] sm:$0xff] %v631
        %636 = vst [vmem:[%s585 + $0x90] sm:$0xff] %v630
        %637 = vst [vmem:[%s585 + $0x98] sm:$0xff] %v631
        %638 = vst [vmem:[%s585 + $0xa0] sm:$0xff] %v630
        %639 = vst [vmem:[%s585 + $0xa8] sm:$0xff] %v631
        %640 = vst [vmem:[%s585 + $0xb0] sm:$0xff] %v630
        %641 = vst [vmem:[%s585 + $0xb8] sm:$0xff] %v631
        %s642 = scalar_lea.vmem %s1, 288
        %v643 = vld [vmem:[%s642] sm:$0xf]
        %v644 = vld [vmem:[%s642 + $0x4] sm:$0xf]
        %v645 = vld [vmem:[%s642 + $0x8] sm:$0xf]
        %v646 = vld [vmem:[%s642 + $0xc] sm:$0xf]
        %v651 = vunpack.c.l.b16 %v643
        %v652 = vunpack.c.l.b16 %v644
        %v653 = vunpack.c.l.b16 %v645
        %v654 = vunpack.c.l.b16 %v646
        %v655 = vpack.c.b16 %v652, %v651
        %v656 = vpack.c.b16 %v654, %v653
        %s659 = scalar_lea.vmem [#allocation2], 1152
        %660 = vst [vmem:[%s659] sm:$0xff] %v655
        %661 = vst [vmem:[%s659 + $0x8] sm:$0xff] %v656
        %662 = vst [vmem:[%s659 + $0x10] sm:$0xff] %v655
        %663 = vst [vmem:[%s659 + $0x18] sm:$0xff] %v656
        %664 = vst [vmem:[%s659 + $0x20] sm:$0xff] %v655
        %665 = vst [vmem:[%s659 + $0x28] sm:$0xff] %v656
        %666 = vst [vmem:[%s659 + $0x30] sm:$0xff] %v655
        %667 = vst [vmem:[%s659 + $0x38] sm:$0xff] %v656
        %v668 = vld [vmem:[%s642 + $0x10] sm:$0xf]
        %v669 = vld [vmem:[%s642 + $0x14] sm:$0xf]
        %v670 = vld [vmem:[%s642 + $0x18] sm:$0xf]
        %v671 = vld [vmem:[%s642 + $0x1c] sm:$0xf]
        %v676 = vunpack.c.l.b16 %v668
        %v677 = vunpack.c.l.b16 %v669
        %v678 = vunpack.c.l.b16 %v670
        %v679 = vunpack.c.l.b16 %v671
        %v680 = vpack.c.b16 %v677, %v676
        %v681 = vpack.c.b16 %v679, %v678
        %684 = vst [vmem:[%s659 + $0x40] sm:$0xff] %v680
        %685 = vst [vmem:[%s659 + $0x48] sm:$0xff] %v681
        %686 = vst [vmem:[%s659 + $0x50] sm:$0xff] %v680
        %687 = vst [vmem:[%s659 + $0x58] sm:$0xff] %v681
        %688 = vst [vmem:[%s659 + $0x60] sm:$0xff] %v680
        %689 = vst [vmem:[%s659 + $0x68] sm:$0xff] %v681
        %690 = vst [vmem:[%s659 + $0x70] sm:$0xff] %v680
        %691 = vst [vmem:[%s659 + $0x78] sm:$0xff] %v681
        %v692 = vld [vmem:[%s642 + $0x20] sm:$0xf]
        %v693 = vld [vmem:[%s642 + $0x24] sm:$0xf]
        %v694 = vld [vmem:[%s642 + $0x28] sm:$0xf]
        %v695 = vld [vmem:[%s642 + $0x2c] sm:$0xf]
        %v700 = vunpack.c.l.b16 %v692
        %v701 = vunpack.c.l.b16 %v693
        %v702 = vunpack.c.l.b16 %v694
        %v703 = vunpack.c.l.b16 %v695
        %v704 = vpack.c.b16 %v701, %v700
        %v705 = vpack.c.b16 %v703, %v702
        %708 = vst [vmem:[%s659 + $0x80] sm:$0xff] %v704
        %709 = vst [vmem:[%s659 + $0x88] sm:$0xff] %v705
        %710 = vst [vmem:[%s659 + $0x90] sm:$0xff] %v704
        %711 = vst [vmem:[%s659 + $0x98] sm:$0xff] %v705
        %712 = vst [vmem:[%s659 + $0xa0] sm:$0xff] %v704
        %713 = vst [vmem:[%s659 + $0xa8] sm:$0xff] %v705
        %714 = vst [vmem:[%s659 + $0xb0] sm:$0xff] %v704
        %715 = vst [vmem:[%s659 + $0xb8] sm:$0xff] %v705
        %s716 = scalar_lea.vmem %s1, 336
        %v717 = vld [vmem:[%s716] sm:$0xf]
        %v718 = vld [vmem:[%s716 + $0x4] sm:$0xf]
        %v719 = vld [vmem:[%s716 + $0x8] sm:$0xf]
        %v720 = vld [vmem:[%s716 + $0xc] sm:$0xf]
        %v725 = vunpack.c.l.b16 %v717
        %v726 = vunpack.c.l.b16 %v718
        %v727 = vunpack.c.l.b16 %v719
        %v728 = vunpack.c.l.b16 %v720
        %v729 = vpack.c.b16 %v726, %v725
        %v730 = vpack.c.b16 %v728, %v727
        %s733 = scalar_lea.vmem [#allocation2], 1344
        %734 = vst [vmem:[%s733] sm:$0xff] %v729
        %735 = vst [vmem:[%s733 + $0x8] sm:$0xff] %v730
        %736 = vst [vmem:[%s733 + $0x10] sm:$0xff] %v729
        %737 = vst [vmem:[%s733 + $0x18] sm:$0xff] %v730
        %738 = vst [vmem:[%s733 + $0x20] sm:$0xff] %v729
        %739 = vst [vmem:[%s733 + $0x28] sm:$0xff] %v730
        %740 = vst [vmem:[%s733 + $0x30] sm:$0xff] %v729
        %741 = vst [vmem:[%s733 + $0x38] sm:$0xff] %v730
        %v742 = vld [vmem:[%s716 + $0x10] sm:$0xf]
        %v743 = vld [vmem:[%s716 + $0x14] sm:$0xf]
        %v744 = vld [vmem:[%s716 + $0x18] sm:$0xf]
        %v745 = vld [vmem:[%s716 + $0x1c] sm:$0xf]
        %v750 = vunpack.c.l.b16 %v742
        %v751 = vunpack.c.l.b16 %v743
        %v752 = vunpack.c.l.b16 %v744
        %v753 = vunpack.c.l.b16 %v745
        %v754 = vpack.c.b16 %v751, %v750
        %v755 = vpack.c.b16 %v753, %v752
        %758 = vst [vmem:[%s733 + $0x40] sm:$0xff] %v754
        %759 = vst [vmem:[%s733 + $0x48] sm:$0xff] %v755
        %760 = vst [vmem:[%s733 + $0x50] sm:$0xff] %v754
        %761 = vst [vmem:[%s733 + $0x58] sm:$0xff] %v755
        %762 = vst [vmem:[%s733 + $0x60] sm:$0xff] %v754
        %763 = vst [vmem:[%s733 + $0x68] sm:$0xff] %v755
        %764 = vst [vmem:[%s733 + $0x70] sm:$0xff] %v754
        %765 = vst [vmem:[%s733 + $0x78] sm:$0xff] %v755
        %v766 = vld [vmem:[%s716 + $0x20] sm:$0xf]
        %v767 = vld [vmem:[%s716 + $0x24] sm:$0xf]
        %v768 = vld [vmem:[%s716 + $0x28] sm:$0xf]
        %v769 = vld [vmem:[%s716 + $0x2c] sm:$0xf]
        %v774 = vunpack.c.l.b16 %v766
        %v775 = vunpack.c.l.b16 %v767
        %v776 = vunpack.c.l.b16 %v768
        %v777 = vunpack.c.l.b16 %v769
        %v778 = vpack.c.b16 %v775, %v774
        %v779 = vpack.c.b16 %v777, %v776
        %782 = vst [vmem:[%s733 + $0x80] sm:$0xff] %v778
        %783 = vst [vmem:[%s733 + $0x88] sm:$0xff] %v779
        %784 = vst [vmem:[%s733 + $0x90] sm:$0xff] %v778
        %785 = vst [vmem:[%s733 + $0x98] sm:$0xff] %v779
        %786 = vst [vmem:[%s733 + $0xa0] sm:$0xff] %v778
        %787 = vst [vmem:[%s733 + $0xa8] sm:$0xff] %v779
        %788 = vst [vmem:[%s733 + $0xb0] sm:$0xff] %v778
        %789 = vst [vmem:[%s733 + $0xb8] sm:$0xff] %v779
        %s790 = scalar_lea.vmem %s1, 384
        %v791 = vld [vmem:[%s790] sm:$0xf]
        %v792 = vld [vmem:[%s790 + $0x4] sm:$0xf]
        %v793 = vld [vmem:[%s790 + $0x8] sm:$0xf]
        %v794 = vld [vmem:[%s790 + $0xc] sm:$0xf]
        %v799 = vunpack.c.l.b16 %v791
        %v800 = vunpack.c.l.b16 %v792
        %v801 = vunpack.c.l.b16 %v793
        %v802 = vunpack.c.l.b16 %v794
        %v803 = vpack.c.b16 %v800, %v799
        %v804 = vpack.c.b16 %v802, %v801
        %s807 = scalar_lea.vmem [#allocation2], 1536
        %808 = vst [vmem:[%s807] sm:$0xff] %v803
        %809 = vst [vmem:[%s807 + $0x8] sm:$0xff] %v804
        %810 = vst [vmem:[%s807 + $0x10] sm:$0xff] %v803
        %811 = vst [vmem:[%s807 + $0x18] sm:$0xff] %v804
        %812 = vst [vmem:[%s807 + $0x20] sm:$0xff] %v803
        %813 = vst [vmem:[%s807 + $0x28] sm:$0xff] %v804
        %814 = vst [vmem:[%s807 + $0x30] sm:$0xff] %v803
        %815 = vst [vmem:[%s807 + $0x38] sm:$0xff] %v804
        %v816 = vld [vmem:[%s790 + $0x10] sm:$0xf]
        %v817 = vld [vmem:[%s790 + $0x14] sm:$0xf]
        %v818 = vld [vmem:[%s790 + $0x18] sm:$0xf]
        %v819 = vld [vmem:[%s790 + $0x1c] sm:$0xf]
        %v824 = vunpack.c.l.b16 %v816
        %v825 = vunpack.c.l.b16 %v817
        %v826 = vunpack.c.l.b16 %v818
        %v827 = vunpack.c.l.b16 %v819
        %v828 = vpack.c.b16 %v825, %v824
        %v829 = vpack.c.b16 %v827, %v826
        %832 = vst [vmem:[%s807 + $0x40] sm:$0xff] %v828
        %833 = vst [vmem:[%s807 + $0x48] sm:$0xff] %v829
        %834 = vst [vmem:[%s807 + $0x50] sm:$0xff] %v828
        %835 = vst [vmem:[%s807 + $0x58] sm:$0xff] %v829
        %836 = vst [vmem:[%s807 + $0x60] sm:$0xff] %v828
        %837 = vst [vmem:[%s807 + $0x68] sm:$0xff] %v829
        %838 = vst [vmem:[%s807 + $0x70] sm:$0xff] %v828
        %839 = vst [vmem:[%s807 + $0x78] sm:$0xff] %v829
        %v840 = vld [vmem:[%s790 + $0x20] sm:$0xf]
        %v841 = vld [vmem:[%s790 + $0x24] sm:$0xf]
        %v842 = vld [vmem:[%s790 + $0x28] sm:$0xf]
        %v843 = vld [vmem:[%s790 + $0x2c] sm:$0xf]
        %v848 = vunpack.c.l.b16 %v840
        %v849 = vunpack.c.l.b16 %v841
        %v850 = vunpack.c.l.b16 %v842
        %v851 = vunpack.c.l.b16 %v843
        %v852 = vpack.c.b16 %v849, %v848
        %v853 = vpack.c.b16 %v851, %v850
        %856 = vst [vmem:[%s807 + $0x80] sm:$0xff] %v852
        %857 = vst [vmem:[%s807 + $0x88] sm:$0xff] %v853
        %858 = vst [vmem:[%s807 + $0x90] sm:$0xff] %v852
        %859 = vst [vmem:[%s807 + $0x98] sm:$0xff] %v853
        %860 = vst [vmem:[%s807 + $0xa0] sm:$0xff] %v852
        %861 = vst [vmem:[%s807 + $0xa8] sm:$0xff] %v853
        %862 = vst [vmem:[%s807 + $0xb0] sm:$0xff] %v852
        %863 = vst [vmem:[%s807 + $0xb8] sm:$0xff] %v853
        %s864 = scalar_lea.vmem %s1, 432
        %v865 = vld [vmem:[%s864] sm:$0xf]
        %v866 = vld [vmem:[%s864 + $0x4] sm:$0xf]
        %v867 = vld [vmem:[%s864 + $0x8] sm:$0xf]
        %v868 = vld [vmem:[%s864 + $0xc] sm:$0xf]
        %v873 = vunpack.c.l.b16 %v865
        %v874 = vunpack.c.l.b16 %v866
        %v875 = vunpack.c.l.b16 %v867
        %v876 = vunpack.c.l.b16 %v868
        %v877 = vpack.c.b16 %v874, %v873
        %v878 = vpack.c.b16 %v876, %v875
        %s881 = scalar_lea.vmem [#allocation2], 1728
        %882 = vst [vmem:[%s881] sm:$0xff] %v877
        %883 = vst [vmem:[%s881 + $0x8] sm:$0xff] %v878
        %884 = vst [vmem:[%s881 + $0x10] sm:$0xff] %v877
        %885 = vst [vmem:[%s881 + $0x18] sm:$0xff] %v878
        %886 = vst [vmem:[%s881 + $0x20] sm:$0xff] %v877
        %887 = vst [vmem:[%s881 + $0x28] sm:$0xff] %v878
        %888 = vst [vmem:[%s881 + $0x30] sm:$0xff] %v877
        %889 = vst [vmem:[%s881 + $0x38] sm:$0xff] %v878
        %v890 = vld [vmem:[%s864 + $0x10] sm:$0xf]
        %v891 = vld [vmem:[%s864 + $0x14] sm:$0xf]
        %v892 = vld [vmem:[%s864 + $0x18] sm:$0xf]
        %v893 = vld [vmem:[%s864 + $0x1c] sm:$0xf]
        %v898 = vunpack.c.l.b16 %v890
        %v899 = vunpack.c.l.b16 %v891
        %v900 = vunpack.c.l.b16 %v892
        %v901 = vunpack.c.l.b16 %v893
        %v902 = vpack.c.b16 %v899, %v898
        %v903 = vpack.c.b16 %v901, %v900
        %906 = vst [vmem:[%s881 + $0x40] sm:$0xff] %v902
        %907 = vst [vmem:[%s881 + $0x48] sm:$0xff] %v903
        %908 = vst [vmem:[%s881 + $0x50] sm:$0xff] %v902
        %909 = vst [vmem:[%s881 + $0x58] sm:$0xff] %v903
        %910 = vst [vmem:[%s881 + $0x60] sm:$0xff] %v902
        %911 = vst [vmem:[%s881 + $0x68] sm:$0xff] %v903
        %912 = vst [vmem:[%s881 + $0x70] sm:$0xff] %v902
        %913 = vst [vmem:[%s881 + $0x78] sm:$0xff] %v903
        %v914 = vld [vmem:[%s864 + $0x20] sm:$0xf]
        %v915 = vld [vmem:[%s864 + $0x24] sm:$0xf]
        %v916 = vld [vmem:[%s864 + $0x28] sm:$0xf]
        %v917 = vld [vmem:[%s864 + $0x2c] sm:$0xf]
        %v922 = vunpack.c.l.b16 %v914
        %v923 = vunpack.c.l.b16 %v915
        %v924 = vunpack.c.l.b16 %v916
        %v925 = vunpack.c.l.b16 %v917
        %v926 = vpack.c.b16 %v923, %v922
        %v927 = vpack.c.b16 %v925, %v924
        %930 = vst [vmem:[%s881 + $0x80] sm:$0xff] %v926
        %931 = vst [vmem:[%s881 + $0x88] sm:$0xff] %v927
        %932 = vst [vmem:[%s881 + $0x90] sm:$0xff] %v926
        %933 = vst [vmem:[%s881 + $0x98] sm:$0xff] %v927
        %934 = vst [vmem:[%s881 + $0xa0] sm:$0xff] %v926
        %935 = vst [vmem:[%s881 + $0xa8] sm:$0xff] %v927
        %936 = vst [vmem:[%s881 + $0xb0] sm:$0xff] %v926
        %937 = vst [vmem:[%s881 + $0xb8] sm:$0xff] %v927
        %s938 = scalar_lea.vmem %s1, 480
        %v939 = vld [vmem:[%s938] sm:$0xf]
        %v940 = vld [vmem:[%s938 + $0x4] sm:$0xf]
        %v941 = vld [vmem:[%s938 + $0x8] sm:$0xf]
        %v942 = vld [vmem:[%s938 + $0xc] sm:$0xf]
        %v947 = vunpack.c.l.b16 %v939
        %v948 = vunpack.c.l.b16 %v940
        %v949 = vunpack.c.l.b16 %v941
        %v950 = vunpack.c.l.b16 %v942
        %v951 = vpack.c.b16 %v948, %v947
        %v952 = vpack.c.b16 %v950, %v949
        %s955 = scalar_lea.vmem [#allocation2], 1920
        %956 = vst [vmem:[%s955] sm:$0xff] %v951
        %957 = vst [vmem:[%s955 + $0x8] sm:$0xff] %v952
        %958 = vst [vmem:[%s955 + $0x10] sm:$0xff] %v951
        %959 = vst [vmem:[%s955 + $0x18] sm:$0xff] %v952
        %960 = vst [vmem:[%s955 + $0x20] sm:$0xff] %v951
        %961 = vst [vmem:[%s955 + $0x28] sm:$0xff] %v952
        %962 = vst [vmem:[%s955 + $0x30] sm:$0xff] %v951
        %963 = vst [vmem:[%s955 + $0x38] sm:$0xff] %v952
        %v964 = vld [vmem:[%s938 + $0x10] sm:$0xf]
        %v965 = vld [vmem:[%s938 + $0x14] sm:$0xf]
        %v966 = vld [vmem:[%s938 + $0x18] sm:$0xf]
        %v967 = vld [vmem:[%s938 + $0x1c] sm:$0xf]
        %v972 = vunpack.c.l.b16 %v964
        %v973 = vunpack.c.l.b16 %v965
        %v974 = vunpack.c.l.b16 %v966
        %v975 = vunpack.c.l.b16 %v967
        %v976 = vpack.c.b16 %v973, %v972
        %v977 = vpack.c.b16 %v975, %v974
        %980 = vst [vmem:[%s955 + $0x40] sm:$0xff] %v976
        %981 = vst [vmem:[%s955 + $0x48] sm:$0xff] %v977
        %982 = vst [vmem:[%s955 + $0x50] sm:$0xff] %v976
        %983 = vst [vmem:[%s955 + $0x58] sm:$0xff] %v977
        %984 = vst [vmem:[%s955 + $0x60] sm:$0xff] %v976
        %985 = vst [vmem:[%s955 + $0x68] sm:$0xff] %v977
        %986 = vst [vmem:[%s955 + $0x70] sm:$0xff] %v976
        %987 = vst [vmem:[%s955 + $0x78] sm:$0xff] %v977
        %v988 = vld [vmem:[%s938 + $0x20] sm:$0xf]
        %v989 = vld [vmem:[%s938 + $0x24] sm:$0xf]
        %v990 = vld [vmem:[%s938 + $0x28] sm:$0xf]
        %v991 = vld [vmem:[%s938 + $0x2c] sm:$0xf]
        %v996 = vunpack.c.l.b16 %v988
        %v997 = vunpack.c.l.b16 %v989
        %v998 = vunpack.c.l.b16 %v990
        %v999 = vunpack.c.l.b16 %v991
        %v1000 = vpack.c.b16 %v997, %v996
        %v1001 = vpack.c.b16 %v999, %v998
        %1004 = vst [vmem:[%s955 + $0x80] sm:$0xff] %v1000
        %1005 = vst [vmem:[%s955 + $0x88] sm:$0xff] %v1001
        %1006 = vst [vmem:[%s955 + $0x90] sm:$0xff] %v1000
        %1007 = vst [vmem:[%s955 + $0x98] sm:$0xff] %v1001
        %1008 = vst [vmem:[%s955 + $0xa0] sm:$0xff] %v1000
        %1009 = vst [vmem:[%s955 + $0xa8] sm:$0xff] %v1001
        %1010 = vst [vmem:[%s955 + $0xb0] sm:$0xff] %v1000
        %1011 = vst [vmem:[%s955 + $0xb8] sm:$0xff] %v1001
        %s1012 = scalar_lea.vmem %s1, 528
        %v1013 = vld [vmem:[%s1012] sm:$0xf]
        %v1014 = vld [vmem:[%s1012 + $0x4] sm:$0xf]
        %v1015 = vld [vmem:[%s1012 + $0x8] sm:$0xf]
        %v1016 = vld [vmem:[%s1012 + $0xc] sm:$0xf]
        %v1021 = vunpack.c.l.b16 %v1013
        %v1022 = vunpack.c.l.b16 %v1014
        %v1023 = vunpack.c.l.b16 %v1015
        %v1024 = vunpack.c.l.b16 %v1016
        %v1025 = vpack.c.b16 %v1022, %v1021
        %v1026 = vpack.c.b16 %v1024, %v1023
        %s1029 = scalar_lea.vmem [#allocation2], 2112
        %1030 = vst [vmem:[%s1029] sm:$0xff] %v1025
        %1031 = vst [vmem:[%s1029 + $0x8] sm:$0xff] %v1026
        %1032 = vst [vmem:[%s1029 + $0x10] sm:$0xff] %v1025
        %1033 = vst [vmem:[%s1029 + $0x18] sm:$0xff] %v1026
        %1034 = vst [vmem:[%s1029 + $0x20] sm:$0xff] %v1025
        %1035 = vst [vmem:[%s1029 + $0x28] sm:$0xff] %v1026
        %1036 = vst [vmem:[%s1029 + $0x30] sm:$0xff] %v1025
        %1037 = vst [vmem:[%s1029 + $0x38] sm:$0xff] %v1026
        %v1038 = vld [vmem:[%s1012 + $0x10] sm:$0xf]
        %v1039 = vld [vmem:[%s1012 + $0x14] sm:$0xf]
        %v1040 = vld [vmem:[%s1012 + $0x18] sm:$0xf]
        %v1041 = vld [vmem:[%s1012 + $0x1c] sm:$0xf]
        %v1046 = vunpack.c.l.b16 %v1038
        %v1047 = vunpack.c.l.b16 %v1039
        %v1048 = vunpack.c.l.b16 %v1040
        %v1049 = vunpack.c.l.b16 %v1041
        %v1050 = vpack.c.b16 %v1047, %v1046
        %v1051 = vpack.c.b16 %v1049, %v1048
        %1054 = vst [vmem:[%s1029 + $0x40] sm:$0xff] %v1050
        %1055 = vst [vmem:[%s1029 + $0x48] sm:$0xff] %v1051
        %1056 = vst [vmem:[%s1029 + $0x50] sm:$0xff] %v1050
        %1057 = vst [vmem:[%s1029 + $0x58] sm:$0xff] %v1051
        %1058 = vst [vmem:[%s1029 + $0x60] sm:$0xff] %v1050
        %1059 = vst [vmem:[%s1029 + $0x68] sm:$0xff] %v1051
        %1060 = vst [vmem:[%s1029 + $0x70] sm:$0xff] %v1050
        %1061 = vst [vmem:[%s1029 + $0x78] sm:$0xff] %v1051
        %v1062 = vld [vmem:[%s1012 + $0x20] sm:$0xf]
        %v1063 = vld [vmem:[%s1012 + $0x24] sm:$0xf]
        %v1064 = vld [vmem:[%s1012 + $0x28] sm:$0xf]
        %v1065 = vld [vmem:[%s1012 + $0x2c] sm:$0xf]
        %v1070 = vunpack.c.l.b16 %v1062
        %v1071 = vunpack.c.l.b16 %v1063
        %v1072 = vunpack.c.l.b16 %v1064
        %v1073 = vunpack.c.l.b16 %v1065
        %v1074 = vpack.c.b16 %v1071, %v1070
        %v1075 = vpack.c.b16 %v1073, %v1072
        %1078 = vst [vmem:[%s1029 + $0x80] sm:$0xff] %v1074
        %1079 = vst [vmem:[%s1029 + $0x88] sm:$0xff] %v1075
        %1080 = vst [vmem:[%s1029 + $0x90] sm:$0xff] %v1074
        %1081 = vst [vmem:[%s1029 + $0x98] sm:$0xff] %v1075
        %1082 = vst [vmem:[%s1029 + $0xa0] sm:$0xff] %v1074
        %1083 = vst [vmem:[%s1029 + $0xa8] sm:$0xff] %v1075
        %1084 = vst [vmem:[%s1029 + $0xb0] sm:$0xff] %v1074
        %1085 = vst [vmem:[%s1029 + $0xb8] sm:$0xff] %v1075
        %s1086 = scalar_lea.vmem %s1, 576
        %v1087 = vld [vmem:[%s1086] sm:$0xf]
        %v1088 = vld [vmem:[%s1086 + $0x4] sm:$0xf]
        %v1089 = vld [vmem:[%s1086 + $0x8] sm:$0xf]
        %v1090 = vld [vmem:[%s1086 + $0xc] sm:$0xf]
        %v1095 = vunpack.c.l.b16 %v1087
        %v1096 = vunpack.c.l.b16 %v1088
        %v1097 = vunpack.c.l.b16 %v1089
        %v1098 = vunpack.c.l.b16 %v1090
        %v1099 = vpack.c.b16 %v1096, %v1095
        %v1100 = vpack.c.b16 %v1098, %v1097
        %s1103 = scalar_lea.vmem [#allocation2], 2304
        %1104 = vst [vmem:[%s1103] sm:$0xff] %v1099
        %1105 = vst [vmem:[%s1103 + $0x8] sm:$0xff] %v1100
        %1106 = vst [vmem:[%s1103 + $0x10] sm:$0xff] %v1099
        %1107 = vst [vmem:[%s1103 + $0x18] sm:$0xff] %v1100
        %1108 = vst [vmem:[%s1103 + $0x20] sm:$0xff] %v1099
        %1109 = vst [vmem:[%s1103 + $0x28] sm:$0xff] %v1100
        %1110 = vst [vmem:[%s1103 + $0x30] sm:$0xff] %v1099
        %1111 = vst [vmem:[%s1103 + $0x38] sm:$0xff] %v1100
        %v1112 = vld [vmem:[%s1086 + $0x10] sm:$0xf]
        %v1113 = vld [vmem:[%s1086 + $0x14] sm:$0xf]
        %v1114 = vld [vmem:[%s1086 + $0x18] sm:$0xf]
        %v1115 = vld [vmem:[%s1086 + $0x1c] sm:$0xf]
        %v1120 = vunpack.c.l.b16 %v1112
        %v1121 = vunpack.c.l.b16 %v1113
        %v1122 = vunpack.c.l.b16 %v1114
        %v1123 = vunpack.c.l.b16 %v1115
        %v1124 = vpack.c.b16 %v1121, %v1120
        %v1125 = vpack.c.b16 %v1123, %v1122
        %1128 = vst [vmem:[%s1103 + $0x40] sm:$0xff] %v1124
        %1129 = vst [vmem:[%s1103 + $0x48] sm:$0xff] %v1125
        %1130 = vst [vmem:[%s1103 + $0x50] sm:$0xff] %v1124
        %1131 = vst [vmem:[%s1103 + $0x58] sm:$0xff] %v1125
        %1132 = vst [vmem:[%s1103 + $0x60] sm:$0xff] %v1124
        %1133 = vst [vmem:[%s1103 + $0x68] sm:$0xff] %v1125
        %1134 = vst [vmem:[%s1103 + $0x70] sm:$0xff] %v1124
        %1135 = vst [vmem:[%s1103 + $0x78] sm:$0xff] %v1125
        %v1136 = vld [vmem:[%s1086 + $0x20] sm:$0xf]
        %v1137 = vld [vmem:[%s1086 + $0x24] sm:$0xf]
        %v1138 = vld [vmem:[%s1086 + $0x28] sm:$0xf]
        %v1139 = vld [vmem:[%s1086 + $0x2c] sm:$0xf]
        %v1144 = vunpack.c.l.b16 %v1136
        %v1145 = vunpack.c.l.b16 %v1137
        %v1146 = vunpack.c.l.b16 %v1138
        %v1147 = vunpack.c.l.b16 %v1139
        %v1148 = vpack.c.b16 %v1145, %v1144
        %v1149 = vpack.c.b16 %v1147, %v1146
        %1152 = vst [vmem:[%s1103 + $0x80] sm:$0xff] %v1148
        %1153 = vst [vmem:[%s1103 + $0x88] sm:$0xff] %v1149
        %1154 = vst [vmem:[%s1103 + $0x90] sm:$0xff] %v1148
        %1155 = vst [vmem:[%s1103 + $0x98] sm:$0xff] %v1149
        %1156 = vst [vmem:[%s1103 + $0xa0] sm:$0xff] %v1148
        %1157 = vst [vmem:[%s1103 + $0xa8] sm:$0xff] %v1149
        %1158 = vst [vmem:[%s1103 + $0xb0] sm:$0xff] %v1148
        %1159 = vst [vmem:[%s1103 + $0xb8] sm:$0xff] %v1149
        %s1160 = scalar_lea.vmem %s1, 624
        %v1161 = vld [vmem:[%s1160] sm:$0xf]
        %v1162 = vld [vmem:[%s1160 + $0x4] sm:$0xf]
        %v1163 = vld [vmem:[%s1160 + $0x8] sm:$0xf]
        %v1164 = vld [vmem:[%s1160 + $0xc] sm:$0xf]
        %v1169 = vunpack.c.l.b16 %v1161
        %v1170 = vunpack.c.l.b16 %v1162
        %v1171 = vunpack.c.l.b16 %v1163
        %v1172 = vunpack.c.l.b16 %v1164
        %v1173 = vpack.c.b16 %v1170, %v1169
        %v1174 = vpack.c.b16 %v1172, %v1171
        %s1177 = scalar_lea.vmem [#allocation2], 2496
        %1178 = vst [vmem:[%s1177] sm:$0xff] %v1173
        %1179 = vst [vmem:[%s1177 + $0x8] sm:$0xff] %v1174
        %1180 = vst [vmem:[%s1177 + $0x10] sm:$0xff] %v1173
        %1181 = vst [vmem:[%s1177 + $0x18] sm:$0xff] %v1174
        %1182 = vst [vmem:[%s1177 + $0x20] sm:$0xff] %v1173
        %1183 = vst [vmem:[%s1177 + $0x28] sm:$0xff] %v1174
        %1184 = vst [vmem:[%s1177 + $0x30] sm:$0xff] %v1173
        %1185 = vst [vmem:[%s1177 + $0x38] sm:$0xff] %v1174
        %v1186 = vld [vmem:[%s1160 + $0x10] sm:$0xf]
        %v1187 = vld [vmem:[%s1160 + $0x14] sm:$0xf]
        %v1188 = vld [vmem:[%s1160 + $0x18] sm:$0xf]
        %v1189 = vld [vmem:[%s1160 + $0x1c] sm:$0xf]
        %v1194 = vunpack.c.l.b16 %v1186
        %v1195 = vunpack.c.l.b16 %v1187
        %v1196 = vunpack.c.l.b16 %v1188
        %v1197 = vunpack.c.l.b16 %v1189
        %v1198 = vpack.c.b16 %v1195, %v1194
        %v1199 = vpack.c.b16 %v1197, %v1196
        %1202 = vst [vmem:[%s1177 + $0x40] sm:$0xff] %v1198
        %1203 = vst [vmem:[%s1177 + $0x48] sm:$0xff] %v1199
        %1204 = vst [vmem:[%s1177 + $0x50] sm:$0xff] %v1198
        %1205 = vst [vmem:[%s1177 + $0x58] sm:$0xff] %v1199
        %1206 = vst [vmem:[%s1177 + $0x60] sm:$0xff] %v1198
        %1207 = vst [vmem:[%s1177 + $0x68] sm:$0xff] %v1199
        %1208 = vst [vmem:[%s1177 + $0x70] sm:$0xff] %v1198
        %1209 = vst [vmem:[%s1177 + $0x78] sm:$0xff] %v1199
        %v1210 = vld [vmem:[%s1160 + $0x20] sm:$0xf]
        %v1211 = vld [vmem:[%s1160 + $0x24] sm:$0xf]
        %v1212 = vld [vmem:[%s1160 + $0x28] sm:$0xf]
        %v1213 = vld [vmem:[%s1160 + $0x2c] sm:$0xf]
        %v1218 = vunpack.c.l.b16 %v1210
        %v1219 = vunpack.c.l.b16 %v1211
        %v1220 = vunpack.c.l.b16 %v1212
        %v1221 = vunpack.c.l.b16 %v1213
        %v1222 = vpack.c.b16 %v1219, %v1218
        %v1223 = vpack.c.b16 %v1221, %v1220
        %1226 = vst [vmem:[%s1177 + $0x80] sm:$0xff] %v1222
        %1227 = vst [vmem:[%s1177 + $0x88] sm:$0xff] %v1223
        %1228 = vst [vmem:[%s1177 + $0x90] sm:$0xff] %v1222
        %1229 = vst [vmem:[%s1177 + $0x98] sm:$0xff] %v1223
        %1230 = vst [vmem:[%s1177 + $0xa0] sm:$0xff] %v1222
        %1231 = vst [vmem:[%s1177 + $0xa8] sm:$0xff] %v1223
        %1232 = vst [vmem:[%s1177 + $0xb0] sm:$0xff] %v1222
        %1233 = vst [vmem:[%s1177 + $0xb8] sm:$0xff] %v1223
        %s1234 = scalar_lea.vmem %s1, 672
        %v1235 = vld [vmem:[%s1234] sm:$0xf]
        %v1236 = vld [vmem:[%s1234 + $0x4] sm:$0xf]
        %v1237 = vld [vmem:[%s1234 + $0x8] sm:$0xf]
        %v1238 = vld [vmem:[%s1234 + $0xc] sm:$0xf]
        %v1243 = vunpack.c.l.b16 %v1235
        %v1244 = vunpack.c.l.b16 %v1236
        %v1245 = vunpack.c.l.b16 %v1237
        %v1246 = vunpack.c.l.b16 %v1238
        %v1247 = vpack.c.b16 %v1244, %v1243
        %v1248 = vpack.c.b16 %v1246, %v1245
        %s1251 = scalar_lea.vmem [#allocation2], 2688
        %1252 = vst [vmem:[%s1251] sm:$0xff] %v1247
        %1253 = vst [vmem:[%s1251 + $0x8] sm:$0xff] %v1248
        %1254 = vst [vmem:[%s1251 + $0x10] sm:$0xff] %v1247
        %1255 = vst [vmem:[%s1251 + $0x18] sm:$0xff] %v1248
        %1256 = vst [vmem:[%s1251 + $0x20] sm:$0xff] %v1247
        %1257 = vst [vmem:[%s1251 + $0x28] sm:$0xff] %v1248
        %1258 = vst [vmem:[%s1251 + $0x30] sm:$0xff] %v1247
        %1259 = vst [vmem:[%s1251 + $0x38] sm:$0xff] %v1248
        %v1260 = vld [vmem:[%s1234 + $0x10] sm:$0xf]
        %v1261 = vld [vmem:[%s1234 + $0x14] sm:$0xf]
        %v1262 = vld [vmem:[%s1234 + $0x18] sm:$0xf]
        %v1263 = vld [vmem:[%s1234 + $0x1c] sm:$0xf]
        %v1268 = vunpack.c.l.b16 %v1260
        %v1269 = vunpack.c.l.b16 %v1261
        %v1270 = vunpack.c.l.b16 %v1262
        %v1271 = vunpack.c.l.b16 %v1263
        %v1272 = vpack.c.b16 %v1269, %v1268
        %v1273 = vpack.c.b16 %v1271, %v1270
        %1276 = vst [vmem:[%s1251 + $0x40] sm:$0xff] %v1272
        %1277 = vst [vmem:[%s1251 + $0x48] sm:$0xff] %v1273
        %1278 = vst [vmem:[%s1251 + $0x50] sm:$0xff] %v1272
        %1279 = vst [vmem:[%s1251 + $0x58] sm:$0xff] %v1273
        %1280 = vst [vmem:[%s1251 + $0x60] sm:$0xff] %v1272
        %1281 = vst [vmem:[%s1251 + $0x68] sm:$0xff] %v1273
        %1282 = vst [vmem:[%s1251 + $0x70] sm:$0xff] %v1272
        %1283 = vst [vmem:[%s1251 + $0x78] sm:$0xff] %v1273
        %v1284 = vld [vmem:[%s1234 + $0x20] sm:$0xf]
        %v1285 = vld [vmem:[%s1234 + $0x24] sm:$0xf]
        %v1286 = vld [vmem:[%s1234 + $0x28] sm:$0xf]
        %v1287 = vld [vmem:[%s1234 + $0x2c] sm:$0xf]
        %v1292 = vunpack.c.l.b16 %v1284
        %v1293 = vunpack.c.l.b16 %v1285
        %v1294 = vunpack.c.l.b16 %v1286
        %v1295 = vunpack.c.l.b16 %v1287
        %v1296 = vpack.c.b16 %v1293, %v1292
        %v1297 = vpack.c.b16 %v1295, %v1294
        %1300 = vst [vmem:[%s1251 + $0x80] sm:$0xff] %v1296
        %1301 = vst [vmem:[%s1251 + $0x88] sm:$0xff] %v1297
        %1302 = vst [vmem:[%s1251 + $0x90] sm:$0xff] %v1296
        %1303 = vst [vmem:[%s1251 + $0x98] sm:$0xff] %v1297
        %1304 = vst [vmem:[%s1251 + $0xa0] sm:$0xff] %v1296
        %1305 = vst [vmem:[%s1251 + $0xa8] sm:$0xff] %v1297
        %1306 = vst [vmem:[%s1251 + $0xb0] sm:$0xff] %v1296
        %1307 = vst [vmem:[%s1251 + $0xb8] sm:$0xff] %v1297
      $region36: #{encoder_forward.1} parent=31 // pred_fallthru
        _
      %v1308 = vld [vmem:[%s186] sm:$0xf]
      %v1309 = vld [vmem:[%s186 + $0x4] sm:$0xf]
      %v1310 = vld [vmem:[%s186 + $0x8] sm:$0xf]
      %v1311 = vld [vmem:[%s186 + $0xc] sm:$0xf]
      %v1312 = vld [vmem:[%s186 + $0x10] sm:$0xf]
      %v1313 = vld [vmem:[%s186 + $0x14] sm:$0xf]
      %v1314 = vld [vmem:[%s186 + $0x18] sm:$0xf]
      %v1315 = vld [vmem:[%s186 + $0x1c] sm:$0xf]
      %v1316 = vld [vmem:[%s186 + $0x20] sm:$0xf]
      %v1317 = vld [vmem:[%s186 + $0x24] sm:$0xf]
      %v1318 = vld [vmem:[%s186 + $0x28] sm:$0xf]
      %v1319 = vld [vmem:[%s186 + $0x2c] sm:$0xf]
      %v1320 = vld [vmem:[%s186 + $0x30] sm:$0xf]
      %v1321 = vld [vmem:[%s186 + $0x34] sm:$0xf]
      %v1322 = vld [vmem:[%s186 + $0x38] sm:$0xf]
      %v1323 = vld [vmem:[%s186 + $0x3c] sm:$0xf]
      %v1324 = vld [vmem:[%s186 + $0x40] sm:$0xf]
      %v1325 = vld [vmem:[%s186 + $0x44] sm:$0xf]
      %v1326 = vld [vmem:[%s186 + $0x48] sm:$0xf]
      %v1327 = vld [vmem:[%s186 + $0x4c] sm:$0xf]
      %v1328 = vld [vmem:[%s186 + $0x50] sm:$0xf]
      %v1329 = vld [vmem:[%s186 + $0x54] sm:$0xf]
      %v1330 = vld [vmem:[%s186 + $0x58] sm:$0xf]
      %v1331 = vld [vmem:[%s186 + $0x5c] sm:$0xf]
      %v1332 = vld [vmem:[%s186 + $0x60] sm:$0xf]
      %v1333 = vld [vmem:[%s186 + $0x64] sm:$0xf]
      %v1334 = vld [vmem:[%s186 + $0x68] sm:$0xf]
      %v1335 = vld [vmem:[%s186 + $0x6c] sm:$0xf]
      %v1336 = vld [vmem:[%s186 + $0x70] sm:$0xf]
      %v1337 = vld [vmem:[%s186 + $0x74] sm:$0xf]
      %v1338 = vld [vmem:[%s186 + $0x78] sm:$0xf]
      %v1339 = vld [vmem:[%s186 + $0x7c] sm:$0xf]
      %v1368 = vunpack.c.l.b16 %v1308
      %v1369 = vunpack.c.l.b16 %v1309
      %v1370 = vunpack.c.l.b16 %v1310
      %v1371 = vunpack.c.l.b16 %v1311
      %v1372 = vunpack.c.l.b16 %v1312
      %v1373 = vunpack.c.l.b16 %v1313
      %v1374 = vunpack.c.l.b16 %v1314
      %v1375 = vunpack.c.l.b16 %v1315
      %v1376 = vunpack.c.l.b16 %v1316
      %v1377 = vunpack.c.l.b16 %v1317
      %v1378 = vunpack.c.l.b16 %v1318
      %v1379 = vunpack.c.l.b16 %v1319
      %v1380 = vunpack.c.l.b16 %v1320
      %v1381 = vunpack.c.l.b16 %v1321
      %v1382 = vunpack.c.l.b16 %v1322
      %v1383 = vunpack.c.l.b16 %v1323
      %v1384 = vunpack.c.l.b16 %v1324
      %v1385 = vunpack.c.l.b16 %v1325
      %v1386 = vunpack.c.l.b16 %v1326
      %v1387 = vunpack.c.l.b16 %v1327
      %v1388 = vunpack.c.l.b16 %v1328
      %v1389 = vunpack.c.l.b16 %v1329
      %v1390 = vunpack.c.l.b16 %v1330
      %v1391 = vunpack.c.l.b16 %v1331
      %v1392 = vunpack.c.l.b16 %v1332
      %v1393 = vunpack.c.l.b16 %v1333
      %v1394 = vunpack.c.l.b16 %v1334
      %v1395 = vunpack.c.l.b16 %v1335
      %v1396 = vpack.c.b16 %v1369, %v1368
      %v1397 = vpack.c.b16 %v1371, %v1370
      %v1398 = vpack.c.b16 %v1373, %v1372
      %v1399 = vpack.c.b16 %v1375, %v1374
      %v1400 = vpack.c.b16 %v1377, %v1376
      %v1401 = vpack.c.b16 %v1379, %v1378
      %v1402 = vpack.c.b16 %v1381, %v1380
      %v1403 = vpack.c.b16 %v1383, %v1382
      %v1404 = vpack.c.b16 %v1385, %v1384
      %v1405 = vpack.c.b16 %v1387, %v1386
      %v1406 = vpack.c.b16 %v1389, %v1388
      %v1407 = vpack.c.b16 %v1391, %v1390
      %v1408 = vpack.c.b16 %v1393, %v1392
      %v1409 = vpack.c.b16 %v1395, %v1394
      %v1426 = vunpack.c.l.b16 %v1336
      %v1427 = vunpack.c.l.b16 %v1337
      %v1428 = vpack.c.b16 %v1427, %v1426
      %v1432 = vunpack.c.l.b16 %v1338
      %v1433 = vunpack.c.l.b16 %v1339
      %v1434 = vpack.c.b16 %v1433, %v1432
      %v1436 = vld [vmem:[#allocation2] sm:$0xff]
      %v1437 = vld [vmem:[#allocation2 + $0x8] sm:$0xff]
      %v1438 = vld [vmem:[#allocation2 + $0x10] sm:$0xff]
      %v1439 = vld [vmem:[#allocation2 + $0x18] sm:$0xff]
      %v1440 = vld [vmem:[#allocation2 + $0x20] sm:$0xff]
      %v1441 = vld [vmem:[#allocation2 + $0x28] sm:$0xff]
      %v1442 = vld [vmem:[#allocation2 + $0x30] sm:$0xff]
      %v1443 = vld [vmem:[#allocation2 + $0x38] sm:$0xff]
      %v1444 = vld [vmem:[#allocation2 + $0x40] sm:$0xff]
      %v1445 = vld [vmem:[#allocation2 + $0x48] sm:$0xff]
      %v1446 = vld [vmem:[#allocation2 + $0x50] sm:$0xff]
      %v1447 = vld [vmem:[#allocation2 + $0x58] sm:$0xff]
      %v1448 = vld [vmem:[#allocation2 + $0x60] sm:$0xff]
      %v1449 = vld [vmem:[#allocation2 + $0x68] sm:$0xff]
      %v1450 = vld [vmem:[#allocation2 + $0x70] sm:$0xff]
      %v1451 = vld [vmem:[#allocation2 + $0x78] sm:$0xff]
      %v1452 = vld [vmem:[#allocation2 + $0x80] sm:$0xff]
      %v1453 = vld [vmem:[#allocation2 + $0x88] sm:$0xff]
      %v1454 = vld [vmem:[#allocation2 + $0x90] sm:$0xff]
      %v1455 = vld [vmem:[#allocation2 + $0x98] sm:$0xff]
      %v1456 = vld [vmem:[#allocation2 + $0xa0] sm:$0xff]
      %v1457 = vld [vmem:[#allocation2 + $0xa8] sm:$0xff]
      %v1458 = vld [vmem:[#allocation2 + $0xb0] sm:$0xff]
      %v1459 = vld [vmem:[#allocation2 + $0xb8] sm:$0xff]
      %1460 = vmatprep.subr.bf16.mxu0 0
      %1461 = vmatpush1.bf16.msra.mxu0 %v1436
      %1462 = vmatprep.subr.bf16.mxu0 0
      %1463 = vmatpush1.bf16.msra.mxu0 %v1437
      %1464 = vmatprep.subr.bf16.mxu0 0
      %1465 = vmatpush1.bf16.msra.mxu0 %v1438
      %1466 = vmatprep.subr.bf16.mxu0 0
      %1467 = vmatpush1.bf16.msra.mxu0 %v1439
      %1468 = vmatprep.subr.bf16.mxu0 0
      %1469 = vmatpush1.bf16.msra.mxu0 %v1440
      %1470 = vmatprep.subr.bf16.mxu0 0
      %1471 = vmatpush1.bf16.msra.mxu0 %v1441
      %1472 = vmatprep.subr.bf16.mxu0 0
      %1473 = vmatpush1.bf16.msra.mxu0 %v1442
      %1474 = vmatprep.subr.bf16.mxu0 0
      %1475 = vmatpush1.bf16.msra.mxu0 %v1443
      %1476 = vmatprep.subr.bf16.mxu0 0
      %1477 = vmatpush1.bf16.msra.mxu0 %v1444
      %1478 = vmatprep.subr.bf16.mxu0 0
      %1479 = vmatpush1.bf16.msra.mxu0 %v1445
      %1480 = vmatprep.subr.bf16.mxu0 0
      %1481 = vmatpush1.bf16.msra.mxu0 %v1446
      %1482 = vmatprep.subr.bf16.mxu0 0
      %1483 = vmatpush1.bf16.msra.mxu0 %v1447
      %1484 = vmatprep.subr.bf16.mxu0 0
      %1485 = vmatpush1.bf16.msra.mxu0 %v1448
      %1486 = vmatprep.subr.bf16.mxu0 0
      %1487 = vmatpush1.bf16.msra.mxu0 %v1449
      %1488 = vmatprep.subr.bf16.mxu0 0
      %1489 = vmatpush1.bf16.msra.mxu0 %v1450
      %1490 = vmatprep.subr.bf16.mxu0 0
      %1491 = vmatpush1.bf16.msra.mxu0 %v1451
      %1492 = vmatprep.mubr.bf16.mxu0 %v1397
      %1493 = vmatmul.mubr.bf16.gmra.mrb[0].mxu0 %v1396
      %v1494 = vpop.f32.mrb[0].mxu0
      %v1495 = vadd.f32 0.0, %v1494
      %v1496 = vpop.f32.mrb[0].mxu0
      %v1497 = vpop.f32.mrb[0].mxu0
      %v1498 = vadd.f32 0.0, %v1497
      %v1499 = vpop.f32.mrb[0].mxu0
      %1500 = vmatprep.mubr.bf16.mxu0 %v1398
      %1501 = vmatmul.mubr.bf16.gmra.mrb[0].mxu0 %v1397
      %v1502 = vpop.f32.mrb[0].mxu0
      %v1503 = vadd.f32 0.0, %v1502
      %v1504 = vpop.f32.mrb[0].mxu0
      %v1505 = vpop.f32.mrb[0].mxu0
      %v1506 = vadd.f32 0.0, %v1505
      %v1507 = vpop.f32.mrb[0].mxu0
      %1508 = vmatprep.mubr.bf16.mxu0 %v1399
      %1509 = vmatmul.mubr.bf16.gmra.mrb[0].mxu0 %v1398
      %v1510 = vpop.f32.mrb[0].mxu0
      %v1511 = vadd.f32 0.0, %v1510
      %v1512 = vpop.f32.mrb[0].mxu0
      %v1513 = vpop.f32.mrb[0].mxu0
      %v1514 = vadd.f32 0.0, %v1513
      %v1515 = vpop.f32.mrb[0].mxu0
      %1516 = vmatprep.mubr.bf16.mxu0 %v1400
      %1517 = vmatmul.mubr.bf16.gmra.mrb[0].mxu0 %v1399
      %v1518 = vpop.f32.mrb[0].mxu0
      %v1519 = vadd.f32 0.0, %v1518
      %v1520 = vpop.f32.mrb[0].mxu0
      %v1521 = vpop.f32.mrb[0].mxu0
      %v1522 = vadd.f32 0.0, %v1521
      %v1523 = vpop.f32.mrb[0].mxu0
      %1524 = vmatprep.mubr.bf16.mxu0 %v1401
      %1525 = vmatmul.mubr.bf16.gmra.mrb[0].mxu0 %v1400
      %v1526 = vpop.f32.mrb[0].mxu0
      %v1527 = vadd.f32 0.0, %v1526
      %v1528 = vpop.f32.mrb[0].mxu0
      %v1529 = vpop.f32.mrb[0].mxu0
      %v1530 = vadd.f32 0.0, %v1529
      %v1531 = vpop.f32.mrb[0].mxu0
      %1532 = vmatprep.mubr.bf16.mxu0 %v1402
      %1533 = vmatmul.mubr.bf16.gmra.mrb[0].mxu0 %v1401
      %v1534 = vpop.f32.mrb[0].mxu0
      %v1535 = vadd.f32 0.0, %v1534
      %v1536 = vpop.f32.mrb[0].mxu0
      %v1537 = vpop.f32.mrb[0].mxu0
      %v1538 = vadd.f32 0.0, %v1537
      %v1539 = vpop.f32.mrb[0].mxu0
      %1540 = vmatprep.mubr.bf16.mxu0 %v1403
      %1541 = vmatmul.mubr.bf16.gmra.mrb[0].mxu0 %v1402
      %v1542 = vpop.f32.mrb[0].mxu0
      %v1543 = vadd.f32 0.0, %v1542
      %v1544 = vpop.f32.mrb[0].mxu0
      %v1545 = vpop.f32.mrb[0].mxu0
      %v1546 = vadd.f32 0.0, %v1545
      %v1547 = vpop.f32.mrb[0].mxu0
      %1548 = vmatprep.mubr.bf16.mxu0 %v1404
      %1549 = vmatmul.mubr.bf16.gmra.mrb[0].mxu0 %v1403
      %v1550 = vpop.f32.mrb[0].mxu0
      %v1551 = vadd.f32 0.0, %v1550
      %v1552 = vpop.f32.mrb[0].mxu0
      %v1553 = vpop.f32.mrb[0].mxu0
      %v1554 = vadd.f32 0.0, %v1553
      %v1555 = vpop.f32.mrb[0].mxu0
      %1556 = vmatprep.mubr.bf16.mxu0 %v1405
      %1557 = vmatmul.mubr.bf16.gmra.mrb[0].mxu0 %v1404
      %v1558 = vpop.f32.mrb[0].mxu0
      %v1559 = vadd.f32 0.0, %v1558
      %v1560 = vpop.f32.mrb[0].mxu0
      %v1561 = vpop.f32.mrb[0].mxu0
      %v1562 = vadd.f32 0.0, %v1561
      %v1563 = vpop.f32.mrb[0].mxu0
      %1564 = vmatprep.mubr.bf16.mxu0 %v1406
      %1565 = vmatmul.mubr.bf16.gmra.mrb[0].mxu0 %v1405
      %v1566 = vpop.f32.mrb[0].mxu0
      %v1567 = vadd.f32 0.0, %v1566
      %v1568 = vpop.f32.mrb[0].mxu0
      %v1569 = vpop.f32.mrb[0].mxu0
      %v1570 = vadd.f32 0.0, %v1569
      %v1571 = vpop.f32.mrb[0].mxu0
      %1572 = vmatprep.mubr.bf16.mxu0 %v1407
      %1573 = vmatmul.mubr.bf16.gmra.mrb[0].mxu0 %v1406
      %v1574 = vpop.f32.mrb[0].mxu0
      %v1575 = vadd.f32 0.0, %v1574
      %v1576 = vpop.f32.mrb[0].mxu0
      %v1577 = vpop.f32.mrb[0].mxu0
      %v1578 = vadd.f32 0.0, %v1577
      %v1579 = vpop.f32.mrb[0].mxu0
      %1580 = vmatprep.mubr.bf16.mxu0 %v1408
      %1581 = vmatmul.mubr.bf16.gmra.mrb[0].mxu0 %v1407
      %v1582 = vpop.f32.mrb[0].mxu0
      %v1583 = vadd.f32 0.0, %v1582
      %v1584 = vpop.f32.mrb[0].mxu0
      %v1585 = vpop.f32.mrb[0].mxu0
      %v1586 = vadd.f32 0.0, %v1585
      %v1587 = vpop.f32.mrb[0].mxu0
      %1588 = vmatprep.mubr.bf16.mxu0 %v1409
      %1589 = vmatmul.mubr.bf16.gmra.mrb[0].mxu0 %v1408
      %v1590 = vpop.f32.mrb[0].mxu0
      %v1591 = vadd.f32 0.0, %v1590
      %v1592 = vpop.f32.mrb[0].mxu0
      %v1593 = vpop.f32.mrb[0].mxu0
      %v1594 = vadd.f32 0.0, %v1593
      %v1595 = vpop.f32.mrb[0].mxu0
      %1596 = vmatprep.mubr.bf16.mxu0 %v1428
      %1597 = vmatmul.mubr.bf16.gmra.mrb[0].mxu0 %v1409
      %v1598 = vpop.f32.mrb[0].mxu0
      %v1599 = vadd.f32 0.0, %v1598
      %v1600 = vpop.f32.mrb[0].mxu0
      %v1601 = vpop.f32.mrb[0].mxu0
      %v1602 = vadd.f32 0.0, %v1601
      %v1603 = vpop.f32.mrb[0].mxu0
      %1604 = vdwg.mxu0
      %1605 = vmatprep.subr.bf16.mxu0 0
      %1606 = vmatpush1.bf16.msra.mxu0 %v1452
      %1607 = vmatprep.subr.bf16.mxu0 0
      %1608 = vmatpush1.bf16.msra.mxu0 %v1453
      %1609 = vmatprep.subr.bf16.mxu0 0
      %1610 = vmatpush1.bf16.msra.mxu0 %v1454
      %1611 = vmatprep.subr.bf16.mxu0 0
      %1612 = vmatpush1.bf16.msra.mxu0 %v1455
      %1613 = vmatprep.subr.bf16.mxu0 0
      %1614 = vmatpush1.bf16.msra.mxu0 %v1456
      %1615 = vmatprep.subr.bf16.mxu0 0
      %1616 = vmatpush1.bf16.msra.mxu0 %v1457
      %1617 = vmatprep.subr.bf16.mxu0 0
      %1618 = vmatpush1.bf16.msra.mxu0 %v1458
      %1619 = vmatprep.subr.bf16.mxu0 0
      %1620 = vmatpush1.bf16.msra.mxu0 %v1459
      %1621 = vmatprep.subr.bf16.mxu0 0
      %1622 = vmatpush1.bf16.msra.mxu0 0
      %1623 = vmatprep.subr.bf16.mxu0 0
      %1624 = vmatpush1.bf16.msra.mxu0 0
      %1625 = vmatprep.subr.bf16.mxu0 0
      %1626 = vmatpush1.bf16.msra.mxu0 0
      %1627 = vmatprep.subr.bf16.mxu0 0
      %1628 = vmatpush1.bf16.msra.mxu0 0
      %1629 = vmatprep.subr.bf16.mxu0 0
      %1630 = vmatpush1.bf16.msra.mxu0 0
      %1631 = vmatprep.subr.bf16.mxu0 0
      %1632 = vmatpush1.bf16.msra.mxu0 0
      %1633 = vmatprep.subr.bf16.mxu0 0
      %1634 = vmatpush1.bf16.msra.mxu0 0
      %1635 = vmatprep.subr.bf16.mxu0 0
      %1636 = vmatpush1.bf16.msra.mxu0 0
      %1637 = vmatprep.mubr.bf16.mxu0 0
      %1638 = vmatmul.mubr.bf16.gmra.mrb[0].mxu0 %v1398
      %v1639 = vpop.f32.mrb[0].mxu0
      %v1640 = vadd.f32 %v1495, %v1639
      %v1641 = vpop.f32.mrb[0].mxu0
      %v1642 = vpop.f32.mrb[0].mxu0
      %v1643 = vadd.f32 %v1498, %v1642
      %v1644 = vpop.f32.mrb[0].mxu0
      %1645 = vmatprep.mubr.bf16.mxu0 0
      %1646 = vmatmul.mubr.bf16.gmra.mrb[0].mxu0 %v1399
      %v1647 = vpop.f32.mrb[0].mxu0
      %v1648 = vadd.f32 %v1503, %v1647
      %v1649 = vpop.f32.mrb[0].mxu0
      %v1650 = vpop.f32.mrb[0].mxu0
      %v1651 = vadd.f32 %v1506, %v1650
      %v1652 = vpop.f32.mrb[0].mxu0
      %1653 = vmatprep.mubr.bf16.mxu0 0
      %1654 = vmatmul.mubr.bf16.gmra.mrb[0].mxu0 %v1400
      %v1655 = vpop.f32.mrb[0].mxu0
      %v1656 = vadd.f32 %v1511, %v1655
      %v1657 = vpop.f32.mrb[0].mxu0
      %v1658 = vpop.f32.mrb[0].mxu0
      %v1659 = vadd.f32 %v1514, %v1658
      %v1660 = vpop.f32.mrb[0].mxu0
      %1661 = vmatprep.mubr.bf16.mxu0 0
      %1662 = vmatmul.mubr.bf16.gmra.mrb[0].mxu0 %v1401
      %v1663 = vpop.f32.mrb[0].mxu0
      %v1664 = vadd.f32 %v1519, %v1663
      %v1665 = vpop.f32.mrb[0].mxu0
      %v1666 = vpop.f32.mrb[0].mxu0
      %v1667 = vadd.f32 %v1522, %v1666
      %v1668 = vpop.f32.mrb[0].mxu0
      %1669 = vmatprep.mubr.bf16.mxu0 0
      %1670 = vmatmul.mubr.bf16.gmra.mrb[0].mxu0 %v1402
      %v1671 = vpop.f32.mrb[0].mxu0
      %v1672 = vadd.f32 %v1527, %v1671
      %v1673 = vpop.f32.mrb[0].mxu0
      %v1674 = vpop.f32.mrb[0].mxu0
      %v1675 = vadd.f32 %v1530, %v1674
      %v1676 = vpop.f32.mrb[0].mxu0
      %1677 = vmatprep.mubr.bf16.mxu0 0
      %1678 = vmatmul.mubr.bf16.gmra.mrb[0].mxu0 %v1403
      %v1679 = vpop.f32.mrb[0].mxu0
      %v1680 = vadd.f32 %v1535, %v1679
      %v1681 = vpop.f32.mrb[0].mxu0
      %v1682 = vpop.f32.mrb[0].mxu0
      %v1683 = vadd.f32 %v1538, %v1682
      %v1684 = vpop.f32.mrb[0].mxu0
      %1685 = vmatprep.mubr.bf16.mxu0 0
      %1686 = vmatmul.mubr.bf16.gmra.mrb[0].mxu0 %v1404
      %v1687 = vpop.f32.mrb[0].mxu0
      %v1688 = vadd.f32 %v1543, %v1687
      %v1689 = vpop.f32.mrb[0].mxu0
      %v1690 = vpop.f32.mrb[0].mxu0
      %v1691 = vadd.f32 %v1546, %v1690
      %v1692 = vpop.f32.mrb[0].mxu0
      %1693 = vmatprep.mubr.bf16.mxu0 0
      %1694 = vmatmul.mubr.bf16.gmra.mrb[0].mxu0 %v1405
      %v1695 = vpop.f32.mrb[0].mxu0
      %v1696 = vadd.f32 %v1551, %v1695
      %v1697 = vpop.f32.mrb[0].mxu0
      %v1698 = vpop.f32.mrb[0].mxu0
      %v1699 = vadd.f32 %v1554, %v1698
      %v1700 = vpop.f32.mrb[0].mxu0
      %1701 = vmatprep.mubr.bf16.mxu0 0
      %1702 = vmatmul.mubr.bf16.gmra.mrb[0].mxu0 %v1406
      %v1703 = vpop.f32.mrb[0].mxu0
      %v1704 = vadd.f32 %v1559, %v1703
      %v1705 = vpop.f32.mrb[0].mxu0
      %v1706 = vpop.f32.mrb[0].mxu0
      %v1707 = vadd.f32 %v1562, %v1706
      %v1708 = vpop.f32.mrb[0].mxu0
      %1709 = vmatprep.mubr.bf16.mxu0 0
      %1710 = vmatmul.mubr.bf16.gmra.mrb[0].mxu0 %v1407
      %v1711 = vpop.f32.mrb[0].mxu0
      %v1712 = vadd.f32 %v1567, %v1711
      %v1713 = vpop.f32.mrb[0].mxu0
      %v1714 = vpop.f32.mrb[0].mxu0
      %v1715 = vadd.f32 %v1570, %v1714
      %v1716 = vpop.f32.mrb[0].mxu0
      %1717 = vmatprep.mubr.bf16.mxu0 0
      %1718 = vmatmul.mubr.bf16.gmra.mrb[0].mxu0 %v1408
      %v1719 = vpop.f32.mrb[0].mxu0
      %v1720 = vadd.f32 %v1575, %v1719
      %v1721 = vpop.f32.mrb[0].mxu0
      %v1722 = vpop.f32.mrb[0].mxu0
      %v1723 = vadd.f32 %v1578, %v1722
      %v1724 = vpop.f32.mrb[0].mxu0
      %1725 = vmatprep.mubr.bf16.mxu0 0
      %1726 = vmatmul.mubr.bf16.gmra.mrb[0].mxu0 %v1409
      %v1727 = vpop.f32.mrb[0].mxu0
      %v1728 = vadd.f32 %v1583, %v1727
      %v1729 = vpop.f32.mrb[0].mxu0
      %v1730 = vpop.f32.mrb[0].mxu0
      %v1731 = vadd.f32 %v1586, %v1730
      %v1732 = vpop.f32.mrb[0].mxu0
      %1733 = vmatprep.mubr.bf16.mxu0 0
      %1734 = vmatmul.mubr.bf16.gmra.mrb[0].mxu0 %v1428
      %v1735 = vpop.f32.mrb[0].mxu0
      %v1736 = vadd.f32 %v1591, %v1735
      %v1737 = vpop.f32.mrb[0].mxu0
      %v1738 = vpop.f32.mrb[0].mxu0
      %v1739 = vadd.f32 %v1594, %v1738
      %v1740 = vpop.f32.mrb[0].mxu0
      %1741 = vmatprep.mubr.bf16.mxu0 0
      %1742 = vmatmul.mubr.bf16.gmra.mrb[0].mxu0 %v1434
      %v1743 = vpop.f32.mrb[0].mxu0
      %v1744 = vadd.f32 %v1599, %v1743
      %v1745 = vpop.f32.mrb[0].mxu0
      %v1746 = vpop.f32.mrb[0].mxu0
      %v1747 = vadd.f32 %v1602, %v1746
      %v1748 = vpop.f32.mrb[0].mxu0
      %1749 = vdwg.mxu0
      %s1750 = scalar_lea.vmem [#allocation2], 192
      %v1751 = vld [vmem:[%s1750] sm:$0xff]
      %v1752 = vld [vmem:[%s1750 + $0x8] sm:$0xff]
      %v1753 = vld [vmem:[%s1750 + $0x10] sm:$0xff]
      %v1754 = vld [vmem:[%s1750 + $0x18] sm:$0xff]
      %v1755 = vld [vmem:[%s1750 + $0x20] sm:$0xff]
      %v1756 = vld [vmem:[%s1750 + $0x28] sm:$0xff]
      %v1757 = vld [vmem:[%s1750 + $0x30] sm:$0xff]
      %v1758 = vld [vmem:[%s1750 + $0x38] sm:$0xff]
      %v1759 = vld [vmem:[%s1750 + $0x40] sm:$0xff]
      %v1760 = vld [vmem:[%s1750 + $0x48] sm:$0xff]
      %v1761 = vld [vmem:[%s1750 + $0x50] sm:$0xff]
      %v1762 = vld [vmem:[%s1750 + $0x58] sm:$0xff]
      %v1763 = vld [vmem:[%s1750 + $0x60] sm:$0xff]
      %v1764 = vld [vmem:[%s1750 + $0x68] sm:$0xff]
      %v1765 = vld [vmem:[%s1750 + $0x70] sm:$0xff]
      %v1766 = vld [vmem:[%s1750 + $0x78] sm:$0xff]
      %v1767 = vld [vmem:[%s1750 + $0x80] sm:$0xff]
      %v1768 = vld [vmem:[%s1750 + $0x88] sm:$0xff]
      %v1769 = vld [vmem:[%s1750 + $0x90] sm:$0xff]
      %v1770 = vld [vmem:[%s1750 + $0x98] sm:$0xff]
      %v1771 = vld [vmem:[%s1750 + $0xa0] sm:$0xff]
      %v1772 = vld [vmem:[%s1750 + $0xa8] sm:$0xff]
      %v1773 = vld [vmem:[%s1750 + $0xb0] sm:$0xff]
      %v1774 = vld [vmem:[%s1750 + $0xb8] sm:$0xff]
      %1775 = vmatprep.subr.bf16.mxu0 0
      %1776 = vmatpush1.bf16.msra.mxu0 %v1751
      %1777 = vmatprep.subr.bf16.mxu0 0
      %1778 = vmatpush1.bf16.msra.mxu0 %v1752
      %1779 = vmatprep.subr.bf16.mxu0 0
      %1780 = vmatpush1.bf16.msra.mxu0 %v1753
      %1781 = vmatprep.subr.bf16.mxu0 0
      %1782 = vmatpush1.bf16.msra.mxu0 %v1754
      %1783 = vmatprep.subr.bf16.mxu0 0
      %1784 = vmatpush1.bf16.msra.mxu0 %v1755
      %1785 = vmatprep.subr.bf16.mxu0 0
      %1786 = vmatpush1.bf16.msra.mxu0 %v1756
      %1787 = vmatprep.subr.bf16.mxu0 0
      %1788 = vmatpush1.bf16.msra.mxu0 %v1757
      %1789 = vmatprep.subr.bf16.mxu0 0
      %1790 = vmatpush1.bf16.msra.mxu0 %v1758
      %1791 = vmatprep.subr.bf16.mxu0 0
      %1792 = vmatpush1.bf16.msra.mxu0 %v1759
      %1793 = vmatprep.subr.bf16.mxu0 0
      %1794 = vmatpush1.bf16.msra.mxu0 %v1760
      %1795 = vmatprep.subr.bf16.mxu0 0
      %1796 = vmatpush1.bf16.msra.mxu0 %v1761
      %1797 = vmatprep.subr.bf16.mxu0 0
      %1798 = vmatpush1.bf16.msra.mxu0 %v1762
      %1799 = vmatprep.subr.bf16.mxu0 0
      %1800 = vmatpush1.bf16.msra.mxu0 %v1763
      %1801 = vmatprep.subr.bf16.mxu0 0
      %1802 = vmatpush1.bf16.msra.mxu0 %v1764
      %1803 = vmatprep.subr.bf16.mxu0 0
      %1804 = vmatpush1.bf16.msra.mxu0 %v1765
      %1805 = vmatprep.subr.bf16.mxu0 0
      %1806 = vmatpush1.bf16.msra.mxu0 %v1766
      %1807 = vmatprep.mubr.bf16.mxu0 %v1397
      %1808 = vmatmul.mubr.bf16.gmra.mrb[0].mxu0 %v1396
      %v1809 = vpop.f32.mrb[0].mxu0
      %v1810 = vadd.f32 0.0, %v1809
      %v1811 = vpop.f32.mrb[0].mxu0
      %v1812 = vpop.f32.mrb[0].mxu0
      %v1813 = vadd.f32 0.0, %v1812
      %v1814 = vpop.f32.mrb[0].mxu0
      %1815 = vmatprep.mubr.bf16.mxu0 %v1398
      %1816 = vmatmul.mubr.bf16.gmra.mrb[0].mxu0 %v1397
      %v1817 = vpop.f32.mrb[0].mxu0
      %v1818 = vadd.f32 0.0, %v1817
      %v1819 = vpop.f32.mrb[0].mxu0
      %v1820 = vpop.f32.mrb[0].mxu0
      %v1821 = vadd.f32 0.0, %v1820
      %v1822 = vpop.f32.mrb[0].mxu0
      %1823 = vmatprep.mubr.bf16.mxu0 %v1399
      %1824 = vmatmul.mubr.bf16.gmra.mrb[0].mxu0 %v1398
      %v1825 = vpop.f32.mrb[0].mxu0
      %v1826 = vadd.f32 0.0, %v1825
      %v1827 = vpop.f32.mrb[0].mxu0
      %v1828 = vpop.f32.mrb[0].mxu0
      %v1829 = vadd.f32 0.0, %v1828
      %v1830 = vpop.f32.mrb[0].mxu0
      %1831 = vmatprep.mubr.bf16.mxu0 %v1400
      %1832 = vmatmul.mubr.bf16.gmra.mrb[0].mxu0 %v1399
      %v1833 = vpop.f32.mrb[0].mxu0
      %v1834 = vadd.f32 0.0, %v1833
      %v1835 = vpop.f32.mrb[0].mxu0
      %v1836 = vpop.f32.mrb[0].mxu0
      %v1837 = vadd.f32 0.0, %v1836
      %v1838 = vpop.f32.mrb[0].mxu0
      %1839 = vmatprep.mubr.bf16.mxu0 %v1401
      %1840 = vmatmul.mubr.bf16.gmra.mrb[0].mxu0 %v1400
      %v1841 = vpop.f32.mrb[0].mxu0
      %v1842 = vadd.f32 0.0, %v1841
      %v1843 = vpop.f32.mrb[0].mxu0
      %v1844 = vpop.f32.mrb[0].mxu0
      %v1845 = vadd.f32 0.0, %v1844
      %v1846 = vpop.f32.mrb[0].mxu0
      %1847 = vmatprep.mubr.bf16.mxu0 %v1402
      %1848 = vmatmul.mubr.bf16.gmra.mrb[0].mxu0 %v1401
      %v1849 = vpop.f32.mrb[0].mxu0
      %v1850 = vadd.f32 0.0, %v1849
      %v1851 = vpop.f32.mrb[0].mxu0
      %v1852 = vpop.f32.mrb[0].mxu0
      %v1853 = vadd.f32 0.0, %v1852
      %v1854 = vpop.f32.mrb[0].mxu0
      %1855 = vmatprep.mubr.bf16.mxu0 %v1403
      %1856 = vmatmul.mubr.bf16.gmra.mrb[0].mxu0 %v1402
      %v1857 = vpop.f32.mrb[0].mxu0
      %v1858 = vadd.f32 0.0, %v1857
      %v1859 = vpop.f32.mrb[0].mxu0
      %v1860 = vpop.f32.mrb[0].mxu0
      %v1861 = vadd.f32 0.0, %v1860
      %v1862 = vpop.f32.mrb[0].mxu0
      %1863 = vmatprep.mubr.bf16.mxu0 %v1404
      %1864 = vmatmul.mubr.bf16.gmra.mrb[0].mxu0 %v1403
      %v1865 = vpop.f32.mrb[0].mxu0
      %v1866 = vadd.f32 0.0, %v1865
      %v1867 = vpop.f32.mrb[0].mxu0
      %v1868 = vpop.f32.mrb[0].mxu0
      %v1869 = vadd.f32 0.0, %v1868
      %v1870 = vpop.f32.mrb[0].mxu0
      %1871 = vmatprep.mubr.bf16.mxu0 %v1405
      %1872 = vmatmul.mubr.bf16.gmra.mrb[0].mxu0 %v1404
      %v1873 = vpop.f32.mrb[0].mxu0
      %v1874 = vadd.f32 0.0, %v1873
      %v1875 = vpop.f32.mrb[0].mxu0
      %v1876 = vpop.f32.mrb[0].mxu0
      %v1877 = vadd.f32 0.0, %v1876
      %v1878 = vpop.f32.mrb[0].mxu0
      %1879 = vmatprep.mubr.bf16.mxu0 %v1406
      %1880 = vmatmul.mubr.bf16.gmra.mrb[0].mxu0 %v1405
      %v1881 = vpop.f32.mrb[0].mxu0
      %v1882 = vadd.f32 0.0, %v1881
      %v1883 = vpop.f32.mrb[0].mxu0
      %v1884 = vpop.f32.mrb[0].mxu0
      %v1885 = vadd.f32 0.0, %v1884
      %v1886 = vpop.f32.mrb[0].mxu0
      %1887 = vmatprep.mubr.bf16.mxu0 %v1407
      %1888 = vmatmul.mubr.bf16.gmra.mrb[0].mxu0 %v1406
      %v1889 = vpop.f32.mrb[0].mxu0
      %v1890 = vadd.f32 0.0, %v1889
      %v1891 = vpop.f32.mrb[0].mxu0
      %v1892 = vpop.f32.mrb[0].mxu0
      %v1893 = vadd.f32 0.0, %v1892
      %v1894 = vpop.f32.mrb[0].mxu0
      %1895 = vmatprep.mubr.bf16.mxu0 %v1408
      %1896 = vmatmul.mubr.bf16.gmra.mrb[0].mxu0 %v1407
      %v1897 = vpop.f32.mrb[0].mxu0
      %v1898 = vadd.f32 0.0, %v1897
      %v1899 = vpop.f32.mrb[0].mxu0
      %v1900 = vpop.f32.mrb[0].mxu0
      %v1901 = vadd.f32 0.0, %v1900
      %v1902 = vpop.f32.mrb[0].mxu0
      %1903 = vmatprep.mubr.bf16.mxu0 %v1409
      %1904 = vmatmul.mubr.bf16.gmra.mrb[0].mxu0 %v1408
      %v1905 = vpop.f32.mrb[0].mxu0
      %v1906 = vadd.f32 0.0, %v1905
      %v1907 = vpop.f32.mrb[0].mxu0
      %v1908 = vpop.f32.mrb[0].mxu0
      %v1909 = vadd.f32 0.0, %v1908
      %v1910 = vpop.f32.mrb[0].mxu0
      %1911 = vmatprep.mubr.bf16.mxu0 %v1428
      %1912 = vmatmul.mubr.bf16.gmra.mrb[0].mxu0 %v1409
      %v1913 = vpop.f32.mrb[0].mxu0
      %v1914 = vadd.f32 0.0, %v1913
      %v1915 = vpop.f32.mrb[0].mxu0
      %v1916 = vpop.f32.mrb[0].mxu0
      %v1917 = vadd.f32 0.0, %v1916
      %v1918 = vpop.f32.mrb[0].mxu0
      %1919 = vdwg.mxu0
      %1920 = vmatprep.subr.bf16.mxu0 0
      %1921 = vmatpush1.bf16.msra.mxu0 %v1767
      %1922 = vmatprep.subr.bf16.mxu0 0
      %1923 = vmatpush1.bf16.msra.mxu0 %v1768
      %1924 = vmatprep.subr.bf16.mxu0 0
      %1925 = vmatpush1.bf16.msra.mxu0 %v1769
      %1926 = vmatprep.subr.bf16.mxu0 0
      %1927 = vmatpush1.bf16.msra.mxu0 %v1770
      %1928 = vmatprep.subr.bf16.mxu0 0
      %1929 = vmatpush1.bf16.msra.mxu0 %v1771
      %1930 = vmatprep.subr.bf16.mxu0 0
      %1931 = vmatpush1.bf16.msra.mxu0 %v1772
      %1932 = vmatprep.subr.bf16.mxu0 0
      %1933 = vmatpush1.bf16.msra.mxu0 %v1773
      %1934 = vmatprep.subr.bf16.mxu0 0
      %1935 = vmatpush1.bf16.msra.mxu0 %v1774
      %1936 = vmatprep.subr.bf16.mxu0 0
      %1937 = vmatpush1.bf16.msra.mxu0 0
      %1938 = vmatprep.subr.bf16.mxu0 0
      %1939 = vmatpush1.bf16.msra.mxu0 0
      %1940 = vmatprep.subr.bf16.mxu0 0
      %1941 = vmatpush1.bf16.msra.mxu0 0
      %1942 = vmatprep.subr.bf16.mxu0 0
      %1943 = vmatpush1.bf16.msra.mxu0 0
      %1944 = vmatprep.subr.bf16.mxu0 0
      %1945 = vmatpush1.bf16.msra.mxu0 0
      %1946 = vmatprep.subr.bf16.mxu0 0
      %1947 = vmatpush1.bf16.msra.mxu0 0
      %1948 = vmatprep.subr.bf16.mxu0 0
      %1949 = vmatpush1.bf16.msra.mxu0 0
      %1950 = vmatprep.subr.bf16.mxu0 0
      %1951 = vmatpush1.bf16.msra.mxu0 0
      %1952 = vmatprep.mubr.bf16.mxu0 0
      %1953 = vmatmul.mubr.bf16.gmra.mrb[0].mxu0 %v1398
      %v1954 = vpop.f32.mrb[0].mxu0
      %v1955 = vadd.f32 %v1810, %v1954
      %v1956 = vpop.f32.mrb[0].mxu0
      %v1957 = vpop.f32.mrb[0].mxu0
      %v1958 = vadd.f32 %v1813, %v1957
      %v1959 = vpop.f32.mrb[0].mxu0
      %1960 = vmatprep.mubr.bf16.mxu0 0
      %1961 = vmatmul.mubr.bf16.gmra.mrb[0].mxu0 %v1399
      %v1962 = vpop.f32.mrb[0].mxu0
      %v1963 = vadd.f32 %v1818, %v1962
      %v1964 = vpop.f32.mrb[0].mxu0
      %v1965 = vpop.f32.mrb[0].mxu0
      %v1966 = vadd.f32 %v1821, %v1965
      %v1967 = vpop.f32.mrb[0].mxu0
      %1968 = vmatprep.mubr.bf16.mxu0 0
      %1969 = vmatmul.mubr.bf16.gmra.mrb[0].mxu0 %v1400
      %v1970 = vpop.f32.mrb[0].mxu0
      %v1971 = vadd.f32 %v1826, %v1970
      %v1972 = vpop.f32.mrb[0].mxu0
      %v1973 = vpop.f32.mrb[0].mxu0
      %v1974 = vadd.f32 %v1829, %v1973
      %v1975 = vpop.f32.mrb[0].mxu0
      %1976 = vmatprep.mubr.bf16.mxu0 0
      %1977 = vmatmul.mubr.bf16.gmra.mrb[0].mxu0 %v1401
      %v1978 = vpop.f32.mrb[0].mxu0
      %v1979 = vadd.f32 %v1834, %v1978
      %v1980 = vpop.f32.mrb[0].mxu0
      %v1981 = vpop.f32.mrb[0].mxu0
      %v1982 = vadd.f32 %v1837, %v1981
      %v1983 = vpop.f32.mrb[0].mxu0
      %1984 = vmatprep.mubr.bf16.mxu0 0
      %1985 = vmatmul.mubr.bf16.gmra.mrb[0].mxu0 %v1402
      %v1986 = vpop.f32.mrb[0].mxu0
      %v1987 = vadd.f32 %v1842, %v1986
      %v1988 = vpop.f32.mrb[0].mxu0
      %v1989 = vpop.f32.mrb[0].mxu0
      %v1990 = vadd.f32 %v1845, %v1989
      %v1991 = vpop.f32.mrb[0].mxu0
      %1992 = vmatprep.mubr.bf16.mxu0 0
      %1993 = vmatmul.mubr.bf16.gmra.mrb[0].mxu0 %v1403
      %v1994 = vpop.f32.mrb[0].mxu0
      %v1995 = vadd.f32 %v1850, %v1994
      %v1996 = vpop.f32.mrb[0].mxu0
      %v1997 = vpop.f32.mrb[0].mxu0
      %v1998 = vadd.f32 %v1853, %v1997
      %v1999 = vpop.f32.mrb[0].mxu0
      %2000 = vmatprep.mubr.bf16.mxu0 0
      %2001 = vmatmul.mubr.bf16.gmra.mrb[0].mxu0 %v1404
      %v2002 = vpop.f32.mrb[0].mxu0
      %v2003 = vadd.f32 %v1858, %v2002
      %v2004 = vpop.f32.mrb[0].mxu0
      %v2005 = vpop.f32.mrb[0].mxu0
      %v2006 = vadd.f32 %v1861, %v2005
      %v2007 = vpop.f32.mrb[0].mxu0
      %2008 = vmatprep.mubr.bf16.mxu0 0
      %2009 = vmatmul.mubr.bf16.gmra.mrb[0].mxu0 %v1405
      %v2010 = vpop.f32.mrb[0].mxu0
      %v2011 = vadd.f32 %v1866, %v2010
      %v2012 = vpop.f32.mrb[0].mxu0
      %v2013 = vpop.f32.mrb[0].mxu0
      %v2014 = vadd.f32 %v1869, %v2013
      %v2015 = vpop.f32.mrb[0].mxu0
      %2016 = vmatprep.mubr.bf16.mxu0 0
      %2017 = vmatmul.mubr.bf16.gmra.mrb[0].mxu0 %v1406
      %v2018 = vpop.f32.mrb[0].mxu0
      %v2019 = vadd.f32 %v1874, %v2018
      %v2020 = vpop.f32.mrb[0].mxu0
      %v2021 = vpop.f32.mrb[0].mxu0
      %v2022 = vadd.f32 %v1877, %v2021
      %v2023 = vpop.f32.mrb[0].mxu0
      %2024 = vmatprep.mubr.bf16.mxu0 0
      %2025 = vmatmul.mubr.bf16.gmra.mrb[0].mxu0 %v1407
      %v2026 = vpop.f32.mrb[0].mxu0
      %v2027 = vadd.f32 %v1882, %v2026
      %v2028 = vpop.f32.mrb[0].mxu0
      %v2029 = vpop.f32.mrb[0].mxu0
      %v2030 = vadd.f32 %v1885, %v2029
      %v2031 = vpop.f32.mrb[0].mxu0
      %2032 = vmatprep.mubr.bf16.mxu0 0
      %2033 = vmatmul.mubr.bf16.gmra.mrb[0].mxu0 %v1408
      %v2034 = vpop.f32.mrb[0].mxu0
      %v2035 = vadd.f32 %v1890, %v2034
      %v2036 = vpop.f32.mrb[0].mxu0
      %v2037 = vpop.f32.mrb[0].mxu0
      %v2038 = vadd.f32 %v1893, %v2037
      %v2039 = vpop.f32.mrb[0].mxu0
      %2040 = vmatprep.mubr.bf16.mxu0 0
      %2041 = vmatmul.mubr.bf16.gmra.mrb[0].mxu0 %v1409
      %v2042 = vpop.f32.mrb[0].mxu0
      %v2043 = vadd.f32 %v1898, %v2042
      %v2044 = vpop.f32.mrb[0].mxu0
      %v2045 = vpop.f32.mrb[0].mxu0
      %v2046 = vadd.f32 %v1901, %v2045
      %v2047 = vpop.f32.mrb[0].mxu0
      %2048 = vmatprep.mubr.bf16.mxu0 0
      %2049 = vmatmul.mubr.bf16.gmra.mrb[0].mxu0 %v1428
      %v2050 = vpop.f32.mrb[0].mxu0
      %v2051 = vadd.f32 %v1906, %v2050
      %v2052 = vpop.f32.mrb[0].mxu0
      %v2053 = vpop.f32.mrb[0].mxu0
      %v2054 = vadd.f32 %v1909, %v2053
      %v2055 = vpop.f32.mrb[0].mxu0
      %2056 = vmatprep.mubr.bf16.mxu0 0
      %2057 = vmatmul.mubr.bf16.gmra.mrb[0].mxu0 %v1434
      %v2058 = vpop.f32.mrb[0].mxu0
      %v2059 = vadd.f32 %v1914, %v2058
      %v2060 = vpop.f32.mrb[0].mxu0
      %v2061 = vpop.f32.mrb[0].mxu0
      %v2062 = vadd.f32 %v1917, %v2061
      %v2063 = vpop.f32.mrb[0].mxu0
      %2064 = vdwg.mxu0
      %s2065 = scalar_lea.vmem [#allocation2], 384
      %v2066 = vld [vmem:[%s2065] sm:$0xff]
      %v2067 = vld [vmem:[%s2065 + $0x8] sm:$0xff]
      %v2068 = vld [vmem:[%s2065 + $0x10] sm:$0xff]
      %v2069 = vld [vmem:[%s2065 + $0x18] sm:$0xff]
      %v2070 = vld [vmem:[%s2065 + $0x20] sm:$0xff]
      %v2071 = vld [vmem:[%s2065 + $0x28] sm:$0xff]
      %v2072 = vld [vmem:[%s2065 + $0x30] sm:$0xff]
      %v2073 = vld [vmem:[%s2065 + $0x38] sm:$0xff]
      %v2074 = vld [vmem:[%s2065 + $0x40] sm:$0xff]
      %v2075 = vld [vmem:[%s2065 + $0x48] sm:$0xff]
      %v2076 = vld [vmem:[%s2065 + $0x50] sm:$0xff]
      %v2077 = vld [vmem:[%s2065 + $0x58] sm:$0xff]
      %v2078 = vld [vmem:[%s2065 + $0x60] sm:$0xff]
      %v2079 = vld [vmem:[%s2065 + $0x68] sm:$0xff]
      %v2080 = vld [vmem:[%s2065 + $0x70] sm:$0xff]
      %v2081 = vld [vmem:[%s2065 + $0x78] sm:$0xff]
      %v2082 = vld [vmem:[%s2065 + $0x80] sm:$0xff]
      %v2083 = vld [vmem:[%s2065 + $0x88] sm:$0xff]
      %v2084 = vld [vmem:[%s2065 + $0x90] sm:$0xff]
      %v2085 = vld [vmem:[%s2065 + $0x98] sm:$0xff]
      %v2086 = vld [vmem:[%s2065 + $0xa0] sm:$0xff]
      %v2087 = vld [vmem:[%s2065 + $0xa8] sm:$0xff]
      %v2088 = vld [vmem:[%s2065 + $0xb0] sm:$0xff]
      %v2089 = vld [vmem:[%s2065 + $0xb8] sm:$0xff]
      %2090 = vmatprep.subr.bf16.mxu0 0
      %2091 = vmatpush1.bf16.msra.mxu0 %v2066
      %2092 = vmatprep.subr.bf16.mxu0 0
      %2093 = vmatpush1.bf16.msra.mxu0 %v2067
      %2094 = vmatprep.subr.bf16.mxu0 0
      %2095 = vmatpush1.bf16.msra.mxu0 %v2068
      %2096 = vmatprep.subr.bf16.mxu0 0
      %2097 = vmatpush1.bf16.msra.mxu0 %v2069
      %2098 = vmatprep.subr.bf16.mxu0 0
      %2099 = vmatpush1.bf16.msra.mxu0 %v2070
      %2100 = vmatprep.subr.bf16.mxu0 0
      %2101 = vmatpush1.bf16.msra.mxu0 %v2071
      %2102 = vmatprep.subr.bf16.mxu0 0
      %2103 = vmatpush1.bf16.msra.mxu0 %v2072
      %2104 = vmatprep.subr.bf16.mxu0 0
      %2105 = vmatpush1.bf16.msra.mxu0 %v2073
      %2106 = vmatprep.subr.bf16.mxu0 0
      %2107 = vmatpush1.bf16.msra.mxu0 %v2074
      %2108 = vmatprep.subr.bf16.mxu0 0
      %2109 = vmatpush1.bf16.msra.mxu0 %v2075
      %2110 = vmatprep.subr.bf16.mxu0 0
      %2111 = vmatpush1.bf16.msra.mxu0 %v2076
      %2112 = vmatprep.subr.bf16.mxu0 0
      %2113 = vmatpush1.bf16.msra.mxu0 %v2077
      %2114 = vmatprep.subr.bf16.mxu0 0
      %2115 = vmatpush1.bf16.msra.mxu0 %v2078
      %2116 = vmatprep.subr.bf16.mxu0 0
      %2117 = vmatpush1.bf16.msra.mxu0 %v2079
      %2118 = vmatprep.subr.bf16.mxu0 0
      %2119 = vmatpush1.bf16.msra.mxu0 %v2080
      %2120 = vmatprep.subr.bf16.mxu0 0
      %2121 = vmatpush1.bf16.msra.mxu0 %v2081
      %2122 = vmatprep.mubr.bf16.mxu0 %v1397
      %2123 = vmatmul.mubr.bf16.gmra.mrb[0].mxu0 %v1396
      %v2124 = vpop.f32.mrb[0].mxu0
      %v2125 = vadd.f32 0.0, %v2124
      %v2126 = vpop.f32.mrb[0].mxu0
      %v2127 = vpop.f32.mrb[0].mxu0
      %v2128 = vadd.f32 0.0, %v2127
      %v2129 = vpop.f32.mrb[0].mxu0
      %2130 = vmatprep.mubr.bf16.mxu0 %v1398
      %2131 = vmatmul.mubr.bf16.gmra.mrb[0].mxu0 %v1397
      %v2132 = vpop.f32.mrb[0].mxu0
      %v2133 = vadd.f32 0.0, %v2132
      %v2134 = vpop.f32.mrb[0].mxu0
      %v2135 = vpop.f32.mrb[0].mxu0
      %v2136 = vadd.f32 0.0, %v2135
      %v2137 = vpop.f32.mrb[0].mxu0
      %2138 = vmatprep.mubr.bf16.mxu0 %v1399
      %2139 = vmatmul.mubr.bf16.gmra.mrb[0].mxu0 %v1398
      %v2140 = vpop.f32.mrb[0].mxu0
      %v2141 = vadd.f32 0.0, %v2140
      %v2142 = vpop.f32.mrb[0].mxu0
      %v2143 = vpop.f32.mrb[0].mxu0
      %v2144 = vadd.f32 0.0, %v2143
      %v2145 = vpop.f32.mrb[0].mxu0
      %2146 = vmatprep.mubr.bf16.mxu0 %v1400
      %2147 = vmatmul.mubr.bf16.gmra.mrb[0].mxu0 %v1399
      %v2148 = vpop.f32.mrb[0].mxu0
      %v2149 = vadd.f32 0.0, %v2148
      %v2150 = vpop.f32.mrb[0].mxu0
      %v2151 = vpop.f32.mrb[0].mxu0
      %v2152 = vadd.f32 0.0, %v2151
      %v2153 = vpop.f32.mrb[0].mxu0
      %2154 = vmatprep.mubr.bf16.mxu0 %v1401
      %2155 = vmatmul.mubr.bf16.gmra.mrb[0].mxu0 %v1400
      %v2156 = vpop.f32.mrb[0].mxu0
      %v2157 = vadd.f32 0.0, %v2156
      %v2158 = vpop.f32.mrb[0].mxu0
      %v2159 = vpop.f32.mrb[0].mxu0
      %v2160 = vadd.f32 0.0, %v2159
      %v2161 = vpop.f32.mrb[0].mxu0
      %2162 = vmatprep.mubr.bf16.mxu0 %v1402
      %2163 = vmatmul.mubr.bf16.gmra.mrb[0].mxu0 %v1401
      %v2164 = vpop.f32.mrb[0].mxu0
      %v2165 = vadd.f32 0.0, %v2164
      %v2166 = vpop.f32.mrb[0].mxu0
      %v2167 = vpop.f32.mrb[0].mxu0
      %v2168 = vadd.f32 0.0, %v2167
      %v2169 = vpop.f32.mrb[0].mxu0
      %2170 = vmatprep.mubr.bf16.mxu0 %v1403
      %2171 = vmatmul.mubr.bf16.gmra.mrb[0].mxu0 %v1402
      %v2172 = vpop.f32.mrb[0].mxu0
      %v2173 = vadd.f32 0.0, %v2172
      %v2174 = vpop.f32.mrb[0].mxu0
      %v2175 = vpop.f32.mrb[0].mxu0
      %v2176 = vadd.f32 0.0, %v2175
      %v2177 = vpop.f32.mrb[0].mxu0
      %2178 = vmatprep.mubr.bf16.mxu0 %v1404
      %2179 = vmatmul.mubr.bf16.gmra.mrb[0].mxu0 %v1403
      %v2180 = vpop.f32.mrb[0].mxu0
      %v2181 = vadd.f32 0.0, %v2180
      %v2182 = vpop.f32.mrb[0].mxu0
      %v2183 = vpop.f32.mrb[0].mxu0
      %v2184 = vadd.f32 0.0, %v2183
      %v2185 = vpop.f32.mrb[0].mxu0
      %2186 = vmatprep.mubr.bf16.mxu0 %v1405
      %2187 = vmatmul.mubr.bf16.gmra.mrb[0].mxu0 %v1404
      %v2188 = vpop.f32.mrb[0].mxu0
      %v2189 = vadd.f32 0.0, %v2188
      %v2190 = vpop.f32.mrb[0].mxu0
      %v2191 = vpop.f32.mrb[0].mxu0
      %v2192 = vadd.f32 0.0, %v2191
      %v2193 = vpop.f32.mrb[0].mxu0
      %2194 = vmatprep.mubr.bf16.mxu0 %v1406
      %2195 = vmatmul.mubr.bf16.gmra.mrb[0].mxu0 %v1405
      %v2196 = vpop.f32.mrb[0].mxu0
      %v2197 = vadd.f32 0.0, %v2196
      %v2198 = vpop.f32.mrb[0].mxu0
      %v2199 = vpop.f32.mrb[0].mxu0
      %v2200 = vadd.f32 0.0, %v2199
      %v2201 = vpop.f32.mrb[0].mxu0
      %2202 = vmatprep.mubr.bf16.mxu0 %v1407
      %2203 = vmatmul.mubr.bf16.gmra.mrb[0].mxu0 %v1406
      %v2204 = vpop.f32.mrb[0].mxu0
      %v2205 = vadd.f32 0.0, %v2204
      %v2206 = vpop.f32.mrb[0].mxu0
      %v2207 = vpop.f32.mrb[0].mxu0
      %v2208 = vadd.f32 0.0, %v2207
      %v2209 = vpop.f32.mrb[0].mxu0
      %2210 = vmatprep.mubr.bf16.mxu0 %v1408
      %2211 = vmatmul.mubr.bf16.gmra.mrb[0].mxu0 %v1407
      %v2212 = vpop.f32.mrb[0].mxu0
      %v2213 = vadd.f32 0.0, %v2212
      %v2214 = vpop.f32.mrb[0].mxu0
      %v2215 = vpop.f32.mrb[0].mxu0
      %v2216 = vadd.f32 0.0, %v2215
      %v2217 = vpop.f32.mrb[0].mxu0
      %2218 = vmatprep.mubr.bf16.mxu0 %v1409
      %2219 = vmatmul.mubr.bf16.gmra.mrb[0].mxu0 %v1408
      %v2220 = vpop.f32.mrb[0].mxu0
      %v2221 = vadd.f32 0.0, %v2220
      %v2222 = vpop.f32.mrb[0].mxu0
      %v2223 = vpop.f32.mrb[0].mxu0
      %v2224 = vadd.f32 0.0, %v2223
      %v2225 = vpop.f32.mrb[0].mxu0
      %2226 = vmatprep.mubr.bf16.mxu0 %v1428
      %2227 = vmatmul.mubr.bf16.gmra.mrb[0].mxu0 %v1409
      %v2228 = vpop.f32.mrb[0].mxu0
      %v2229 = vadd.f32 0.0, %v2228
      %v2230 = vpop.f32.mrb[0].mxu0
      %v2231 = vpop.f32.mrb[0].mxu0
      %v2232 = vadd.f32 0.0, %v2231
      %v2233 = vpop.f32.mrb[0].mxu0
      %2234 = vdwg.mxu0
      %2235 = vmatprep.subr.bf16.mxu0 0
      %2236 = vmatpush1.bf16.msra.mxu0 %v2082
      %2237 = vmatprep.subr.bf16.mxu0 0
      %2238 = vmatpush1.bf16.msra.mxu0 %v2083
      %2239 = vmatprep.subr.bf16.mxu0 0
      %2240 = vmatpush1.bf16.msra.mxu0 %v2084
      %2241 = vmatprep.subr.bf16.mxu0 0
      %2242 = vmatpush1.bf16.msra.mxu0 %v2085
      %2243 = vmatprep.subr.bf16.mxu0 0
      %2244 = vmatpush1.bf16.msra.mxu0 %v2086
      %2245 = vmatprep.subr.bf16.mxu0 0
      %2246 = vmatpush1.bf16.msra.mxu0 %v2087
      %2247 = vmatprep.subr.bf16.mxu0 0
      %2248 = vmatpush1.bf16.msra.mxu0 %v2088
      %2249 = vmatprep.subr.bf16.mxu0 0
      %2250 = vmatpush1.bf16.msra.mxu0 %v2089
      %2251 = vmatprep.subr.bf16.mxu0 0
      %2252 = vmatpush1.bf16.msra.mxu0 0
      %2253 = vmatprep.subr.bf16.mxu0 0
      %2254 = vmatpush1.bf16.msra.mxu0 0
      %2255 = vmatprep.subr.bf16.mxu0 0
      %2256 = vmatpush1.bf16.msra.mxu0 0
      %2257 = vmatprep.subr.bf16.mxu0 0
      %2258 = vmatpush1.bf16.msra.mxu0 0
      %2259 = vmatprep.subr.bf16.mxu0 0
      %2260 = vmatpush1.bf16.msra.mxu0 0
      %2261 = vmatprep.subr.bf16.mxu0 0
      %2262 = vmatpush1.bf16.msra.mxu0 0
      %2263 = vmatprep.subr.bf16.mxu0 0
      %2264 = vmatpush1.bf16.msra.mxu0 0
      %2265 = vmatprep.subr.bf16.mxu0 0
      %2266 = vmatpush1.bf16.msra.mxu0 0
      %2267 = vmatprep.mubr.bf16.mxu0 0
      %2268 = vmatmul.mubr.bf16.gmra.mrb[0].mxu0 %v1398
      %v2269 = vpop.f32.mrb[0].mxu0
      %v2270 = vadd.f32 %v2125, %v2269
      %v2271 = vpop.f32.mrb[0].mxu0
      %v2272 = vpop.f32.mrb[0].mxu0
      %v2273 = vadd.f32 %v2128, %v2272
      %v2274 = vpop.f32.mrb[0].mxu0
      %2275 = vmatprep.mubr.bf16.mxu0 0
      %2276 = vmatmul.mubr.bf16.gmra.mrb[0].mxu0 %v1399
      %v2277 = vpop.f32.mrb[0].mxu0
      %v2278 = vadd.f32 %v2133, %v2277
      %v2279 = vpop.f32.mrb[0].mxu0
      %v2280 = vpop.f32.mrb[0].mxu0
      %v2281 = vadd.f32 %v2136, %v2280
      %v2282 = vpop.f32.mrb[0].mxu0
      %2283 = vmatprep.mubr.bf16.mxu0 0
      %2284 = vmatmul.mubr.bf16.gmra.mrb[0].mxu0 %v1400
      %v2285 = vpop.f32.mrb[0].mxu0
      %v2286 = vadd.f32 %v2141, %v2285
      %v2287 = vpop.f32.mrb[0].mxu0
      %v2288 = vpop.f32.mrb[0].mxu0
      %v2289 = vadd.f32 %v2144, %v2288
      %v2290 = vpop.f32.mrb[0].mxu0
      %2291 = vmatprep.mubr.bf16.mxu0 0
      %2292 = vmatmul.mubr.bf16.gmra.mrb[0].mxu0 %v1401
      %v2293 = vpop.f32.mrb[0].mxu0
      %v2294 = vadd.f32 %v2149, %v2293
      %v2295 = vpop.f32.mrb[0].mxu0
      %v2296 = vpop.f32.mrb[0].mxu0
      %v2297 = vadd.f32 %v2152, %v2296
      %v2298 = vpop.f32.mrb[0].mxu0
      %2299 = vmatprep.mubr.bf16.mxu0 0
      %2300 = vmatmul.mubr.bf16.gmra.mrb[0].mxu0 %v1402
      %v2301 = vpop.f32.mrb[0].mxu0
      %v2302 = vadd.f32 %v2157, %v2301
      %v2303 = vpop.f32.mrb[0].mxu0
      %v2304 = vpop.f32.mrb[0].mxu0
      %v2305 = vadd.f32 %v2160, %v2304
      %v2306 = vpop.f32.mrb[0].mxu0
      %2307 = vmatprep.mubr.bf16.mxu0 0
      %2308 = vmatmul.mubr.bf16.gmra.mrb[0].mxu0 %v1403
      %v2309 = vpop.f32.mrb[0].mxu0
      %v2310 = vadd.f32 %v2165, %v2309
      %v2311 = vpop.f32.mrb[0].mxu0
      %v2312 = vpop.f32.mrb[0].mxu0
      %v2313 = vadd.f32 %v2168, %v2312
      %v2314 = vpop.f32.mrb[0].mxu0
      %2315 = vmatprep.mubr.bf16.mxu0 0
      %2316 = vmatmul.mubr.bf16.gmra.mrb[0].mxu0 %v1404
      %v2317 = vpop.f32.mrb[0].mxu0
      %v2318 = vadd.f32 %v2173, %v2317
      %v2319 = vpop.f32.mrb[0].mxu0
      %v2320 = vpop.f32.mrb[0].mxu0
      %v2321 = vadd.f32 %v2176, %v2320
      %v2322 = vpop.f32.mrb[0].mxu0
      %2323 = vmatprep.mubr.bf16.mxu0 0
      %2324 = vmatmul.mubr.bf16.gmra.mrb[0].mxu0 %v1405
      %v2325 = vpop.f32.mrb[0].mxu0
      %v2326 = vadd.f32 %v2181, %v2325
      %v2327 = vpop.f32.mrb[0].mxu0
      %v2328 = vpop.f32.mrb[0].mxu0
      %v2329 = vadd.f32 %v2184, %v2328
      %v2330 = vpop.f32.mrb[0].mxu0
      %2331 = vmatprep.mubr.bf16.mxu0 0
      %2332 = vmatmul.mubr.bf16.gmra.mrb[0].mxu0 %v1406
      %v2333 = vpop.f32.mrb[0].mxu0
      %v2334 = vadd.f32 %v2189, %v2333
      %v2335 = vpop.f32.mrb[0].mxu0
      %v2336 = vpop.f32.mrb[0].mxu0
      %v2337 = vadd.f32 %v2192, %v2336
      %v2338 = vpop.f32.mrb[0].mxu0
      %2339 = vmatprep.mubr.bf16.mxu0 0
      %2340 = vmatmul.mubr.bf16.gmra.mrb[0].mxu0 %v1407
      %v2341 = vpop.f32.mrb[0].mxu0
      %v2342 = vadd.f32 %v2197, %v2341
      %v2343 = vpop.f32.mrb[0].mxu0
      %v2344 = vpop.f32.mrb[0].mxu0
      %v2345 = vadd.f32 %v2200, %v2344
      %v2346 = vpop.f32.mrb[0].mxu0
      %2347 = vmatprep.mubr.bf16.mxu0 0
      %2348 = vmatmul.mubr.bf16.gmra.mrb[0].mxu0 %v1408
      %v2349 = vpop.f32.mrb[0].mxu0
      %v2350 = vadd.f32 %v2205, %v2349
      %v2351 = vpop.f32.mrb[0].mxu0
      %v2352 = vpop.f32.mrb[0].mxu0
      %v2353 = vadd.f32 %v2208, %v2352
      %v2354 = vpop.f32.mrb[0].mxu0
      %2355 = vmatprep.mubr.bf16.mxu0 0
      %2356 = vmatmul.mubr.bf16.gmra.mrb[0].mxu0 %v1409
      %v2357 = vpop.f32.mrb[0].mxu0
      %v2358 = vadd.f32 %v2213, %v2357
      %v2359 = vpop.f32.mrb[0].mxu0
      %v2360 = vpop.f32.mrb[0].mxu0
      %v2361 = vadd.f32 %v2216, %v2360
      %v2362 = vpop.f32.mrb[0].mxu0
      %2363 = vmatprep.mubr.bf16.mxu0 0
      %2364 = vmatmul.mubr.bf16.gmra.mrb[0].mxu0 %v1428
      %v2365 = vpop.f32.mrb[0].mxu0
      %v2366 = vadd.f32 %v2221, %v2365
      %v2367 = vpop.f32.mrb[0].mxu0
      %v2368 = vpop.f32.mrb[0].mxu0
      %v2369 = vadd.f32 %v2224, %v2368
      %v2370 = vpop.f32.mrb[0].mxu0
      %2371 = vmatprep.mubr.bf16.mxu0 0
      %2372 = vmatmul.mubr.bf16.gmra.mrb[0].mxu0 %v1434
      %v2373 = vpop.f32.mrb[0].mxu0
      %v2374 = vadd.f32 %v2229, %v2373
      %v2375 = vpop.f32.mrb[0].mxu0
      %v2376 = vpop.f32.mrb[0].mxu0
      %v2377 = vadd.f32 %v2232, %v2376
      %v2378 = vpop.f32.mrb[0].mxu0
      %2379 = vdwg.mxu0
      %v2380 = vrot.slane %v1955, 1
      %v2381 = vrot.slane %v1963, 1
      %v2382 = vrot.slane %v1971, 1
      %v2383 = vrot.slane %v1979, 1
      %v2384 = vrot.slane %v1987, 1
      %v2385 = vrot.slane %v1995, 1
      %v2386 = vrot.slane %v2003, 1
      %v2387 = vrot.slane %v2011, 1
      %v2388 = vrot.slane %v2019, 1
      %v2389 = vrot.slane %v2027, 1
      %v2390 = vrot.slane %v2035, 1
      %v2391 = vrot.slane %v2043, 1
      %v2392 = vrot.slane %v2051, 1
      %v2393 = vrot.slane %v2059, 1
      %v2394 = vrot.slane %v1958, 1
      %v2395 = vrot.slane %v1966, 1
      %v2396 = vrot.slane %v1974, 1
      %v2397 = vrot.slane %v1982, 1
      %v2398 = vrot.slane %v1990, 1
      %v2399 = vrot.slane %v1998, 1
      %v2400 = vrot.slane %v2006, 1
      %v2401 = vrot.slane %v2014, 1
      %v2402 = vrot.slane %v2022, 1
      %v2403 = vrot.slane %v2030, 1
      %v2404 = vrot.slane %v2038, 1
      %v2405 = vrot.slane %v2046, 1
      %v2406 = vrot.slane %v2054, 1
      %v2407 = vrot.slane %v2062, 1
      %v2408 = vlaneseq
      %v2409 = vshrl.u32 %v2408, 7
      %vm2410 = vcmp.lt.s32.totalorder %v2409, 7
      %v2411 = vsel %vm2410, %v2380, %v2394
      %v2412 = vsel %vm2410, %v2381, %v2395
      %v2413 = vsel %vm2410, %v2382, %v2396
      %v2414 = vsel %vm2410, %v2383, %v2397
      %v2415 = vsel %vm2410, %v2384, %v2398
      %v2416 = vsel %vm2410, %v2385, %v2399
      %v2417 = vsel %vm2410, %v2386, %v2400
      %v2418 = vsel %vm2410, %v2387, %v2401
      %v2419 = vsel %vm2410, %v2388, %v2402
      %v2420 = vsel %vm2410, %v2389, %v2403
      %v2421 = vsel %vm2410, %v2390, %v2404
      %v2422 = vsel %vm2410, %v2391, %v2405
      %v2423 = vsel %vm2410, %v2392, %v2406
      %v2424 = vsel %vm2410, %v2393, %v2407
      %v2425 = vsel %vm2410, %v2394, %v2380
      %v2426 = vsel %vm2410, %v2395, %v2381
      %v2427 = vsel %vm2410, %v2396, %v2382
      %v2428 = vsel %vm2410, %v2397, %v2383
      %v2429 = vsel %vm2410, %v2398, %v2384
      %v2430 = vsel %vm2410, %v2399, %v2385
      %v2431 = vsel %vm2410, %v2400, %v2386
      %v2432 = vsel %vm2410, %v2401, %v2387
      %v2433 = vsel %vm2410, %v2402, %v2388
      %v2434 = vsel %vm2410, %v2403, %v2389
      %v2435 = vsel %vm2410, %v2404, %v2390
      %v2436 = vsel %vm2410, %v2405, %v2391
      %v2437 = vsel %vm2410, %v2406, %v2392
      %v2438 = vsel %vm2410, %v2407, %v2393
      %v2439 = vadd.f32 %v1640, %v2411
      %v2440 = vadd.f32 %v1643, %v2425
      %v2441 = vadd.f32 %v1648, %v2412
      %v2442 = vadd.f32 %v1651, %v2426
      %v2443 = vadd.f32 %v1656, %v2413
      %v2444 = vadd.f32 %v1659, %v2427
      %v2445 = vadd.f32 %v1664, %v2414
      %v2446 = vadd.f32 %v1667, %v2428
      %v2447 = vadd.f32 %v1672, %v2415
      %v2448 = vadd.f32 %v1675, %v2429
      %v2449 = vadd.f32 %v1680, %v2416
      %v2450 = vadd.f32 %v1683, %v2430
      %v2451 = vadd.f32 %v1688, %v2417
      %v2452 = vadd.f32 %v1691, %v2431
      %v2453 = vadd.f32 %v1696, %v2418
      %v2454 = vadd.f32 %v1699, %v2432
      %v2455 = vadd.f32 %v1704, %v2419
      %v2456 = vadd.f32 %v1707, %v2433
      %v2457 = vadd.f32 %v1712, %v2420
      %v2458 = vadd.f32 %v1715, %v2434
      %v2459 = vadd.f32 %v1720, %v2421
      %v2460 = vadd.f32 %v1723, %v2435
      %v2461 = vadd.f32 %v1728, %v2422
      %v2462 = vadd.f32 %v1731, %v2436
      %v2463 = vadd.f32 %v1736, %v2423
      %v2464 = vadd.f32 %v1739, %v2437
      %v2465 = vadd.f32 %v1744, %v2424
      %v2466 = vadd.f32 %v1747, %v2438
      %v2467 = vrot.slane %v2270, 2
      %v2468 = vrot.slane %v2278, 2
      %v2469 = vrot.slane %v2286, 2
      %v2470 = vrot.slane %v2294, 2
      %v2471 = vrot.slane %v2302, 2
      %v2472 = vrot.slane %v2310, 2
      %v2473 = vrot.slane %v2318, 2
      %v2474 = vrot.slane %v2326, 2
      %v2475 = vrot.slane %v2334, 2
      %v2476 = vrot.slane %v2342, 2
      %v2477 = vrot.slane %v2350, 2
      %v2478 = vrot.slane %v2358, 2
      %v2479 = vrot.slane %v2366, 2
      %v2480 = vrot.slane %v2374, 2
      %v2481 = vrot.slane %v2273, 2
      %v2482 = vrot.slane %v2281, 2
      %v2483 = vrot.slane %v2289, 2
      %v2484 = vrot.slane %v2297, 2
      %v2485 = vrot.slane %v2305, 2
      %v2486 = vrot.slane %v2313, 2
      %v2487 = vrot.slane %v2321, 2
      %v2488 = vrot.slane %v2329, 2
      %v2489 = vrot.slane %v2337, 2
      %v2490 = vrot.slane %v2345, 2
      %v2491 = vrot.slane %v2353, 2
      %v2492 = vrot.slane %v2361, 2
      %v2493 = vrot.slane %v2369, 2
      %v2494 = vrot.slane %v2377, 2
      %vm2495 = vcmp.lt.s32.totalorder %v2409, 6
      %v2496 = vsel %vm2495, %v2467, %v2481
      %v2497 = vsel %vm2495, %v2468, %v2482
      %v2498 = vsel %vm2495, %v2469, %v2483
      %v2499 = vsel %vm2495, %v2470, %v2484
      %v2500 = vsel %vm2495, %v2471, %v2485
      %v2501 = vsel %vm2495, %v2472, %v2486
      %v2502 = vsel %vm2495, %v2473, %v2487
      %v2503 = vsel %vm2495, %v2474, %v2488
      %v2504 = vsel %vm2495, %v2475, %v2489
      %v2505 = vsel %vm2495, %v2476, %v2490
      %v2506 = vsel %vm2495, %v2477, %v2491
      %v2507 = vsel %vm2495, %v2478, %v2492
      %v2508 = vsel %vm2495, %v2479, %v2493
      %v2509 = vsel %vm2495, %v2480, %v2494
      %v2510 = vsel %vm2495, %v2481, %v2467
      %v2511 = vsel %vm2495, %v2482, %v2468
      %v2512 = vsel %vm2495, %v2483, %v2469
      %v2513 = vsel %vm2495, %v2484, %v2470
      %v2514 = vsel %vm2495, %v2485, %v2471
      %v2515 = vsel %vm2495, %v2486, %v2472
      %v2516 = vsel %vm2495, %v2487, %v2473
      %v2517 = vsel %vm2495, %v2488, %v2474
      %v2518 = vsel %vm2495, %v2489, %v2475
      %v2519 = vsel %vm2495, %v2490, %v2476
      %v2520 = vsel %vm2495, %v2491, %v2477
      %v2521 = vsel %vm2495, %v2492, %v2478
      %v2522 = vsel %vm2495, %v2493, %v2479
      %v2523 = vsel %vm2495, %v2494, %v2480
      %v2524 = vadd.f32 %v2439, %v2496
      %v2525 = vadd.f32 %v2440, %v2510
      %v2526 = vadd.f32 %v2441, %v2497
      %v2527 = vadd.f32 %v2442, %v2511
      %v2528 = vadd.f32 %v2443, %v2498
      %v2529 = vadd.f32 %v2444, %v2512
      %v2530 = vadd.f32 %v2445, %v2499
      %v2531 = vadd.f32 %v2446, %v2513
      %v2532 = vadd.f32 %v2447, %v2500
      %v2533 = vadd.f32 %v2448, %v2514
      %v2534 = vadd.f32 %v2449, %v2501
      %v2535 = vadd.f32 %v2450, %v2515
      %v2536 = vadd.f32 %v2451, %v2502
      %v2537 = vadd.f32 %v2452, %v2516
      %v2538 = vadd.f32 %v2453, %v2503
      %v2539 = vadd.f32 %v2454, %v2517
      %v2540 = vadd.f32 %v2455, %v2504
      %v2541 = vadd.f32 %v2456, %v2518
      %v2542 = vadd.f32 %v2457, %v2505
      %v2543 = vadd.f32 %v2458, %v2519
      %v2544 = vadd.f32 %v2459, %v2506
      %v2545 = vadd.f32 %v2460, %v2520
      %v2546 = vadd.f32 %v2461, %v2507
      %v2547 = vadd.f32 %v2462, %v2521
      %v2548 = vadd.f32 %v2463, %v2508
      %v2549 = vadd.f32 %v2464, %v2522
      %v2550 = vadd.f32 %v2465, %v2509
      %v2551 = vadd.f32 %v2466, %v2523
      %v2552 = vld [vmem:[%s2] sm:$0x1]
      %v2554 = vlaneseq
      %v2555 = vshrl.u32 %v2554, 7
      %v2556 = vsub.s32 0, %v2555
      %v2557 = vrot.slane %v2552, %v2556
      %v2559 = vadd.f32 %v2524, %v2557
      %v2560 = vadd.f32 %v2525, %v2557
      %v2561 = vadd.f32 %v2526, %v2557
      %v2562 = vadd.f32 %v2527, %v2557
      %v2563 = vadd.f32 %v2528, %v2557
      %v2564 = vadd.f32 %v2529, %v2557
      %v2565 = vadd.f32 %v2530, %v2557
      %v2566 = vadd.f32 %v2531, %v2557
      %v2567 = vadd.f32 %v2532, %v2557
      %v2568 = vadd.f32 %v2533, %v2557
      %v2569 = vadd.f32 %v2534, %v2557
      %v2570 = vadd.f32 %v2535, %v2557
      %v2571 = vadd.f32 %v2536, %v2557
      %v2572 = vadd.f32 %v2537, %v2557
      %v2573 = vadd.f32 %v2538, %v2557
      %v2574 = vadd.f32 %v2539, %v2557
      %v2575 = vadd.f32 %v2540, %v2557
      %v2576 = vadd.f32 %v2541, %v2557
      %v2577 = vadd.f32 %v2542, %v2557
      %v2578 = vadd.f32 %v2543, %v2557
      %v2579 = vadd.f32 %v2544, %v2557
      %v2580 = vadd.f32 %v2545, %v2557
      %v2581 = vadd.f32 %v2546, %v2557
      %v2582 = vadd.f32 %v2547, %v2557
      %v2583 = vadd.f32 %v2548, %v2557
      %v2584 = vadd.f32 %v2549, %v2557
      %v2585 = vadd.f32 %v2550, %v2557
      %v2586 = vadd.f32 %v2551, %v2557
      %v2587 = vmul.f32 %v2559, 0.2
      %v2588 = vmul.f32 %v2560, 0.2
      %v2589 = vmul.f32 %v2561, 0.2
      %v2590 = vmul.f32 %v2562, 0.2
      %v2591 = vmul.f32 %v2563, 0.2
      %v2592 = vmul.f32 %v2564, 0.2
      %v2593 = vmul.f32 %v2565, 0.2
      %v2594 = vmul.f32 %v2566, 0.2
      %v2595 = vmul.f32 %v2567, 0.2
      %v2596 = vmul.f32 %v2568, 0.2
      %v2597 = vmul.f32 %v2569, 0.2
      %v2598 = vmul.f32 %v2570, 0.2
      %v2599 = vmul.f32 %v2571, 0.2
      %v2600 = vmul.f32 %v2572, 0.2
      %v2601 = vmul.f32 %v2573, 0.2
      %v2602 = vmul.f32 %v2574, 0.2
      %v2603 = vmul.f32 %v2575, 0.2
      %v2604 = vmul.f32 %v2576, 0.2
      %v2605 = vmul.f32 %v2577, 0.2
      %v2606 = vmul.f32 %v2578, 0.2
      %v2607 = vmul.f32 %v2579, 0.2
      %v2608 = vmul.f32 %v2580, 0.2
      %v2609 = vmul.f32 %v2581, 0.2
      %v2610 = vmul.f32 %v2582, 0.2
      %v2611 = vmul.f32 %v2583, 0.2
      %v2612 = vmul.f32 %v2584, 0.2
      %v2613 = vmul.f32 %v2585, 0.2
      %v2614 = vmul.f32 %v2586, 0.2
      %v2615 = vmax.f32 %v2559, %v2587
      %v2616 = vmax.f32 %v2560, %v2588
      %v2617 = vmax.f32 %v2561, %v2589
      %v2618 = vmax.f32 %v2562, %v2590
      %v2619 = vmax.f32 %v2563, %v2591
      %v2620 = vmax.f32 %v2564, %v2592
      %v2621 = vmax.f32 %v2565, %v2593
      %v2622 = vmax.f32 %v2566, %v2594
      %v2623 = vmax.f32 %v2567, %v2595
      %v2624 = vmax.f32 %v2568, %v2596
      %v2625 = vmax.f32 %v2569, %v2597
      %v2626 = vmax.f32 %v2570, %v2598
      %v2627 = vmax.f32 %v2571, %v2599
      %v2628 = vmax.f32 %v2572, %v2600
      %v2629 = vmax.f32 %v2573, %v2601
      %v2630 = vmax.f32 %v2574, %v2602
      %v2631 = vmax.f32 %v2575, %v2603
      %v2632 = vmax.f32 %v2576, %v2604
      %v2633 = vmax.f32 %v2577, %v2605
      %v2634 = vmax.f32 %v2578, %v2606
      %v2635 = vmax.f32 %v2579, %v2607
      %v2636 = vmax.f32 %v2580, %v2608
      %v2637 = vmax.f32 %v2581, %v2609
      %v2638 = vmax.f32 %v2582, %v2610
      %v2639 = vmax.f32 %v2583, %v2611
      %v2640 = vmax.f32 %v2584, %v2612
      %v2641 = vmax.f32 %v2585, %v2613
      %v2642 = vmax.f32 %v2586, %v2614
      %s2643 = scalar_lea.vmem %s2, 1
      %v2644 = vld [vmem:[%s2643] sm:$0x1]
      %v2646 = vlaneseq
      %v2647 = vshrl.u32 %v2646, 7
      %v2648 = vsub.s32 0, %v2647
      %v2649 = vrot.slane %v2644, %v2648
      %v2651 = vmul.f32 %v2615, %v2649
      %v2652 = vmul.f32 %v2616, %v2649
      %v2653 = vmul.f32 %v2617, %v2649
      %v2654 = vmul.f32 %v2618, %v2649
      %v2655 = vmul.f32 %v2619, %v2649
      %v2656 = vmul.f32 %v2620, %v2649
      %v2657 = vmul.f32 %v2621, %v2649
      %v2658 = vmul.f32 %v2622, %v2649
      %v2659 = vmul.f32 %v2623, %v2649
      %v2660 = vmul.f32 %v2624, %v2649
      %v2661 = vmul.f32 %v2625, %v2649
      %v2662 = vmul.f32 %v2626, %v2649
      %v2663 = vmul.f32 %v2627, %v2649
      %v2664 = vmul.f32 %v2628, %v2649
      %v2665 = vmul.f32 %v2629, %v2649
      %v2666 = vmul.f32 %v2630, %v2649
      %v2667 = vmul.f32 %v2631, %v2649
      %v2668 = vmul.f32 %v2632, %v2649
      %v2669 = vmul.f32 %v2633, %v2649
      %v2670 = vmul.f32 %v2634, %v2649
      %v2671 = vmul.f32 %v2635, %v2649
      %v2672 = vmul.f32 %v2636, %v2649
      %v2673 = vmul.f32 %v2637, %v2649
      %v2674 = vmul.f32 %v2638, %v2649
      %v2675 = vmul.f32 %v2639, %v2649
      %v2676 = vmul.f32 %v2640, %v2649
      %v2677 = vmul.f32 %v2641, %v2649
      %v2678 = vmul.f32 %v2642, %v2649
      %s2679 = scalar_lea.vmem %s2, 2
      %v2680 = vld [vmem:[%s2679] sm:$0x1]
      %v2682 = vlaneseq
      %v2683 = vshrl.u32 %v2682, 7
      %v2684 = vsub.s32 0, %v2683
      %v2685 = vrot.slane %v2680, %v2684
      %v2687 = vadd.f32 %v2651, %v2685
      %v2688 = vadd.f32 %v2652, %v2685
      %v2689 = vadd.f32 %v2653, %v2685
      %v2690 = vadd.f32 %v2654, %v2685
      %v2691 = vadd.f32 %v2655, %v2685
      %v2692 = vadd.f32 %v2656, %v2685
      %v2693 = vadd.f32 %v2657, %v2685
      %v2694 = vadd.f32 %v2658, %v2685
      %v2695 = vadd.f32 %v2659, %v2685
      %v2696 = vadd.f32 %v2660, %v2685
      %v2697 = vadd.f32 %v2661, %v2685
      %v2698 = vadd.f32 %v2662, %v2685
      %v2699 = vadd.f32 %v2663, %v2685
      %v2700 = vadd.f32 %v2664, %v2685
      %v2701 = vadd.f32 %v2665, %v2685
      %v2702 = vadd.f32 %v2666, %v2685
      %v2703 = vadd.f32 %v2667, %v2685
      %v2704 = vadd.f32 %v2668, %v2685
      %v2705 = vadd.f32 %v2669, %v2685
      %v2706 = vadd.f32 %v2670, %v2685
      %v2707 = vadd.f32 %v2671, %v2685
      %v2708 = vadd.f32 %v2672, %v2685
      %v2709 = vadd.f32 %v2673, %v2685
      %v2710 = vadd.f32 %v2674, %v2685
      %v2711 = vadd.f32 %v2675, %v2685
      %v2712 = vadd.f32 %v2676, %v2685
      %v2713 = vadd.f32 %v2677, %v2685
      %v2714 = vadd.f32 %v2678, %v2685
      %v2715 = vpack.c.bf16 %v2688, %v2687
      %v2716 = vpack.c.bf16 %v2690, %v2689
      %v2717 = vpack.c.bf16 %v2692, %v2691
      %v2718 = vpack.c.bf16 %v2694, %v2693
      %v2719 = vpack.c.bf16 %v2696, %v2695
      %v2720 = vpack.c.bf16 %v2698, %v2697
      %v2721 = vpack.c.bf16 %v2700, %v2699
      %v2722 = vpack.c.bf16 %v2702, %v2701
      %v2723 = vpack.c.bf16 %v2704, %v2703
      %v2724 = vpack.c.bf16 %v2706, %v2705
      %v2725 = vpack.c.bf16 %v2708, %v2707
      %v2726 = vpack.c.bf16 %v2710, %v2709
      %v2727 = vpack.c.bf16 %v2712, %v2711
      %v2728 = vpack.c.bf16 %v2714, %v2713
      %s2729 = scalar_lea.vmem [#allocation2], 576
      %v2730 = vld [vmem:[%s2729] sm:$0xff]
      %v2731 = vld [vmem:[%s2729 + $0x8] sm:$0xff]
      %v2732 = vld [vmem:[%s2729 + $0x10] sm:$0xff]
      %v2733 = vld [vmem:[%s2729 + $0x18] sm:$0xff]
      %v2734 = vld [vmem:[%s2729 + $0x20] sm:$0xff]
      %v2735 = vld [vmem:[%s2729 + $0x28] sm:$0xff]
      %v2736 = vld [vmem:[%s2729 + $0x30] sm:$0xff]
      %v2737 = vld [vmem:[%s2729 + $0x38] sm:$0xff]
      %v2738 = vld [vmem:[%s2729 + $0x40] sm:$0xff]
      %v2739 = vld [vmem:[%s2729 + $0x48] sm:$0xff]
      %v2740 = vld [vmem:[%s2729 + $0x50] sm:$0xff]
      %v2741 = vld [vmem:[%s2729 + $0x58] sm:$0xff]
      %v2742 = vld [vmem:[%s2729 + $0x60] sm:$0xff]
      %v2743 = vld [vmem:[%s2729 + $0x68] sm:$0xff]
      %v2744 = vld [vmem:[%s2729 + $0x70] sm:$0xff]
      %v2745 = vld [vmem:[%s2729 + $0x78] sm:$0xff]
      %v2746 = vld [vmem:[%s2729 + $0x80] sm:$0xff]
      %v2747 = vld [vmem:[%s2729 + $0x88] sm:$0xff]
      %v2748 = vld [vmem:[%s2729 + $0x90] sm:$0xff]
      %v2749 = vld [vmem:[%s2729 + $0x98] sm:$0xff]
      %v2750 = vld [vmem:[%s2729 + $0xa0] sm:$0xff]
      %v2751 = vld [vmem:[%s2729 + $0xa8] sm:$0xff]
      %v2752 = vld [vmem:[%s2729 + $0xb0] sm:$0xff]
      %v2753 = vld [vmem:[%s2729 + $0xb8] sm:$0xff]
      %2754 = vmatprep.subr.bf16.mxu0 0
      %2755 = vmatpush1.bf16.msra.mxu0 %v2730
      %2756 = vmatprep.subr.bf16.mxu0 0
      %2757 = vmatpush1.bf16.msra.mxu0 %v2731
      %2758 = vmatprep.subr.bf16.mxu0 0
      %2759 = vmatpush1.bf16.msra.mxu0 %v2732
      %2760 = vmatprep.subr.bf16.mxu0 0
      %2761 = vmatpush1.bf16.msra.mxu0 %v2733
      %2762 = vmatprep.subr.bf16.mxu0 0
      %2763 = vmatpush1.bf16.msra.mxu0 %v2734
      %2764 = vmatprep.subr.bf16.mxu0 0
      %2765 = vmatpush1.bf16.msra.mxu0 %v2735
      %2766 = vmatprep.subr.bf16.mxu0 0
      %2767 = vmatpush1.bf16.msra.mxu0 %v2736
      %2768 = vmatprep.subr.bf16.mxu0 0
      %2769 = vmatpush1.bf16.msra.mxu0 %v2737
      %2770 = vmatprep.subr.bf16.mxu0 0
      %2771 = vmatpush1.bf16.msra.mxu0 %v2738
      %2772 = vmatprep.subr.bf16.mxu0 0
      %2773 = vmatpush1.bf16.msra.mxu0 %v2739
      %2774 = vmatprep.subr.bf16.mxu0 0
      %2775 = vmatpush1.bf16.msra.mxu0 %v2740
      %2776 = vmatprep.subr.bf16.mxu0 0
      %2777 = vmatpush1.bf16.msra.mxu0 %v2741
      %2778 = vmatprep.subr.bf16.mxu0 0
      %2779 = vmatpush1.bf16.msra.mxu0 %v2742
      %2780 = vmatprep.subr.bf16.mxu0 0
      %2781 = vmatpush1.bf16.msra.mxu0 %v2743
      %2782 = vmatprep.subr.bf16.mxu0 0
      %2783 = vmatpush1.bf16.msra.mxu0 %v2744
      %2784 = vmatprep.subr.bf16.mxu0 0
      %2785 = vmatpush1.bf16.msra.mxu0 %v2745
      %2786 = vmatprep.mubr.bf16.mxu0 %v2716
      %2787 = vmatmul.mubr.bf16.gmra.mrb[0].mxu0 %v2715
      %v2788 = vpop.f32.mrb[0].mxu0
      %v2789 = vadd.f32 0.0, %v2788
      %v2790 = vpop.f32.mrb[0].mxu0
      %v2791 = vpop.f32.mrb[0].mxu0
      %v2792 = vadd.f32 0.0, %v2791
      %v2793 = vpop.f32.mrb[0].mxu0
      %2794 = vmatprep.mubr.bf16.mxu0 %v2717
      %2795 = vmatmul.mubr.bf16.gmra.mrb[0].mxu0 %v2716
      %v2796 = vpop.f32.mrb[0].mxu0
      %v2797 = vadd.f32 0.0, %v2796
      %v2798 = vpop.f32.mrb[0].mxu0
      %v2799 = vpop.f32.mrb[0].mxu0
      %v2800 = vadd.f32 0.0, %v2799
      %v2801 = vpop.f32.mrb[0].mxu0
      %2802 = vmatprep.mubr.bf16.mxu0 %v2718
      %2803 = vmatmul.mubr.bf16.gmra.mrb[0].mxu0 %v2717
      %v2804 = vpop.f32.mrb[0].mxu0
      %v2805 = vadd.f32 0.0, %v2804
      %v2806 = vpop.f32.mrb[0].mxu0
      %v2807 = vpop.f32.mrb[0].mxu0
      %v2808 = vadd.f32 0.0, %v2807
      %v2809 = vpop.f32.mrb[0].mxu0
      %2810 = vmatprep.mubr.bf16.mxu0 %v2719
      %2811 = vmatmul.mubr.bf16.gmra.mrb[0].mxu0 %v2718
      %v2812 = vpop.f32.mrb[0].mxu0
      %v2813 = vadd.f32 0.0, %v2812
      %v2814 = vpop.f32.mrb[0].mxu0
      %v2815 = vpop.f32.mrb[0].mxu0
      %v2816 = vadd.f32 0.0, %v2815
      %v2817 = vpop.f32.mrb[0].mxu0
      %2818 = vmatprep.mubr.bf16.mxu0 %v2720
      %2819 = vmatmul.mubr.bf16.gmra.mrb[0].mxu0 %v2719
      %v2820 = vpop.f32.mrb[0].mxu0
      %v2821 = vadd.f32 0.0, %v2820
      %v2822 = vpop.f32.mrb[0].mxu0
      %v2823 = vpop.f32.mrb[0].mxu0
      %v2824 = vadd.f32 0.0, %v2823
      %v2825 = vpop.f32.mrb[0].mxu0
      %2826 = vmatprep.mubr.bf16.mxu0 %v2721
      %2827 = vmatmul.mubr.bf16.gmra.mrb[0].mxu0 %v2720
      %v2828 = vpop.f32.mrb[0].mxu0
      %v2829 = vadd.f32 0.0, %v2828
      %v2830 = vpop.f32.mrb[0].mxu0
      %v2831 = vpop.f32.mrb[0].mxu0
      %v2832 = vadd.f32 0.0, %v2831
      %v2833 = vpop.f32.mrb[0].mxu0
      %2834 = vmatprep.mubr.bf16.mxu0 %v2722
      %2835 = vmatmul.mubr.bf16.gmra.mrb[0].mxu0 %v2721
      %v2836 = vpop.f32.mrb[0].mxu0
      %v2837 = vadd.f32 0.0, %v2836
      %v2838 = vpop.f32.mrb[0].mxu0
      %v2839 = vpop.f32.mrb[0].mxu0
      %v2840 = vadd.f32 0.0, %v2839
      %v2841 = vpop.f32.mrb[0].mxu0
      %2842 = vmatprep.mubr.bf16.mxu0 %v2723
      %2843 = vmatmul.mubr.bf16.gmra.mrb[0].mxu0 %v2722
      %v2844 = vpop.f32.mrb[0].mxu0
      %v2845 = vadd.f32 0.0, %v2844
      %v2846 = vpop.f32.mrb[0].mxu0
      %v2847 = vpop.f32.mrb[0].mxu0
      %v2848 = vadd.f32 0.0, %v2847
      %v2849 = vpop.f32.mrb[0].mxu0
      %2850 = vmatprep.mubr.bf16.mxu0 %v2724
      %2851 = vmatmul.mubr.bf16.gmra.mrb[0].mxu0 %v2723
      %v2852 = vpop.f32.mrb[0].mxu0
      %v2853 = vadd.f32 0.0, %v2852
      %v2854 = vpop.f32.mrb[0].mxu0
      %v2855 = vpop.f32.mrb[0].mxu0
      %v2856 = vadd.f32 0.0, %v2855
      %v2857 = vpop.f32.mrb[0].mxu0
      %2858 = vmatprep.mubr.bf16.mxu0 %v2725
      %2859 = vmatmul.mubr.bf16.gmra.mrb[0].mxu0 %v2724
      %v2860 = vpop.f32.mrb[0].mxu0
      %v2861 = vadd.f32 0.0, %v2860
      %v2862 = vpop.f32.mrb[0].mxu0
      %v2863 = vpop.f32.mrb[0].mxu0
      %v2864 = vadd.f32 0.0, %v2863
      %v2865 = vpop.f32.mrb[0].mxu0
      %2866 = vmatprep.mubr.bf16.mxu0 %v2726
      %2867 = vmatmul.mubr.bf16.gmra.mrb[0].mxu0 %v2725
      %v2868 = vpop.f32.mrb[0].mxu0
      %v2869 = vadd.f32 0.0, %v2868
      %v2870 = vpop.f32.mrb[0].mxu0
      %v2871 = vpop.f32.mrb[0].mxu0
      %v2872 = vadd.f32 0.0, %v2871
      %v2873 = vpop.f32.mrb[0].mxu0
      %2874 = vmatprep.mubr.bf16.mxu0 %v2727
      %2875 = vmatmul.mubr.bf16.gmra.mrb[0].mxu0 %v2726
      %v2876 = vpop.f32.mrb[0].mxu0
      %v2877 = vadd.f32 0.0, %v2876
      %v2878 = vpop.f32.mrb[0].mxu0
      %v2879 = vpop.f32.mrb[0].mxu0
      %v2880 = vadd.f32 0.0, %v2879
      %v2881 = vpop.f32.mrb[0].mxu0
      %2882 = vdwg.mxu0
      %2883 = vmatprep.subr.bf16.mxu0 0
      %2884 = vmatpush1.bf16.msra.mxu0 %v2746
      %2885 = vmatprep.subr.bf16.mxu0 0
      %2886 = vmatpush1.bf16.msra.mxu0 %v2747
      %2887 = vmatprep.subr.bf16.mxu0 0
      %2888 = vmatpush1.bf16.msra.mxu0 %v2748
      %2889 = vmatprep.subr.bf16.mxu0 0
      %2890 = vmatpush1.bf16.msra.mxu0 %v2749
      %2891 = vmatprep.subr.bf16.mxu0 0
      %2892 = vmatpush1.bf16.msra.mxu0 %v2750
      %2893 = vmatprep.subr.bf16.mxu0 0
      %2894 = vmatpush1.bf16.msra.mxu0 %v2751
      %2895 = vmatprep.subr.bf16.mxu0 0
      %2896 = vmatpush1.bf16.msra.mxu0 %v2752
      %2897 = vmatprep.subr.bf16.mxu0 0
      %2898 = vmatpush1.bf16.msra.mxu0 %v2753
      %2899 = vmatprep.subr.bf16.mxu0 0
      %2900 = vmatpush1.bf16.msra.mxu0 0
      %2901 = vmatprep.subr.bf16.mxu0 0
      %2902 = vmatpush1.bf16.msra.mxu0 0
      %2903 = vmatprep.subr.bf16.mxu0 0
      %2904 = vmatpush1.bf16.msra.mxu0 0
      %2905 = vmatprep.subr.bf16.mxu0 0
      %2906 = vmatpush1.bf16.msra.mxu0 0
      %2907 = vmatprep.subr.bf16.mxu0 0
      %2908 = vmatpush1.bf16.msra.mxu0 0
      %2909 = vmatprep.subr.bf16.mxu0 0
      %2910 = vmatpush1.bf16.msra.mxu0 0
      %2911 = vmatprep.subr.bf16.mxu0 0
      %2912 = vmatpush1.bf16.msra.mxu0 0
      %2913 = vmatprep.subr.bf16.mxu0 0
      %2914 = vmatpush1.bf16.msra.mxu0 0
      %2915 = vmatprep.mubr.bf16.mxu0 0
      %2916 = vmatmul.mubr.bf16.gmra.mrb[0].mxu0 %v2717
      %v2917 = vpop.f32.mrb[0].mxu0
      %v2918 = vadd.f32 %v2789, %v2917
      %v2919 = vpop.f32.mrb[0].mxu0
      %v2920 = vpop.f32.mrb[0].mxu0
      %v2921 = vadd.f32 %v2792, %v2920
      %v2922 = vpop.f32.mrb[0].mxu0
      %2923 = vmatprep.mubr.bf16.mxu0 0
      %2924 = vmatmul.mubr.bf16.gmra.mrb[0].mxu0 %v2718
      %v2925 = vpop.f32.mrb[0].mxu0
      %v2926 = vadd.f32 %v2797, %v2925
      %v2927 = vpop.f32.mrb[0].mxu0
      %v2928 = vpop.f32.mrb[0].mxu0
      %v2929 = vadd.f32 %v2800, %v2928
      %v2930 = vpop.f32.mrb[0].mxu0
      %2931 = vmatprep.mubr.bf16.mxu0 0
      %2932 = vmatmul.mubr.bf16.gmra.mrb[0].mxu0 %v2719
      %v2933 = vpop.f32.mrb[0].mxu0
      %v2934 = vadd.f32 %v2805, %v2933
      %v2935 = vpop.f32.mrb[0].mxu0
      %v2936 = vpop.f32.mrb[0].mxu0
      %v2937 = vadd.f32 %v2808, %v2936
      %v2938 = vpop.f32.mrb[0].mxu0
      %2939 = vmatprep.mubr.bf16.mxu0 0
      %2940 = vmatmul.mubr.bf16.gmra.mrb[0].mxu0 %v2720
      %v2941 = vpop.f32.mrb[0].mxu0
      %v2942 = vadd.f32 %v2813, %v2941
      %v2943 = vpop.f32.mrb[0].mxu0
      %v2944 = vpop.f32.mrb[0].mxu0
      %v2945 = vadd.f32 %v2816, %v2944
      %v2946 = vpop.f32.mrb[0].mxu0
      %2947 = vmatprep.mubr.bf16.mxu0 0
      %2948 = vmatmul.mubr.bf16.gmra.mrb[0].mxu0 %v2721
      %v2949 = vpop.f32.mrb[0].mxu0
      %v2950 = vadd.f32 %v2821, %v2949
      %v2951 = vpop.f32.mrb[0].mxu0
      %v2952 = vpop.f32.mrb[0].mxu0
      %v2953 = vadd.f32 %v2824, %v2952
      %v2954 = vpop.f32.mrb[0].mxu0
      %2955 = vmatprep.mubr.bf16.mxu0 0
      %2956 = vmatmul.mubr.bf16.gmra.mrb[0].mxu0 %v2722
      %v2957 = vpop.f32.mrb[0].mxu0
      %v2958 = vadd.f32 %v2829, %v2957
      %v2959 = vpop.f32.mrb[0].mxu0
      %v2960 = vpop.f32.mrb[0].mxu0
      %v2961 = vadd.f32 %v2832, %v2960
      %v2962 = vpop.f32.mrb[0].mxu0
      %2963 = vmatprep.mubr.bf16.mxu0 0
      %2964 = vmatmul.mubr.bf16.gmra.mrb[0].mxu0 %v2723
      %v2965 = vpop.f32.mrb[0].mxu0
      %v2966 = vadd.f32 %v2837, %v2965
      %v2967 = vpop.f32.mrb[0].mxu0
      %v2968 = vpop.f32.mrb[0].mxu0
      %v2969 = vadd.f32 %v2840, %v2968
      %v2970 = vpop.f32.mrb[0].mxu0
      %2971 = vmatprep.mubr.bf16.mxu0 0
      %2972 = vmatmul.mubr.bf16.gmra.mrb[0].mxu0 %v2724
      %v2973 = vpop.f32.mrb[0].mxu0
      %v2974 = vadd.f32 %v2845, %v2973
      %v2975 = vpop.f32.mrb[0].mxu0
      %v2976 = vpop.f32.mrb[0].mxu0
      %v2977 = vadd.f32 %v2848, %v2976
      %v2978 = vpop.f32.mrb[0].mxu0
      %2979 = vmatprep.mubr.bf16.mxu0 0
      %2980 = vmatmul.mubr.bf16.gmra.mrb[0].mxu0 %v2725
      %v2981 = vpop.f32.mrb[0].mxu0
      %v2982 = vadd.f32 %v2853, %v2981
      %v2983 = vpop.f32.mrb[0].mxu0
      %v2984 = vpop.f32.mrb[0].mxu0
      %v2985 = vadd.f32 %v2856, %v2984
      %v2986 = vpop.f32.mrb[0].mxu0
      %2987 = vmatprep.mubr.bf16.mxu0 0
      %2988 = vmatmul.mubr.bf16.gmra.mrb[0].mxu0 %v2726
      %v2989 = vpop.f32.mrb[0].mxu0
      %v2990 = vadd.f32 %v2861, %v2989
      %v2991 = vpop.f32.mrb[0].mxu0
      %v2992 = vpop.f32.mrb[0].mxu0
      %v2993 = vadd.f32 %v2864, %v2992
      %v2994 = vpop.f32.mrb[0].mxu0
      %2995 = vmatprep.mubr.bf16.mxu0 0
      %2996 = vmatmul.mubr.bf16.gmra.mrb[0].mxu0 %v2727
      %v2997 = vpop.f32.mrb[0].mxu0
      %v2998 = vadd.f32 %v2869, %v2997
      %v2999 = vpop.f32.mrb[0].mxu0
      %v3000 = vpop.f32.mrb[0].mxu0
      %v3001 = vadd.f32 %v2872, %v3000
      %v3002 = vpop.f32.mrb[0].mxu0
      %3003 = vmatprep.mubr.bf16.mxu0 0
      %3004 = vmatmul.mubr.bf16.gmra.mrb[0].mxu0 %v2728
      %v3005 = vpop.f32.mrb[0].mxu0
      %v3006 = vadd.f32 %v2877, %v3005
      %v3007 = vpop.f32.mrb[0].mxu0
      %v3008 = vpop.f32.mrb[0].mxu0
      %v3009 = vadd.f32 %v2880, %v3008
      %v3010 = vpop.f32.mrb[0].mxu0
      %3011 = vdwg.mxu0
      %s3012 = scalar_lea.vmem [#allocation2], 768
      %v3013 = vld [vmem:[%s3012] sm:$0xff]
      %v3014 = vld [vmem:[%s3012 + $0x8] sm:$0xff]
      %v3015 = vld [vmem:[%s3012 + $0x10] sm:$0xff]
      %v3016 = vld [vmem:[%s3012 + $0x18] sm:$0xff]
      %v3017 = vld [vmem:[%s3012 + $0x20] sm:$0xff]
      %v3018 = vld [vmem:[%s3012 + $0x28] sm:$0xff]
      %v3019 = vld [vmem:[%s3012 + $0x30] sm:$0xff]
      %v3020 = vld [vmem:[%s3012 + $0x38] sm:$0xff]
      %v3021 = vld [vmem:[%s3012 + $0x40] sm:$0xff]
      %v3022 = vld [vmem:[%s3012 + $0x48] sm:$0xff]
      %v3023 = vld [vmem:[%s3012 + $0x50] sm:$0xff]
      %v3024 = vld [vmem:[%s3012 + $0x58] sm:$0xff]
      %v3025 = vld [vmem:[%s3012 + $0x60] sm:$0xff]
      %v3026 = vld [vmem:[%s3012 + $0x68] sm:$0xff]
      %v3027 = vld [vmem:[%s3012 + $0x70] sm:$0xff]
      %v3028 = vld [vmem:[%s3012 + $0x78] sm:$0xff]
      %v3029 = vld [vmem:[%s3012 + $0x80] sm:$0xff]
      %v3030 = vld [vmem:[%s3012 + $0x88] sm:$0xff]
      %v3031 = vld [vmem:[%s3012 + $0x90] sm:$0xff]
      %v3032 = vld [vmem:[%s3012 + $0x98] sm:$0xff]
      %v3033 = vld [vmem:[%s3012 + $0xa0] sm:$0xff]
      %v3034 = vld [vmem:[%s3012 + $0xa8] sm:$0xff]
      %v3035 = vld [vmem:[%s3012 + $0xb0] sm:$0xff]
      %v3036 = vld [vmem:[%s3012 + $0xb8] sm:$0xff]
      %3037 = vmatprep.subr.bf16.mxu0 0
      %3038 = vmatpush1.bf16.msra.mxu0 %v3013
      %3039 = vmatprep.subr.bf16.mxu0 0
      %3040 = vmatpush1.bf16.msra.mxu0 %v3014
      %3041 = vmatprep.subr.bf16.mxu0 0
      %3042 = vmatpush1.bf16.msra.mxu0 %v3015
      %3043 = vmatprep.subr.bf16.mxu0 0
      %3044 = vmatpush1.bf16.msra.mxu0 %v3016
      %3045 = vmatprep.subr.bf16.mxu0 0
      %3046 = vmatpush1.bf16.msra.mxu0 %v3017
      %3047 = vmatprep.subr.bf16.mxu0 0
      %3048 = vmatpush1.bf16.msra.mxu0 %v3018
      %3049 = vmatprep.subr.bf16.mxu0 0
      %3050 = vmatpush1.bf16.msra.mxu0 %v3019
      %3051 = vmatprep.subr.bf16.mxu0 0
      %3052 = vmatpush1.bf16.msra.mxu0 %v3020
      %3053 = vmatprep.subr.bf16.mxu0 0
      %3054 = vmatpush1.bf16.msra.mxu0 %v3021
      %3055 = vmatprep.subr.bf16.mxu0 0
      %3056 = vmatpush1.bf16.msra.mxu0 %v3022
      %3057 = vmatprep.subr.bf16.mxu0 0
      %3058 = vmatpush1.bf16.msra.mxu0 %v3023
      %3059 = vmatprep.subr.bf16.mxu0 0
      %3060 = vmatpush1.bf16.msra.mxu0 %v3024
      %3061 = vmatprep.subr.bf16.mxu0 0
      %3062 = vmatpush1.bf16.msra.mxu0 %v3025
      %3063 = vmatprep.subr.bf16.mxu0 0
      %3064 = vmatpush1.bf16.msra.mxu0 %v3026
      %3065 = vmatprep.subr.bf16.mxu0 0
      %3066 = vmatpush1.bf16.msra.mxu0 %v3027
      %3067 = vmatprep.subr.bf16.mxu0 0
      %3068 = vmatpush1.bf16.msra.mxu0 %v3028
      %3069 = vmatprep.mubr.bf16.mxu0 %v2716
      %3070 = vmatmul.mubr.bf16.gmra.mrb[0].mxu0 %v2715
      %v3071 = vpop.f32.mrb[0].mxu0
      %v3072 = vadd.f32 0.0, %v3071
      %v3073 = vpop.f32.mrb[0].mxu0
      %v3074 = vpop.f32.mrb[0].mxu0
      %v3075 = vadd.f32 0.0, %v3074
      %v3076 = vpop.f32.mrb[0].mxu0
      %3077 = vmatprep.mubr.bf16.mxu0 %v2717
      %3078 = vmatmul.mubr.bf16.gmra.mrb[0].mxu0 %v2716
      %v3079 = vpop.f32.mrb[0].mxu0
      %v3080 = vadd.f32 0.0, %v3079
      %v3081 = vpop.f32.mrb[0].mxu0
      %v3082 = vpop.f32.mrb[0].mxu0
      %v3083 = vadd.f32 0.0, %v3082
      %v3084 = vpop.f32.mrb[0].mxu0
      %3085 = vmatprep.mubr.bf16.mxu0 %v2718
      %3086 = vmatmul.mubr.bf16.gmra.mrb[0].mxu0 %v2717
      %v3087 = vpop.f32.mrb[0].mxu0
      %v3088 = vadd.f32 0.0, %v3087
      %v3089 = vpop.f32.mrb[0].mxu0
      %v3090 = vpop.f32.mrb[0].mxu0
      %v3091 = vadd.f32 0.0, %v3090
      %v3092 = vpop.f32.mrb[0].mxu0
      %3093 = vmatprep.mubr.bf16.mxu0 %v2719
      %3094 = vmatmul.mubr.bf16.gmra.mrb[0].mxu0 %v2718
      %v3095 = vpop.f32.mrb[0].mxu0
      %v3096 = vadd.f32 0.0, %v3095
      %v3097 = vpop.f32.mrb[0].mxu0
      %v3098 = vpop.f32.mrb[0].mxu0
      %v3099 = vadd.f32 0.0, %v3098
      %v3100 = vpop.f32.mrb[0].mxu0
      %3101 = vmatprep.mubr.bf16.mxu0 %v2720
      %3102 = vmatmul.mubr.bf16.gmra.mrb[0].mxu0 %v2719
      %v3103 = vpop.f32.mrb[0].mxu0
      %v3104 = vadd.f32 0.0, %v3103
      %v3105 = vpop.f32.mrb[0].mxu0
      %v3106 = vpop.f32.mrb[0].mxu0
      %v3107 = vadd.f32 0.0, %v3106
      %v3108 = vpop.f32.mrb[0].mxu0
      %3109 = vmatprep.mubr.bf16.mxu0 %v2721
      %3110 = vmatmul.mubr.bf16.gmra.mrb[0].mxu0 %v2720
      %v3111 = vpop.f32.mrb[0].mxu0
      %v3112 = vadd.f32 0.0, %v3111
      %v3113 = vpop.f32.mrb[0].mxu0
      %v3114 = vpop.f32.mrb[0].mxu0
      %v3115 = vadd.f32 0.0, %v3114
      %v3116 = vpop.f32.mrb[0].mxu0
      %3117 = vmatprep.mubr.bf16.mxu0 %v2722
      %3118 = vmatmul.mubr.bf16.gmra.mrb[0].mxu0 %v2721
      %v3119 = vpop.f32.mrb[0].mxu0
      %v3120 = vadd.f32 0.0, %v3119
      %v3121 = vpop.f32.mrb[0].mxu0
      %v3122 = vpop.f32.mrb[0].mxu0
      %v3123 = vadd.f32 0.0, %v3122
      %v3124 = vpop.f32.mrb[0].mxu0
      %3125 = vmatprep.mubr.bf16.mxu0 %v2723
      %3126 = vmatmul.mubr.bf16.gmra.mrb[0].mxu0 %v2722
      %v3127 = vpop.f32.mrb[0].mxu0
      %v3128 = vadd.f32 0.0, %v3127
      %v3129 = vpop.f32.mrb[0].mxu0
      %v3130 = vpop.f32.mrb[0].mxu0
      %v3131 = vadd.f32 0.0, %v3130
      %v3132 = vpop.f32.mrb[0].mxu0
      %3133 = vmatprep.mubr.bf16.mxu0 %v2724
      %3134 = vmatmul.mubr.bf16.gmra.mrb[0].mxu0 %v2723
      %v3135 = vpop.f32.mrb[0].mxu0
      %v3136 = vadd.f32 0.0, %v3135
      %v3137 = vpop.f32.mrb[0].mxu0
      %v3138 = vpop.f32.mrb[0].mxu0
      %v3139 = vadd.f32 0.0, %v3138
      %v3140 = vpop.f32.mrb[0].mxu0
      %3141 = vmatprep.mubr.bf16.mxu0 %v2725
      %3142 = vmatmul.mubr.bf16.gmra.mrb[0].mxu0 %v2724
      %v3143 = vpop.f32.mrb[0].mxu0
      %v3144 = vadd.f32 0.0, %v3143
      %v3145 = vpop.f32.mrb[0].mxu0
      %v3146 = vpop.f32.mrb[0].mxu0
      %v3147 = vadd.f32 0.0, %v3146
      %v3148 = vpop.f32.mrb[0].mxu0
      %3149 = vmatprep.mubr.bf16.mxu0 %v2726
      %3150 = vmatmul.mubr.bf16.gmra.mrb[0].mxu0 %v2725
      %v3151 = vpop.f32.mrb[0].mxu0
      %v3152 = vadd.f32 0.0, %v3151
      %v3153 = vpop.f32.mrb[0].mxu0
      %v3154 = vpop.f32.mrb[0].mxu0
      %v3155 = vadd.f32 0.0, %v3154
      %v3156 = vpop.f32.mrb[0].mxu0
      %3157 = vmatprep.mubr.bf16.mxu0 %v2727
      %3158 = vmatmul.mubr.bf16.gmra.mrb[0].mxu0 %v2726
      %v3159 = vpop.f32.mrb[0].mxu0
      %v3160 = vadd.f32 0.0, %v3159
      %v3161 = vpop.f32.mrb[0].mxu0
      %v3162 = vpop.f32.mrb[0].mxu0
      %v3163 = vadd.f32 0.0, %v3162
      %v3164 = vpop.f32.mrb[0].mxu0
      %3165 = vdwg.mxu0
      %3166 = vmatprep.subr.bf16.mxu0 0
      %3167 = vmatpush1.bf16.msra.mxu0 %v3029
      %3168 = vmatprep.subr.bf16.mxu0 0
      %3169 = vmatpush1.bf16.msra.mxu0 %v3030
      %3170 = vmatprep.subr.bf16.mxu0 0
      %3171 = vmatpush1.bf16.msra.mxu0 %v3031
      %3172 = vmatprep.subr.bf16.mxu0 0
      %3173 = vmatpush1.bf16.msra.mxu0 %v3032
      %3174 = vmatprep.subr.bf16.mxu0 0
      %3175 = vmatpush1.bf16.msra.mxu0 %v3033
      %3176 = vmatprep.subr.bf16.mxu0 0
      %3177 = vmatpush1.bf16.msra.mxu0 %v3034
      %3178 = vmatprep.subr.bf16.mxu0 0
      %3179 = vmatpush1.bf16.msra.mxu0 %v3035
      %3180 = vmatprep.subr.bf16.mxu0 0
      %3181 = vmatpush1.bf16.msra.mxu0 %v3036
      %3182 = vmatprep.subr.bf16.mxu0 0
      %3183 = vmatpush1.bf16.msra.mxu0 0
      %3184 = vmatprep.subr.bf16.mxu0 0
      %3185 = vmatpush1.bf16.msra.mxu0 0
      %3186 = vmatprep.subr.bf16.mxu0 0
      %3187 = vmatpush1.bf16.msra.mxu0 0
      %3188 = vmatprep.subr.bf16.mxu0 0
      %3189 = vmatpush1.bf16.msra.mxu0 0
      %3190 = vmatprep.subr.bf16.mxu0 0
      %3191 = vmatpush1.bf16.msra.mxu0 0
      %3192 = vmatprep.subr.bf16.mxu0 0
      %3193 = vmatpush1.bf16.msra.mxu0 0
      %3194 = vmatprep.subr.bf16.mxu0 0
      %3195 = vmatpush1.bf16.msra.mxu0 0
      %3196 = vmatprep.subr.bf16.mxu0 0
      %3197 = vmatpush1.bf16.msra.mxu0 0
      %3198 = vmatprep.mubr.bf16.mxu0 0
      %3199 = vmatmul.mubr.bf16.gmra.mrb[0].mxu0 %v2717
      %v3200 = vpop.f32.mrb[0].mxu0
      %v3201 = vadd.f32 %v3072, %v3200
      %v3202 = vpop.f32.mrb[0].mxu0
      %v3203 = vpop.f32.mrb[0].mxu0
      %v3204 = vadd.f32 %v3075, %v3203
      %v3205 = vpop.f32.mrb[0].mxu0
      %3206 = vmatprep.mubr.bf16.mxu0 0
      %3207 = vmatmul.mubr.bf16.gmra.mrb[0].mxu0 %v2718
      %v3208 = vpop.f32.mrb[0].mxu0
      %v3209 = vadd.f32 %v3080, %v3208
      %v3210 = vpop.f32.mrb[0].mxu0
      %v3211 = vpop.f32.mrb[0].mxu0
      %v3212 = vadd.f32 %v3083, %v3211
      %v3213 = vpop.f32.mrb[0].mxu0
      %3214 = vmatprep.mubr.bf16.mxu0 0
      %3215 = vmatmul.mubr.bf16.gmra.mrb[0].mxu0 %v2719
      %v3216 = vpop.f32.mrb[0].mxu0
      %v3217 = vadd.f32 %v3088, %v3216
      %v3218 = vpop.f32.mrb[0].mxu0
      %v3219 = vpop.f32.mrb[0].mxu0
      %v3220 = vadd.f32 %v3091, %v3219
      %v3221 = vpop.f32.mrb[0].mxu0
      %3222 = vmatprep.mubr.bf16.mxu0 0
      %3223 = vmatmul.mubr.bf16.gmra.mrb[0].mxu0 %v2720
      %v3224 = vpop.f32.mrb[0].mxu0
      %v3225 = vadd.f32 %v3096, %v3224
      %v3226 = vpop.f32.mrb[0].mxu0
      %v3227 = vpop.f32.mrb[0].mxu0
      %v3228 = vadd.f32 %v3099, %v3227
      %v3229 = vpop.f32.mrb[0].mxu0
      %3230 = vmatprep.mubr.bf16.mxu0 0
      %3231 = vmatmul.mubr.bf16.gmra.mrb[0].mxu0 %v2721
      %v3232 = vpop.f32.mrb[0].mxu0
      %v3233 = vadd.f32 %v3104, %v3232
      %v3234 = vpop.f32.mrb[0].mxu0
      %v3235 = vpop.f32.mrb[0].mxu0
      %v3236 = vadd.f32 %v3107, %v3235
      %v3237 = vpop.f32.mrb[0].mxu0
      %3238 = vmatprep.mubr.bf16.mxu0 0
      %3239 = vmatmul.mubr.bf16.gmra.mrb[0].mxu0 %v2722
      %v3240 = vpop.f32.mrb[0].mxu0
      %v3241 = vadd.f32 %v3112, %v3240
      %v3242 = vpop.f32.mrb[0].mxu0
      %v3243 = vpop.f32.mrb[0].mxu0
      %v3244 = vadd.f32 %v3115, %v3243
      %v3245 = vpop.f32.mrb[0].mxu0
      %3246 = vmatprep.mubr.bf16.mxu0 0
      %3247 = vmatmul.mubr.bf16.gmra.mrb[0].mxu0 %v2723
      %v3248 = vpop.f32.mrb[0].mxu0
      %v3249 = vadd.f32 %v3120, %v3248
      %v3250 = vpop.f32.mrb[0].mxu0
      %v3251 = vpop.f32.mrb[0].mxu0
      %v3252 = vadd.f32 %v3123, %v3251
      %v3253 = vpop.f32.mrb[0].mxu0
      %3254 = vmatprep.mubr.bf16.mxu0 0
      %3255 = vmatmul.mubr.bf16.gmra.mrb[0].mxu0 %v2724
      %v3256 = vpop.f32.mrb[0].mxu0
      %v3257 = vadd.f32 %v3128, %v3256
      %v3258 = vpop.f32.mrb[0].mxu0
      %v3259 = vpop.f32.mrb[0].mxu0
      %v3260 = vadd.f32 %v3131, %v3259
      %v3261 = vpop.f32.mrb[0].mxu0
      %3262 = vmatprep.mubr.bf16.mxu0 0
      %3263 = vmatmul.mubr.bf16.gmra.mrb[0].mxu0 %v2725
      %v3264 = vpop.f32.mrb[0].mxu0
      %v3265 = vadd.f32 %v3136, %v3264
      %v3266 = vpop.f32.mrb[0].mxu0
      %v3267 = vpop.f32.mrb[0].mxu0
      %v3268 = vadd.f32 %v3139, %v3267
      %v3269 = vpop.f32.mrb[0].mxu0
      %3270 = vmatprep.mubr.bf16.mxu0 0
      %3271 = vmatmul.mubr.bf16.gmra.mrb[0].mxu0 %v2726
      %v3272 = vpop.f32.mrb[0].mxu0
      %v3273 = vadd.f32 %v3144, %v3272
      %v3274 = vpop.f32.mrb[0].mxu0
      %v3275 = vpop.f32.mrb[0].mxu0
      %v3276 = vadd.f32 %v3147, %v3275
      %v3277 = vpop.f32.mrb[0].mxu0
      %3278 = vmatprep.mubr.bf16.mxu0 0
      %3279 = vmatmul.mubr.bf16.gmra.mrb[0].mxu0 %v2727
      %v3280 = vpop.f32.mrb[0].mxu0
      %v3281 = vadd.f32 %v3152, %v3280
      %v3282 = vpop.f32.mrb[0].mxu0
      %v3283 = vpop.f32.mrb[0].mxu0
      %v3284 = vadd.f32 %v3155, %v3283
      %v3285 = vpop.f32.mrb[0].mxu0
      %3286 = vmatprep.mubr.bf16.mxu0 0
      %3287 = vmatmul.mubr.bf16.gmra.mrb[0].mxu0 %v2728
      %v3288 = vpop.f32.mrb[0].mxu0
      %v3289 = vadd.f32 %v3160, %v3288
      %v3290 = vpop.f32.mrb[0].mxu0
      %v3291 = vpop.f32.mrb[0].mxu0
      %v3292 = vadd.f32 %v3163, %v3291
      %v3293 = vpop.f32.mrb[0].mxu0
      %3294 = vdwg.mxu0
      %s3295 = scalar_lea.vmem [#allocation2], 960
      %v3296 = vld [vmem:[%s3295] sm:$0xff]
      %v3297 = vld [vmem:[%s3295 + $0x8] sm:$0xff]
      %v3298 = vld [vmem:[%s3295 + $0x10] sm:$0xff]
      %v3299 = vld [vmem:[%s3295 + $0x18] sm:$0xff]
      %v3300 = vld [vmem:[%s3295 + $0x20] sm:$0xff]
      %v3301 = vld [vmem:[%s3295 + $0x28] sm:$0xff]
      %v3302 = vld [vmem:[%s3295 + $0x30] sm:$0xff]
      %v3303 = vld [vmem:[%s3295 + $0x38] sm:$0xff]
      %v3304 = vld [vmem:[%s3295 + $0x40] sm:$0xff]
      %v3305 = vld [vmem:[%s3295 + $0x48] sm:$0xff]
      %v3306 = vld [vmem:[%s3295 + $0x50] sm:$0xff]
      %v3307 = vld [vmem:[%s3295 + $0x58] sm:$0xff]
      %v3308 = vld [vmem:[%s3295 + $0x60] sm:$0xff]
      %v3309 = vld [vmem:[%s3295 + $0x68] sm:$0xff]
      %v3310 = vld [vmem:[%s3295 + $0x70] sm:$0xff]
      %v3311 = vld [vmem:[%s3295 + $0x78] sm:$0xff]
      %v3312 = vld [vmem:[%s3295 + $0x80] sm:$0xff]
      %v3313 = vld [vmem:[%s3295 + $0x88] sm:$0xff]
      %v3314 = vld [vmem:[%s3295 + $0x90] sm:$0xff]
      %v3315 = vld [vmem:[%s3295 + $0x98] sm:$0xff]
      %v3316 = vld [vmem:[%s3295 + $0xa0] sm:$0xff]
      %v3317 = vld [vmem:[%s3295 + $0xa8] sm:$0xff]
      %v3318 = vld [vmem:[%s3295 + $0xb0] sm:$0xff]
      %v3319 = vld [vmem:[%s3295 + $0xb8] sm:$0xff]
      %3320 = vmatprep.subr.bf16.mxu0 0
      %3321 = vmatpush1.bf16.msra.mxu0 %v3296
      %3322 = vmatprep.subr.bf16.mxu0 0
      %3323 = vmatpush1.bf16.msra.mxu0 %v3297
      %3324 = vmatprep.subr.bf16.mxu0 0
      %3325 = vmatpush1.bf16.msra.mxu0 %v3298
      %3326 = vmatprep.subr.bf16.mxu0 0
      %3327 = vmatpush1.bf16.msra.mxu0 %v3299
      %3328 = vmatprep.subr.bf16.mxu0 0
      %3329 = vmatpush1.bf16.msra.mxu0 %v3300
      %3330 = vmatprep.subr.bf16.mxu0 0
      %3331 = vmatpush1.bf16.msra.mxu0 %v3301
      %3332 = vmatprep.subr.bf16.mxu0 0
      %3333 = vmatpush1.bf16.msra.mxu0 %v3302
      %3334 = vmatprep.subr.bf16.mxu0 0
      %3335 = vmatpush1.bf16.msra.mxu0 %v3303
      %3336 = vmatprep.subr.bf16.mxu0 0
      %3337 = vmatpush1.bf16.msra.mxu0 %v3304
      %3338 = vmatprep.subr.bf16.mxu0 0
      %3339 = vmatpush1.bf16.msra.mxu0 %v3305
      %3340 = vmatprep.subr.bf16.mxu0 0
      %3341 = vmatpush1.bf16.msra.mxu0 %v3306
      %3342 = vmatprep.subr.bf16.mxu0 0
      %3343 = vmatpush1.bf16.msra.mxu0 %v3307
      %3344 = vmatprep.subr.bf16.mxu0 0
      %3345 = vmatpush1.bf16.msra.mxu0 %v3308
      %3346 = vmatprep.subr.bf16.mxu0 0
      %3347 = vmatpush1.bf16.msra.mxu0 %v3309
      %3348 = vmatprep.subr.bf16.mxu0 0
      %3349 = vmatpush1.bf16.msra.mxu0 %v3310
      %3350 = vmatprep.subr.bf16.mxu0 0
      %3351 = vmatpush1.bf16.msra.mxu0 %v3311
      %3352 = vmatprep.mubr.bf16.mxu0 %v2716
      %3353 = vmatmul.mubr.bf16.gmra.mrb[0].mxu0 %v2715
      %v3354 = vpop.f32.mrb[0].mxu0
      %v3355 = vadd.f32 0.0, %v3354
      %v3356 = vpop.f32.mrb[0].mxu0
      %v3357 = vpop.f32.mrb[0].mxu0
      %v3358 = vadd.f32 0.0, %v3357
      %v3359 = vpop.f32.mrb[0].mxu0
      %3360 = vmatprep.mubr.bf16.mxu0 %v2717
      %3361 = vmatmul.mubr.bf16.gmra.mrb[0].mxu0 %v2716
      %v3362 = vpop.f32.mrb[0].mxu0
      %v3363 = vadd.f32 0.0, %v3362
      %v3364 = vpop.f32.mrb[0].mxu0
      %v3365 = vpop.f32.mrb[0].mxu0
      %v3366 = vadd.f32 0.0, %v3365
      %v3367 = vpop.f32.mrb[0].mxu0
      %3368 = vmatprep.mubr.bf16.mxu0 %v2718
      %3369 = vmatmul.mubr.bf16.gmra.mrb[0].mxu0 %v2717
      %v3370 = vpop.f32.mrb[0].mxu0
      %v3371 = vadd.f32 0.0, %v3370
      %v3372 = vpop.f32.mrb[0].mxu0
      %v3373 = vpop.f32.mrb[0].mxu0
      %v3374 = vadd.f32 0.0, %v3373
      %v3375 = vpop.f32.mrb[0].mxu0
      %3376 = vmatprep.mubr.bf16.mxu0 %v2719
      %3377 = vmatmul.mubr.bf16.gmra.mrb[0].mxu0 %v2718
      %v3378 = vpop.f32.mrb[0].mxu0
      %v3379 = vadd.f32 0.0, %v3378
      %v3380 = vpop.f32.mrb[0].mxu0
      %v3381 = vpop.f32.mrb[0].mxu0
      %v3382 = vadd.f32 0.0, %v3381
      %v3383 = vpop.f32.mrb[0].mxu0
      %3384 = vmatprep.mubr.bf16.mxu0 %v2720
      %3385 = vmatmul.mubr.bf16.gmra.mrb[0].mxu0 %v2719
      %v3386 = vpop.f32.mrb[0].mxu0
      %v3387 = vadd.f32 0.0, %v3386
      %v3388 = vpop.f32.mrb[0].mxu0
      %v3389 = vpop.f32.mrb[0].mxu0
      %v3390 = vadd.f32 0.0, %v3389
      %v3391 = vpop.f32.mrb[0].mxu0
      %3392 = vmatprep.mubr.bf16.mxu0 %v2721
      %3393 = vmatmul.mubr.bf16.gmra.mrb[0].mxu0 %v2720
      %v3394 = vpop.f32.mrb[0].mxu0
      %v3395 = vadd.f32 0.0, %v3394
      %v3396 = vpop.f32.mrb[0].mxu0
      %v3397 = vpop.f32.mrb[0].mxu0
      %v3398 = vadd.f32 0.0, %v3397
      %v3399 = vpop.f32.mrb[0].mxu0
      %3400 = vmatprep.mubr.bf16.mxu0 %v2722
      %3401 = vmatmul.mubr.bf16.gmra.mrb[0].mxu0 %v2721
      %v3402 = vpop.f32.mrb[0].mxu0
      %v3403 = vadd.f32 0.0, %v3402
      %v3404 = vpop.f32.mrb[0].mxu0
      %v3405 = vpop.f32.mrb[0].mxu0
      %v3406 = vadd.f32 0.0, %v3405
      %v3407 = vpop.f32.mrb[0].mxu0
      %3408 = vmatprep.mubr.bf16.mxu0 %v2723
      %3409 = vmatmul.mubr.bf16.gmra.mrb[0].mxu0 %v2722
      %v3410 = vpop.f32.mrb[0].mxu0
      %v3411 = vadd.f32 0.0, %v3410
      %v3412 = vpop.f32.mrb[0].mxu0
      %v3413 = vpop.f32.mrb[0].mxu0
      %v3414 = vadd.f32 0.0, %v3413
      %v3415 = vpop.f32.mrb[0].mxu0
      %3416 = vmatprep.mubr.bf16.mxu0 %v2724
      %3417 = vmatmul.mubr.bf16.gmra.mrb[0].mxu0 %v2723
      %v3418 = vpop.f32.mrb[0].mxu0
      %v3419 = vadd.f32 0.0, %v3418
      %v3420 = vpop.f32.mrb[0].mxu0
      %v3421 = vpop.f32.mrb[0].mxu0
      %v3422 = vadd.f32 0.0, %v3421
      %v3423 = vpop.f32.mrb[0].mxu0
      %3424 = vmatprep.mubr.bf16.mxu0 %v2725
      %3425 = vmatmul.mubr.bf16.gmra.mrb[0].mxu0 %v2724
      %v3426 = vpop.f32.mrb[0].mxu0
      %v3427 = vadd.f32 0.0, %v3426
      %v3428 = vpop.f32.mrb[0].mxu0
      %v3429 = vpop.f32.mrb[0].mxu0
      %v3430 = vadd.f32 0.0, %v3429
      %v3431 = vpop.f32.mrb[0].mxu0
      %3432 = vmatprep.mubr.bf16.mxu0 %v2726
      %3433 = vmatmul.mubr.bf16.gmra.mrb[0].mxu0 %v2725
      %v3434 = vpop.f32.mrb[0].mxu0
      %v3435 = vadd.f32 0.0, %v3434
      %v3436 = vpop.f32.mrb[0].mxu0
      %v3437 = vpop.f32.mrb[0].mxu0
      %v3438 = vadd.f32 0.0, %v3437
      %v3439 = vpop.f32.mrb[0].mxu0
      %3440 = vmatprep.mubr.bf16.mxu0 %v2727
      %3441 = vmatmul.mubr.bf16.gmra.mrb[0].mxu0 %v2726
      %v3442 = vpop.f32.mrb[0].mxu0
      %v3443 = vadd.f32 0.0, %v3442
      %v3444 = vpop.f32.mrb[0].mxu0
      %v3445 = vpop.f32.mrb[0].mxu0
      %v3446 = vadd.f32 0.0, %v3445
      %v3447 = vpop.f32.mrb[0].mxu0
      %3448 = vdwg.mxu0
      %3449 = vmatprep.subr.bf16.mxu0 0
      %3450 = vmatpush1.bf16.msra.mxu0 %v3312
      %3451 = vmatprep.subr.bf16.mxu0 0
      %3452 = vmatpush1.bf16.msra.mxu0 %v3313
      %3453 = vmatprep.subr.bf16.mxu0 0
      %3454 = vmatpush1.bf16.msra.mxu0 %v3314
      %3455 = vmatprep.subr.bf16.mxu0 0
      %3456 = vmatpush1.bf16.msra.mxu0 %v3315
      %3457 = vmatprep.subr.bf16.mxu0 0
      %3458 = vmatpush1.bf16.msra.mxu0 %v3316
      %3459 = vmatprep.subr.bf16.mxu0 0
      %3460 = vmatpush1.bf16.msra.mxu0 %v3317
      %3461 = vmatprep.subr.bf16.mxu0 0
      %3462 = vmatpush1.bf16.msra.mxu0 %v3318
      %3463 = vmatprep.subr.bf16.mxu0 0
      %3464 = vmatpush1.bf16.msra.mxu0 %v3319
      %3465 = vmatprep.subr.bf16.mxu0 0
      %3466 = vmatpush1.bf16.msra.mxu0 0
      %3467 = vmatprep.subr.bf16.mxu0 0
      %3468 = vmatpush1.bf16.msra.mxu0 0
      %3469 = vmatprep.subr.bf16.mxu0 0
      %3470 = vmatpush1.bf16.msra.mxu0 0
      %3471 = vmatprep.subr.bf16.mxu0 0
      %3472 = vmatpush1.bf16.msra.mxu0 0
      %3473 = vmatprep.subr.bf16.mxu0 0
      %3474 = vmatpush1.bf16.msra.mxu0 0
      %3475 = vmatprep.subr.bf16.mxu0 0
      %3476 = vmatpush1.bf16.msra.mxu0 0
      %3477 = vmatprep.subr.bf16.mxu0 0
      %3478 = vmatpush1.bf16.msra.mxu0 0
      %3479 = vmatprep.subr.bf16.mxu0 0
      %3480 = vmatpush1.bf16.msra.mxu0 0
      %3481 = vmatprep.mubr.bf16.mxu0 0
      %3482 = vmatmul.mubr.bf16.gmra.mrb[0].mxu0 %v2717
      %v3483 = vpop.f32.mrb[0].mxu0
      %v3484 = vadd.f32 %v3355, %v3483
      %v3485 = vpop.f32.mrb[0].mxu0
      %v3486 = vpop.f32.mrb[0].mxu0
      %v3487 = vadd.f32 %v3358, %v3486
      %v3488 = vpop.f32.mrb[0].mxu0
      %3489 = vmatprep.mubr.bf16.mxu0 0
      %3490 = vmatmul.mubr.bf16.gmra.mrb[0].mxu0 %v2718
      %v3491 = vpop.f32.mrb[0].mxu0
      %v3492 = vadd.f32 %v3363, %v3491
      %v3493 = vpop.f32.mrb[0].mxu0
      %v3494 = vpop.f32.mrb[0].mxu0
      %v3495 = vadd.f32 %v3366, %v3494
      %v3496 = vpop.f32.mrb[0].mxu0
      %3497 = vmatprep.mubr.bf16.mxu0 0
      %3498 = vmatmul.mubr.bf16.gmra.mrb[0].mxu0 %v2719
      %v3499 = vpop.f32.mrb[0].mxu0
      %v3500 = vadd.f32 %v3371, %v3499
      %v3501 = vpop.f32.mrb[0].mxu0
      %v3502 = vpop.f32.mrb[0].mxu0
      %v3503 = vadd.f32 %v3374, %v3502
      %v3504 = vpop.f32.mrb[0].mxu0
      %3505 = vmatprep.mubr.bf16.mxu0 0
      %3506 = vmatmul.mubr.bf16.gmra.mrb[0].mxu0 %v2720
      %v3507 = vpop.f32.mrb[0].mxu0
      %v3508 = vadd.f32 %v3379, %v3507
      %v3509 = vpop.f32.mrb[0].mxu0
      %v3510 = vpop.f32.mrb[0].mxu0
      %v3511 = vadd.f32 %v3382, %v3510
      %v3512 = vpop.f32.mrb[0].mxu0
      %3513 = vmatprep.mubr.bf16.mxu0 0
      %3514 = vmatmul.mubr.bf16.gmra.mrb[0].mxu0 %v2721
      %v3515 = vpop.f32.mrb[0].mxu0
      %v3516 = vadd.f32 %v3387, %v3515
      %v3517 = vpop.f32.mrb[0].mxu0
      %v3518 = vpop.f32.mrb[0].mxu0
      %v3519 = vadd.f32 %v3390, %v3518
      %v3520 = vpop.f32.mrb[0].mxu0
      %3521 = vmatprep.mubr.bf16.mxu0 0
      %3522 = vmatmul.mubr.bf16.gmra.mrb[0].mxu0 %v2722
      %v3523 = vpop.f32.mrb[0].mxu0
      %v3524 = vadd.f32 %v3395, %v3523
      %v3525 = vpop.f32.mrb[0].mxu0
      %v3526 = vpop.f32.mrb[0].mxu0
      %v3527 = vadd.f32 %v3398, %v3526
      %v3528 = vpop.f32.mrb[0].mxu0
      %3529 = vmatprep.mubr.bf16.mxu0 0
      %3530 = vmatmul.mubr.bf16.gmra.mrb[0].mxu0 %v2723
      %v3531 = vpop.f32.mrb[0].mxu0
      %v3532 = vadd.f32 %v3403, %v3531
      %v3533 = vpop.f32.mrb[0].mxu0
      %v3534 = vpop.f32.mrb[0].mxu0
      %v3535 = vadd.f32 %v3406, %v3534
      %v3536 = vpop.f32.mrb[0].mxu0
      %3537 = vmatprep.mubr.bf16.mxu0 0
      %3538 = vmatmul.mubr.bf16.gmra.mrb[0].mxu0 %v2724
      %v3539 = vpop.f32.mrb[0].mxu0
      %v3540 = vadd.f32 %v3411, %v3539
      %v3541 = vpop.f32.mrb[0].mxu0
      %v3542 = vpop.f32.mrb[0].mxu0
      %v3543 = vadd.f32 %v3414, %v3542
      %v3544 = vpop.f32.mrb[0].mxu0
      %3545 = vmatprep.mubr.bf16.mxu0 0
      %3546 = vmatmul.mubr.bf16.gmra.mrb[0].mxu0 %v2725
      %v3547 = vpop.f32.mrb[0].mxu0
      %v3548 = vadd.f32 %v3419, %v3547
      %v3549 = vpop.f32.mrb[0].mxu0
      %v3550 = vpop.f32.mrb[0].mxu0
      %v3551 = vadd.f32 %v3422, %v3550
      %v3552 = vpop.f32.mrb[0].mxu0
      %3553 = vmatprep.mubr.bf16.mxu0 0
      %3554 = vmatmul.mubr.bf16.gmra.mrb[0].mxu0 %v2726
      %v3555 = vpop.f32.mrb[0].mxu0
      %v3556 = vadd.f32 %v3427, %v3555
      %v3557 = vpop.f32.mrb[0].mxu0
      %v3558 = vpop.f32.mrb[0].mxu0
      %v3559 = vadd.f32 %v3430, %v3558
      %v3560 = vpop.f32.mrb[0].mxu0
      %3561 = vmatprep.mubr.bf16.mxu0 0
      %3562 = vmatmul.mubr.bf16.gmra.mrb[0].mxu0 %v2727
      %v3563 = vpop.f32.mrb[0].mxu0
      %v3564 = vadd.f32 %v3435, %v3563
      %v3565 = vpop.f32.mrb[0].mxu0
      %v3566 = vpop.f32.mrb[0].mxu0
      %v3567 = vadd.f32 %v3438, %v3566
      %v3568 = vpop.f32.mrb[0].mxu0
      %3569 = vmatprep.mubr.bf16.mxu0 0
      %3570 = vmatmul.mubr.bf16.gmra.mrb[0].mxu0 %v2728
      %v3571 = vpop.f32.mrb[0].mxu0
      %v3572 = vadd.f32 %v3443, %v3571
      %v3573 = vpop.f32.mrb[0].mxu0
      %v3574 = vpop.f32.mrb[0].mxu0
      %v3575 = vadd.f32 %v3446, %v3574
      %v3576 = vpop.f32.mrb[0].mxu0
      %3577 = vdwg.mxu0
      %v3578 = vrot.slane %v3201, 1
      %v3579 = vrot.slane %v3209, 1
      %v3580 = vrot.slane %v3217, 1
      %v3581 = vrot.slane %v3225, 1
      %v3582 = vrot.slane %v3233, 1
      %v3583 = vrot.slane %v3241, 1
      %v3584 = vrot.slane %v3249, 1
      %v3585 = vrot.slane %v3257, 1
      %v3586 = vrot.slane %v3265, 1
      %v3587 = vrot.slane %v3273, 1
      %v3588 = vrot.slane %v3281, 1
      %v3589 = vrot.slane %v3289, 1
      %v3590 = vrot.slane %v3204, 1
      %v3591 = vrot.slane %v3212, 1
      %v3592 = vrot.slane %v3220, 1
      %v3593 = vrot.slane %v3228, 1
      %v3594 = vrot.slane %v3236, 1
      %v3595 = vrot.slane %v3244, 1
      %v3596 = vrot.slane %v3252, 1
      %v3597 = vrot.slane %v3260, 1
      %v3598 = vrot.slane %v3268, 1
      %v3599 = vrot.slane %v3276, 1
      %v3600 = vrot.slane %v3284, 1
      %v3601 = vrot.slane %v3292, 1
      %v3602 = vsel %vm2410, %v3578, %v3590
      %v3603 = vsel %vm2410, %v3579, %v3591
      %v3604 = vsel %vm2410, %v3580, %v3592
      %v3605 = vsel %vm2410, %v3581, %v3593
      %v3606 = vsel %vm2410, %v3582, %v3594
      %v3607 = vsel %vm2410, %v3583, %v3595
      %v3608 = vsel %vm2410, %v3584, %v3596
      %v3609 = vsel %vm2410, %v3585, %v3597
      %v3610 = vsel %vm2410, %v3586, %v3598
      %v3611 = vsel %vm2410, %v3587, %v3599
      %v3612 = vsel %vm2410, %v3588, %v3600
      %v3613 = vsel %vm2410, %v3589, %v3601
      %v3614 = vsel %vm2410, %v3590, %v3578
      %v3615 = vsel %vm2410, %v3591, %v3579
      %v3616 = vsel %vm2410, %v3592, %v3580
      %v3617 = vsel %vm2410, %v3593, %v3581
      %v3618 = vsel %vm2410, %v3594, %v3582
      %v3619 = vsel %vm2410, %v3595, %v3583
      %v3620 = vsel %vm2410, %v3596, %v3584
      %v3621 = vsel %vm2410, %v3597, %v3585
      %v3622 = vsel %vm2410, %v3598, %v3586
      %v3623 = vsel %vm2410, %v3599, %v3587
      %v3624 = vsel %vm2410, %v3600, %v3588
      %v3625 = vsel %vm2410, %v3601, %v3589
      %v3626 = vadd.f32 %v2918, %v3602
      %v3627 = vadd.f32 %v2921, %v3614
      %v3628 = vadd.f32 %v2926, %v3603
      %v3629 = vadd.f32 %v2929, %v3615
      %v3630 = vadd.f32 %v2934, %v3604
      %v3631 = vadd.f32 %v2937, %v3616
      %v3632 = vadd.f32 %v2942, %v3605
      %v3633 = vadd.f32 %v2945, %v3617
      %v3634 = vadd.f32 %v2950, %v3606
      %v3635 = vadd.f32 %v2953, %v3618
      %v3636 = vadd.f32 %v2958, %v3607
      %v3637 = vadd.f32 %v2961, %v3619
      %v3638 = vadd.f32 %v2966, %v3608
      %v3639 = vadd.f32 %v2969, %v3620
      %v3640 = vadd.f32 %v2974, %v3609
      %v3641 = vadd.f32 %v2977, %v3621
      %v3642 = vadd.f32 %v2982, %v3610
      %v3643 = vadd.f32 %v2985, %v3622
      %v3644 = vadd.f32 %v2990, %v3611
      %v3645 = vadd.f32 %v2993, %v3623
      %v3646 = vadd.f32 %v2998, %v3612
      %v3647 = vadd.f32 %v3001, %v3624
      %v3648 = vadd.f32 %v3006, %v3613
      %v3649 = vadd.f32 %v3009, %v3625
      %v3650 = vrot.slane %v3484, 2
      %v3651 = vrot.slane %v3492, 2
      %v3652 = vrot.slane %v3500, 2
      %v3653 = vrot.slane %v3508, 2
      %v3654 = vrot.slane %v3516, 2
      %v3655 = vrot.slane %v3524, 2
      %v3656 = vrot.slane %v3532, 2
      %v3657 = vrot.slane %v3540, 2
      %v3658 = vrot.slane %v3548, 2
      %v3659 = vrot.slane %v3556, 2
      %v3660 = vrot.slane %v3564, 2
      %v3661 = vrot.slane %v3572, 2
      %v3662 = vrot.slane %v3487, 2
      %v3663 = vrot.slane %v3495, 2
      %v3664 = vrot.slane %v3503, 2
      %v3665 = vrot.slane %v3511, 2
      %v3666 = vrot.slane %v3519, 2
      %v3667 = vrot.slane %v3527, 2
      %v3668 = vrot.slane %v3535, 2
      %v3669 = vrot.slane %v3543, 2
      %v3670 = vrot.slane %v3551, 2
      %v3671 = vrot.slane %v3559, 2
      %v3672 = vrot.slane %v3567, 2
      %v3673 = vrot.slane %v3575, 2
      %v3674 = vsel %vm2495, %v3650, %v3662
      %v3675 = vsel %vm2495, %v3651, %v3663
      %v3676 = vsel %vm2495, %v3652, %v3664
      %v3677 = vsel %vm2495, %v3653, %v3665
      %v3678 = vsel %vm2495, %v3654, %v3666
      %v3679 = vsel %vm2495, %v3655, %v3667
      %v3680 = vsel %vm2495, %v3656, %v3668
      %v3681 = vsel %vm2495, %v3657, %v3669
      %v3682 = vsel %vm2495, %v3658, %v3670
      %v3683 = vsel %vm2495, %v3659, %v3671
      %v3684 = vsel %vm2495, %v3660, %v3672
      %v3685 = vsel %vm2495, %v3661, %v3673
      %v3686 = vsel %vm2495, %v3662, %v3650
      %v3687 = vsel %vm2495, %v3663, %v3651
      %v3688 = vsel %vm2495, %v3664, %v3652
      %v3689 = vsel %vm2495, %v3665, %v3653
      %v3690 = vsel %vm2495, %v3666, %v3654
      %v3691 = vsel %vm2495, %v3667, %v3655
      %v3692 = vsel %vm2495, %v3668, %v3656
      %v3693 = vsel %vm2495, %v3669, %v3657
      %v3694 = vsel %vm2495, %v3670, %v3658
      %v3695 = vsel %vm2495, %v3671, %v3659
      %v3696 = vsel %vm2495, %v3672, %v3660
      %v3697 = vsel %vm2495, %v3673, %v3661
      %v3698 = vadd.f32 %v3626, %v3674
      %v3699 = vadd.f32 %v3627, %v3686
      %v3700 = vadd.f32 %v3628, %v3675
      %v3701 = vadd.f32 %v3629, %v3687
      %v3702 = vadd.f32 %v3630, %v3676
      %v3703 = vadd.f32 %v3631, %v3688
      %v3704 = vadd.f32 %v3632, %v3677
      %v3705 = vadd.f32 %v3633, %v3689
      %v3706 = vadd.f32 %v3634, %v3678
      %v3707 = vadd.f32 %v3635, %v3690
      %v3708 = vadd.f32 %v3636, %v3679
      %v3709 = vadd.f32 %v3637, %v3691
      %v3710 = vadd.f32 %v3638, %v3680
      %v3711 = vadd.f32 %v3639, %v3692
      %v3712 = vadd.f32 %v3640, %v3681
      %v3713 = vadd.f32 %v3641, %v3693
      %v3714 = vadd.f32 %v3642, %v3682
      %v3715 = vadd.f32 %v3643, %v3694
      %v3716 = vadd.f32 %v3644, %v3683
      %v3717 = vadd.f32 %v3645, %v3695
      %v3718 = vadd.f32 %v3646, %v3684
      %v3719 = vadd.f32 %v3647, %v3696
      %v3720 = vadd.f32 %v3648, %v3685
      %v3721 = vadd.f32 %v3649, %v3697
      %s3722 = scalar_lea.vmem %s2, 3
      %v3723 = vld [vmem:[%s3722] sm:$0x1]
      %v3725 = vlaneseq
      %v3726 = vshrl.u32 %v3725, 7
      %v3727 = vsub.s32 0, %v3726
      %v3728 = vrot.slane %v3723, %v3727
      %v3730 = vadd.f32 %v3698, %v3728
      %v3731 = vadd.f32 %v3699, %v3728
      %v3732 = vadd.f32 %v3700, %v3728
      %v3733 = vadd.f32 %v3701, %v3728
      %v3734 = vadd.f32 %v3702, %v3728
      %v3735 = vadd.f32 %v3703, %v3728
      %v3736 = vadd.f32 %v3704, %v3728
      %v3737 = vadd.f32 %v3705, %v3728
      %v3738 = vadd.f32 %v3706, %v3728
      %v3739 = vadd.f32 %v3707, %v3728
      %v3740 = vadd.f32 %v3708, %v3728
      %v3741 = vadd.f32 %v3709, %v3728
      %v3742 = vadd.f32 %v3710, %v3728
      %v3743 = vadd.f32 %v3711, %v3728
      %v3744 = vadd.f32 %v3712, %v3728
      %v3745 = vadd.f32 %v3713, %v3728
      %v3746 = vadd.f32 %v3714, %v3728
      %v3747 = vadd.f32 %v3715, %v3728
      %v3748 = vadd.f32 %v3716, %v3728
      %v3749 = vadd.f32 %v3717, %v3728
      %v3750 = vadd.f32 %v3718, %v3728
      %v3751 = vadd.f32 %v3719, %v3728
      %v3752 = vadd.f32 %v3720, %v3728
      %v3753 = vadd.f32 %v3721, %v3728
      %v3754 = vmul.f32 %v3730, 0.2
      %v3755 = vmul.f32 %v3731, 0.2
      %v3756 = vmul.f32 %v3732, 0.2
      %v3757 = vmul.f32 %v3733, 0.2
      %v3758 = vmul.f32 %v3734, 0.2
      %v3759 = vmul.f32 %v3735, 0.2
      %v3760 = vmul.f32 %v3736, 0.2
      %v3761 = vmul.f32 %v3737, 0.2
      %v3762 = vmul.f32 %v3738, 0.2
      %v3763 = vmul.f32 %v3739, 0.2
      %v3764 = vmul.f32 %v3740, 0.2
      %v3765 = vmul.f32 %v3741, 0.2
      %v3766 = vmul.f32 %v3742, 0.2
      %v3767 = vmul.f32 %v3743, 0.2
      %v3768 = vmul.f32 %v3744, 0.2
      %v3769 = vmul.f32 %v3745, 0.2
      %v3770 = vmul.f32 %v3746, 0.2
      %v3771 = vmul.f32 %v3747, 0.2
      %v3772 = vmul.f32 %v3748, 0.2
      %v3773 = vmul.f32 %v3749, 0.2
      %v3774 = vmul.f32 %v3750, 0.2
      %v3775 = vmul.f32 %v3751, 0.2
      %v3776 = vmul.f32 %v3752, 0.2
      %v3777 = vmul.f32 %v3753, 0.2
      %v3778 = vmax.f32 %v3730, %v3754
      %v3779 = vmax.f32 %v3731, %v3755
      %v3780 = vmax.f32 %v3732, %v3756
      %v3781 = vmax.f32 %v3733, %v3757
      %v3782 = vmax.f32 %v3734, %v3758
      %v3783 = vmax.f32 %v3735, %v3759
      %v3784 = vmax.f32 %v3736, %v3760
      %v3785 = vmax.f32 %v3737, %v3761
      %v3786 = vmax.f32 %v3738, %v3762
      %v3787 = vmax.f32 %v3739, %v3763
      %v3788 = vmax.f32 %v3740, %v3764
      %v3789 = vmax.f32 %v3741, %v3765
      %v3790 = vmax.f32 %v3742, %v3766
      %v3791 = vmax.f32 %v3743, %v3767
      %v3792 = vmax.f32 %v3744, %v3768
      %v3793 = vmax.f32 %v3745, %v3769
      %v3794 = vmax.f32 %v3746, %v3770
      %v3795 = vmax.f32 %v3747, %v3771
      %v3796 = vmax.f32 %v3748, %v3772
      %v3797 = vmax.f32 %v3749, %v3773
      %v3798 = vmax.f32 %v3750, %v3774
      %v3799 = vmax.f32 %v3751, %v3775
      %v3800 = vmax.f32 %v3752, %v3776
      %v3801 = vmax.f32 %v3753, %v3777
      %s3802 = scalar_lea.vmem %s2, 4
      %v3803 = vld [vmem:[%s3802] sm:$0x1]
      %v3805 = vlaneseq
      %v3806 = vshrl.u32 %v3805, 7
      %v3807 = vsub.s32 0, %v3806
      %v3808 = vrot.slane %v3803, %v3807
      %v3810 = vmul.f32 %v3778, %v3808
      %v3811 = vmul.f32 %v3779, %v3808
      %v3812 = vmul.f32 %v3780, %v3808
      %v3813 = vmul.f32 %v3781, %v3808
      %v3814 = vmul.f32 %v3782, %v3808
      %v3815 = vmul.f32 %v3783, %v3808
      %v3816 = vmul.f32 %v3784, %v3808
      %v3817 = vmul.f32 %v3785, %v3808
      %v3818 = vmul.f32 %v3786, %v3808
      %v3819 = vmul.f32 %v3787, %v3808
      %v3820 = vmul.f32 %v3788, %v3808
      %v3821 = vmul.f32 %v3789, %v3808
      %v3822 = vmul.f32 %v3790, %v3808
      %v3823 = vmul.f32 %v3791, %v3808
      %v3824 = vmul.f32 %v3792, %v3808
      %v3825 = vmul.f32 %v3793, %v3808
      %v3826 = vmul.f32 %v3794, %v3808
      %v3827 = vmul.f32 %v3795, %v3808
      %v3828 = vmul.f32 %v3796, %v3808
      %v3829 = vmul.f32 %v3797, %v3808
      %v3830 = vmul.f32 %v3798, %v3808
      %v3831 = vmul.f32 %v3799, %v3808
      %v3832 = vmul.f32 %v3800, %v3808
      %v3833 = vmul.f32 %v3801, %v3808
      %s3834 = scalar_lea.vmem %s2, 5
      %v3835 = vld [vmem:[%s3834] sm:$0x1]
      %v3837 = vlaneseq
      %v3838 = vshrl.u32 %v3837, 7
      %v3839 = vsub.s32 0, %v3838
      %v3840 = vrot.slane %v3835, %v3839
      %v3842 = vadd.f32 %v3810, %v3840
      %v3843 = vadd.f32 %v3811, %v3840
      %v3844 = vadd.f32 %v3812, %v3840
      %v3845 = vadd.f32 %v3813, %v3840
      %v3846 = vadd.f32 %v3814, %v3840
      %v3847 = vadd.f32 %v3815, %v3840
      %v3848 = vadd.f32 %v3816, %v3840
      %v3849 = vadd.f32 %v3817, %v3840
      %v3850 = vadd.f32 %v3818, %v3840
      %v3851 = vadd.f32 %v3819, %v3840
      %v3852 = vadd.f32 %v3820, %v3840
      %v3853 = vadd.f32 %v3821, %v3840
      %v3854 = vadd.f32 %v3822, %v3840
      %v3855 = vadd.f32 %v3823, %v3840
      %v3856 = vadd.f32 %v3824, %v3840
      %v3857 = vadd.f32 %v3825, %v3840
      %v3858 = vadd.f32 %v3826, %v3840
      %v3859 = vadd.f32 %v3827, %v3840
      %v3860 = vadd.f32 %v3828, %v3840
      %v3861 = vadd.f32 %v3829, %v3840
      %v3862 = vadd.f32 %v3830, %v3840
      %v3863 = vadd.f32 %v3831, %v3840
      %v3864 = vadd.f32 %v3832, %v3840
      %v3865 = vadd.f32 %v3833, %v3840
      %v3866 = vpack.c.bf16 %v3843, %v3842
      %v3867 = vpack.c.bf16 %v3845, %v3844
      %v3868 = vpack.c.bf16 %v3847, %v3846
      %v3869 = vpack.c.bf16 %v3849, %v3848
      %v3870 = vpack.c.bf16 %v3851, %v3850
      %v3871 = vpack.c.bf16 %v3853, %v3852
      %v3872 = vpack.c.bf16 %v3855, %v3854
      %v3873 = vpack.c.bf16 %v3857, %v3856
      %v3874 = vpack.c.bf16 %v3859, %v3858
      %v3875 = vpack.c.bf16 %v3861, %v3860
      %v3876 = vpack.c.bf16 %v3863, %v3862
      %v3877 = vpack.c.bf16 %v3865, %v3864
      %s3878 = scalar_lea.vmem [#allocation2], 1152
      %v3879 = vld [vmem:[%s3878] sm:$0xff]
      %v3880 = vld [vmem:[%s3878 + $0x8] sm:$0xff]
      %v3881 = vld [vmem:[%s3878 + $0x10] sm:$0xff]
      %v3882 = vld [vmem:[%s3878 + $0x18] sm:$0xff]
      %v3883 = vld [vmem:[%s3878 + $0x20] sm:$0xff]
      %v3884 = vld [vmem:[%s3878 + $0x28] sm:$0xff]
      %v3885 = vld [vmem:[%s3878 + $0x30] sm:$0xff]
      %v3886 = vld [vmem:[%s3878 + $0x38] sm:$0xff]
      %v3887 = vld [vmem:[%s3878 + $0x40] sm:$0xff]
      %v3888 = vld [vmem:[%s3878 + $0x48] sm:$0xff]
      %v3889 = vld [vmem:[%s3878 + $0x50] sm:$0xff]
      %v3890 = vld [vmem:[%s3878 + $0x58] sm:$0xff]
      %v3891 = vld [vmem:[%s3878 + $0x60] sm:$0xff]
      %v3892 = vld [vmem:[%s3878 + $0x68] sm:$0xff]
      %v3893 = vld [vmem:[%s3878 + $0x70] sm:$0xff]
      %v3894 = vld [vmem:[%s3878 + $0x78] sm:$0xff]
      %v3895 = vld [vmem:[%s3878 + $0x80] sm:$0xff]
      %v3896 = vld [vmem:[%s3878 + $0x88] sm:$0xff]
      %v3897 = vld [vmem:[%s3878 + $0x90] sm:$0xff]
      %v3898 = vld [vmem:[%s3878 + $0x98] sm:$0xff]
      %v3899 = vld [vmem:[%s3878 + $0xa0] sm:$0xff]
      %v3900 = vld [vmem:[%s3878 + $0xa8] sm:$0xff]
      %v3901 = vld [vmem:[%s3878 + $0xb0] sm:$0xff]
      %v3902 = vld [vmem:[%s3878 + $0xb8] sm:$0xff]
      %3903 = vmatprep.subr.bf16.mxu0 0
      %3904 = vmatpush1.bf16.msra.mxu0 %v3879
      %3905 = vmatprep.subr.bf16.mxu0 0
      %3906 = vmatpush1.bf16.msra.mxu0 %v3880
      %3907 = vmatprep.subr.bf16.mxu0 0
      %3908 = vmatpush1.bf16.msra.mxu0 %v3881
      %3909 = vmatprep.subr.bf16.mxu0 0
      %3910 = vmatpush1.bf16.msra.mxu0 %v3882
      %3911 = vmatprep.subr.bf16.mxu0 0
      %3912 = vmatpush1.bf16.msra.mxu0 %v3883
      %3913 = vmatprep.subr.bf16.mxu0 0
      %3914 = vmatpush1.bf16.msra.mxu0 %v3884
      %3915 = vmatprep.subr.bf16.mxu0 0
      %3916 = vmatpush1.bf16.msra.mxu0 %v3885
      %3917 = vmatprep.subr.bf16.mxu0 0
      %3918 = vmatpush1.bf16.msra.mxu0 %v3886
      %3919 = vmatprep.subr.bf16.mxu0 0
      %3920 = vmatpush1.bf16.msra.mxu0 %v3887
      %3921 = vmatprep.subr.bf16.mxu0 0
      %3922 = vmatpush1.bf16.msra.mxu0 %v3888
      %3923 = vmatprep.subr.bf16.mxu0 0
      %3924 = vmatpush1.bf16.msra.mxu0 %v3889
      %3925 = vmatprep.subr.bf16.mxu0 0
      %3926 = vmatpush1.bf16.msra.mxu0 %v3890
      %3927 = vmatprep.subr.bf16.mxu0 0
      %3928 = vmatpush1.bf16.msra.mxu0 %v3891
      %3929 = vmatprep.subr.bf16.mxu0 0
      %3930 = vmatpush1.bf16.msra.mxu0 %v3892
      %3931 = vmatprep.subr.bf16.mxu0 0
      %3932 = vmatpush1.bf16.msra.mxu0 %v3893
      %3933 = vmatprep.subr.bf16.mxu0 0
      %3934 = vmatpush1.bf16.msra.mxu0 %v3894
      %3935 = vmatprep.mubr.bf16.mxu0 %v3867
      %3936 = vmatmul.mubr.bf16.gmra.mrb[0].mxu0 %v3866
      %v3937 = vpop.f32.mrb[0].mxu0
      %v3938 = vadd.f32 0.0, %v3937
      %v3939 = vpop.f32.mrb[0].mxu0
      %v3940 = vpop.f32.mrb[0].mxu0
      %v3941 = vadd.f32 0.0, %v3940
      %v3942 = vpop.f32.mrb[0].mxu0
      %3943 = vmatprep.mubr.bf16.mxu0 %v3868
      %3944 = vmatmul.mubr.bf16.gmra.mrb[0].mxu0 %v3867
      %v3945 = vpop.f32.mrb[0].mxu0
      %v3946 = vadd.f32 0.0, %v3945
      %v3947 = vpop.f32.mrb[0].mxu0
      %v3948 = vpop.f32.mrb[0].mxu0
      %v3949 = vadd.f32 0.0, %v3948
      %v3950 = vpop.f32.mrb[0].mxu0
      %3951 = vmatprep.mubr.bf16.mxu0 %v3869
      %3952 = vmatmul.mubr.bf16.gmra.mrb[0].mxu0 %v3868
      %v3953 = vpop.f32.mrb[0].mxu0
      %v3954 = vadd.f32 0.0, %v3953
      %v3955 = vpop.f32.mrb[0].mxu0
      %v3956 = vpop.f32.mrb[0].mxu0
      %v3957 = vadd.f32 0.0, %v3956
      %v3958 = vpop.f32.mrb[0].mxu0
      %3959 = vmatprep.mubr.bf16.mxu0 %v3870
      %3960 = vmatmul.mubr.bf16.gmra.mrb[0].mxu0 %v3869
      %v3961 = vpop.f32.mrb[0].mxu0
      %v3962 = vadd.f32 0.0, %v3961
      %v3963 = vpop.f32.mrb[0].mxu0
      %v3964 = vpop.f32.mrb[0].mxu0
      %v3965 = vadd.f32 0.0, %v3964
      %v3966 = vpop.f32.mrb[0].mxu0
      %3967 = vmatprep.mubr.bf16.mxu0 %v3871
      %3968 = vmatmul.mubr.bf16.gmra.mrb[0].mxu0 %v3870
      %v3969 = vpop.f32.mrb[0].mxu0
      %v3970 = vadd.f32 0.0, %v3969
      %v3971 = vpop.f32.mrb[0].mxu0
      %v3972 = vpop.f32.mrb[0].mxu0
      %v3973 = vadd.f32 0.0, %v3972
      %v3974 = vpop.f32.mrb[0].mxu0
      %3975 = vmatprep.mubr.bf16.mxu0 %v3872
      %3976 = vmatmul.mubr.bf16.gmra.mrb[0].mxu0 %v3871
      %v3977 = vpop.f32.mrb[0].mxu0
      %v3978 = vadd.f32 0.0, %v3977
      %v3979 = vpop.f32.mrb[0].mxu0
      %v3980 = vpop.f32.mrb[0].mxu0
      %v3981 = vadd.f32 0.0, %v3980
      %v3982 = vpop.f32.mrb[0].mxu0
      %3983 = vmatprep.mubr.bf16.mxu0 %v3873
      %3984 = vmatmul.mubr.bf16.gmra.mrb[0].mxu0 %v3872
      %v3985 = vpop.f32.mrb[0].mxu0
      %v3986 = vadd.f32 0.0, %v3985
      %v3987 = vpop.f32.mrb[0].mxu0
      %v3988 = vpop.f32.mrb[0].mxu0
      %v3989 = vadd.f32 0.0, %v3988
      %v3990 = vpop.f32.mrb[0].mxu0
      %3991 = vmatprep.mubr.bf16.mxu0 %v3874
      %3992 = vmatmul.mubr.bf16.gmra.mrb[0].mxu0 %v3873
      %v3993 = vpop.f32.mrb[0].mxu0
      %v3994 = vadd.f32 0.0, %v3993
      %v3995 = vpop.f32.mrb[0].mxu0
      %v3996 = vpop.f32.mrb[0].mxu0
      %v3997 = vadd.f32 0.0, %v3996
      %v3998 = vpop.f32.mrb[0].mxu0
      %3999 = vmatprep.mubr.bf16.mxu0 %v3875
      %4000 = vmatmul.mubr.bf16.gmra.mrb[0].mxu0 %v3874
      %v4001 = vpop.f32.mrb[0].mxu0
      %v4002 = vadd.f32 0.0, %v4001
      %v4003 = vpop.f32.mrb[0].mxu0
      %v4004 = vpop.f32.mrb[0].mxu0
      %v4005 = vadd.f32 0.0, %v4004
      %v4006 = vpop.f32.mrb[0].mxu0
      %4007 = vmatprep.mubr.bf16.mxu0 %v3876
      %4008 = vmatmul.mubr.bf16.gmra.mrb[0].mxu0 %v3875
      %v4009 = vpop.f32.mrb[0].mxu0
      %v4010 = vadd.f32 0.0, %v4009
      %v4011 = vpop.f32.mrb[0].mxu0
      %v4012 = vpop.f32.mrb[0].mxu0
      %v4013 = vadd.f32 0.0, %v4012
      %v4014 = vpop.f32.mrb[0].mxu0
      %4015 = vdwg.mxu0
      %4016 = vmatprep.subr.bf16.mxu0 0
      %4017 = vmatpush1.bf16.msra.mxu0 %v3895
      %4018 = vmatprep.subr.bf16.mxu0 0
      %4019 = vmatpush1.bf16.msra.mxu0 %v3896
      %4020 = vmatprep.subr.bf16.mxu0 0
      %4021 = vmatpush1.bf16.msra.mxu0 %v3897
      %4022 = vmatprep.subr.bf16.mxu0 0
      %4023 = vmatpush1.bf16.msra.mxu0 %v3898
      %4024 = vmatprep.subr.bf16.mxu0 0
      %4025 = vmatpush1.bf16.msra.mxu0 %v3899
      %4026 = vmatprep.subr.bf16.mxu0 0
      %4027 = vmatpush1.bf16.msra.mxu0 %v3900
      %4028 = vmatprep.subr.bf16.mxu0 0
      %4029 = vmatpush1.bf16.msra.mxu0 %v3901
      %4030 = vmatprep.subr.bf16.mxu0 0
      %4031 = vmatpush1.bf16.msra.mxu0 %v3902
      %4032 = vmatprep.subr.bf16.mxu0 0
      %4033 = vmatpush1.bf16.msra.mxu0 0
      %4034 = vmatprep.subr.bf16.mxu0 0
      %4035 = vmatpush1.bf16.msra.mxu0 0
      %4036 = vmatprep.subr.bf16.mxu0 0
      %4037 = vmatpush1.bf16.msra.mxu0 0
      %4038 = vmatprep.subr.bf16.mxu0 0
      %4039 = vmatpush1.bf16.msra.mxu0 0
      %4040 = vmatprep.subr.bf16.mxu0 0
      %4041 = vmatpush1.bf16.msra.mxu0 0
      %4042 = vmatprep.subr.bf16.mxu0 0
      %4043 = vmatpush1.bf16.msra.mxu0 0
      %4044 = vmatprep.subr.bf16.mxu0 0
      %4045 = vmatpush1.bf16.msra.mxu0 0
      %4046 = vmatprep.subr.bf16.mxu0 0
      %4047 = vmatpush1.bf16.msra.mxu0 0
      %4048 = vmatprep.mubr.bf16.mxu0 0
      %4049 = vmatmul.mubr.bf16.gmra.mrb[0].mxu0 %v3868
      %v4050 = vpop.f32.mrb[0].mxu0
      %v4051 = vadd.f32 %v3938, %v4050
      %v4052 = vpop.f32.mrb[0].mxu0
      %v4053 = vpop.f32.mrb[0].mxu0
      %v4054 = vadd.f32 %v3941, %v4053
      %v4055 = vpop.f32.mrb[0].mxu0
      %4056 = vmatprep.mubr.bf16.mxu0 0
      %4057 = vmatmul.mubr.bf16.gmra.mrb[0].mxu0 %v3869
      %v4058 = vpop.f32.mrb[0].mxu0
      %v4059 = vadd.f32 %v3946, %v4058
      %v4060 = vpop.f32.mrb[0].mxu0
      %v4061 = vpop.f32.mrb[0].mxu0
      %v4062 = vadd.f32 %v3949, %v4061
      %v4063 = vpop.f32.mrb[0].mxu0
      %4064 = vmatprep.mubr.bf16.mxu0 0
      %4065 = vmatmul.mubr.bf16.gmra.mrb[0].mxu0 %v3870
      %v4066 = vpop.f32.mrb[0].mxu0
      %v4067 = vadd.f32 %v3954, %v4066
      %v4068 = vpop.f32.mrb[0].mxu0
      %v4069 = vpop.f32.mrb[0].mxu0
      %v4070 = vadd.f32 %v3957, %v4069
      %v4071 = vpop.f32.mrb[0].mxu0
      %4072 = vmatprep.mubr.bf16.mxu0 0
      %4073 = vmatmul.mubr.bf16.gmra.mrb[0].mxu0 %v3871
      %v4074 = vpop.f32.mrb[0].mxu0
      %v4075 = vadd.f32 %v3962, %v4074
      %v4076 = vpop.f32.mrb[0].mxu0
      %v4077 = vpop.f32.mrb[0].mxu0
      %v4078 = vadd.f32 %v3965, %v4077
      %v4079 = vpop.f32.mrb[0].mxu0
      %4080 = vmatprep.mubr.bf16.mxu0 0
      %4081 = vmatmul.mubr.bf16.gmra.mrb[0].mxu0 %v3872
      %v4082 = vpop.f32.mrb[0].mxu0
      %v4083 = vadd.f32 %v3970, %v4082
      %v4084 = vpop.f32.mrb[0].mxu0
      %v4085 = vpop.f32.mrb[0].mxu0
      %v4086 = vadd.f32 %v3973, %v4085
      %v4087 = vpop.f32.mrb[0].mxu0
      %4088 = vmatprep.mubr.bf16.mxu0 0
      %4089 = vmatmul.mubr.bf16.gmra.mrb[0].mxu0 %v3873
      %v4090 = vpop.f32.mrb[0].mxu0
      %v4091 = vadd.f32 %v3978, %v4090
      %v4092 = vpop.f32.mrb[0].mxu0
      %v4093 = vpop.f32.mrb[0].mxu0
      %v4094 = vadd.f32 %v3981, %v4093
      %v4095 = vpop.f32.mrb[0].mxu0
      %4096 = vmatprep.mubr.bf16.mxu0 0
      %4097 = vmatmul.mubr.bf16.gmra.mrb[0].mxu0 %v3874
      %v4098 = vpop.f32.mrb[0].mxu0
      %v4099 = vadd.f32 %v3986, %v4098
      %v4100 = vpop.f32.mrb[0].mxu0
      %v4101 = vpop.f32.mrb[0].mxu0
      %v4102 = vadd.f32 %v3989, %v4101
      %v4103 = vpop.f32.mrb[0].mxu0
      %4104 = vmatprep.mubr.bf16.mxu0 0
      %4105 = vmatmul.mubr.bf16.gmra.mrb[0].mxu0 %v3875
      %v4106 = vpop.f32.mrb[0].mxu0
      %v4107 = vadd.f32 %v3994, %v4106
      %v4108 = vpop.f32.mrb[0].mxu0
      %v4109 = vpop.f32.mrb[0].mxu0
      %v4110 = vadd.f32 %v3997, %v4109
      %v4111 = vpop.f32.mrb[0].mxu0
      %4112 = vmatprep.mubr.bf16.mxu0 0
      %4113 = vmatmul.mubr.bf16.gmra.mrb[0].mxu0 %v3876
      %v4114 = vpop.f32.mrb[0].mxu0
      %v4115 = vadd.f32 %v4002, %v4114
      %v4116 = vpop.f32.mrb[0].mxu0
      %v4117 = vpop.f32.mrb[0].mxu0
      %v4118 = vadd.f32 %v4005, %v4117
      %v4119 = vpop.f32.mrb[0].mxu0
      %4120 = vmatprep.mubr.bf16.mxu0 0
      %4121 = vmatmul.mubr.bf16.gmra.mrb[0].mxu0 %v3877
      %v4122 = vpop.f32.mrb[0].mxu0
      %v4123 = vadd.f32 %v4010, %v4122
      %v4124 = vpop.f32.mrb[0].mxu0
      %v4125 = vpop.f32.mrb[0].mxu0
      %v4126 = vadd.f32 %v4013, %v4125
      %v4127 = vpop.f32.mrb[0].mxu0
      %4128 = vdwg.mxu0
      %s4129 = scalar_lea.vmem [#allocation2], 1344
      %v4130 = vld [vmem:[%s4129] sm:$0xff]
      %v4131 = vld [vmem:[%s4129 + $0x8] sm:$0xff]
      %v4132 = vld [vmem:[%s4129 + $0x10] sm:$0xff]
      %v4133 = vld [vmem:[%s4129 + $0x18] sm:$0xff]
      %v4134 = vld [vmem:[%s4129 + $0x20] sm:$0xff]
      %v4135 = vld [vmem:[%s4129 + $0x28] sm:$0xff]
      %v4136 = vld [vmem:[%s4129 + $0x30] sm:$0xff]
      %v4137 = vld [vmem:[%s4129 + $0x38] sm:$0xff]
      %v4138 = vld [vmem:[%s4129 + $0x40] sm:$0xff]
      %v4139 = vld [vmem:[%s4129 + $0x48] sm:$0xff]
      %v4140 = vld [vmem:[%s4129 + $0x50] sm:$0xff]
      %v4141 = vld [vmem:[%s4129 + $0x58] sm:$0xff]
      %v4142 = vld [vmem:[%s4129 + $0x60] sm:$0xff]
      %v4143 = vld [vmem:[%s4129 + $0x68] sm:$0xff]
      %v4144 = vld [vmem:[%s4129 + $0x70] sm:$0xff]
      %v4145 = vld [vmem:[%s4129 + $0x78] sm:$0xff]
      %v4146 = vld [vmem:[%s4129 + $0x80] sm:$0xff]
      %v4147 = vld [vmem:[%s4129 + $0x88] sm:$0xff]
      %v4148 = vld [vmem:[%s4129 + $0x90] sm:$0xff]
      %v4149 = vld [vmem:[%s4129 + $0x98] sm:$0xff]
      %v4150 = vld [vmem:[%s4129 + $0xa0] sm:$0xff]
      %v4151 = vld [vmem:[%s4129 + $0xa8] sm:$0xff]
      %v4152 = vld [vmem:[%s4129 + $0xb0] sm:$0xff]
      %v4153 = vld [vmem:[%s4129 + $0xb8] sm:$0xff]
      %4154 = vmatprep.subr.bf16.mxu0 0
      %4155 = vmatpush1.bf16.msra.mxu0 %v4130
      %4156 = vmatprep.subr.bf16.mxu0 0
      %4157 = vmatpush1.bf16.msra.mxu0 %v4131
      %4158 = vmatprep.subr.bf16.mxu0 0
      %4159 = vmatpush1.bf16.msra.mxu0 %v4132
      %4160 = vmatprep.subr.bf16.mxu0 0
      %4161 = vmatpush1.bf16.msra.mxu0 %v4133
      %4162 = vmatprep.subr.bf16.mxu0 0
      %4163 = vmatpush1.bf16.msra.mxu0 %v4134
      %4164 = vmatprep.subr.bf16.mxu0 0
      %4165 = vmatpush1.bf16.msra.mxu0 %v4135
      %4166 = vmatprep.subr.bf16.mxu0 0
      %4167 = vmatpush1.bf16.msra.mxu0 %v4136
      %4168 = vmatprep.subr.bf16.mxu0 0
      %4169 = vmatpush1.bf16.msra.mxu0 %v4137
      %4170 = vmatprep.subr.bf16.mxu0 0
      %4171 = vmatpush1.bf16.msra.mxu0 %v4138
      %4172 = vmatprep.subr.bf16.mxu0 0
      %4173 = vmatpush1.bf16.msra.mxu0 %v4139
      %4174 = vmatprep.subr.bf16.mxu0 0
      %4175 = vmatpush1.bf16.msra.mxu0 %v4140
      %4176 = vmatprep.subr.bf16.mxu0 0
      %4177 = vmatpush1.bf16.msra.mxu0 %v4141
      %4178 = vmatprep.subr.bf16.mxu0 0
      %4179 = vmatpush1.bf16.msra.mxu0 %v4142
      %4180 = vmatprep.subr.bf16.mxu0 0
      %4181 = vmatpush1.bf16.msra.mxu0 %v4143
      %4182 = vmatprep.subr.bf16.mxu0 0
      %4183 = vmatpush1.bf16.msra.mxu0 %v4144
      %4184 = vmatprep.subr.bf16.mxu0 0
      %4185 = vmatpush1.bf16.msra.mxu0 %v4145
      %4186 = vmatprep.mubr.bf16.mxu0 %v3867
      %4187 = vmatmul.mubr.bf16.gmra.mrb[0].mxu0 %v3866
      %v4188 = vpop.f32.mrb[0].mxu0
      %v4189 = vadd.f32 0.0, %v4188
      %v4190 = vpop.f32.mrb[0].mxu0
      %v4191 = vpop.f32.mrb[0].mxu0
      %v4192 = vadd.f32 0.0, %v4191
      %v4193 = vpop.f32.mrb[0].mxu0
      %4194 = vmatprep.mubr.bf16.mxu0 %v3868
      %4195 = vmatmul.mubr.bf16.gmra.mrb[0].mxu0 %v3867
      %v4196 = vpop.f32.mrb[0].mxu0
      %v4197 = vadd.f32 0.0, %v4196
      %v4198 = vpop.f32.mrb[0].mxu0
      %v4199 = vpop.f32.mrb[0].mxu0
      %v4200 = vadd.f32 0.0, %v4199
      %v4201 = vpop.f32.mrb[0].mxu0
      %4202 = vmatprep.mubr.bf16.mxu0 %v3869
      %4203 = vmatmul.mubr.bf16.gmra.mrb[0].mxu0 %v3868
      %v4204 = vpop.f32.mrb[0].mxu0
      %v4205 = vadd.f32 0.0, %v4204
      %v4206 = vpop.f32.mrb[0].mxu0
      %v4207 = vpop.f32.mrb[0].mxu0
      %v4208 = vadd.f32 0.0, %v4207
      %v4209 = vpop.f32.mrb[0].mxu0
      %4210 = vmatprep.mubr.bf16.mxu0 %v3870
      %4211 = vmatmul.mubr.bf16.gmra.mrb[0].mxu0 %v3869
      %v4212 = vpop.f32.mrb[0].mxu0
      %v4213 = vadd.f32 0.0, %v4212
      %v4214 = vpop.f32.mrb[0].mxu0
      %v4215 = vpop.f32.mrb[0].mxu0
      %v4216 = vadd.f32 0.0, %v4215
      %v4217 = vpop.f32.mrb[0].mxu0
      %4218 = vmatprep.mubr.bf16.mxu0 %v3871
      %4219 = vmatmul.mubr.bf16.gmra.mrb[0].mxu0 %v3870
      %v4220 = vpop.f32.mrb[0].mxu0
      %v4221 = vadd.f32 0.0, %v4220
      %v4222 = vpop.f32.mrb[0].mxu0
      %v4223 = vpop.f32.mrb[0].mxu0
      %v4224 = vadd.f32 0.0, %v4223
      %v4225 = vpop.f32.mrb[0].mxu0
      %4226 = vmatprep.mubr.bf16.mxu0 %v3872
      %4227 = vmatmul.mubr.bf16.gmra.mrb[0].mxu0 %v3871
      %v4228 = vpop.f32.mrb[0].mxu0
      %v4229 = vadd.f32 0.0, %v4228
      %v4230 = vpop.f32.mrb[0].mxu0
      %v4231 = vpop.f32.mrb[0].mxu0
      %v4232 = vadd.f32 0.0, %v4231
      %v4233 = vpop.f32.mrb[0].mxu0
      %4234 = vmatprep.mubr.bf16.mxu0 %v3873
      %4235 = vmatmul.mubr.bf16.gmra.mrb[0].mxu0 %v3872
      %v4236 = vpop.f32.mrb[0].mxu0
      %v4237 = vadd.f32 0.0, %v4236
      %v4238 = vpop.f32.mrb[0].mxu0
      %v4239 = vpop.f32.mrb[0].mxu0
      %v4240 = vadd.f32 0.0, %v4239
      %v4241 = vpop.f32.mrb[0].mxu0
      %4242 = vmatprep.mubr.bf16.mxu0 %v3874
      %4243 = vmatmul.mubr.bf16.gmra.mrb[0].mxu0 %v3873
      %v4244 = vpop.f32.mrb[0].mxu0
      %v4245 = vadd.f32 0.0, %v4244
      %v4246 = vpop.f32.mrb[0].mxu0
      %v4247 = vpop.f32.mrb[0].mxu0
      %v4248 = vadd.f32 0.0, %v4247
      %v4249 = vpop.f32.mrb[0].mxu0
      %4250 = vmatprep.mubr.bf16.mxu0 %v3875
      %4251 = vmatmul.mubr.bf16.gmra.mrb[0].mxu0 %v3874
      %v4252 = vpop.f32.mrb[0].mxu0
      %v4253 = vadd.f32 0.0, %v4252
      %v4254 = vpop.f32.mrb[0].mxu0
      %v4255 = vpop.f32.mrb[0].mxu0
      %v4256 = vadd.f32 0.0, %v4255
      %v4257 = vpop.f32.mrb[0].mxu0
      %4258 = vmatprep.mubr.bf16.mxu0 %v3876
      %4259 = vmatmul.mubr.bf16.gmra.mrb[0].mxu0 %v3875
      %v4260 = vpop.f32.mrb[0].mxu0
      %v4261 = vadd.f32 0.0, %v4260
      %v4262 = vpop.f32.mrb[0].mxu0
      %v4263 = vpop.f32.mrb[0].mxu0
      %v4264 = vadd.f32 0.0, %v4263
      %v4265 = vpop.f32.mrb[0].mxu0
      %4266 = vdwg.mxu0
      %4267 = vmatprep.subr.bf16.mxu0 0
      %4268 = vmatpush1.bf16.msra.mxu0 %v4146
      %4269 = vmatprep.subr.bf16.mxu0 0
      %4270 = vmatpush1.bf16.msra.mxu0 %v4147
      %4271 = vmatprep.subr.bf16.mxu0 0
      %4272 = vmatpush1.bf16.msra.mxu0 %v4148
      %4273 = vmatprep.subr.bf16.mxu0 0
      %4274 = vmatpush1.bf16.msra.mxu0 %v4149
      %4275 = vmatprep.subr.bf16.mxu0 0
      %4276 = vmatpush1.bf16.msra.mxu0 %v4150
      %4277 = vmatprep.subr.bf16.mxu0 0
      %4278 = vmatpush1.bf16.msra.mxu0 %v4151
      %4279 = vmatprep.subr.bf16.mxu0 0
      %4280 = vmatpush1.bf16.msra.mxu0 %v4152
      %4281 = vmatprep.subr.bf16.mxu0 0
      %4282 = vmatpush1.bf16.msra.mxu0 %v4153
      %4283 = vmatprep.subr.bf16.mxu0 0
      %4284 = vmatpush1.bf16.msra.mxu0 0
      %4285 = vmatprep.subr.bf16.mxu0 0
      %4286 = vmatpush1.bf16.msra.mxu0 0
      %4287 = vmatprep.subr.bf16.mxu0 0
      %4288 = vmatpush1.bf16.msra.mxu0 0
      %4289 = vmatprep.subr.bf16.mxu0 0
      %4290 = vmatpush1.bf16.msra.mxu0 0
      %4291 = vmatprep.subr.bf16.mxu0 0
      %4292 = vmatpush1.bf16.msra.mxu0 0
      %4293 = vmatprep.subr.bf16.mxu0 0
      %4294 = vmatpush1.bf16.msra.mxu0 0
      %4295 = vmatprep.subr.bf16.mxu0 0
      %4296 = vmatpush1.bf16.msra.mxu0 0
      %4297 = vmatprep.subr.bf16.mxu0 0
      %4298 = vmatpush1.bf16.msra.mxu0 0
      %4299 = vmatprep.mubr.bf16.mxu0 0
      %4300 = vmatmul.mubr.bf16.gmra.mrb[0].mxu0 %v3868
      %v4301 = vpop.f32.mrb[0].mxu0
      %v4302 = vadd.f32 %v4189, %v4301
      %v4303 = vpop.f32.mrb[0].mxu0
      %v4304 = vpop.f32.mrb[0].mxu0
      %v4305 = vadd.f32 %v4192, %v4304
      %v4306 = vpop.f32.mrb[0].mxu0
      %4307 = vmatprep.mubr.bf16.mxu0 0
      %4308 = vmatmul.mubr.bf16.gmra.mrb[0].mxu0 %v3869
      %v4309 = vpop.f32.mrb[0].mxu0
      %v4310 = vadd.f32 %v4197, %v4309
      %v4311 = vpop.f32.mrb[0].mxu0
      %v4312 = vpop.f32.mrb[0].mxu0
      %v4313 = vadd.f32 %v4200, %v4312
      %v4314 = vpop.f32.mrb[0].mxu0
      %4315 = vmatprep.mubr.bf16.mxu0 0
      %4316 = vmatmul.mubr.bf16.gmra.mrb[0].mxu0 %v3870
      %v4317 = vpop.f32.mrb[0].mxu0
      %v4318 = vadd.f32 %v4205, %v4317
      %v4319 = vpop.f32.mrb[0].mxu0
      %v4320 = vpop.f32.mrb[0].mxu0
      %v4321 = vadd.f32 %v4208, %v4320
      %v4322 = vpop.f32.mrb[0].mxu0
      %4323 = vmatprep.mubr.bf16.mxu0 0
      %4324 = vmatmul.mubr.bf16.gmra.mrb[0].mxu0 %v3871
      %v4325 = vpop.f32.mrb[0].mxu0
      %v4326 = vadd.f32 %v4213, %v4325
      %v4327 = vpop.f32.mrb[0].mxu0
      %v4328 = vpop.f32.mrb[0].mxu0
      %v4329 = vadd.f32 %v4216, %v4328
      %v4330 = vpop.f32.mrb[0].mxu0
      %4331 = vmatprep.mubr.bf16.mxu0 0
      %4332 = vmatmul.mubr.bf16.gmra.mrb[0].mxu0 %v3872
      %v4333 = vpop.f32.mrb[0].mxu0
      %v4334 = vadd.f32 %v4221, %v4333
      %v4335 = vpop.f32.mrb[0].mxu0
      %v4336 = vpop.f32.mrb[0].mxu0
      %v4337 = vadd.f32 %v4224, %v4336
      %v4338 = vpop.f32.mrb[0].mxu0
      %4339 = vmatprep.mubr.bf16.mxu0 0
      %4340 = vmatmul.mubr.bf16.gmra.mrb[0].mxu0 %v3873
      %v4341 = vpop.f32.mrb[0].mxu0
      %v4342 = vadd.f32 %v4229, %v4341
      %v4343 = vpop.f32.mrb[0].mxu0
      %v4344 = vpop.f32.mrb[0].mxu0
      %v4345 = vadd.f32 %v4232, %v4344
      %v4346 = vpop.f32.mrb[0].mxu0
      %4347 = vmatprep.mubr.bf16.mxu0 0
      %4348 = vmatmul.mubr.bf16.gmra.mrb[0].mxu0 %v3874
      %v4349 = vpop.f32.mrb[0].mxu0
      %v4350 = vadd.f32 %v4237, %v4349
      %v4351 = vpop.f32.mrb[0].mxu0
      %v4352 = vpop.f32.mrb[0].mxu0
      %v4353 = vadd.f32 %v4240, %v4352
      %v4354 = vpop.f32.mrb[0].mxu0
      %4355 = vmatprep.mubr.bf16.mxu0 0
      %4356 = vmatmul.mubr.bf16.gmra.mrb[0].mxu0 %v3875
      %v4357 = vpop.f32.mrb[0].mxu0
      %v4358 = vadd.f32 %v4245, %v4357
      %v4359 = vpop.f32.mrb[0].mxu0
      %v4360 = vpop.f32.mrb[0].mxu0
      %v4361 = vadd.f32 %v4248, %v4360
      %v4362 = vpop.f32.mrb[0].mxu0
      %4363 = vmatprep.mubr.bf16.mxu0 0
      %4364 = vmatmul.mubr.bf16.gmra.mrb[0].mxu0 %v3876
      %v4365 = vpop.f32.mrb[0].mxu0
      %v4366 = vadd.f32 %v4253, %v4365
      %v4367 = vpop.f32.mrb[0].mxu0
      %v4368 = vpop.f32.mrb[0].mxu0
      %v4369 = vadd.f32 %v4256, %v4368
      %v4370 = vpop.f32.mrb[0].mxu0
      %4371 = vmatprep.mubr.bf16.mxu0 0
      %4372 = vmatmul.mubr.bf16.gmra.mrb[0].mxu0 %v3877
      %v4373 = vpop.f32.mrb[0].mxu0
      %v4374 = vadd.f32 %v4261, %v4373
      %v4375 = vpop.f32.mrb[0].mxu0
      %v4376 = vpop.f32.mrb[0].mxu0
      %v4377 = vadd.f32 %v4264, %v4376
      %v4378 = vpop.f32.mrb[0].mxu0
      %4379 = vdwg.mxu0
      %s4380 = scalar_lea.vmem [#allocation2], 1536
      %v4381 = vld [vmem:[%s4380] sm:$0xff]
      %v4382 = vld [vmem:[%s4380 + $0x8] sm:$0xff]
      %v4383 = vld [vmem:[%s4380 + $0x10] sm:$0xff]
      %v4384 = vld [vmem:[%s4380 + $0x18] sm:$0xff]
      %v4385 = vld [vmem:[%s4380 + $0x20] sm:$0xff]
      %v4386 = vld [vmem:[%s4380 + $0x28] sm:$0xff]
      %v4387 = vld [vmem:[%s4380 + $0x30] sm:$0xff]
      %v4388 = vld [vmem:[%s4380 + $0x38] sm:$0xff]
      %v4389 = vld [vmem:[%s4380 + $0x40] sm:$0xff]
      %v4390 = vld [vmem:[%s4380 + $0x48] sm:$0xff]
      %v4391 = vld [vmem:[%s4380 + $0x50] sm:$0xff]
      %v4392 = vld [vmem:[%s4380 + $0x58] sm:$0xff]
      %v4393 = vld [vmem:[%s4380 + $0x60] sm:$0xff]
      %v4394 = vld [vmem:[%s4380 + $0x68] sm:$0xff]
      %v4395 = vld [vmem:[%s4380 + $0x70] sm:$0xff]
      %v4396 = vld [vmem:[%s4380 + $0x78] sm:$0xff]
      %v4397 = vld [vmem:[%s4380 + $0x80] sm:$0xff]
      %v4398 = vld [vmem:[%s4380 + $0x88] sm:$0xff]
      %v4399 = vld [vmem:[%s4380 + $0x90] sm:$0xff]
      %v4400 = vld [vmem:[%s4380 + $0x98] sm:$0xff]
      %v4401 = vld [vmem:[%s4380 + $0xa0] sm:$0xff]
      %v4402 = vld [vmem:[%s4380 + $0xa8] sm:$0xff]
      %v4403 = vld [vmem:[%s4380 + $0xb0] sm:$0xff]
      %v4404 = vld [vmem:[%s4380 + $0xb8] sm:$0xff]
      %4405 = vmatprep.subr.bf16.mxu0 0
      %4406 = vmatpush1.bf16.msra.mxu0 %v4381
      %4407 = vmatprep.subr.bf16.mxu0 0
      %4408 = vmatpush1.bf16.msra.mxu0 %v4382
      %4409 = vmatprep.subr.bf16.mxu0 0
      %4410 = vmatpush1.bf16.msra.mxu0 %v4383
      %4411 = vmatprep.subr.bf16.mxu0 0
      %4412 = vmatpush1.bf16.msra.mxu0 %v4384
      %4413 = vmatprep.subr.bf16.mxu0 0
      %4414 = vmatpush1.bf16.msra.mxu0 %v4385
      %4415 = vmatprep.subr.bf16.mxu0 0
      %4416 = vmatpush1.bf16.msra.mxu0 %v4386
      %4417 = vmatprep.subr.bf16.mxu0 0
      %4418 = vmatpush1.bf16.msra.mxu0 %v4387
      %4419 = vmatprep.subr.bf16.mxu0 0
      %4420 = vmatpush1.bf16.msra.mxu0 %v4388
      %4421 = vmatprep.subr.bf16.mxu0 0
      %4422 = vmatpush1.bf16.msra.mxu0 %v4389
      %4423 = vmatprep.subr.bf16.mxu0 0
      %4424 = vmatpush1.bf16.msra.mxu0 %v4390
      %4425 = vmatprep.subr.bf16.mxu0 0
      %4426 = vmatpush1.bf16.msra.mxu0 %v4391
      %4427 = vmatprep.subr.bf16.mxu0 0
      %4428 = vmatpush1.bf16.msra.mxu0 %v4392
      %4429 = vmatprep.subr.bf16.mxu0 0
      %4430 = vmatpush1.bf16.msra.mxu0 %v4393
      %4431 = vmatprep.subr.bf16.mxu0 0
      %4432 = vmatpush1.bf16.msra.mxu0 %v4394
      %4433 = vmatprep.subr.bf16.mxu0 0
      %4434 = vmatpush1.bf16.msra.mxu0 %v4395
      %4435 = vmatprep.subr.bf16.mxu0 0
      %4436 = vmatpush1.bf16.msra.mxu0 %v4396
      %4437 = vmatprep.mubr.bf16.mxu0 %v3867
      %4438 = vmatmul.mubr.bf16.gmra.mrb[0].mxu0 %v3866
      %v4439 = vpop.f32.mrb[0].mxu0
      %v4440 = vadd.f32 0.0, %v4439
      %v4441 = vpop.f32.mrb[0].mxu0
      %v4442 = vpop.f32.mrb[0].mxu0
      %v4443 = vadd.f32 0.0, %v4442
      %v4444 = vpop.f32.mrb[0].mxu0
      %4445 = vmatprep.mubr.bf16.mxu0 %v3868
      %4446 = vmatmul.mubr.bf16.gmra.mrb[0].mxu0 %v3867
      %v4447 = vpop.f32.mrb[0].mxu0
      %v4448 = vadd.f32 0.0, %v4447
      %v4449 = vpop.f32.mrb[0].mxu0
      %v4450 = vpop.f32.mrb[0].mxu0
      %v4451 = vadd.f32 0.0, %v4450
      %v4452 = vpop.f32.mrb[0].mxu0
      %4453 = vmatprep.mubr.bf16.mxu0 %v3869
      %4454 = vmatmul.mubr.bf16.gmra.mrb[0].mxu0 %v3868
      %v4455 = vpop.f32.mrb[0].mxu0
      %v4456 = vadd.f32 0.0, %v4455
      %v4457 = vpop.f32.mrb[0].mxu0
      %v4458 = vpop.f32.mrb[0].mxu0
      %v4459 = vadd.f32 0.0, %v4458
      %v4460 = vpop.f32.mrb[0].mxu0
      %4461 = vmatprep.mubr.bf16.mxu0 %v3870
      %4462 = vmatmul.mubr.bf16.gmra.mrb[0].mxu0 %v3869
      %v4463 = vpop.f32.mrb[0].mxu0
      %v4464 = vadd.f32 0.0, %v4463
      %v4465 = vpop.f32.mrb[0].mxu0
      %v4466 = vpop.f32.mrb[0].mxu0
      %v4467 = vadd.f32 0.0, %v4466
      %v4468 = vpop.f32.mrb[0].mxu0
      %4469 = vmatprep.mubr.bf16.mxu0 %v3871
      %4470 = vmatmul.mubr.bf16.gmra.mrb[0].mxu0 %v3870
      %v4471 = vpop.f32.mrb[0].mxu0
      %v4472 = vadd.f32 0.0, %v4471
      %v4473 = vpop.f32.mrb[0].mxu0
      %v4474 = vpop.f32.mrb[0].mxu0
      %v4475 = vadd.f32 0.0, %v4474
      %v4476 = vpop.f32.mrb[0].mxu0
      %4477 = vmatprep.mubr.bf16.mxu0 %v3872
      %4478 = vmatmul.mubr.bf16.gmra.mrb[0].mxu0 %v3871
      %v4479 = vpop.f32.mrb[0].mxu0
      %v4480 = vadd.f32 0.0, %v4479
      %v4481 = vpop.f32.mrb[0].mxu0
      %v4482 = vpop.f32.mrb[0].mxu0
      %v4483 = vadd.f32 0.0, %v4482
      %v4484 = vpop.f32.mrb[0].mxu0
      %4485 = vmatprep.mubr.bf16.mxu0 %v3873
      %4486 = vmatmul.mubr.bf16.gmra.mrb[0].mxu0 %v3872
      %v4487 = vpop.f32.mrb[0].mxu0
      %v4488 = vadd.f32 0.0, %v4487
      %v4489 = vpop.f32.mrb[0].mxu0
      %v4490 = vpop.f32.mrb[0].mxu0
      %v4491 = vadd.f32 0.0, %v4490
      %v4492 = vpop.f32.mrb[0].mxu0
      %4493 = vmatprep.mubr.bf16.mxu0 %v3874
      %4494 = vmatmul.mubr.bf16.gmra.mrb[0].mxu0 %v3873
      %v4495 = vpop.f32.mrb[0].mxu0
      %v4496 = vadd.f32 0.0, %v4495
      %v4497 = vpop.f32.mrb[0].mxu0
      %v4498 = vpop.f32.mrb[0].mxu0
      %v4499 = vadd.f32 0.0, %v4498
      %v4500 = vpop.f32.mrb[0].mxu0
      %4501 = vmatprep.mubr.bf16.mxu0 %v3875
      %4502 = vmatmul.mubr.bf16.gmra.mrb[0].mxu0 %v3874
      %v4503 = vpop.f32.mrb[0].mxu0
      %v4504 = vadd.f32 0.0, %v4503
      %v4505 = vpop.f32.mrb[0].mxu0
      %v4506 = vpop.f32.mrb[0].mxu0
      %v4507 = vadd.f32 0.0, %v4506
      %v4508 = vpop.f32.mrb[0].mxu0
      %4509 = vmatprep.mubr.bf16.mxu0 %v3876
      %4510 = vmatmul.mubr.bf16.gmra.mrb[0].mxu0 %v3875
      %v4511 = vpop.f32.mrb[0].mxu0
      %v4512 = vadd.f32 0.0, %v4511
      %v4513 = vpop.f32.mrb[0].mxu0
      %v4514 = vpop.f32.mrb[0].mxu0
      %v4515 = vadd.f32 0.0, %v4514
      %v4516 = vpop.f32.mrb[0].mxu0
      %4517 = vdwg.mxu0
      %4518 = vmatprep.subr.bf16.mxu0 0
      %4519 = vmatpush1.bf16.msra.mxu0 %v4397
      %4520 = vmatprep.subr.bf16.mxu0 0
      %4521 = vmatpush1.bf16.msra.mxu0 %v4398
      %4522 = vmatprep.subr.bf16.mxu0 0
      %4523 = vmatpush1.bf16.msra.mxu0 %v4399
      %4524 = vmatprep.subr.bf16.mxu0 0
      %4525 = vmatpush1.bf16.msra.mxu0 %v4400
      %4526 = vmatprep.subr.bf16.mxu0 0
      %4527 = vmatpush1.bf16.msra.mxu0 %v4401
      %4528 = vmatprep.subr.bf16.mxu0 0
      %4529 = vmatpush1.bf16.msra.mxu0 %v4402
      %4530 = vmatprep.subr.bf16.mxu0 0
      %4531 = vmatpush1.bf16.msra.mxu0 %v4403
      %4532 = vmatprep.subr.bf16.mxu0 0
      %4533 = vmatpush1.bf16.msra.mxu0 %v4404
      %4534 = vmatprep.subr.bf16.mxu0 0
      %4535 = vmatpush1.bf16.msra.mxu0 0
      %4536 = vmatprep.subr.bf16.mxu0 0
      %4537 = vmatpush1.bf16.msra.mxu0 0
      %4538 = vmatprep.subr.bf16.mxu0 0
      %4539 = vmatpush1.bf16.msra.mxu0 0
      %4540 = vmatprep.subr.bf16.mxu0 0
      %4541 = vmatpush1.bf16.msra.mxu0 0
      %4542 = vmatprep.subr.bf16.mxu0 0
      %4543 = vmatpush1.bf16.msra.mxu0 0
      %4544 = vmatprep.subr.bf16.mxu0 0
      %4545 = vmatpush1.bf16.msra.mxu0 0
      %4546 = vmatprep.subr.bf16.mxu0 0
      %4547 = vmatpush1.bf16.msra.mxu0 0
      %4548 = vmatprep.subr.bf16.mxu0 0
      %4549 = vmatpush1.bf16.msra.mxu0 0
      %4550 = vmatprep.mubr.bf16.mxu0 0
      %4551 = vmatmul.mubr.bf16.gmra.mrb[0].mxu0 %v3868
      %v4552 = vpop.f32.mrb[0].mxu0
      %v4553 = vadd.f32 %v4440, %v4552
      %v4554 = vpop.f32.mrb[0].mxu0
      %v4555 = vpop.f32.mrb[0].mxu0
      %v4556 = vadd.f32 %v4443, %v4555
      %v4557 = vpop.f32.mrb[0].mxu0
      %4558 = vmatprep.mubr.bf16.mxu0 0
      %4559 = vmatmul.mubr.bf16.gmra.mrb[0].mxu0 %v3869
      %v4560 = vpop.f32.mrb[0].mxu0
      %v4561 = vadd.f32 %v4448, %v4560
      %v4562 = vpop.f32.mrb[0].mxu0
      %v4563 = vpop.f32.mrb[0].mxu0
      %v4564 = vadd.f32 %v4451, %v4563
      %v4565 = vpop.f32.mrb[0].mxu0
      %4566 = vmatprep.mubr.bf16.mxu0 0
      %4567 = vmatmul.mubr.bf16.gmra.mrb[0].mxu0 %v3870
      %v4568 = vpop.f32.mrb[0].mxu0
      %v4569 = vadd.f32 %v4456, %v4568
      %v4570 = vpop.f32.mrb[0].mxu0
      %v4571 = vpop.f32.mrb[0].mxu0
      %v4572 = vadd.f32 %v4459, %v4571
      %v4573 = vpop.f32.mrb[0].mxu0
      %4574 = vmatprep.mubr.bf16.mxu0 0
      %4575 = vmatmul.mubr.bf16.gmra.mrb[0].mxu0 %v3871
      %v4576 = vpop.f32.mrb[0].mxu0
      %v4577 = vadd.f32 %v4464, %v4576
      %v4578 = vpop.f32.mrb[0].mxu0
      %v4579 = vpop.f32.mrb[0].mxu0
      %v4580 = vadd.f32 %v4467, %v4579
      %v4581 = vpop.f32.mrb[0].mxu0
      %4582 = vmatprep.mubr.bf16.mxu0 0
      %4583 = vmatmul.mubr.bf16.gmra.mrb[0].mxu0 %v3872
      %v4584 = vpop.f32.mrb[0].mxu0
      %v4585 = vadd.f32 %v4472, %v4584
      %v4586 = vpop.f32.mrb[0].mxu0
      %v4587 = vpop.f32.mrb[0].mxu0
      %v4588 = vadd.f32 %v4475, %v4587
      %v4589 = vpop.f32.mrb[0].mxu0
      %4590 = vmatprep.mubr.bf16.mxu0 0
      %4591 = vmatmul.mubr.bf16.gmra.mrb[0].mxu0 %v3873
      %v4592 = vpop.f32.mrb[0].mxu0
      %v4593 = vadd.f32 %v4480, %v4592
      %v4594 = vpop.f32.mrb[0].mxu0
      %v4595 = vpop.f32.mrb[0].mxu0
      %v4596 = vadd.f32 %v4483, %v4595
      %v4597 = vpop.f32.mrb[0].mxu0
      %4598 = vmatprep.mubr.bf16.mxu0 0
      %4599 = vmatmul.mubr.bf16.gmra.mrb[0].mxu0 %v3874
      %v4600 = vpop.f32.mrb[0].mxu0
      %v4601 = vadd.f32 %v4488, %v4600
      %v4602 = vpop.f32.mrb[0].mxu0
      %v4603 = vpop.f32.mrb[0].mxu0
      %v4604 = vadd.f32 %v4491, %v4603
      %v4605 = vpop.f32.mrb[0].mxu0
      %4606 = vmatprep.mubr.bf16.mxu0 0
      %4607 = vmatmul.mubr.bf16.gmra.mrb[0].mxu0 %v3875
      %v4608 = vpop.f32.mrb[0].mxu0
      %v4609 = vadd.f32 %v4496, %v4608
      %v4610 = vpop.f32.mrb[0].mxu0
      %v4611 = vpop.f32.mrb[0].mxu0
      %v4612 = vadd.f32 %v4499, %v4611
      %v4613 = vpop.f32.mrb[0].mxu0
      %4614 = vmatprep.mubr.bf16.mxu0 0
      %4615 = vmatmul.mubr.bf16.gmra.mrb[0].mxu0 %v3876
      %v4616 = vpop.f32.mrb[0].mxu0
      %v4617 = vadd.f32 %v4504, %v4616
      %v4618 = vpop.f32.mrb[0].mxu0
      %v4619 = vpop.f32.mrb[0].mxu0
      %v4620 = vadd.f32 %v4507, %v4619
      %v4621 = vpop.f32.mrb[0].mxu0
      %4622 = vmatprep.mubr.bf16.mxu0 0
      %4623 = vmatmul.mubr.bf16.gmra.mrb[0].mxu0 %v3877
      %v4624 = vpop.f32.mrb[0].mxu0
      %v4625 = vadd.f32 %v4512, %v4624
      %v4626 = vpop.f32.mrb[0].mxu0
      %v4627 = vpop.f32.mrb[0].mxu0
      %v4628 = vadd.f32 %v4515, %v4627
      %v4629 = vpop.f32.mrb[0].mxu0
      %4630 = vdwg.mxu0
      %v4631 = vrot.slane %v4302, 1
      %v4632 = vrot.slane %v4310, 1
      %v4633 = vrot.slane %v4318, 1
      %v4634 = vrot.slane %v4326, 1
      %v4635 = vrot.slane %v4334, 1
      %v4636 = vrot.slane %v4342, 1
      %v4637 = vrot.slane %v4350, 1
      %v4638 = vrot.slane %v4358, 1
      %v4639 = vrot.slane %v4366, 1
      %v4640 = vrot.slane %v4374, 1
      %v4641 = vrot.slane %v4305, 1
      %v4642 = vrot.slane %v4313, 1
      %v4643 = vrot.slane %v4321, 1
      %v4644 = vrot.slane %v4329, 1
      %v4645 = vrot.slane %v4337, 1
      %v4646 = vrot.slane %v4345, 1
      %v4647 = vrot.slane %v4353, 1
      %v4648 = vrot.slane %v4361, 1
      %v4649 = vrot.slane %v4369, 1
      %v4650 = vrot.slane %v4377, 1
      %v4651 = vsel %vm2410, %v4631, %v4641
      %v4652 = vsel %vm2410, %v4632, %v4642
      %v4653 = vsel %vm2410, %v4633, %v4643
      %v4654 = vsel %vm2410, %v4634, %v4644
      %v4655 = vsel %vm2410, %v4635, %v4645
      %v4656 = vsel %vm2410, %v4636, %v4646
      %v4657 = vsel %vm2410, %v4637, %v4647
      %v4658 = vsel %vm2410, %v4638, %v4648
      %v4659 = vsel %vm2410, %v4639, %v4649
      %v4660 = vsel %vm2410, %v4640, %v4650
      %v4661 = vsel %vm2410, %v4641, %v4631
      %v4662 = vsel %vm2410, %v4642, %v4632
      %v4663 = vsel %vm2410, %v4643, %v4633
      %v4664 = vsel %vm2410, %v4644, %v4634
      %v4665 = vsel %vm2410, %v4645, %v4635
      %v4666 = vsel %vm2410, %v4646, %v4636
      %v4667 = vsel %vm2410, %v4647, %v4637
      %v4668 = vsel %vm2410, %v4648, %v4638
      %v4669 = vsel %vm2410, %v4649, %v4639
      %v4670 = vsel %vm2410, %v4650, %v4640
      %v4671 = vadd.f32 %v4051, %v4651
      %v4672 = vadd.f32 %v4054, %v4661
      %v4673 = vadd.f32 %v4059, %v4652
      %v4674 = vadd.f32 %v4062, %v4662
      %v4675 = vadd.f32 %v4067, %v4653
      %v4676 = vadd.f32 %v4070, %v4663
      %v4677 = vadd.f32 %v4075, %v4654
      %v4678 = vadd.f32 %v4078, %v4664
      %v4679 = vadd.f32 %v4083, %v4655
      %v4680 = vadd.f32 %v4086, %v4665
      %v4681 = vadd.f32 %v4091, %v4656
      %v4682 = vadd.f32 %v4094, %v4666
      %v4683 = vadd.f32 %v4099, %v4657
      %v4684 = vadd.f32 %v4102, %v4667
      %v4685 = vadd.f32 %v4107, %v4658
      %v4686 = vadd.f32 %v4110, %v4668
      %v4687 = vadd.f32 %v4115, %v4659
      %v4688 = vadd.f32 %v4118, %v4669
      %v4689 = vadd.f32 %v4123, %v4660
      %v4690 = vadd.f32 %v4126, %v4670
      %v4691 = vrot.slane %v4553, 2
      %v4692 = vrot.slane %v4561, 2
      %v4693 = vrot.slane %v4569, 2
      %v4694 = vrot.slane %v4577, 2
      %v4695 = vrot.slane %v4585, 2
      %v4696 = vrot.slane %v4593, 2
      %v4697 = vrot.slane %v4601, 2
      %v4698 = vrot.slane %v4609, 2
      %v4699 = vrot.slane %v4617, 2
      %v4700 = vrot.slane %v4625, 2
      %v4701 = vrot.slane %v4556, 2
      %v4702 = vrot.slane %v4564, 2
      %v4703 = vrot.slane %v4572, 2
      %v4704 = vrot.slane %v4580, 2
      %v4705 = vrot.slane %v4588, 2
      %v4706 = vrot.slane %v4596, 2
      %v4707 = vrot.slane %v4604, 2
      %v4708 = vrot.slane %v4612, 2
      %v4709 = vrot.slane %v4620, 2
      %v4710 = vrot.slane %v4628, 2
      %v4711 = vsel %vm2495, %v4691, %v4701
      %v4712 = vsel %vm2495, %v4692, %v4702
      %v4713 = vsel %vm2495, %v4693, %v4703
      %v4714 = vsel %vm2495, %v4694, %v4704
      %v4715 = vsel %vm2495, %v4695, %v4705
      %v4716 = vsel %vm2495, %v4696, %v4706
      %v4717 = vsel %vm2495, %v4697, %v4707
      %v4718 = vsel %vm2495, %v4698, %v4708
      %v4719 = vsel %vm2495, %v4699, %v4709
      %v4720 = vsel %vm2495, %v4700, %v4710
      %v4721 = vsel %vm2495, %v4701, %v4691
      %v4722 = vsel %vm2495, %v4702, %v4692
      %v4723 = vsel %vm2495, %v4703, %v4693
      %v4724 = vsel %vm2495, %v4704, %v4694
      %v4725 = vsel %vm2495, %v4705, %v4695
      %v4726 = vsel %vm2495, %v4706, %v4696
      %v4727 = vsel %vm2495, %v4707, %v4697
      %v4728 = vsel %vm2495, %v4708, %v4698
      %v4729 = vsel %vm2495, %v4709, %v4699
      %v4730 = vsel %vm2495, %v4710, %v4700
      %v4731 = vadd.f32 %v4671, %v4711
      %v4732 = vadd.f32 %v4672, %v4721
      %v4733 = vadd.f32 %v4673, %v4712
      %v4734 = vadd.f32 %v4674, %v4722
      %v4735 = vadd.f32 %v4675, %v4713
      %v4736 = vadd.f32 %v4676, %v4723
      %v4737 = vadd.f32 %v4677, %v4714
      %v4738 = vadd.f32 %v4678, %v4724
      %v4739 = vadd.f32 %v4679, %v4715
      %v4740 = vadd.f32 %v4680, %v4725
      %v4741 = vadd.f32 %v4681, %v4716
      %v4742 = vadd.f32 %v4682, %v4726
      %v4743 = vadd.f32 %v4683, %v4717
      %v4744 = vadd.f32 %v4684, %v4727
      %v4745 = vadd.f32 %v4685, %v4718
      %v4746 = vadd.f32 %v4686, %v4728
      %v4747 = vadd.f32 %v4687, %v4719
      %v4748 = vadd.f32 %v4688, %v4729
      %v4749 = vadd.f32 %v4689, %v4720
      %v4750 = vadd.f32 %v4690, %v4730
      %s4751 = scalar_lea.vmem %s2, 6
      %v4752 = vld [vmem:[%s4751] sm:$0x1]
      %v4754 = vlaneseq
      %v4755 = vshrl.u32 %v4754, 7
      %v4756 = vsub.s32 0, %v4755
      %v4757 = vrot.slane %v4752, %v4756
      %v4759 = vadd.f32 %v4731, %v4757
      %v4760 = vadd.f32 %v4732, %v4757
      %v4761 = vadd.f32 %v4733, %v4757
      %v4762 = vadd.f32 %v4734, %v4757
      %v4763 = vadd.f32 %v4735, %v4757
      %v4764 = vadd.f32 %v4736, %v4757
      %v4765 = vadd.f32 %v4737, %v4757
      %v4766 = vadd.f32 %v4738, %v4757
      %v4767 = vadd.f32 %v4739, %v4757
      %v4768 = vadd.f32 %v4740, %v4757
      %v4769 = vadd.f32 %v4741, %v4757
      %v4770 = vadd.f32 %v4742, %v4757
      %v4771 = vadd.f32 %v4743, %v4757
      %v4772 = vadd.f32 %v4744, %v4757
      %v4773 = vadd.f32 %v4745, %v4757
      %v4774 = vadd.f32 %v4746, %v4757
      %v4775 = vadd.f32 %v4747, %v4757
      %v4776 = vadd.f32 %v4748, %v4757
      %v4777 = vadd.f32 %v4749, %v4757
      %v4778 = vadd.f32 %v4750, %v4757
      %v4779 = vmul.f32 %v4759, 0.2
      %v4780 = vmul.f32 %v4760, 0.2
      %v4781 = vmul.f32 %v4761, 0.2
      %v4782 = vmul.f32 %v4762, 0.2
      %v4783 = vmul.f32 %v4763, 0.2
      %v4784 = vmul.f32 %v4764, 0.2
      %v4785 = vmul.f32 %v4765, 0.2
      %v4786 = vmul.f32 %v4766, 0.2
      %v4787 = vmul.f32 %v4767, 0.2
      %v4788 = vmul.f32 %v4768, 0.2
      %v4789 = vmul.f32 %v4769, 0.2
      %v4790 = vmul.f32 %v4770, 0.2
      %v4791 = vmul.f32 %v4771, 0.2
      %v4792 = vmul.f32 %v4772, 0.2
      %v4793 = vmul.f32 %v4773, 0.2
      %v4794 = vmul.f32 %v4774, 0.2
      %v4795 = vmul.f32 %v4775, 0.2
      %v4796 = vmul.f32 %v4776, 0.2
      %v4797 = vmul.f32 %v4777, 0.2
      %v4798 = vmul.f32 %v4778, 0.2
      %v4799 = vmax.f32 %v4759, %v4779
      %v4800 = vmax.f32 %v4760, %v4780
      %v4801 = vmax.f32 %v4761, %v4781
      %v4802 = vmax.f32 %v4762, %v4782
      %v4803 = vmax.f32 %v4763, %v4783
      %v4804 = vmax.f32 %v4764, %v4784
      %v4805 = vmax.f32 %v4765, %v4785
      %v4806 = vmax.f32 %v4766, %v4786
      %v4807 = vmax.f32 %v4767, %v4787
      %v4808 = vmax.f32 %v4768, %v4788
      %v4809 = vmax.f32 %v4769, %v4789
      %v4810 = vmax.f32 %v4770, %v4790
      %v4811 = vmax.f32 %v4771, %v4791
      %v4812 = vmax.f32 %v4772, %v4792
      %v4813 = vmax.f32 %v4773, %v4793
      %v4814 = vmax.f32 %v4774, %v4794
      %v4815 = vmax.f32 %v4775, %v4795
      %v4816 = vmax.f32 %v4776, %v4796
      %v4817 = vmax.f32 %v4777, %v4797
      %v4818 = vmax.f32 %v4778, %v4798
      %s4819 = scalar_lea.vmem %s2, 7
      %v4820 = vld [vmem:[%s4819] sm:$0x1]
      %v4822 = vlaneseq
      %v4823 = vshrl.u32 %v4822, 7
      %v4824 = vsub.s32 0, %v4823
      %v4825 = vrot.slane %v4820, %v4824
      %v4827 = vmul.f32 %v4799, %v4825
      %v4828 = vmul.f32 %v4800, %v4825
      %v4829 = vmul.f32 %v4801, %v4825
      %v4830 = vmul.f32 %v4802, %v4825
      %v4831 = vmul.f32 %v4803, %v4825
      %v4832 = vmul.f32 %v4804, %v4825
      %v4833 = vmul.f32 %v4805, %v4825
      %v4834 = vmul.f32 %v4806, %v4825
      %v4835 = vmul.f32 %v4807, %v4825
      %v4836 = vmul.f32 %v4808, %v4825
      %v4837 = vmul.f32 %v4809, %v4825
      %v4838 = vmul.f32 %v4810, %v4825
      %v4839 = vmul.f32 %v4811, %v4825
      %v4840 = vmul.f32 %v4812, %v4825
      %v4841 = vmul.f32 %v4813, %v4825
      %v4842 = vmul.f32 %v4814, %v4825
      %v4843 = vmul.f32 %v4815, %v4825
      %v4844 = vmul.f32 %v4816, %v4825
      %v4845 = vmul.f32 %v4817, %v4825
      %v4846 = vmul.f32 %v4818, %v4825
      %s4847 = scalar_lea.vmem %s2, 8
      %v4848 = vld [vmem:[%s4847] sm:$0x1]
      %v4850 = vlaneseq
      %v4851 = vshrl.u32 %v4850, 7
      %v4852 = vsub.s32 0, %v4851
      %v4853 = vrot.slane %v4848, %v4852
      %v4855 = vadd.f32 %v4827, %v4853
      %v4856 = vadd.f32 %v4828, %v4853
      %v4857 = vadd.f32 %v4829, %v4853
      %v4858 = vadd.f32 %v4830, %v4853
      %v4859 = vadd.f32 %v4831, %v4853
      %v4860 = vadd.f32 %v4832, %v4853
      %v4861 = vadd.f32 %v4833, %v4853
      %v4862 = vadd.f32 %v4834, %v4853
      %v4863 = vadd.f32 %v4835, %v4853
      %v4864 = vadd.f32 %v4836, %v4853
      %v4865 = vadd.f32 %v4837, %v4853
      %v4866 = vadd.f32 %v4838, %v4853
      %v4867 = vadd.f32 %v4839, %v4853
      %v4868 = vadd.f32 %v4840, %v4853
      %v4869 = vadd.f32 %v4841, %v4853
      %v4870 = vadd.f32 %v4842, %v4853
      %v4871 = vadd.f32 %v4843, %v4853
      %v4872 = vadd.f32 %v4844, %v4853
      %v4873 = vadd.f32 %v4845, %v4853
      %v4874 = vadd.f32 %v4846, %v4853
      %v4875 = vpack.c.bf16 %v4856, %v4855
      %v4876 = vpack.c.bf16 %v4858, %v4857
      %v4877 = vpack.c.bf16 %v4860, %v4859
      %v4878 = vpack.c.bf16 %v4862, %v4861
      %v4879 = vpack.c.bf16 %v4864, %v4863
      %v4880 = vpack.c.bf16 %v4866, %v4865
      %v4881 = vpack.c.bf16 %v4868, %v4867
      %v4882 = vpack.c.bf16 %v4870, %v4869
      %v4883 = vpack.c.bf16 %v4872, %v4871
      %v4884 = vpack.c.bf16 %v4874, %v4873
      %s4885 = scalar_lea.vmem [#allocation2], 1728
      %v4886 = vld [vmem:[%s4885] sm:$0xff]
      %v4887 = vld [vmem:[%s4885 + $0x8] sm:$0xff]
      %v4888 = vld [vmem:[%s4885 + $0x10] sm:$0xff]
      %v4889 = vld [vmem:[%s4885 + $0x18] sm:$0xff]
      %v4890 = vld [vmem:[%s4885 + $0x20] sm:$0xff]
      %v4891 = vld [vmem:[%s4885 + $0x28] sm:$0xff]
      %v4892 = vld [vmem:[%s4885 + $0x30] sm:$0xff]
      %v4893 = vld [vmem:[%s4885 + $0x38] sm:$0xff]
      %v4894 = vld [vmem:[%s4885 + $0x40] sm:$0xff]
      %v4895 = vld [vmem:[%s4885 + $0x48] sm:$0xff]
      %v4896 = vld [vmem:[%s4885 + $0x50] sm:$0xff]
      %v4897 = vld [vmem:[%s4885 + $0x58] sm:$0xff]
      %v4898 = vld [vmem:[%s4885 + $0x60] sm:$0xff]
      %v4899 = vld [vmem:[%s4885 + $0x68] sm:$0xff]
      %v4900 = vld [vmem:[%s4885 + $0x70] sm:$0xff]
      %v4901 = vld [vmem:[%s4885 + $0x78] sm:$0xff]
      %v4902 = vld [vmem:[%s4885 + $0x80] sm:$0xff]
      %v4903 = vld [vmem:[%s4885 + $0x88] sm:$0xff]
      %v4904 = vld [vmem:[%s4885 + $0x90] sm:$0xff]
      %v4905 = vld [vmem:[%s4885 + $0x98] sm:$0xff]
      %v4906 = vld [vmem:[%s4885 + $0xa0] sm:$0xff]
      %v4907 = vld [vmem:[%s4885 + $0xa8] sm:$0xff]
      %v4908 = vld [vmem:[%s4885 + $0xb0] sm:$0xff]
      %v4909 = vld [vmem:[%s4885 + $0xb8] sm:$0xff]
      %4910 = vmatprep.subr.bf16.mxu0 0
      %4911 = vmatpush1.bf16.msra.mxu0 %v4886
      %4912 = vmatprep.subr.bf16.mxu0 0
      %4913 = vmatpush1.bf16.msra.mxu0 %v4887
      %4914 = vmatprep.subr.bf16.mxu0 0
      %4915 = vmatpush1.bf16.msra.mxu0 %v4888
      %4916 = vmatprep.subr.bf16.mxu0 0
      %4917 = vmatpush1.bf16.msra.mxu0 %v4889
      %4918 = vmatprep.subr.bf16.mxu0 0
      %4919 = vmatpush1.bf16.msra.mxu0 %v4890
      %4920 = vmatprep.subr.bf16.mxu0 0
      %4921 = vmatpush1.bf16.msra.mxu0 %v4891
      %4922 = vmatprep.subr.bf16.mxu0 0
      %4923 = vmatpush1.bf16.msra.mxu0 %v4892
      %4924 = vmatprep.subr.bf16.mxu0 0
      %4925 = vmatpush1.bf16.msra.mxu0 %v4893
      %4926 = vmatprep.subr.bf16.mxu0 0
      %4927 = vmatpush1.bf16.msra.mxu0 %v4894
      %4928 = vmatprep.subr.bf16.mxu0 0
      %4929 = vmatpush1.bf16.msra.mxu0 %v4895
      %4930 = vmatprep.subr.bf16.mxu0 0
      %4931 = vmatpush1.bf16.msra.mxu0 %v4896
      %4932 = vmatprep.subr.bf16.mxu0 0
      %4933 = vmatpush1.bf16.msra.mxu0 %v4897
      %4934 = vmatprep.subr.bf16.mxu0 0
      %4935 = vmatpush1.bf16.msra.mxu0 %v4898
      %4936 = vmatprep.subr.bf16.mxu0 0
      %4937 = vmatpush1.bf16.msra.mxu0 %v4899
      %4938 = vmatprep.subr.bf16.mxu0 0
      %4939 = vmatpush1.bf16.msra.mxu0 %v4900
      %4940 = vmatprep.subr.bf16.mxu0 0
      %4941 = vmatpush1.bf16.msra.mxu0 %v4901
      %4942 = vmatprep.mubr.bf16.mxu0 %v4876
      %4943 = vmatmul.mubr.bf16.gmra.mrb[0].mxu0 %v4875
      %v4944 = vpop.f32.mrb[0].mxu0
      %v4945 = vadd.f32 0.0, %v4944
      %v4946 = vpop.f32.mrb[0].mxu0
      %v4947 = vpop.f32.mrb[0].mxu0
      %v4948 = vadd.f32 0.0, %v4947
      %v4949 = vpop.f32.mrb[0].mxu0
      %4950 = vmatprep.mubr.bf16.mxu0 %v4877
      %4951 = vmatmul.mubr.bf16.gmra.mrb[0].mxu0 %v4876
      %v4952 = vpop.f32.mrb[0].mxu0
      %v4953 = vadd.f32 0.0, %v4952
      %v4954 = vpop.f32.mrb[0].mxu0
      %v4955 = vpop.f32.mrb[0].mxu0
      %v4956 = vadd.f32 0.0, %v4955
      %v4957 = vpop.f32.mrb[0].mxu0
      %4958 = vmatprep.mubr.bf16.mxu0 %v4878
      %4959 = vmatmul.mubr.bf16.gmra.mrb[0].mxu0 %v4877
      %v4960 = vpop.f32.mrb[0].mxu0
      %v4961 = vadd.f32 0.0, %v4960
      %v4962 = vpop.f32.mrb[0].mxu0
      %v4963 = vpop.f32.mrb[0].mxu0
      %v4964 = vadd.f32 0.0, %v4963
      %v4965 = vpop.f32.mrb[0].mxu0
      %4966 = vmatprep.mubr.bf16.mxu0 %v4879
      %4967 = vmatmul.mubr.bf16.gmra.mrb[0].mxu0 %v4878
      %v4968 = vpop.f32.mrb[0].mxu0
      %v4969 = vadd.f32 0.0, %v4968
      %v4970 = vpop.f32.mrb[0].mxu0
      %v4971 = vpop.f32.mrb[0].mxu0
      %v4972 = vadd.f32 0.0, %v4971
      %v4973 = vpop.f32.mrb[0].mxu0
      %4974 = vmatprep.mubr.bf16.mxu0 %v4880
      %4975 = vmatmul.mubr.bf16.gmra.mrb[0].mxu0 %v4879
      %v4976 = vpop.f32.mrb[0].mxu0
      %v4977 = vadd.f32 0.0, %v4976
      %v4978 = vpop.f32.mrb[0].mxu0
      %v4979 = vpop.f32.mrb[0].mxu0
      %v4980 = vadd.f32 0.0, %v4979
      %v4981 = vpop.f32.mrb[0].mxu0
      %4982 = vmatprep.mubr.bf16.mxu0 %v4881
      %4983 = vmatmul.mubr.bf16.gmra.mrb[0].mxu0 %v4880
      %v4984 = vpop.f32.mrb[0].mxu0
      %v4985 = vadd.f32 0.0, %v4984
      %v4986 = vpop.f32.mrb[0].mxu0
      %v4987 = vpop.f32.mrb[0].mxu0
      %v4988 = vadd.f32 0.0, %v4987
      %v4989 = vpop.f32.mrb[0].mxu0
      %4990 = vmatprep.mubr.bf16.mxu0 %v4882
      %4991 = vmatmul.mubr.bf16.gmra.mrb[0].mxu0 %v4881
      %v4992 = vpop.f32.mrb[0].mxu0
      %v4993 = vadd.f32 0.0, %v4992
      %v4994 = vpop.f32.mrb[0].mxu0
      %v4995 = vpop.f32.mrb[0].mxu0
      %v4996 = vadd.f32 0.0, %v4995
      %v4997 = vpop.f32.mrb[0].mxu0
      %4998 = vmatprep.mubr.bf16.mxu0 %v4883
      %4999 = vmatmul.mubr.bf16.gmra.mrb[0].mxu0 %v4882
      %v5000 = vpop.f32.mrb[0].mxu0
      %v5001 = vadd.f32 0.0, %v5000
      %v5002 = vpop.f32.mrb[0].mxu0
      %v5003 = vpop.f32.mrb[0].mxu0
      %v5004 = vadd.f32 0.0, %v5003
      %v5005 = vpop.f32.mrb[0].mxu0
      %5006 = vdwg.mxu0
      %5007 = vmatprep.subr.bf16.mxu0 0
      %5008 = vmatpush1.bf16.msra.mxu0 %v4902
      %5009 = vmatprep.subr.bf16.mxu0 0
      %5010 = vmatpush1.bf16.msra.mxu0 %v4903
      %5011 = vmatprep.subr.bf16.mxu0 0
      %5012 = vmatpush1.bf16.msra.mxu0 %v4904
      %5013 = vmatprep.subr.bf16.mxu0 0
      %5014 = vmatpush1.bf16.msra.mxu0 %v4905
      %5015 = vmatprep.subr.bf16.mxu0 0
      %5016 = vmatpush1.bf16.msra.mxu0 %v4906
      %5017 = vmatprep.subr.bf16.mxu0 0
      %5018 = vmatpush1.bf16.msra.mxu0 %v4907
      %5019 = vmatprep.subr.bf16.mxu0 0
      %5020 = vmatpush1.bf16.msra.mxu0 %v4908
      %5021 = vmatprep.subr.bf16.mxu0 0
      %5022 = vmatpush1.bf16.msra.mxu0 %v4909
      %5023 = vmatprep.subr.bf16.mxu0 0
      %5024 = vmatpush1.bf16.msra.mxu0 0
      %5025 = vmatprep.subr.bf16.mxu0 0
      %5026 = vmatpush1.bf16.msra.mxu0 0
      %5027 = vmatprep.subr.bf16.mxu0 0
      %5028 = vmatpush1.bf16.msra.mxu0 0
      %5029 = vmatprep.subr.bf16.mxu0 0
      %5030 = vmatpush1.bf16.msra.mxu0 0
      %5031 = vmatprep.subr.bf16.mxu0 0
      %5032 = vmatpush1.bf16.msra.mxu0 0
      %5033 = vmatprep.subr.bf16.mxu0 0
      %5034 = vmatpush1.bf16.msra.mxu0 0
      %5035 = vmatprep.subr.bf16.mxu0 0
      %5036 = vmatpush1.bf16.msra.mxu0 0
      %5037 = vmatprep.subr.bf16.mxu0 0
      %5038 = vmatpush1.bf16.msra.mxu0 0
      %5039 = vmatprep.mubr.bf16.mxu0 0
      %5040 = vmatmul.mubr.bf16.gmra.mrb[0].mxu0 %v4877
      %v5041 = vpop.f32.mrb[0].mxu0
      %v5042 = vadd.f32 %v4945, %v5041
      %v5043 = vpop.f32.mrb[0].mxu0
      %v5044 = vpop.f32.mrb[0].mxu0
      %v5045 = vadd.f32 %v4948, %v5044
      %v5046 = vpop.f32.mrb[0].mxu0
      %5047 = vmatprep.mubr.bf16.mxu0 0
      %5048 = vmatmul.mubr.bf16.gmra.mrb[0].mxu0 %v4878
      %v5049 = vpop.f32.mrb[0].mxu0
      %v5050 = vadd.f32 %v4953, %v5049
      %v5051 = vpop.f32.mrb[0].mxu0
      %v5052 = vpop.f32.mrb[0].mxu0
      %v5053 = vadd.f32 %v4956, %v5052
      %v5054 = vpop.f32.mrb[0].mxu0
      %5055 = vmatprep.mubr.bf16.mxu0 0
      %5056 = vmatmul.mubr.bf16.gmra.mrb[0].mxu0 %v4879
      %v5057 = vpop.f32.mrb[0].mxu0
      %v5058 = vadd.f32 %v4961, %v5057
      %v5059 = vpop.f32.mrb[0].mxu0
      %v5060 = vpop.f32.mrb[0].mxu0
      %v5061 = vadd.f32 %v4964, %v5060
      %v5062 = vpop.f32.mrb[0].mxu0
      %5063 = vmatprep.mubr.bf16.mxu0 0
      %5064 = vmatmul.mubr.bf16.gmra.mrb[0].mxu0 %v4880
      %v5065 = vpop.f32.mrb[0].mxu0
      %v5066 = vadd.f32 %v4969, %v5065
      %v5067 = vpop.f32.mrb[0].mxu0
      %v5068 = vpop.f32.mrb[0].mxu0
      %v5069 = vadd.f32 %v4972, %v5068
      %v5070 = vpop.f32.mrb[0].mxu0
      %5071 = vmatprep.mubr.bf16.mxu0 0
      %5072 = vmatmul.mubr.bf16.gmra.mrb[0].mxu0 %v4881
      %v5073 = vpop.f32.mrb[0].mxu0
      %v5074 = vadd.f32 %v4977, %v5073
      %v5075 = vpop.f32.mrb[0].mxu0
      %v5076 = vpop.f32.mrb[0].mxu0
      %v5077 = vadd.f32 %v4980, %v5076
      %v5078 = vpop.f32.mrb[0].mxu0
      %5079 = vmatprep.mubr.bf16.mxu0 0
      %5080 = vmatmul.mubr.bf16.gmra.mrb[0].mxu0 %v4882
      %v5081 = vpop.f32.mrb[0].mxu0
      %v5082 = vadd.f32 %v4985, %v5081
      %v5083 = vpop.f32.mrb[0].mxu0
      %v5084 = vpop.f32.mrb[0].mxu0
      %v5085 = vadd.f32 %v4988, %v5084
      %v5086 = vpop.f32.mrb[0].mxu0
      %5087 = vmatprep.mubr.bf16.mxu0 0
      %5088 = vmatmul.mubr.bf16.gmra.mrb[0].mxu0 %v4883
      %v5089 = vpop.f32.mrb[0].mxu0
      %v5090 = vadd.f32 %v4993, %v5089
      %v5091 = vpop.f32.mrb[0].mxu0
      %v5092 = vpop.f32.mrb[0].mxu0
      %v5093 = vadd.f32 %v4996, %v5092
      %v5094 = vpop.f32.mrb[0].mxu0
      %5095 = vmatprep.mubr.bf16.mxu0 0
      %5096 = vmatmul.mubr.bf16.gmra.mrb[0].mxu0 %v4884
      %v5097 = vpop.f32.mrb[0].mxu0
      %v5098 = vadd.f32 %v5001, %v5097
      %v5099 = vpop.f32.mrb[0].mxu0
      %v5100 = vpop.f32.mrb[0].mxu0
      %v5101 = vadd.f32 %v5004, %v5100
      %v5102 = vpop.f32.mrb[0].mxu0
      %5103 = vdwg.mxu0
      %s5104 = scalar_lea.vmem [#allocation2], 1920
      %v5105 = vld [vmem:[%s5104] sm:$0xff]
      %v5106 = vld [vmem:[%s5104 + $0x8] sm:$0xff]
      %v5107 = vld [vmem:[%s5104 + $0x10] sm:$0xff]
      %v5108 = vld [vmem:[%s5104 + $0x18] sm:$0xff]
      %v5109 = vld [vmem:[%s5104 + $0x20] sm:$0xff]
      %v5110 = vld [vmem:[%s5104 + $0x28] sm:$0xff]
      %v5111 = vld [vmem:[%s5104 + $0x30] sm:$0xff]
      %v5112 = vld [vmem:[%s5104 + $0x38] sm:$0xff]
      %v5113 = vld [vmem:[%s5104 + $0x40] sm:$0xff]
      %v5114 = vld [vmem:[%s5104 + $0x48] sm:$0xff]
      %v5115 = vld [vmem:[%s5104 + $0x50] sm:$0xff]
      %v5116 = vld [vmem:[%s5104 + $0x58] sm:$0xff]
      %v5117 = vld [vmem:[%s5104 + $0x60] sm:$0xff]
      %v5118 = vld [vmem:[%s5104 + $0x68] sm:$0xff]
      %v5119 = vld [vmem:[%s5104 + $0x70] sm:$0xff]
      %v5120 = vld [vmem:[%s5104 + $0x78] sm:$0xff]
      %v5121 = vld [vmem:[%s5104 + $0x80] sm:$0xff]
      %v5122 = vld [vmem:[%s5104 + $0x88] sm:$0xff]
      %v5123 = vld [vmem:[%s5104 + $0x90] sm:$0xff]
      %v5124 = vld [vmem:[%s5104 + $0x98] sm:$0xff]
      %v5125 = vld [vmem:[%s5104 + $0xa0] sm:$0xff]
      %v5126 = vld [vmem:[%s5104 + $0xa8] sm:$0xff]
      %v5127 = vld [vmem:[%s5104 + $0xb0] sm:$0xff]
      %v5128 = vld [vmem:[%s5104 + $0xb8] sm:$0xff]
      %5129 = vmatprep.subr.bf16.mxu0 0
      %5130 = vmatpush1.bf16.msra.mxu0 %v5105
      %5131 = vmatprep.subr.bf16.mxu0 0
      %5132 = vmatpush1.bf16.msra.mxu0 %v5106
      %5133 = vmatprep.subr.bf16.mxu0 0
      %5134 = vmatpush1.bf16.msra.mxu0 %v5107
      %5135 = vmatprep.subr.bf16.mxu0 0
      %5136 = vmatpush1.bf16.msra.mxu0 %v5108
      %5137 = vmatprep.subr.bf16.mxu0 0
      %5138 = vmatpush1.bf16.msra.mxu0 %v5109
      %5139 = vmatprep.subr.bf16.mxu0 0
      %5140 = vmatpush1.bf16.msra.mxu0 %v5110
      %5141 = vmatprep.subr.bf16.mxu0 0
      %5142 = vmatpush1.bf16.msra.mxu0 %v5111
      %5143 = vmatprep.subr.bf16.mxu0 0
      %5144 = vmatpush1.bf16.msra.mxu0 %v5112
      %5145 = vmatprep.subr.bf16.mxu0 0
      %5146 = vmatpush1.bf16.msra.mxu0 %v5113
      %5147 = vmatprep.subr.bf16.mxu0 0
      %5148 = vmatpush1.bf16.msra.mxu0 %v5114
      %5149 = vmatprep.subr.bf16.mxu0 0
      %5150 = vmatpush1.bf16.msra.mxu0 %v5115
      %5151 = vmatprep.subr.bf16.mxu0 0
      %5152 = vmatpush1.bf16.msra.mxu0 %v5116
      %5153 = vmatprep.subr.bf16.mxu0 0
      %5154 = vmatpush1.bf16.msra.mxu0 %v5117
      %5155 = vmatprep.subr.bf16.mxu0 0
      %5156 = vmatpush1.bf16.msra.mxu0 %v5118
      %5157 = vmatprep.subr.bf16.mxu0 0
      %5158 = vmatpush1.bf16.msra.mxu0 %v5119
      %5159 = vmatprep.subr.bf16.mxu0 0
      %5160 = vmatpush1.bf16.msra.mxu0 %v5120
      %5161 = vmatprep.mubr.bf16.mxu0 %v4876
      %5162 = vmatmul.mubr.bf16.gmra.mrb[0].mxu0 %v4875
      %v5163 = vpop.f32.mrb[0].mxu0
      %v5164 = vadd.f32 0.0, %v5163
      %v5165 = vpop.f32.mrb[0].mxu0
      %v5166 = vpop.f32.mrb[0].mxu0
      %v5167 = vadd.f32 0.0, %v5166
      %v5168 = vpop.f32.mrb[0].mxu0
      %5169 = vmatprep.mubr.bf16.mxu0 %v4877
      %5170 = vmatmul.mubr.bf16.gmra.mrb[0].mxu0 %v4876
      %v5171 = vpop.f32.mrb[0].mxu0
      %v5172 = vadd.f32 0.0, %v5171
      %v5173 = vpop.f32.mrb[0].mxu0
      %v5174 = vpop.f32.mrb[0].mxu0
      %v5175 = vadd.f32 0.0, %v5174
      %v5176 = vpop.f32.mrb[0].mxu0
      %5177 = vmatprep.mubr.bf16.mxu0 %v4878
      %5178 = vmatmul.mubr.bf16.gmra.mrb[0].mxu0 %v4877
      %v5179 = vpop.f32.mrb[0].mxu0
      %v5180 = vadd.f32 0.0, %v5179
      %v5181 = vpop.f32.mrb[0].mxu0
      %v5182 = vpop.f32.mrb[0].mxu0
      %v5183 = vadd.f32 0.0, %v5182
      %v5184 = vpop.f32.mrb[0].mxu0
      %5185 = vmatprep.mubr.bf16.mxu0 %v4879
      %5186 = vmatmul.mubr.bf16.gmra.mrb[0].mxu0 %v4878
      %v5187 = vpop.f32.mrb[0].mxu0
      %v5188 = vadd.f32 0.0, %v5187
      %v5189 = vpop.f32.mrb[0].mxu0
      %v5190 = vpop.f32.mrb[0].mxu0
      %v5191 = vadd.f32 0.0, %v5190
      %v5192 = vpop.f32.mrb[0].mxu0
      %5193 = vmatprep.mubr.bf16.mxu0 %v4880
      %5194 = vmatmul.mubr.bf16.gmra.mrb[0].mxu0 %v4879
      %v5195 = vpop.f32.mrb[0].mxu0
      %v5196 = vadd.f32 0.0, %v5195
      %v5197 = vpop.f32.mrb[0].mxu0
      %v5198 = vpop.f32.mrb[0].mxu0
      %v5199 = vadd.f32 0.0, %v5198
      %v5200 = vpop.f32.mrb[0].mxu0
      %5201 = vmatprep.mubr.bf16.mxu0 %v4881
      %5202 = vmatmul.mubr.bf16.gmra.mrb[0].mxu0 %v4880
      %v5203 = vpop.f32.mrb[0].mxu0
      %v5204 = vadd.f32 0.0, %v5203
      %v5205 = vpop.f32.mrb[0].mxu0
      %v5206 = vpop.f32.mrb[0].mxu0
      %v5207 = vadd.f32 0.0, %v5206
      %v5208 = vpop.f32.mrb[0].mxu0
      %5209 = vmatprep.mubr.bf16.mxu0 %v4882
      %5210 = vmatmul.mubr.bf16.gmra.mrb[0].mxu0 %v4881
      %v5211 = vpop.f32.mrb[0].mxu0
      %v5212 = vadd.f32 0.0, %v5211
      %v5213 = vpop.f32.mrb[0].mxu0
      %v5214 = vpop.f32.mrb[0].mxu0
      %v5215 = vadd.f32 0.0, %v5214
      %v5216 = vpop.f32.mrb[0].mxu0
      %5217 = vmatprep.mubr.bf16.mxu0 %v4883
      %5218 = vmatmul.mubr.bf16.gmra.mrb[0].mxu0 %v4882
      %v5219 = vpop.f32.mrb[0].mxu0
      %v5220 = vadd.f32 0.0, %v5219
      %v5221 = vpop.f32.mrb[0].mxu0
      %v5222 = vpop.f32.mrb[0].mxu0
      %v5223 = vadd.f32 0.0, %v5222
      %v5224 = vpop.f32.mrb[0].mxu0
      %5225 = vdwg.mxu0
      %5226 = vmatprep.subr.bf16.mxu0 0
      %5227 = vmatpush1.bf16.msra.mxu0 %v5121
      %5228 = vmatprep.subr.bf16.mxu0 0
      %5229 = vmatpush1.bf16.msra.mxu0 %v5122
      %5230 = vmatprep.subr.bf16.mxu0 0
      %5231 = vmatpush1.bf16.msra.mxu0 %v5123
      %5232 = vmatprep.subr.bf16.mxu0 0
      %5233 = vmatpush1.bf16.msra.mxu0 %v5124
      %5234 = vmatprep.subr.bf16.mxu0 0
      %5235 = vmatpush1.bf16.msra.mxu0 %v5125
      %5236 = vmatprep.subr.bf16.mxu0 0
      %5237 = vmatpush1.bf16.msra.mxu0 %v5126
      %5238 = vmatprep.subr.bf16.mxu0 0
      %5239 = vmatpush1.bf16.msra.mxu0 %v5127
      %5240 = vmatprep.subr.bf16.mxu0 0
      %5241 = vmatpush1.bf16.msra.mxu0 %v5128
      %5242 = vmatprep.subr.bf16.mxu0 0
      %5243 = vmatpush1.bf16.msra.mxu0 0
      %5244 = vmatprep.subr.bf16.mxu0 0
      %5245 = vmatpush1.bf16.msra.mxu0 0
      %5246 = vmatprep.subr.bf16.mxu0 0
      %5247 = vmatpush1.bf16.msra.mxu0 0
      %5248 = vmatprep.subr.bf16.mxu0 0
      %5249 = vmatpush1.bf16.msra.mxu0 0
      %5250 = vmatprep.subr.bf16.mxu0 0
      %5251 = vmatpush1.bf16.msra.mxu0 0
      %5252 = vmatprep.subr.bf16.mxu0 0
      %5253 = vmatpush1.bf16.msra.mxu0 0
      %5254 = vmatprep.subr.bf16.mxu0 0
      %5255 = vmatpush1.bf16.msra.mxu0 0
      %5256 = vmatprep.subr.bf16.mxu0 0
      %5257 = vmatpush1.bf16.msra.mxu0 0
      %5258 = vmatprep.mubr.bf16.mxu0 0
      %5259 = vmatmul.mubr.bf16.gmra.mrb[0].mxu0 %v4877
      %v5260 = vpop.f32.mrb[0].mxu0
      %v5261 = vadd.f32 %v5164, %v5260
      %v5262 = vpop.f32.mrb[0].mxu0
      %v5263 = vpop.f32.mrb[0].mxu0
      %v5264 = vadd.f32 %v5167, %v5263
      %v5265 = vpop.f32.mrb[0].mxu0
      %5266 = vmatprep.mubr.bf16.mxu0 0
      %5267 = vmatmul.mubr.bf16.gmra.mrb[0].mxu0 %v4878
      %v5268 = vpop.f32.mrb[0].mxu0
      %v5269 = vadd.f32 %v5172, %v5268
      %v5270 = vpop.f32.mrb[0].mxu0
      %v5271 = vpop.f32.mrb[0].mxu0
      %v5272 = vadd.f32 %v5175, %v5271
      %v5273 = vpop.f32.mrb[0].mxu0
      %5274 = vmatprep.mubr.bf16.mxu0 0
      %5275 = vmatmul.mubr.bf16.gmra.mrb[0].mxu0 %v4879
      %v5276 = vpop.f32.mrb[0].mxu0
      %v5277 = vadd.f32 %v5180, %v5276
      %v5278 = vpop.f32.mrb[0].mxu0
      %v5279 = vpop.f32.mrb[0].mxu0
      %v5280 = vadd.f32 %v5183, %v5279
      %v5281 = vpop.f32.mrb[0].mxu0
      %5282 = vmatprep.mubr.bf16.mxu0 0
      %5283 = vmatmul.mubr.bf16.gmra.mrb[0].mxu0 %v4880
      %v5284 = vpop.f32.mrb[0].mxu0
      %v5285 = vadd.f32 %v5188, %v5284
      %v5286 = vpop.f32.mrb[0].mxu0
      %v5287 = vpop.f32.mrb[0].mxu0
      %v5288 = vadd.f32 %v5191, %v5287
      %v5289 = vpop.f32.mrb[0].mxu0
      %5290 = vmatprep.mubr.bf16.mxu0 0
      %5291 = vmatmul.mubr.bf16.gmra.mrb[0].mxu0 %v4881
      %v5292 = vpop.f32.mrb[0].mxu0
      %v5293 = vadd.f32 %v5196, %v5292
      %v5294 = vpop.f32.mrb[0].mxu0
      %v5295 = vpop.f32.mrb[0].mxu0
      %v5296 = vadd.f32 %v5199, %v5295
      %v5297 = vpop.f32.mrb[0].mxu0
      %5298 = vmatprep.mubr.bf16.mxu0 0
      %5299 = vmatmul.mubr.bf16.gmra.mrb[0].mxu0 %v4882
      %v5300 = vpop.f32.mrb[0].mxu0
      %v5301 = vadd.f32 %v5204, %v5300
      %v5302 = vpop.f32.mrb[0].mxu0
      %v5303 = vpop.f32.mrb[0].mxu0
      %v5304 = vadd.f32 %v5207, %v5303
      %v5305 = vpop.f32.mrb[0].mxu0
      %5306 = vmatprep.mubr.bf16.mxu0 0
      %5307 = vmatmul.mubr.bf16.gmra.mrb[0].mxu0 %v4883
      %v5308 = vpop.f32.mrb[0].mxu0
      %v5309 = vadd.f32 %v5212, %v5308
      %v5310 = vpop.f32.mrb[0].mxu0
      %v5311 = vpop.f32.mrb[0].mxu0
      %v5312 = vadd.f32 %v5215, %v5311
      %v5313 = vpop.f32.mrb[0].mxu0
      %5314 = vmatprep.mubr.bf16.mxu0 0
      %5315 = vmatmul.mubr.bf16.gmra.mrb[0].mxu0 %v4884
      %v5316 = vpop.f32.mrb[0].mxu0
      %v5317 = vadd.f32 %v5220, %v5316
      %v5318 = vpop.f32.mrb[0].mxu0
      %v5319 = vpop.f32.mrb[0].mxu0
      %v5320 = vadd.f32 %v5223, %v5319
      %v5321 = vpop.f32.mrb[0].mxu0
      %5322 = vdwg.mxu0
      %s5323 = scalar_lea.vmem [#allocation2], 2112
      %v5324 = vld [vmem:[%s5323] sm:$0xff]
      %v5325 = vld [vmem:[%s5323 + $0x8] sm:$0xff]
      %v5326 = vld [vmem:[%s5323 + $0x10] sm:$0xff]
      %v5327 = vld [vmem:[%s5323 + $0x18] sm:$0xff]
      %v5328 = vld [vmem:[%s5323 + $0x20] sm:$0xff]
      %v5329 = vld [vmem:[%s5323 + $0x28] sm:$0xff]
      %v5330 = vld [vmem:[%s5323 + $0x30] sm:$0xff]
      %v5331 = vld [vmem:[%s5323 + $0x38] sm:$0xff]
      %v5332 = vld [vmem:[%s5323 + $0x40] sm:$0xff]
      %v5333 = vld [vmem:[%s5323 + $0x48] sm:$0xff]
      %v5334 = vld [vmem:[%s5323 + $0x50] sm:$0xff]
      %v5335 = vld [vmem:[%s5323 + $0x58] sm:$0xff]
      %v5336 = vld [vmem:[%s5323 + $0x60] sm:$0xff]
      %v5337 = vld [vmem:[%s5323 + $0x68] sm:$0xff]
      %v5338 = vld [vmem:[%s5323 + $0x70] sm:$0xff]
      %v5339 = vld [vmem:[%s5323 + $0x78] sm:$0xff]
      %v5340 = vld [vmem:[%s5323 + $0x80] sm:$0xff]
      %v5341 = vld [vmem:[%s5323 + $0x88] sm:$0xff]
      %v5342 = vld [vmem:[%s5323 + $0x90] sm:$0xff]
      %v5343 = vld [vmem:[%s5323 + $0x98] sm:$0xff]
      %v5344 = vld [vmem:[%s5323 + $0xa0] sm:$0xff]
      %v5345 = vld [vmem:[%s5323 + $0xa8] sm:$0xff]
      %v5346 = vld [vmem:[%s5323 + $0xb0] sm:$0xff]
      %v5347 = vld [vmem:[%s5323 + $0xb8] sm:$0xff]
      %5348 = vmatprep.subr.bf16.mxu0 0
      %5349 = vmatpush1.bf16.msra.mxu0 %v5324
      %5350 = vmatprep.subr.bf16.mxu0 0
      %5351 = vmatpush1.bf16.msra.mxu0 %v5325
      %5352 = vmatprep.subr.bf16.mxu0 0
      %5353 = vmatpush1.bf16.msra.mxu0 %v5326
      %5354 = vmatprep.subr.bf16.mxu0 0
      %5355 = vmatpush1.bf16.msra.mxu0 %v5327
      %5356 = vmatprep.subr.bf16.mxu0 0
      %5357 = vmatpush1.bf16.msra.mxu0 %v5328
      %5358 = vmatprep.subr.bf16.mxu0 0
      %5359 = vmatpush1.bf16.msra.mxu0 %v5329
      %5360 = vmatprep.subr.bf16.mxu0 0
      %5361 = vmatpush1.bf16.msra.mxu0 %v5330
      %5362 = vmatprep.subr.bf16.mxu0 0
      %5363 = vmatpush1.bf16.msra.mxu0 %v5331
      %5364 = vmatprep.subr.bf16.mxu0 0
      %5365 = vmatpush1.bf16.msra.mxu0 %v5332
      %5366 = vmatprep.subr.bf16.mxu0 0
      %5367 = vmatpush1.bf16.msra.mxu0 %v5333
      %5368 = vmatprep.subr.bf16.mxu0 0
      %5369 = vmatpush1.bf16.msra.mxu0 %v5334
      %5370 = vmatprep.subr.bf16.mxu0 0
      %5371 = vmatpush1.bf16.msra.mxu0 %v5335
      %5372 = vmatprep.subr.bf16.mxu0 0
      %5373 = vmatpush1.bf16.msra.mxu0 %v5336
      %5374 = vmatprep.subr.bf16.mxu0 0
      %5375 = vmatpush1.bf16.msra.mxu0 %v5337
      %5376 = vmatprep.subr.bf16.mxu0 0
      %5377 = vmatpush1.bf16.msra.mxu0 %v5338
      %5378 = vmatprep.subr.bf16.mxu0 0
      %5379 = vmatpush1.bf16.msra.mxu0 %v5339
      %5380 = vmatprep.mubr.bf16.mxu0 %v4876
      %5381 = vmatmul.mubr.bf16.gmra.mrb[0].mxu0 %v4875
      %v5382 = vpop.f32.mrb[0].mxu0
      %v5383 = vadd.f32 0.0, %v5382
      %v5384 = vpop.f32.mrb[0].mxu0
      %v5385 = vpop.f32.mrb[0].mxu0
      %v5386 = vadd.f32 0.0, %v5385
      %v5387 = vpop.f32.mrb[0].mxu0
      %5388 = vmatprep.mubr.bf16.mxu0 %v4877
      %5389 = vmatmul.mubr.bf16.gmra.mrb[0].mxu0 %v4876
      %v5390 = vpop.f32.mrb[0].mxu0
      %v5391 = vadd.f32 0.0, %v5390
      %v5392 = vpop.f32.mrb[0].mxu0
      %v5393 = vpop.f32.mrb[0].mxu0
      %v5394 = vadd.f32 0.0, %v5393
      %v5395 = vpop.f32.mrb[0].mxu0
      %5396 = vmatprep.mubr.bf16.mxu0 %v4878
      %5397 = vmatmul.mubr.bf16.gmra.mrb[0].mxu0 %v4877
      %v5398 = vpop.f32.mrb[0].mxu0
      %v5399 = vadd.f32 0.0, %v5398
      %v5400 = vpop.f32.mrb[0].mxu0
      %v5401 = vpop.f32.mrb[0].mxu0
      %v5402 = vadd.f32 0.0, %v5401
      %v5403 = vpop.f32.mrb[0].mxu0
      %5404 = vmatprep.mubr.bf16.mxu0 %v4879
      %5405 = vmatmul.mubr.bf16.gmra.mrb[0].mxu0 %v4878
      %v5406 = vpop.f32.mrb[0].mxu0
      %v5407 = vadd.f32 0.0, %v5406
      %v5408 = vpop.f32.mrb[0].mxu0
      %v5409 = vpop.f32.mrb[0].mxu0
      %v5410 = vadd.f32 0.0, %v5409
      %v5411 = vpop.f32.mrb[0].mxu0
      %5412 = vmatprep.mubr.bf16.mxu0 %v4880
      %5413 = vmatmul.mubr.bf16.gmra.mrb[0].mxu0 %v4879
      %v5414 = vpop.f32.mrb[0].mxu0
      %v5415 = vadd.f32 0.0, %v5414
      %v5416 = vpop.f32.mrb[0].mxu0
      %v5417 = vpop.f32.mrb[0].mxu0
      %v5418 = vadd.f32 0.0, %v5417
      %v5419 = vpop.f32.mrb[0].mxu0
      %5420 = vmatprep.mubr.bf16.mxu0 %v4881
      %5421 = vmatmul.mubr.bf16.gmra.mrb[0].mxu0 %v4880
      %v5422 = vpop.f32.mrb[0].mxu0
      %v5423 = vadd.f32 0.0, %v5422
      %v5424 = vpop.f32.mrb[0].mxu0
      %v5425 = vpop.f32.mrb[0].mxu0
      %v5426 = vadd.f32 0.0, %v5425
      %v5427 = vpop.f32.mrb[0].mxu0
      %5428 = vmatprep.mubr.bf16.mxu0 %v4882
      %5429 = vmatmul.mubr.bf16.gmra.mrb[0].mxu0 %v4881
      %v5430 = vpop.f32.mrb[0].mxu0
      %v5431 = vadd.f32 0.0, %v5430
      %v5432 = vpop.f32.mrb[0].mxu0
      %v5433 = vpop.f32.mrb[0].mxu0
      %v5434 = vadd.f32 0.0, %v5433
      %v5435 = vpop.f32.mrb[0].mxu0
      %5436 = vmatprep.mubr.bf16.mxu0 %v4883
      %5437 = vmatmul.mubr.bf16.gmra.mrb[0].mxu0 %v4882
      %v5438 = vpop.f32.mrb[0].mxu0
      %v5439 = vadd.f32 0.0, %v5438
      %v5440 = vpop.f32.mrb[0].mxu0
      %v5441 = vpop.f32.mrb[0].mxu0
      %v5442 = vadd.f32 0.0, %v5441
      %v5443 = vpop.f32.mrb[0].mxu0
      %5444 = vdwg.mxu0
      %5445 = vmatprep.subr.bf16.mxu0 0
      %5446 = vmatpush1.bf16.msra.mxu0 %v5340
      %5447 = vmatprep.subr.bf16.mxu0 0
      %5448 = vmatpush1.bf16.msra.mxu0 %v5341
      %5449 = vmatprep.subr.bf16.mxu0 0
      %5450 = vmatpush1.bf16.msra.mxu0 %v5342
      %5451 = vmatprep.subr.bf16.mxu0 0
      %5452 = vmatpush1.bf16.msra.mxu0 %v5343
      %5453 = vmatprep.subr.bf16.mxu0 0
      %5454 = vmatpush1.bf16.msra.mxu0 %v5344
      %5455 = vmatprep.subr.bf16.mxu0 0
      %5456 = vmatpush1.bf16.msra.mxu0 %v5345
      %5457 = vmatprep.subr.bf16.mxu0 0
      %5458 = vmatpush1.bf16.msra.mxu0 %v5346
      %5459 = vmatprep.subr.bf16.mxu0 0
      %5460 = vmatpush1.bf16.msra.mxu0 %v5347
      %5461 = vmatprep.subr.bf16.mxu0 0
      %5462 = vmatpush1.bf16.msra.mxu0 0
      %5463 = vmatprep.subr.bf16.mxu0 0
      %5464 = vmatpush1.bf16.msra.mxu0 0
      %5465 = vmatprep.subr.bf16.mxu0 0
      %5466 = vmatpush1.bf16.msra.mxu0 0
      %5467 = vmatprep.subr.bf16.mxu0 0
      %5468 = vmatpush1.bf16.msra.mxu0 0
      %5469 = vmatprep.subr.bf16.mxu0 0
      %5470 = vmatpush1.bf16.msra.mxu0 0
      %5471 = vmatprep.subr.bf16.mxu0 0
      %5472 = vmatpush1.bf16.msra.mxu0 0
      %5473 = vmatprep.subr.bf16.mxu0 0
      %5474 = vmatpush1.bf16.msra.mxu0 0
      %5475 = vmatprep.subr.bf16.mxu0 0
      %5476 = vmatpush1.bf16.msra.mxu0 0
      %5477 = vmatprep.mubr.bf16.mxu0 0
      %5478 = vmatmul.mubr.bf16.gmra.mrb[0].mxu0 %v4877
      %v5479 = vpop.f32.mrb[0].mxu0
      %v5480 = vadd.f32 %v5383, %v5479
      %v5481 = vpop.f32.mrb[0].mxu0
      %v5482 = vpop.f32.mrb[0].mxu0
      %v5483 = vadd.f32 %v5386, %v5482
      %v5484 = vpop.f32.mrb[0].mxu0
      %5485 = vmatprep.mubr.bf16.mxu0 0
      %5486 = vmatmul.mubr.bf16.gmra.mrb[0].mxu0 %v4878
      %v5487 = vpop.f32.mrb[0].mxu0
      %v5488 = vadd.f32 %v5391, %v5487
      %v5489 = vpop.f32.mrb[0].mxu0
      %v5490 = vpop.f32.mrb[0].mxu0
      %v5491 = vadd.f32 %v5394, %v5490
      %v5492 = vpop.f32.mrb[0].mxu0
      %5493 = vmatprep.mubr.bf16.mxu0 0
      %5494 = vmatmul.mubr.bf16.gmra.mrb[0].mxu0 %v4879
      %v5495 = vpop.f32.mrb[0].mxu0
      %v5496 = vadd.f32 %v5399, %v5495
      %v5497 = vpop.f32.mrb[0].mxu0
      %v5498 = vpop.f32.mrb[0].mxu0
      %v5499 = vadd.f32 %v5402, %v5498
      %v5500 = vpop.f32.mrb[0].mxu0
      %5501 = vmatprep.mubr.bf16.mxu0 0
      %5502 = vmatmul.mubr.bf16.gmra.mrb[0].mxu0 %v4880
      %v5503 = vpop.f32.mrb[0].mxu0
      %v5504 = vadd.f32 %v5407, %v5503
      %v5505 = vpop.f32.mrb[0].mxu0
      %v5506 = vpop.f32.mrb[0].mxu0
      %v5507 = vadd.f32 %v5410, %v5506
      %v5508 = vpop.f32.mrb[0].mxu0
      %5509 = vmatprep.mubr.bf16.mxu0 0
      %5510 = vmatmul.mubr.bf16.gmra.mrb[0].mxu0 %v4881
      %v5511 = vpop.f32.mrb[0].mxu0
      %v5512 = vadd.f32 %v5415, %v5511
      %v5513 = vpop.f32.mrb[0].mxu0
      %v5514 = vpop.f32.mrb[0].mxu0
      %v5515 = vadd.f32 %v5418, %v5514
      %v5516 = vpop.f32.mrb[0].mxu0
      %5517 = vmatprep.mubr.bf16.mxu0 0
      %5518 = vmatmul.mubr.bf16.gmra.mrb[0].mxu0 %v4882
      %v5519 = vpop.f32.mrb[0].mxu0
      %v5520 = vadd.f32 %v5423, %v5519
      %v5521 = vpop.f32.mrb[0].mxu0
      %v5522 = vpop.f32.mrb[0].mxu0
      %v5523 = vadd.f32 %v5426, %v5522
      %v5524 = vpop.f32.mrb[0].mxu0
      %5525 = vmatprep.mubr.bf16.mxu0 0
      %5526 = vmatmul.mubr.bf16.gmra.mrb[0].mxu0 %v4883
      %v5527 = vpop.f32.mrb[0].mxu0
      %v5528 = vadd.f32 %v5431, %v5527
      %v5529 = vpop.f32.mrb[0].mxu0
      %v5530 = vpop.f32.mrb[0].mxu0
      %v5531 = vadd.f32 %v5434, %v5530
      %v5532 = vpop.f32.mrb[0].mxu0
      %5533 = vmatprep.mubr.bf16.mxu0 0
      %5534 = vmatmul.mubr.bf16.gmra.mrb[0].mxu0 %v4884
      %v5535 = vpop.f32.mrb[0].mxu0
      %v5536 = vadd.f32 %v5439, %v5535
      %v5537 = vpop.f32.mrb[0].mxu0
      %v5538 = vpop.f32.mrb[0].mxu0
      %v5539 = vadd.f32 %v5442, %v5538
      %v5540 = vpop.f32.mrb[0].mxu0
      %5541 = vdwg.mxu0
      %v5542 = vrot.slane %v5261, 1
      %v5543 = vrot.slane %v5269, 1
      %v5544 = vrot.slane %v5277, 1
      %v5545 = vrot.slane %v5285, 1
      %v5546 = vrot.slane %v5293, 1
      %v5547 = vrot.slane %v5301, 1
      %v5548 = vrot.slane %v5309, 1
      %v5549 = vrot.slane %v5317, 1
      %v5550 = vrot.slane %v5264, 1
      %v5551 = vrot.slane %v5272, 1
      %v5552 = vrot.slane %v5280, 1
      %v5553 = vrot.slane %v5288, 1
      %v5554 = vrot.slane %v5296, 1
      %v5555 = vrot.slane %v5304, 1
      %v5556 = vrot.slane %v5312, 1
      %v5557 = vrot.slane %v5320, 1
      %v5558 = vsel %vm2410, %v5542, %v5550
      %v5559 = vsel %vm2410, %v5543, %v5551
      %v5560 = vsel %vm2410, %v5544, %v5552
      %v5561 = vsel %vm2410, %v5545, %v5553
      %v5562 = vsel %vm2410, %v5546, %v5554
      %v5563 = vsel %vm2410, %v5547, %v5555
      %v5564 = vsel %vm2410, %v5548, %v5556
      %v5565 = vsel %vm2410, %v5549, %v5557
      %v5566 = vsel %vm2410, %v5550, %v5542
      %v5567 = vsel %vm2410, %v5551, %v5543
      %v5568 = vsel %vm2410, %v5552, %v5544
      %v5569 = vsel %vm2410, %v5553, %v5545
      %v5570 = vsel %vm2410, %v5554, %v5546
      %v5571 = vsel %vm2410, %v5555, %v5547
      %v5572 = vsel %vm2410, %v5556, %v5548
      %v5573 = vsel %vm2410, %v5557, %v5549
      %v5574 = vadd.f32 %v5042, %v5558
      %v5575 = vadd.f32 %v5045, %v5566
      %v5576 = vadd.f32 %v5050, %v5559
      %v5577 = vadd.f32 %v5053, %v5567
      %v5578 = vadd.f32 %v5058, %v5560
      %v5579 = vadd.f32 %v5061, %v5568
      %v5580 = vadd.f32 %v5066, %v5561
      %v5581 = vadd.f32 %v5069, %v5569
      %v5582 = vadd.f32 %v5074, %v5562
      %v5583 = vadd.f32 %v5077, %v5570
      %v5584 = vadd.f32 %v5082, %v5563
      %v5585 = vadd.f32 %v5085, %v5571
      %v5586 = vadd.f32 %v5090, %v5564
      %v5587 = vadd.f32 %v5093, %v5572
      %v5588 = vadd.f32 %v5098, %v5565
      %v5589 = vadd.f32 %v5101, %v5573
      %v5590 = vrot.slane %v5480, 2
      %v5591 = vrot.slane %v5488, 2
      %v5592 = vrot.slane %v5496, 2
      %v5593 = vrot.slane %v5504, 2
      %v5594 = vrot.slane %v5512, 2
      %v5595 = vrot.slane %v5520, 2
      %v5596 = vrot.slane %v5528, 2
      %v5597 = vrot.slane %v5536, 2
      %v5598 = vrot.slane %v5483, 2
      %v5599 = vrot.slane %v5491, 2
      %v5600 = vrot.slane %v5499, 2
      %v5601 = vrot.slane %v5507, 2
      %v5602 = vrot.slane %v5515, 2
      %v5603 = vrot.slane %v5523, 2
      %v5604 = vrot.slane %v5531, 2
      %v5605 = vrot.slane %v5539, 2
      %v5606 = vsel %vm2495, %v5590, %v5598
      %v5607 = vsel %vm2495, %v5591, %v5599
      %v5608 = vsel %vm2495, %v5592, %v5600
      %v5609 = vsel %vm2495, %v5593, %v5601
      %v5610 = vsel %vm2495, %v5594, %v5602
      %v5611 = vsel %vm2495, %v5595, %v5603
      %v5612 = vsel %vm2495, %v5596, %v5604
      %v5613 = vsel %vm2495, %v5597, %v5605
      %v5614 = vsel %vm2495, %v5598, %v5590
      %v5615 = vsel %vm2495, %v5599, %v5591
      %v5616 = vsel %vm2495, %v5600, %v5592
      %v5617 = vsel %vm2495, %v5601, %v5593
      %v5618 = vsel %vm2495, %v5602, %v5594
      %v5619 = vsel %vm2495, %v5603, %v5595
      %v5620 = vsel %vm2495, %v5604, %v5596
      %v5621 = vsel %vm2495, %v5605, %v5597
      %v5622 = vadd.f32 %v5574, %v5606
      %v5623 = vadd.f32 %v5575, %v5614
      %v5624 = vadd.f32 %v5576, %v5607
      %v5625 = vadd.f32 %v5577, %v5615
      %v5626 = vadd.f32 %v5578, %v5608
      %v5627 = vadd.f32 %v5579, %v5616
      %v5628 = vadd.f32 %v5580, %v5609
      %v5629 = vadd.f32 %v5581, %v5617
      %v5630 = vadd.f32 %v5582, %v5610
      %v5631 = vadd.f32 %v5583, %v5618
      %v5632 = vadd.f32 %v5584, %v5611
      %v5633 = vadd.f32 %v5585, %v5619
      %v5634 = vadd.f32 %v5586, %v5612
      %v5635 = vadd.f32 %v5587, %v5620
      %v5636 = vadd.f32 %v5588, %v5613
      %v5637 = vadd.f32 %v5589, %v5621
      %s5638 = scalar_lea.vmem %s2, 9
      %v5639 = vld [vmem:[%s5638] sm:$0x1]
      %v5641 = vlaneseq
      %v5642 = vshrl.u32 %v5641, 7
      %v5643 = vsub.s32 0, %v5642
      %v5644 = vrot.slane %v5639, %v5643
      %v5646 = vadd.f32 %v5622, %v5644
      %v5647 = vadd.f32 %v5623, %v5644
      %v5648 = vadd.f32 %v5624, %v5644
      %v5649 = vadd.f32 %v5625, %v5644
      %v5650 = vadd.f32 %v5626, %v5644
      %v5651 = vadd.f32 %v5627, %v5644
      %v5652 = vadd.f32 %v5628, %v5644
      %v5653 = vadd.f32 %v5629, %v5644
      %v5654 = vadd.f32 %v5630, %v5644
      %v5655 = vadd.f32 %v5631, %v5644
      %v5656 = vadd.f32 %v5632, %v5644
      %v5657 = vadd.f32 %v5633, %v5644
      %v5658 = vadd.f32 %v5634, %v5644
      %v5659 = vadd.f32 %v5635, %v5644
      %v5660 = vadd.f32 %v5636, %v5644
      %v5661 = vadd.f32 %v5637, %v5644
      %v5662 = vmul.f32 %v5646, 0.2
      %v5663 = vmul.f32 %v5647, 0.2
      %v5664 = vmul.f32 %v5648, 0.2
      %v5665 = vmul.f32 %v5649, 0.2
      %v5666 = vmul.f32 %v5650, 0.2
      %v5667 = vmul.f32 %v5651, 0.2
      %v5668 = vmul.f32 %v5652, 0.2
      %v5669 = vmul.f32 %v5653, 0.2
      %v5670 = vmul.f32 %v5654, 0.2
      %v5671 = vmul.f32 %v5655, 0.2
      %v5672 = vmul.f32 %v5656, 0.2
      %v5673 = vmul.f32 %v5657, 0.2
      %v5674 = vmul.f32 %v5658, 0.2
      %v5675 = vmul.f32 %v5659, 0.2
      %v5676 = vmul.f32 %v5660, 0.2
      %v5677 = vmul.f32 %v5661, 0.2
      %v5678 = vmax.f32 %v5646, %v5662
      %v5679 = vmax.f32 %v5647, %v5663
      %v5680 = vmax.f32 %v5648, %v5664
      %v5681 = vmax.f32 %v5649, %v5665
      %v5682 = vmax.f32 %v5650, %v5666
      %v5683 = vmax.f32 %v5651, %v5667
      %v5684 = vmax.f32 %v5652, %v5668
      %v5685 = vmax.f32 %v5653, %v5669
      %v5686 = vmax.f32 %v5654, %v5670
      %v5687 = vmax.f32 %v5655, %v5671
      %v5688 = vmax.f32 %v5656, %v5672
      %v5689 = vmax.f32 %v5657, %v5673
      %v5690 = vmax.f32 %v5658, %v5674
      %v5691 = vmax.f32 %v5659, %v5675
      %v5692 = vmax.f32 %v5660, %v5676
      %v5693 = vmax.f32 %v5661, %v5677
      %s5694 = scalar_lea.vmem %s2, 10
      %v5695 = vld [vmem:[%s5694] sm:$0x1]
      %v5697 = vlaneseq
      %v5698 = vshrl.u32 %v5697, 7
      %v5699 = vsub.s32 0, %v5698
      %v5700 = vrot.slane %v5695, %v5699
      %v5702 = vmul.f32 %v5678, %v5700
      %v5703 = vmul.f32 %v5679, %v5700
      %v5704 = vmul.f32 %v5680, %v5700
      %v5705 = vmul.f32 %v5681, %v5700
      %v5706 = vmul.f32 %v5682, %v5700
      %v5707 = vmul.f32 %v5683, %v5700
      %v5708 = vmul.f32 %v5684, %v5700
      %v5709 = vmul.f32 %v5685, %v5700
      %v5710 = vmul.f32 %v5686, %v5700
      %v5711 = vmul.f32 %v5687, %v5700
      %v5712 = vmul.f32 %v5688, %v5700
      %v5713 = vmul.f32 %v5689, %v5700
      %v5714 = vmul.f32 %v5690, %v5700
      %v5715 = vmul.f32 %v5691, %v5700
      %v5716 = vmul.f32 %v5692, %v5700
      %v5717 = vmul.f32 %v5693, %v5700
      %s5718 = scalar_lea.vmem %s2, 11
      %v5719 = vld [vmem:[%s5718] sm:$0x1]
      %v5721 = vlaneseq
      %v5722 = vshrl.u32 %v5721, 7
      %v5723 = vsub.s32 0, %v5722
      %v5724 = vrot.slane %v5719, %v5723
      %v5726 = vadd.f32 %v5702, %v5724
      %v5727 = vadd.f32 %v5703, %v5724
      %v5728 = vadd.f32 %v5704, %v5724
      %v5729 = vadd.f32 %v5705, %v5724
      %v5730 = vadd.f32 %v5706, %v5724
      %v5731 = vadd.f32 %v5707, %v5724
      %v5732 = vadd.f32 %v5708, %v5724
      %v5733 = vadd.f32 %v5709, %v5724
      %v5734 = vadd.f32 %v5710, %v5724
      %v5735 = vadd.f32 %v5711, %v5724
      %v5736 = vadd.f32 %v5712, %v5724
      %v5737 = vadd.f32 %v5713, %v5724
      %v5738 = vadd.f32 %v5714, %v5724
      %v5739 = vadd.f32 %v5715, %v5724
      %v5740 = vadd.f32 %v5716, %v5724
      %v5741 = vadd.f32 %v5717, %v5724
      %v5742 = vpack.c.bf16 %v5727, %v5726
      %v5743 = vpack.c.bf16 %v5729, %v5728
      %v5744 = vpack.c.bf16 %v5731, %v5730
      %v5745 = vpack.c.bf16 %v5733, %v5732
      %v5746 = vpack.c.bf16 %v5735, %v5734
      %v5747 = vpack.c.bf16 %v5737, %v5736
      %v5748 = vpack.c.bf16 %v5739, %v5738
      %v5749 = vpack.c.bf16 %v5741, %v5740
      %s5750 = scalar_lea.vmem [#allocation2], 2304
      %v5751 = vld [vmem:[%s5750] sm:$0xff]
      %v5752 = vld [vmem:[%s5750 + $0x8] sm:$0xff]
      %v5753 = vld [vmem:[%s5750 + $0x10] sm:$0xff]
      %v5754 = vld [vmem:[%s5750 + $0x18] sm:$0xff]
      %v5755 = vld [vmem:[%s5750 + $0x20] sm:$0xff]
      %v5756 = vld [vmem:[%s5750 + $0x28] sm:$0xff]
      %v5757 = vld [vmem:[%s5750 + $0x30] sm:$0xff]
      %v5758 = vld [vmem:[%s5750 + $0x38] sm:$0xff]
      %v5759 = vld [vmem:[%s5750 + $0x40] sm:$0xff]
      %v5760 = vld [vmem:[%s5750 + $0x48] sm:$0xff]
      %v5761 = vld [vmem:[%s5750 + $0x50] sm:$0xff]
      %v5762 = vld [vmem:[%s5750 + $0x58] sm:$0xff]
      %v5763 = vld [vmem:[%s5750 + $0x60] sm:$0xff]
      %v5764 = vld [vmem:[%s5750 + $0x68] sm:$0xff]
      %v5765 = vld [vmem:[%s5750 + $0x70] sm:$0xff]
      %v5766 = vld [vmem:[%s5750 + $0x78] sm:$0xff]
      %v5767 = vld [vmem:[%s5750 + $0x80] sm:$0xff]
      %v5768 = vld [vmem:[%s5750 + $0x88] sm:$0xff]
      %v5769 = vld [vmem:[%s5750 + $0x90] sm:$0xff]
      %v5770 = vld [vmem:[%s5750 + $0x98] sm:$0xff]
      %v5771 = vld [vmem:[%s5750 + $0xa0] sm:$0xff]
      %v5772 = vld [vmem:[%s5750 + $0xa8] sm:$0xff]
      %v5773 = vld [vmem:[%s5750 + $0xb0] sm:$0xff]
      %v5774 = vld [vmem:[%s5750 + $0xb8] sm:$0xff]
      %5775 = vmatprep.subr.bf16.mxu0 0
      %5776 = vmatpush1.bf16.msra.mxu0 %v5751
      %5777 = vmatprep.subr.bf16.mxu0 0
      %5778 = vmatpush1.bf16.msra.mxu0 %v5752
      %5779 = vmatprep.subr.bf16.mxu0 0
      %5780 = vmatpush1.bf16.msra.mxu0 %v5753
      %5781 = vmatprep.subr.bf16.mxu0 0
      %5782 = vmatpush1.bf16.msra.mxu0 %v5754
      %5783 = vmatprep.subr.bf16.mxu0 0
      %5784 = vmatpush1.bf16.msra.mxu0 %v5755
      %5785 = vmatprep.subr.bf16.mxu0 0
      %5786 = vmatpush1.bf16.msra.mxu0 %v5756
      %5787 = vmatprep.subr.bf16.mxu0 0
      %5788 = vmatpush1.bf16.msra.mxu0 %v5757
      %5789 = vmatprep.subr.bf16.mxu0 0
      %5790 = vmatpush1.bf16.msra.mxu0 %v5758
      %5791 = vmatprep.subr.bf16.mxu0 0
      %5792 = vmatpush1.bf16.msra.mxu0 %v5759
      %5793 = vmatprep.subr.bf16.mxu0 0
      %5794 = vmatpush1.bf16.msra.mxu0 %v5760
      %5795 = vmatprep.subr.bf16.mxu0 0
      %5796 = vmatpush1.bf16.msra.mxu0 %v5761
      %5797 = vmatprep.subr.bf16.mxu0 0
      %5798 = vmatpush1.bf16.msra.mxu0 %v5762
      %5799 = vmatprep.subr.bf16.mxu0 0
      %5800 = vmatpush1.bf16.msra.mxu0 %v5763
      %5801 = vmatprep.subr.bf16.mxu0 0
      %5802 = vmatpush1.bf16.msra.mxu0 %v5764
      %5803 = vmatprep.subr.bf16.mxu0 0
      %5804 = vmatpush1.bf16.msra.mxu0 %v5765
      %5805 = vmatprep.subr.bf16.mxu0 0
      %5806 = vmatpush1.bf16.msra.mxu0 %v5766
      %5807 = vmatprep.mubr.bf16.mxu0 %v5743
      %5808 = vmatmul.mubr.bf16.gmra.mrb[0].mxu0 %v5742
      %v5809 = vpop.f32.mrb[0].mxu0
      %v5810 = vadd.f32 0.0, %v5809
      %v5811 = vpop.f32.mrb[0].mxu0
      %v5812 = vpop.f32.mrb[0].mxu0
      %v5813 = vadd.f32 0.0, %v5812
      %v5814 = vpop.f32.mrb[0].mxu0
      %5815 = vmatprep.mubr.bf16.mxu0 %v5744
      %5816 = vmatmul.mubr.bf16.gmra.mrb[0].mxu0 %v5743
      %v5817 = vpop.f32.mrb[0].mxu0
      %v5818 = vadd.f32 0.0, %v5817
      %v5819 = vpop.f32.mrb[0].mxu0
      %v5820 = vpop.f32.mrb[0].mxu0
      %v5821 = vadd.f32 0.0, %v5820
      %v5822 = vpop.f32.mrb[0].mxu0
      %5823 = vmatprep.mubr.bf16.mxu0 %v5745
      %5824 = vmatmul.mubr.bf16.gmra.mrb[0].mxu0 %v5744
      %v5825 = vpop.f32.mrb[0].mxu0
      %v5826 = vadd.f32 0.0, %v5825
      %v5827 = vpop.f32.mrb[0].mxu0
      %v5828 = vpop.f32.mrb[0].mxu0
      %v5829 = vadd.f32 0.0, %v5828
      %v5830 = vpop.f32.mrb[0].mxu0
      %5831 = vmatprep.mubr.bf16.mxu0 %v5746
      %5832 = vmatmul.mubr.bf16.gmra.mrb[0].mxu0 %v5745
      %v5833 = vpop.f32.mrb[0].mxu0
      %v5834 = vadd.f32 0.0, %v5833
      %v5835 = vpop.f32.mrb[0].mxu0
      %v5836 = vpop.f32.mrb[0].mxu0
      %v5837 = vadd.f32 0.0, %v5836
      %v5838 = vpop.f32.mrb[0].mxu0
      %5839 = vmatprep.mubr.bf16.mxu0 %v5747
      %5840 = vmatmul.mubr.bf16.gmra.mrb[0].mxu0 %v5746
      %v5841 = vpop.f32.mrb[0].mxu0
      %v5842 = vadd.f32 0.0, %v5841
      %v5843 = vpop.f32.mrb[0].mxu0
      %v5844 = vpop.f32.mrb[0].mxu0
      %v5845 = vadd.f32 0.0, %v5844
      %v5846 = vpop.f32.mrb[0].mxu0
      %5847 = vmatprep.mubr.bf16.mxu0 %v5748
      %5848 = vmatmul.mubr.bf16.gmra.mrb[0].mxu0 %v5747
      %v5849 = vpop.f32.mrb[0].mxu0
      %v5850 = vadd.f32 0.0, %v5849
      %v5851 = vpop.f32.mrb[0].mxu0
      %v5852 = vpop.f32.mrb[0].mxu0
      %v5853 = vadd.f32 0.0, %v5852
      %v5854 = vpop.f32.mrb[0].mxu0
      %5855 = vdwg.mxu0
      %5856 = vmatprep.subr.bf16.mxu0 0
      %5857 = vmatpush1.bf16.msra.mxu0 %v5767
      %5858 = vmatprep.subr.bf16.mxu0 0
      %5859 = vmatpush1.bf16.msra.mxu0 %v5768
      %5860 = vmatprep.subr.bf16.mxu0 0
      %5861 = vmatpush1.bf16.msra.mxu0 %v5769
      %5862 = vmatprep.subr.bf16.mxu0 0
      %5863 = vmatpush1.bf16.msra.mxu0 %v5770
      %5864 = vmatprep.subr.bf16.mxu0 0
      %5865 = vmatpush1.bf16.msra.mxu0 %v5771
      %5866 = vmatprep.subr.bf16.mxu0 0
      %5867 = vmatpush1.bf16.msra.mxu0 %v5772
      %5868 = vmatprep.subr.bf16.mxu0 0
      %5869 = vmatpush1.bf16.msra.mxu0 %v5773
      %5870 = vmatprep.subr.bf16.mxu0 0
      %5871 = vmatpush1.bf16.msra.mxu0 %v5774
      %5872 = vmatprep.subr.bf16.mxu0 0
      %5873 = vmatpush1.bf16.msra.mxu0 0
      %5874 = vmatprep.subr.bf16.mxu0 0
      %5875 = vmatpush1.bf16.msra.mxu0 0
      %5876 = vmatprep.subr.bf16.mxu0 0
      %5877 = vmatpush1.bf16.msra.mxu0 0
      %5878 = vmatprep.subr.bf16.mxu0 0
      %5879 = vmatpush1.bf16.msra.mxu0 0
      %5880 = vmatprep.subr.bf16.mxu0 0
      %5881 = vmatpush1.bf16.msra.mxu0 0
      %5882 = vmatprep.subr.bf16.mxu0 0
      %5883 = vmatpush1.bf16.msra.mxu0 0
      %5884 = vmatprep.subr.bf16.mxu0 0
      %5885 = vmatpush1.bf16.msra.mxu0 0
      %5886 = vmatprep.subr.bf16.mxu0 0
      %5887 = vmatpush1.bf16.msra.mxu0 0
      %5888 = vmatprep.mubr.bf16.mxu0 0
      %5889 = vmatmul.mubr.bf16.gmra.mrb[0].mxu0 %v5744
      %v5890 = vpop.f32.mrb[0].mxu0
      %v5891 = vadd.f32 %v5810, %v5890
      %v5892 = vpop.f32.mrb[0].mxu0
      %v5893 = vpop.f32.mrb[0].mxu0
      %v5894 = vadd.f32 %v5813, %v5893
      %v5895 = vpop.f32.mrb[0].mxu0
      %5896 = vmatprep.mubr.bf16.mxu0 0
      %5897 = vmatmul.mubr.bf16.gmra.mrb[0].mxu0 %v5745
      %v5898 = vpop.f32.mrb[0].mxu0
      %v5899 = vadd.f32 %v5818, %v5898
      %v5900 = vpop.f32.mrb[0].mxu0
      %v5901 = vpop.f32.mrb[0].mxu0
      %v5902 = vadd.f32 %v5821, %v5901
      %v5903 = vpop.f32.mrb[0].mxu0
      %5904 = vmatprep.mubr.bf16.mxu0 0
      %5905 = vmatmul.mubr.bf16.gmra.mrb[0].mxu0 %v5746
      %v5906 = vpop.f32.mrb[0].mxu0
      %v5907 = vadd.f32 %v5826, %v5906
      %v5908 = vpop.f32.mrb[0].mxu0
      %v5909 = vpop.f32.mrb[0].mxu0
      %v5910 = vadd.f32 %v5829, %v5909
      %v5911 = vpop.f32.mrb[0].mxu0
      %5912 = vmatprep.mubr.bf16.mxu0 0
      %5913 = vmatmul.mubr.bf16.gmra.mrb[0].mxu0 %v5747
      %v5914 = vpop.f32.mrb[0].mxu0
      %v5915 = vadd.f32 %v5834, %v5914
      %v5916 = vpop.f32.mrb[0].mxu0
      %v5917 = vpop.f32.mrb[0].mxu0
      %v5918 = vadd.f32 %v5837, %v5917
      %v5919 = vpop.f32.mrb[0].mxu0
      %5920 = vmatprep.mubr.bf16.mxu0 0
      %5921 = vmatmul.mubr.bf16.gmra.mrb[0].mxu0 %v5748
      %v5922 = vpop.f32.mrb[0].mxu0
      %v5923 = vadd.f32 %v5842, %v5922
      %v5924 = vpop.f32.mrb[0].mxu0
      %v5925 = vpop.f32.mrb[0].mxu0
      %v5926 = vadd.f32 %v5845, %v5925
      %v5927 = vpop.f32.mrb[0].mxu0
      %5928 = vmatprep.mubr.bf16.mxu0 0
      %5929 = vmatmul.mubr.bf16.gmra.mrb[0].mxu0 %v5749
      %v5930 = vpop.f32.mrb[0].mxu0
      %v5931 = vadd.f32 %v5850, %v5930
      %v5932 = vpop.f32.mrb[0].mxu0
      %v5933 = vpop.f32.mrb[0].mxu0
      %v5934 = vadd.f32 %v5853, %v5933
      %v5935 = vpop.f32.mrb[0].mxu0
      %5936 = vdwg.mxu0
      %s5937 = scalar_lea.vmem [#allocation2], 2496
      %v5938 = vld [vmem:[%s5937] sm:$0xff]
      %v5939 = vld [vmem:[%s5937 + $0x8] sm:$0xff]
      %v5940 = vld [vmem:[%s5937 + $0x10] sm:$0xff]
      %v5941 = vld [vmem:[%s5937 + $0x18] sm:$0xff]
      %v5942 = vld [vmem:[%s5937 + $0x20] sm:$0xff]
      %v5943 = vld [vmem:[%s5937 + $0x28] sm:$0xff]
      %v5944 = vld [vmem:[%s5937 + $0x30] sm:$0xff]
      %v5945 = vld [vmem:[%s5937 + $0x38] sm:$0xff]
      %v5946 = vld [vmem:[%s5937 + $0x40] sm:$0xff]
      %v5947 = vld [vmem:[%s5937 + $0x48] sm:$0xff]
      %v5948 = vld [vmem:[%s5937 + $0x50] sm:$0xff]
      %v5949 = vld [vmem:[%s5937 + $0x58] sm:$0xff]
      %v5950 = vld [vmem:[%s5937 + $0x60] sm:$0xff]
      %v5951 = vld [vmem:[%s5937 + $0x68] sm:$0xff]
      %v5952 = vld [vmem:[%s5937 + $0x70] sm:$0xff]
      %v5953 = vld [vmem:[%s5937 + $0x78] sm:$0xff]
      %v5954 = vld [vmem:[%s5937 + $0x80] sm:$0xff]
      %v5955 = vld [vmem:[%s5937 + $0x88] sm:$0xff]
      %v5956 = vld [vmem:[%s5937 + $0x90] sm:$0xff]
      %v5957 = vld [vmem:[%s5937 + $0x98] sm:$0xff]
      %v5958 = vld [vmem:[%s5937 + $0xa0] sm:$0xff]
      %v5959 = vld [vmem:[%s5937 + $0xa8] sm:$0xff]
      %v5960 = vld [vmem:[%s5937 + $0xb0] sm:$0xff]
      %v5961 = vld [vmem:[%s5937 + $0xb8] sm:$0xff]
      %5962 = vmatprep.subr.bf16.mxu0 0
      %5963 = vmatpush1.bf16.msra.mxu0 %v5938
      %5964 = vmatprep.subr.bf16.mxu0 0
      %5965 = vmatpush1.bf16.msra.mxu0 %v5939
      %5966 = vmatprep.subr.bf16.mxu0 0
      %5967 = vmatpush1.bf16.msra.mxu0 %v5940
      %5968 = vmatprep.subr.bf16.mxu0 0
      %5969 = vmatpush1.bf16.msra.mxu0 %v5941
      %5970 = vmatprep.subr.bf16.mxu0 0
      %5971 = vmatpush1.bf16.msra.mxu0 %v5942
      %5972 = vmatprep.subr.bf16.mxu0 0
      %5973 = vmatpush1.bf16.msra.mxu0 %v5943
      %5974 = vmatprep.subr.bf16.mxu0 0
      %5975 = vmatpush1.bf16.msra.mxu0 %v5944
      %5976 = vmatprep.subr.bf16.mxu0 0
      %5977 = vmatpush1.bf16.msra.mxu0 %v5945
      %5978 = vmatprep.subr.bf16.mxu0 0
      %5979 = vmatpush1.bf16.msra.mxu0 %v5946
      %5980 = vmatprep.subr.bf16.mxu0 0
      %5981 = vmatpush1.bf16.msra.mxu0 %v5947
      %5982 = vmatprep.subr.bf16.mxu0 0
      %5983 = vmatpush1.bf16.msra.mxu0 %v5948
      %5984 = vmatprep.subr.bf16.mxu0 0
      %5985 = vmatpush1.bf16.msra.mxu0 %v5949
      %5986 = vmatprep.subr.bf16.mxu0 0
      %5987 = vmatpush1.bf16.msra.mxu0 %v5950
      %5988 = vmatprep.subr.bf16.mxu0 0
      %5989 = vmatpush1.bf16.msra.mxu0 %v5951
      %5990 = vmatprep.subr.bf16.mxu0 0
      %5991 = vmatpush1.bf16.msra.mxu0 %v5952
      %5992 = vmatprep.subr.bf16.mxu0 0
      %5993 = vmatpush1.bf16.msra.mxu0 %v5953
      %5994 = vmatprep.mubr.bf16.mxu0 %v5743
      %5995 = vmatmul.mubr.bf16.gmra.mrb[0].mxu0 %v5742
      %v5996 = vpop.f32.mrb[0].mxu0
      %v5997 = vadd.f32 0.0, %v5996
      %v5998 = vpop.f32.mrb[0].mxu0
      %v5999 = vpop.f32.mrb[0].mxu0
      %v6000 = vadd.f32 0.0, %v5999
      %v6001 = vpop.f32.mrb[0].mxu0
      %6002 = vmatprep.mubr.bf16.mxu0 %v5744
      %6003 = vmatmul.mubr.bf16.gmra.mrb[0].mxu0 %v5743
      %v6004 = vpop.f32.mrb[0].mxu0
      %v6005 = vadd.f32 0.0, %v6004
      %v6006 = vpop.f32.mrb[0].mxu0
      %v6007 = vpop.f32.mrb[0].mxu0
      %v6008 = vadd.f32 0.0, %v6007
      %v6009 = vpop.f32.mrb[0].mxu0
      %6010 = vmatprep.mubr.bf16.mxu0 %v5745
      %6011 = vmatmul.mubr.bf16.gmra.mrb[0].mxu0 %v5744
      %v6012 = vpop.f32.mrb[0].mxu0
      %v6013 = vadd.f32 0.0, %v6012
      %v6014 = vpop.f32.mrb[0].mxu0
      %v6015 = vpop.f32.mrb[0].mxu0
      %v6016 = vadd.f32 0.0, %v6015
      %v6017 = vpop.f32.mrb[0].mxu0
      %6018 = vmatprep.mubr.bf16.mxu0 %v5746
      %6019 = vmatmul.mubr.bf16.gmra.mrb[0].mxu0 %v5745
      %v6020 = vpop.f32.mrb[0].mxu0
      %v6021 = vadd.f32 0.0, %v6020
      %v6022 = vpop.f32.mrb[0].mxu0
      %v6023 = vpop.f32.mrb[0].mxu0
      %v6024 = vadd.f32 0.0, %v6023
      %v6025 = vpop.f32.mrb[0].mxu0
      %6026 = vmatprep.mubr.bf16.mxu0 %v5747
      %6027 = vmatmul.mubr.bf16.gmra.mrb[0].mxu0 %v5746
      %v6028 = vpop.f32.mrb[0].mxu0
      %v6029 = vadd.f32 0.0, %v6028
      %v6030 = vpop.f32.mrb[0].mxu0
      %v6031 = vpop.f32.mrb[0].mxu0
      %v6032 = vadd.f32 0.0, %v6031
      %v6033 = vpop.f32.mrb[0].mxu0
      %6034 = vmatprep.mubr.bf16.mxu0 %v5748
      %6035 = vmatmul.mubr.bf16.gmra.mrb[0].mxu0 %v5747
      %v6036 = vpop.f32.mrb[0].mxu0
      %v6037 = vadd.f32 0.0, %v6036
      %v6038 = vpop.f32.mrb[0].mxu0
      %v6039 = vpop.f32.mrb[0].mxu0
      %v6040 = vadd.f32 0.0, %v6039
      %v6041 = vpop.f32.mrb[0].mxu0
      %6042 = vdwg.mxu0
      %6043 = vmatprep.subr.bf16.mxu0 0
      %6044 = vmatpush1.bf16.msra.mxu0 %v5954
      %6045 = vmatprep.subr.bf16.mxu0 0
      %6046 = vmatpush1.bf16.msra.mxu0 %v5955
      %6047 = vmatprep.subr.bf16.mxu0 0
      %6048 = vmatpush1.bf16.msra.mxu0 %v5956
      %6049 = vmatprep.subr.bf16.mxu0 0
      %6050 = vmatpush1.bf16.msra.mxu0 %v5957
      %6051 = vmatprep.subr.bf16.mxu0 0
      %6052 = vmatpush1.bf16.msra.mxu0 %v5958
      %6053 = vmatprep.subr.bf16.mxu0 0
      %6054 = vmatpush1.bf16.msra.mxu0 %v5959
      %6055 = vmatprep.subr.bf16.mxu0 0
      %6056 = vmatpush1.bf16.msra.mxu0 %v5960
      %6057 = vmatprep.subr.bf16.mxu0 0
      %6058 = vmatpush1.bf16.msra.mxu0 %v5961
      %6059 = vmatprep.subr.bf16.mxu0 0
      %6060 = vmatpush1.bf16.msra.mxu0 0
      %6061 = vmatprep.subr.bf16.mxu0 0
      %6062 = vmatpush1.bf16.msra.mxu0 0
      %6063 = vmatprep.subr.bf16.mxu0 0
      %6064 = vmatpush1.bf16.msra.mxu0 0
      %6065 = vmatprep.subr.bf16.mxu0 0
      %6066 = vmatpush1.bf16.msra.mxu0 0
      %6067 = vmatprep.subr.bf16.mxu0 0
      %6068 = vmatpush1.bf16.msra.mxu0 0
      %6069 = vmatprep.subr.bf16.mxu0 0
      %6070 = vmatpush1.bf16.msra.mxu0 0
      %6071 = vmatprep.subr.bf16.mxu0 0
      %6072 = vmatpush1.bf16.msra.mxu0 0
      %6073 = vmatprep.subr.bf16.mxu0 0
      %6074 = vmatpush1.bf16.msra.mxu0 0
      %6075 = vmatprep.mubr.bf16.mxu0 0
      %6076 = vmatmul.mubr.bf16.gmra.mrb[0].mxu0 %v5744
      %v6077 = vpop.f32.mrb[0].mxu0
      %v6078 = vadd.f32 %v5997, %v6077
      %v6079 = vpop.f32.mrb[0].mxu0
      %v6080 = vpop.f32.mrb[0].mxu0
      %v6081 = vadd.f32 %v6000, %v6080
      %v6082 = vpop.f32.mrb[0].mxu0
      %6083 = vmatprep.mubr.bf16.mxu0 0
      %6084 = vmatmul.mubr.bf16.gmra.mrb[0].mxu0 %v5745
      %v6085 = vpop.f32.mrb[0].mxu0
      %v6086 = vadd.f32 %v6005, %v6085
      %v6087 = vpop.f32.mrb[0].mxu0
      %v6088 = vpop.f32.mrb[0].mxu0
      %v6089 = vadd.f32 %v6008, %v6088
      %v6090 = vpop.f32.mrb[0].mxu0
      %6091 = vmatprep.mubr.bf16.mxu0 0
      %6092 = vmatmul.mubr.bf16.gmra.mrb[0].mxu0 %v5746
      %v6093 = vpop.f32.mrb[0].mxu0
      %v6094 = vadd.f32 %v6013, %v6093
      %v6095 = vpop.f32.mrb[0].mxu0
      %v6096 = vpop.f32.mrb[0].mxu0
      %v6097 = vadd.f32 %v6016, %v6096
      %v6098 = vpop.f32.mrb[0].mxu0
      %6099 = vmatprep.mubr.bf16.mxu0 0
      %6100 = vmatmul.mubr.bf16.gmra.mrb[0].mxu0 %v5747
      %v6101 = vpop.f32.mrb[0].mxu0
      %v6102 = vadd.f32 %v6021, %v6101
      %v6103 = vpop.f32.mrb[0].mxu0
      %v6104 = vpop.f32.mrb[0].mxu0
      %v6105 = vadd.f32 %v6024, %v6104
      %v6106 = vpop.f32.mrb[0].mxu0
      %6107 = vmatprep.mubr.bf16.mxu0 0
      %6108 = vmatmul.mubr.bf16.gmra.mrb[0].mxu0 %v5748
      %v6109 = vpop.f32.mrb[0].mxu0
      %v6110 = vadd.f32 %v6029, %v6109
      %v6111 = vpop.f32.mrb[0].mxu0
      %v6112 = vpop.f32.mrb[0].mxu0
      %v6113 = vadd.f32 %v6032, %v6112
      %v6114 = vpop.f32.mrb[0].mxu0
      %6115 = vmatprep.mubr.bf16.mxu0 0
      %6116 = vmatmul.mubr.bf16.gmra.mrb[0].mxu0 %v5749
      %v6117 = vpop.f32.mrb[0].mxu0
      %v6118 = vadd.f32 %v6037, %v6117
      %v6119 = vpop.f32.mrb[0].mxu0
      %v6120 = vpop.f32.mrb[0].mxu0
      %v6121 = vadd.f32 %v6040, %v6120
      %v6122 = vpop.f32.mrb[0].mxu0
      %6123 = vdwg.mxu0
      %s6124 = scalar_lea.vmem [#allocation2], 2688
      %v6125 = vld [vmem:[%s6124] sm:$0xff]
      %v6126 = vld [vmem:[%s6124 + $0x8] sm:$0xff]
      %v6127 = vld [vmem:[%s6124 + $0x10] sm:$0xff]
      %v6128 = vld [vmem:[%s6124 + $0x18] sm:$0xff]
      %v6129 = vld [vmem:[%s6124 + $0x20] sm:$0xff]
      %v6130 = vld [vmem:[%s6124 + $0x28] sm:$0xff]
      %v6131 = vld [vmem:[%s6124 + $0x30] sm:$0xff]
      %v6132 = vld [vmem:[%s6124 + $0x38] sm:$0xff]
      %v6133 = vld [vmem:[%s6124 + $0x40] sm:$0xff]
      %v6134 = vld [vmem:[%s6124 + $0x48] sm:$0xff]
      %v6135 = vld [vmem:[%s6124 + $0x50] sm:$0xff]
      %v6136 = vld [vmem:[%s6124 + $0x58] sm:$0xff]
      %v6137 = vld [vmem:[%s6124 + $0x60] sm:$0xff]
      %v6138 = vld [vmem:[%s6124 + $0x68] sm:$0xff]
      %v6139 = vld [vmem:[%s6124 + $0x70] sm:$0xff]
      %v6140 = vld [vmem:[%s6124 + $0x78] sm:$0xff]
      %v6141 = vld [vmem:[%s6124 + $0x80] sm:$0xff]
      %v6142 = vld [vmem:[%s6124 + $0x88] sm:$0xff]
      %v6143 = vld [vmem:[%s6124 + $0x90] sm:$0xff]
      %v6144 = vld [vmem:[%s6124 + $0x98] sm:$0xff]
      %v6145 = vld [vmem:[%s6124 + $0xa0] sm:$0xff]
      %v6146 = vld [vmem:[%s6124 + $0xa8] sm:$0xff]
      %v6147 = vld [vmem:[%s6124 + $0xb0] sm:$0xff]
      %v6148 = vld [vmem:[%s6124 + $0xb8] sm:$0xff]
      %6149 = vmatprep.subr.bf16.mxu0 0
      %6150 = vmatpush1.bf16.msra.mxu0 %v6125
      %6151 = vmatprep.subr.bf16.mxu0 0
      %6152 = vmatpush1.bf16.msra.mxu0 %v6126
      %6153 = vmatprep.subr.bf16.mxu0 0
      %6154 = vmatpush1.bf16.msra.mxu0 %v6127
      %6155 = vmatprep.subr.bf16.mxu0 0
      %6156 = vmatpush1.bf16.msra.mxu0 %v6128
      %6157 = vmatprep.subr.bf16.mxu0 0
      %6158 = vmatpush1.bf16.msra.mxu0 %v6129
      %6159 = vmatprep.subr.bf16.mxu0 0
      %6160 = vmatpush1.bf16.msra.mxu0 %v6130
      %6161 = vmatprep.subr.bf16.mxu0 0
      %6162 = vmatpush1.bf16.msra.mxu0 %v6131
      %6163 = vmatprep.subr.bf16.mxu0 0
      %6164 = vmatpush1.bf16.msra.mxu0 %v6132
      %6165 = vmatprep.subr.bf16.mxu0 0
      %6166 = vmatpush1.bf16.msra.mxu0 %v6133
      %6167 = vmatprep.subr.bf16.mxu0 0
      %6168 = vmatpush1.bf16.msra.mxu0 %v6134
      %6169 = vmatprep.subr.bf16.mxu0 0
      %6170 = vmatpush1.bf16.msra.mxu0 %v6135
      %6171 = vmatprep.subr.bf16.mxu0 0
      %6172 = vmatpush1.bf16.msra.mxu0 %v6136
      %6173 = vmatprep.subr.bf16.mxu0 0
      %6174 = vmatpush1.bf16.msra.mxu0 %v6137
      %6175 = vmatprep.subr.bf16.mxu0 0
      %6176 = vmatpush1.bf16.msra.mxu0 %v6138
      %6177 = vmatprep.subr.bf16.mxu0 0
      %6178 = vmatpush1.bf16.msra.mxu0 %v6139
      %6179 = vmatprep.subr.bf16.mxu0 0
      %6180 = vmatpush1.bf16.msra.mxu0 %v6140
      %6181 = vmatprep.mubr.bf16.mxu0 %v5743
      %6182 = vmatmul.mubr.bf16.gmra.mrb[0].mxu0 %v5742
      %v6183 = vpop.f32.mrb[0].mxu0
      %v6184 = vadd.f32 0.0, %v6183
      %v6185 = vpop.f32.mrb[0].mxu0
      %v6186 = vpop.f32.mrb[0].mxu0
      %v6187 = vadd.f32 0.0, %v6186
      %v6188 = vpop.f32.mrb[0].mxu0
      %6189 = vmatprep.mubr.bf16.mxu0 %v5744
      %6190 = vmatmul.mubr.bf16.gmra.mrb[0].mxu0 %v5743
      %v6191 = vpop.f32.mrb[0].mxu0
      %v6192 = vadd.f32 0.0, %v6191
      %v6193 = vpop.f32.mrb[0].mxu0
      %v6194 = vpop.f32.mrb[0].mxu0
      %v6195 = vadd.f32 0.0, %v6194
      %v6196 = vpop.f32.mrb[0].mxu0
      %6197 = vmatprep.mubr.bf16.mxu0 %v5745
      %6198 = vmatmul.mubr.bf16.gmra.mrb[0].mxu0 %v5744
      %v6199 = vpop.f32.mrb[0].mxu0
      %v6200 = vadd.f32 0.0, %v6199
      %v6201 = vpop.f32.mrb[0].mxu0
      %v6202 = vpop.f32.mrb[0].mxu0
      %v6203 = vadd.f32 0.0, %v6202
      %v6204 = vpop.f32.mrb[0].mxu0
      %6205 = vmatprep.mubr.bf16.mxu0 %v5746
      %6206 = vmatmul.mubr.bf16.gmra.mrb[0].mxu0 %v5745
      %v6207 = vpop.f32.mrb[0].mxu0
      %v6208 = vadd.f32 0.0, %v6207
      %v6209 = vpop.f32.mrb[0].mxu0
      %v6210 = vpop.f32.mrb[0].mxu0
      %v6211 = vadd.f32 0.0, %v6210
      %v6212 = vpop.f32.mrb[0].mxu0
      %6213 = vmatprep.mubr.bf16.mxu0 %v5747
      %6214 = vmatmul.mubr.bf16.gmra.mrb[0].mxu0 %v5746
      %v6215 = vpop.f32.mrb[0].mxu0
      %v6216 = vadd.f32 0.0, %v6215
      %v6217 = vpop.f32.mrb[0].mxu0
      %v6218 = vpop.f32.mrb[0].mxu0
      %v6219 = vadd.f32 0.0, %v6218
      %v6220 = vpop.f32.mrb[0].mxu0
      %6221 = vmatprep.mubr.bf16.mxu0 %v5748
      %6222 = vmatmul.mubr.bf16.gmra.mrb[0].mxu0 %v5747
      %v6223 = vpop.f32.mrb[0].mxu0
      %v6224 = vadd.f32 0.0, %v6223
      %v6225 = vpop.f32.mrb[0].mxu0
      %v6226 = vpop.f32.mrb[0].mxu0
      %v6227 = vadd.f32 0.0, %v6226
      %v6228 = vpop.f32.mrb[0].mxu0
      %6229 = vdwg.mxu0
      %6230 = vmatprep.subr.bf16.mxu0 0
      %6231 = vmatpush1.bf16.msra.mxu0 %v6141
      %6232 = vmatprep.subr.bf16.mxu0 0
      %6233 = vmatpush1.bf16.msra.mxu0 %v6142
      %6234 = vmatprep.subr.bf16.mxu0 0
      %6235 = vmatpush1.bf16.msra.mxu0 %v6143
      %6236 = vmatprep.subr.bf16.mxu0 0
      %6237 = vmatpush1.bf16.msra.mxu0 %v6144
      %6238 = vmatprep.subr.bf16.mxu0 0
      %6239 = vmatpush1.bf16.msra.mxu0 %v6145
      %6240 = vmatprep.subr.bf16.mxu0 0
      %6241 = vmatpush1.bf16.msra.mxu0 %v6146
      %6242 = vmatprep.subr.bf16.mxu0 0
      %6243 = vmatpush1.bf16.msra.mxu0 %v6147
      %6244 = vmatprep.subr.bf16.mxu0 0
      %6245 = vmatpush1.bf16.msra.mxu0 %v6148
      %6246 = vmatprep.subr.bf16.mxu0 0
      %6247 = vmatpush1.bf16.msra.mxu0 0
      %6248 = vmatprep.subr.bf16.mxu0 0
      %6249 = vmatpush1.bf16.msra.mxu0 0
      %6250 = vmatprep.subr.bf16.mxu0 0
      %6251 = vmatpush1.bf16.msra.mxu0 0
      %6252 = vmatprep.subr.bf16.mxu0 0
      %6253 = vmatpush1.bf16.msra.mxu0 0
      %6254 = vmatprep.subr.bf16.mxu0 0
      %6255 = vmatpush1.bf16.msra.mxu0 0
      %6256 = vmatprep.subr.bf16.mxu0 0
      %6257 = vmatpush1.bf16.msra.mxu0 0
      %6258 = vmatprep.subr.bf16.mxu0 0
      %6259 = vmatpush1.bf16.msra.mxu0 0
      %6260 = vmatprep.subr.bf16.mxu0 0
      %6261 = vmatpush1.bf16.msra.mxu0 0
      %6262 = vmatprep.mubr.bf16.mxu0 0
      %6263 = vmatmul.mubr.bf16.gmra.mrb[0].mxu0 %v5744
      %v6264 = vpop.f32.mrb[0].mxu0
      %v6265 = vadd.f32 %v6184, %v6264
      %v6266 = vpop.f32.mrb[0].mxu0
      %v6267 = vpop.f32.mrb[0].mxu0
      %v6268 = vadd.f32 %v6187, %v6267
      %v6269 = vpop.f32.mrb[0].mxu0
      %6270 = vmatprep.mubr.bf16.mxu0 0
      %6271 = vmatmul.mubr.bf16.gmra.mrb[0].mxu0 %v5745
      %v6272 = vpop.f32.mrb[0].mxu0
      %v6273 = vadd.f32 %v6192, %v6272
      %v6274 = vpop.f32.mrb[0].mxu0
      %v6275 = vpop.f32.mrb[0].mxu0
      %v6276 = vadd.f32 %v6195, %v6275
      %v6277 = vpop.f32.mrb[0].mxu0
      %6278 = vmatprep.mubr.bf16.mxu0 0
      %6279 = vmatmul.mubr.bf16.gmra.mrb[0].mxu0 %v5746
      %v6280 = vpop.f32.mrb[0].mxu0
      %v6281 = vadd.f32 %v6200, %v6280
      %v6282 = vpop.f32.mrb[0].mxu0
      %v6283 = vpop.f32.mrb[0].mxu0
      %v6284 = vadd.f32 %v6203, %v6283
      %v6285 = vpop.f32.mrb[0].mxu0
      %6286 = vmatprep.mubr.bf16.mxu0 0
      %6287 = vmatmul.mubr.bf16.gmra.mrb[0].mxu0 %v5747
      %v6288 = vpop.f32.mrb[0].mxu0
      %v6289 = vadd.f32 %v6208, %v6288
      %v6290 = vpop.f32.mrb[0].mxu0
      %v6291 = vpop.f32.mrb[0].mxu0
      %v6292 = vadd.f32 %v6211, %v6291
      %v6293 = vpop.f32.mrb[0].mxu0
      %6294 = vmatprep.mubr.bf16.mxu0 0
      %6295 = vmatmul.mubr.bf16.gmra.mrb[0].mxu0 %v5748
      %v6296 = vpop.f32.mrb[0].mxu0
      %v6297 = vadd.f32 %v6216, %v6296
      %v6298 = vpop.f32.mrb[0].mxu0
      %v6299 = vpop.f32.mrb[0].mxu0
      %v6300 = vadd.f32 %v6219, %v6299
      %v6301 = vpop.f32.mrb[0].mxu0
      %6302 = vmatprep.mubr.bf16.mxu0 0
      %6303 = vmatmul.mubr.bf16.gmra.mrb[0].mxu0 %v5749
      %v6304 = vpop.f32.mrb[0].mxu0
      %v6305 = vadd.f32 %v6224, %v6304
      %v6306 = vpop.f32.mrb[0].mxu0
      %v6307 = vpop.f32.mrb[0].mxu0
      %v6308 = vadd.f32 %v6227, %v6307
      %v6309 = vpop.f32.mrb[0].mxu0
      %6310 = vdwg.mxu0
      %v6311 = vrot.slane %v6078, 1
      %v6312 = vrot.slane %v6086, 1
      %v6313 = vrot.slane %v6094, 1
      %v6314 = vrot.slane %v6102, 1
      %v6315 = vrot.slane %v6110, 1
      %v6316 = vrot.slane %v6118, 1
      %v6317 = vrot.slane %v6081, 1
      %v6318 = vrot.slane %v6089, 1
      %v6319 = vrot.slane %v6097, 1
      %v6320 = vrot.slane %v6105, 1
      %v6321 = vrot.slane %v6113, 1
      %v6322 = vrot.slane %v6121, 1
      %v6323 = vsel %vm2410, %v6311, %v6317
      %v6324 = vsel %vm2410, %v6312, %v6318
      %v6325 = vsel %vm2410, %v6313, %v6319
      %v6326 = vsel %vm2410, %v6314, %v6320
      %v6327 = vsel %vm2410, %v6315, %v6321
      %v6328 = vsel %vm2410, %v6316, %v6322
      %v6329 = vsel %vm2410, %v6317, %v6311
      %v6330 = vsel %vm2410, %v6318, %v6312
      %v6331 = vsel %vm2410, %v6319, %v6313
      %v6332 = vsel %vm2410, %v6320, %v6314
      %v6333 = vsel %vm2410, %v6321, %v6315
      %v6334 = vsel %vm2410, %v6322, %v6316
      %v6335 = vadd.f32 %v5891, %v6323
      %v6336 = vadd.f32 %v5894, %v6329
      %v6337 = vadd.f32 %v5899, %v6324
      %v6338 = vadd.f32 %v5902, %v6330
      %v6339 = vadd.f32 %v5907, %v6325
      %v6340 = vadd.f32 %v5910, %v6331
      %v6341 = vadd.f32 %v5915, %v6326
      %v6342 = vadd.f32 %v5918, %v6332
      %v6343 = vadd.f32 %v5923, %v6327
      %v6344 = vadd.f32 %v5926, %v6333
      %v6345 = vadd.f32 %v5931, %v6328
      %v6346 = vadd.f32 %v5934, %v6334
      %v6347 = vrot.slane %v6265, 2
      %v6348 = vrot.slane %v6273, 2
      %v6349 = vrot.slane %v6281, 2
      %v6350 = vrot.slane %v6289, 2
      %v6351 = vrot.slane %v6297, 2
      %v6352 = vrot.slane %v6305, 2
      %v6353 = vrot.slane %v6268, 2
      %v6354 = vrot.slane %v6276, 2
      %v6355 = vrot.slane %v6284, 2
      %v6356 = vrot.slane %v6292, 2
      %v6357 = vrot.slane %v6300, 2
      %v6358 = vrot.slane %v6308, 2
      %v6359 = vsel %vm2495, %v6347, %v6353
      %v6360 = vsel %vm2495, %v6348, %v6354
      %v6361 = vsel %vm2495, %v6349, %v6355
      %v6362 = vsel %vm2495, %v6350, %v6356
      %v6363 = vsel %vm2495, %v6351, %v6357
      %v6364 = vsel %vm2495, %v6352, %v6358
      %v6365 = vsel %vm2495, %v6353, %v6347
      %v6366 = vsel %vm2495, %v6354, %v6348
      %v6367 = vsel %vm2495, %v6355, %v6349
      %v6368 = vsel %vm2495, %v6356, %v6350
      %v6369 = vsel %vm2495, %v6357, %v6351
      %v6370 = vsel %vm2495, %v6358, %v6352
      %v6371 = vadd.f32 %v6335, %v6359
      %v6372 = vadd.f32 %v6336, %v6365
      %v6373 = vadd.f32 %v6337, %v6360
      %v6374 = vadd.f32 %v6338, %v6366
      %v6375 = vadd.f32 %v6339, %v6361
      %v6376 = vadd.f32 %v6340, %v6367
      %v6377 = vadd.f32 %v6341, %v6362
      %v6378 = vadd.f32 %v6342, %v6368
      %v6379 = vadd.f32 %v6343, %v6363
      %v6380 = vadd.f32 %v6344, %v6369
      %v6381 = vadd.f32 %v6345, %v6364
      %v6382 = vadd.f32 %v6346, %v6370
      %s6383 = scalar_lea.vmem %s2, 12
      %v6384 = vld [vmem:[%s6383] sm:$0x1]
      %v6386 = vlaneseq
      %v6387 = vshrl.u32 %v6386, 7
      %v6388 = vsub.s32 0, %v6387
      %v6389 = vrot.slane %v6384, %v6388
      %v6391 = vadd.f32 %v6371, %v6389
      %v6392 = vadd.f32 %v6372, %v6389
      %v6393 = vadd.f32 %v6373, %v6389
      %v6394 = vadd.f32 %v6374, %v6389
      %v6395 = vadd.f32 %v6375, %v6389
      %v6396 = vadd.f32 %v6376, %v6389
      %v6397 = vadd.f32 %v6377, %v6389
      %v6398 = vadd.f32 %v6378, %v6389
      %v6399 = vadd.f32 %v6379, %v6389
      %v6400 = vadd.f32 %v6380, %v6389
      %v6401 = vadd.f32 %v6381, %v6389
      %v6402 = vadd.f32 %v6382, %v6389
      %v6403 = vmul.f32 %v6391, 0.2
      %v6404 = vmul.f32 %v6392, 0.2
      %v6405 = vmul.f32 %v6393, 0.2
      %v6406 = vmul.f32 %v6394, 0.2
      %v6407 = vmul.f32 %v6395, 0.2
      %v6408 = vmul.f32 %v6396, 0.2
      %v6409 = vmul.f32 %v6397, 0.2
      %v6410 = vmul.f32 %v6398, 0.2
      %v6411 = vmul.f32 %v6399, 0.2
      %v6412 = vmul.f32 %v6400, 0.2
      %v6413 = vmul.f32 %v6401, 0.2
      %v6414 = vmul.f32 %v6402, 0.2
      %v6415 = vmax.f32 %v6391, %v6403
      %v6416 = vmax.f32 %v6392, %v6404
      %v6417 = vmax.f32 %v6393, %v6405
      %v6418 = vmax.f32 %v6394, %v6406
      %v6419 = vmax.f32 %v6395, %v6407
      %v6420 = vmax.f32 %v6396, %v6408
      %v6421 = vmax.f32 %v6397, %v6409
      %v6422 = vmax.f32 %v6398, %v6410
      %v6423 = vmax.f32 %v6399, %v6411
      %v6424 = vmax.f32 %v6400, %v6412
      %v6425 = vmax.f32 %v6401, %v6413
      %v6426 = vmax.f32 %v6402, %v6414
      %s6427 = scalar_lea.vmem %s2, 13
      %v6428 = vld [vmem:[%s6427] sm:$0x1]
      %v6430 = vlaneseq
      %v6431 = vshrl.u32 %v6430, 7
      %v6432 = vsub.s32 0, %v6431
      %v6433 = vrot.slane %v6428, %v6432
      %v6435 = vmul.f32 %v6415, %v6433
      %v6436 = vmul.f32 %v6416, %v6433
      %v6437 = vmul.f32 %v6417, %v6433
      %v6438 = vmul.f32 %v6418, %v6433
      %v6439 = vmul.f32 %v6419, %v6433
      %v6440 = vmul.f32 %v6420, %v6433
      %v6441 = vmul.f32 %v6421, %v6433
      %v6442 = vmul.f32 %v6422, %v6433
      %v6443 = vmul.f32 %v6423, %v6433
      %v6444 = vmul.f32 %v6424, %v6433
      %v6445 = vmul.f32 %v6425, %v6433
      %v6446 = vmul.f32 %v6426, %v6433
      %s6447 = scalar_lea.vmem %s2, 14
      %v6448 = vld [vmem:[%s6447] sm:$0x1]
      %v6450 = vlaneseq
      %v6451 = vshrl.u32 %v6450, 7
      %v6452 = vsub.s32 0, %v6451
      %v6453 = vrot.slane %v6448, %v6452
      %v6455 = vadd.f32 %v6435, %v6453
      %v6456 = vadd.f32 %v6436, %v6453
      %v6457 = vadd.f32 %v6437, %v6453
      %v6458 = vadd.f32 %v6438, %v6453
      %v6459 = vadd.f32 %v6439, %v6453
      %v6460 = vadd.f32 %v6440, %v6453
      %v6461 = vadd.f32 %v6441, %v6453
      %v6462 = vadd.f32 %v6442, %v6453
      %v6463 = vadd.f32 %v6443, %v6453
      %v6464 = vadd.f32 %v6444, %v6453
      %v6465 = vadd.f32 %v6445, %v6453
      %v6466 = vadd.f32 %v6446, %v6453
      %6467 = vst [vmem:[%s193] sm:$0xff] %v6455
      %6468 = vst [vmem:[%s193 + $0x8] sm:$0xff] %v6456
      %6469 = vst [vmem:[%s193 + $0x10] sm:$0xff] %v6457
      %6470 = vst [vmem:[%s193 + $0x18] sm:$0xff] %v6458
      %6471 = vst [vmem:[%s193 + $0x20] sm:$0xff] %v6459
      %6472 = vst [vmem:[%s193 + $0x28] sm:$0xff] %v6460
      %6473 = vst [vmem:[%s193 + $0x30] sm:$0xff] %v6461
      %6474 = vst [vmem:[%s193 + $0x38] sm:$0xff] %v6462
      %6475 = vst [vmem:[%s193 + $0x40] sm:$0xff] %v6463
      %6476 = vst [vmem:[%s193 + $0x48] sm:$0xff] %v6464
      %6477 = vst [vmem:[%s193 + $0x50] sm:$0xff] %v6465
      %6478 = vst [vmem:[%s193 + $0x58] sm:$0xff] %v6466
      %s6479 = sadd.s32 %s18, %s19
      %p6480 = scmp.lt.s32.totalorder %s6479, 1
      %s6481 = scalar_select %p6480, %s6479, 1
      %s6482 = smul.addr %s6481, 12
      %s6483 = smul.addr %s6482, 8
      %s6484 = scalar_lea.vmem %s3, %s6483
      // Predicated region
      $region37: #{encoder_forward.1} parent=31 // pred_check
        %p6485 = pneg %p116
      $region38: #{encoder_forward.1} parent=31 // pred_check_branch
        %6487 = sbr.rel (%p6485) target = $region40
      $region39: #{encoder_forward.1} parent=31 // pred_region
        %s6488 = sadd.s32 %s18, %s19
      $region40: #{encoder_forward.1} parent=31 // pred_fallthru
        _
    $region32: #{encoder_forward.1} parent=5 // pred_fallthru
      _
    %p6489 = scmp.le.s32.totalorder 2, %s9
    // Predicated region
    $region41: #{encoder_forward.1} parent=5 // pred_check
      %p6490 = pneg %p6489
    $region42: #{encoder_forward.1} parent=5 // pred_check_branch
      %6492 = sbr.rel (%p6490) target = $region44
    $region43: #{encoder_forward.1} parent=5 // pred_region
      %s6493 = ssub.s32 %s9, 2
      // Predicated region
      $region45: #{encoder_forward.1} parent=43 // pred_check
        %p6494 = pneg %p122
      $region46: #{encoder_forward.1} parent=43 // pred_check_branch
        %6496 = sbr.rel (%p6494) target = $region48
      $region47: #{encoder_forward.1} parent=43 // pred_region
        %s6497 = sadd.s32 %s20, %s21
        %p6498 = scmp.lt.s32.totalorder %s6497, 1
        %s6499 = scalar_select %p6498, %s6497, 1
        %s6500 = smul.addr %s6499, 12
        %s6501 = smul.addr %s6500, 8
        %s6502 = scalar_lea.vmem %s3, %s6501
      $region48: #{encoder_forward.1} parent=43 // pred_fallthru
        _
    $region44: #{encoder_forward.1} parent=5 // pred_fallthru
      _
  $region6: #{encoder_forward.1} parent=0 // loop_footer
    %s13 = sadd.s32 1, %s9
  $region7: #{encoder_forward.1} parent=0 // loop_footer_branch
    %8 = sbr.rel target = $region3
  $region8: #{encoder_forward.1} parent=0 // loop_exit
    _

</llo_original>
